<compile_context>
chip_gen: v6e
topology: v6e:2x2x1
jax: 0.10.0
libtpu: 0.0.40
codegen_flags: <defaults>
</compile_context>

<pallas_src>
import jax
import jax.numpy as jnp
from jax import lax
from jax.experimental import pallas as pl
from jax.experimental.pallas import tpu as pltpu

_EPS = 1e-5
_NEG_SLOPE = 0.01

_VMEM = pl.BlockSpec(memory_space=pltpu.MemorySpace.VMEM)
_PARAMS = pltpu.CompilerParams(vmem_limit_bytes=32 * 1024 * 1024)

_CONV_CFG = {
    "conv1": dict(k=5, stride=2, pad=2),
    "conv2": dict(k=3, stride=2, pad=1),
    "conv3": dict(k=3, stride=2, pad=1),
}


def _bn_lrelu(y, gamma, beta):
    """Training-mode BatchNorm over rows (biased var) + LeakyReLU(0.01), f32."""
    m = y.shape[0]
    mean = jnp.sum(y, axis=0, keepdims=True) * (1.0 / m)
    d = y - mean
    var = jnp.sum(d * d, axis=0, keepdims=True) * (1.0 / m)
    y = d * lax.rsqrt(var + _EPS) * gamma + beta
    return jnp.where(y > 0, y, _NEG_SLOPE * y)


# ---------------------------------------------------------------------------
# Kernel 1 (conv1/conv2/conv3): gridless matmul (bf16 -> f32) + BN + LeakyReLU.
# ---------------------------------------------------------------------------
def _conv_bn_lrelu_kernel(x_ref, w_ref, g_ref, b_ref, o_ref):
    y = jnp.dot(x_ref[...], w_ref[...], preferred_element_type=jnp.float32)
    o_ref[...] = _bn_lrelu(y, g_ref[...], b_ref[...]).astype(o_ref.dtype)


# ---------------------------------------------------------------------------
# Kernel 2: conv4 + BN + LReLU + fc1 + BN + LReLU + fc2 + BN + LReLU + fc3 +
# sigmoid, all in one kernel.  conv4's patches arrive as (4, N, K) with the
# leading axis being the spatial position p = oh*2 + ow, and fc1's weight as
# (4, 512, 256) per-position slabs, so the PyTorch NCHW Flatten is just a sum
# of four matmuls — no in-kernel reshape/transpose.
# ---------------------------------------------------------------------------
def _conv4_fc_kernel(p4_ref, w4_ref, g4_ref, b4_ref,
                     w1_ref, g1_ref, bt1_ref,
                     w2_ref, g2_ref, bt2_ref,
                     w3_ref, b3_ref, o_ref):
    # conv4: one (N, K) x (K, 512) matmul per spatial position.
    cs = [jnp.dot(p4_ref[p], w4_ref[...], preferred_element_type=jnp.float32)
          for p in range(4)]                                   # 4 x (N, 512) f32

    # BatchNorm2d(512) statistics over all 4*N rows (exact batch stats).
    m4 = 4.0 * cs[0].shape[0]
    mean = jnp.sum(cs[0] + cs[1] + cs[2] + cs[3], axis=0, keepdims=True) * (1.0 / m4)
    ds = [c - mean for c in cs]
    sq = ds[0] * ds[0] + ds[1] * ds[1] + ds[2] * ds[2] + ds[3] * ds[3]
    var = jnp.sum(sq, axis=0, keepdims=True) * (1.0 / m4)
    scale = lax.rsqrt(var + _EPS) * g4_ref[...]

    # Flatten + fc1 as a sum of per-position matmuls (absorbs NCHW Flatten).
    h = None
    for p in range(4):
        y = ds[p] * scale + b4_ref[...]
        y = jnp.where(y > 0, y, _NEG_SLOPE * y)                # LeakyReLU
        t = jnp.dot(y.astype(jnp.bfloat16), w1_ref[p],
                    preferred_element_type=jnp.float32)        # (N, 256)
        h = t if h is None else h + t

    h = _bn_lrelu(h, g1_ref[...], bt1_ref[...])                # BN1d(256)+LReLU
    h = jnp.dot(h.astype(jnp.bfloat16), w2_ref[...],
                preferred_element_type=jnp.float32)            # (N, 128)
    h = _bn_lrelu(h, g2_ref[...], bt2_ref[...])                # BN1d(128)+LReLU

    # fc3 (output width 1) on the VPU/XLU: multiply + cross-lane reduce.
    y = jnp.sum(h * w3_ref[...], axis=1, keepdims=True) + b3_ref[...]
    o_ref[...] = 1.0 / (1.0 + jnp.exp(-y))                     # sigmoid


# ---------------------------------------------------------------------------
# Glue: NHWC patch extraction (single XLA op) + layer wrappers.
# ---------------------------------------------------------------------------
def _patches_nhwc(h, k, stride, pad):
    """(N,H,W,C) -> (N,OH,OW,C*k*k), feature order channel-major then (i,j)."""
    return lax.conv_general_dilated_patches(
        h, (k, k), (stride, stride), ((pad, pad), (pad, pad)),
        dimension_numbers=("NHWC", "HWIO", "NHWC"))


def conv_bn_lrelu(h, p, k, stride, pad):
    patches = _patches_nhwc(h, k, stride, pad)                 # (N, OH, OW, K)
    n, oh, ow, kdim = patches.shape
    cout = p["w"].shape[1]
    out = pl.pallas_call(
        _conv_bn_lrelu_kernel,
        out_shape=jax.ShapeDtypeStruct((n * oh * ow, cout), jnp.bfloat16),
        in_specs=[_VMEM] * 4,
        out_specs=_VMEM,
        compiler_params=_PARAMS,
    )(patches.reshape(n * oh * ow, kdim), p["w"], p["gamma"], p["beta"])
    return out.reshape(n, oh, ow, cout)                        # stays NHWC


def conv4_fc(h, cp, fp):
    patches = _patches_nhwc(h, 3, 2, 1)                        # (N, 2, 2, 2304)
    n, oh, ow, kdim = patches.shape
    assert oh * ow == 4 and kdim == cp["w"].shape[0]
    # Rows ordered (spatial position p = oh*2+ow, batch n).
    p4 = jnp.transpose(patches, (1, 2, 0, 3)).reshape(oh * ow, n, kdim)
    return pl.pallas_call(
        _conv4_fc_kernel,
        out_shape=jax.ShapeDtypeStruct((n, 1), jnp.float32),
        in_specs=[_VMEM] * 12,
        out_specs=_VMEM,
        compiler_params=_PARAMS,
    )(p4, cp["w"], cp["gamma"], cp["beta"],
      fp["w1"], fp["g1"], fp["bt1"],
      fp["w2"], fp["g2"], fp["bt2"],
      fp["w3"], fp["b3"])


# ---------------------------------------------------------------------------
# Parameters: init in PyTorch layouts, then one-time prep to kernel layouts.
# ---------------------------------------------------------------------------
def init_params(key):
    """PyTorch layouts: Conv2d w (Cout,Cin,KH,KW); Linear w (Dout,Din)."""
    def conv_p(key, cout, cin, k):
        k1, k2 = jax.random.split(key)
        return {
            "w": jax.random.normal(k1, (cout, cin, k, k), jnp.float32) * 0.05,
            "b": jax.random.normal(k2, (cout,), jnp.float32) * 0.01,
            "gamma": jnp.ones((cout,), jnp.float32),
            "beta": jnp.zeros((cout,), jnp.float32),
        }

    def lin_p(key, dout, din, bn=True):
        k1, k2 = jax.random.split(key)
        p = {
            "w": jax.random.normal(k1, (dout, din), jnp.float32) * 0.05,
            "b": jax.random.normal(k2, (dout,), jnp.float32) * 0.01,
        }
        if bn:
            p["gamma"] = jnp.ones((dout,), jnp.float32)
            p["beta"] = jnp.zeros((dout,), jnp.float32)
        return p

    ks = jax.random.split(key, 7)
    return {
        "conv1": conv_p(ks[0], 64, 4, 5),
        "conv2": conv_p(ks[1], 128, 64, 3),
        "conv3": conv_p(ks[2], 256, 128, 3),
        "conv4": conv_p(ks[3], 512, 256, 3),
        "fc1": lin_p(ks[4], 256, 512 * 2 * 2),
        "fc2": lin_p(ks[5], 128, 256),
        "fc3": lin_p(ks[6], 1, 128, bn=False),
    }


def prepare_params(params):
    """One-time conversion from PyTorch layouts to kernel-friendly layouts.

    Conv / fc1 / fc2 biases are dropped: a per-channel constant preceding a
    training-mode BatchNorm is exactly cancelled by the mean subtraction.
    """
    kp = {}

    def conv_mat(p):
        cout = p["w"].shape[0]
        # (Cout,Cin,KH,KW) -> (Cin*KH*KW, Cout); row order (c, i, j) matches
        # conv_general_dilated_patches' channel-major feature order.
        return p["w"].reshape(cout, -1).T

    # conv1: pad Cout 64 -> 128 (zero columns) so the output store is lane-dense.
    w1 = jnp.pad(conv_mat(params["conv1"]), ((0, 0), (0, 64)))            # (100,128)
    g1 = jnp.concatenate([params["conv1"]["gamma"], jnp.ones((64,), jnp.float32)])
    b1 = jnp.concatenate([params["conv1"]["beta"], jnp.zeros((64,), jnp.float32)])
    kp["conv1"] = dict(w=w1.astype(jnp.bfloat16),
                       gamma=g1.reshape(1, -1).astype(jnp.float32),
                       beta=b1.reshape(1, -1).astype(jnp.float32))

    # conv2 consumes conv1's 128-channel padded output: append 9*64 zero K rows
    # for the (identically zero) pad channels.
    w2 = jnp.pad(conv_mat(params["conv2"]), ((0, 64 * 9), (0, 0)))        # (1152,128)
    kp["conv2"] = dict(w=w2.astype(jnp.bfloat16),
                       gamma=params["conv2"]["gamma"].reshape(1, -1).astype(jnp.float32),
                       beta=params["conv2"]["beta"].reshape(1, -1).astype(jnp.float32))

    for name in ("conv3", "conv4"):
        p = params[name]
        kp[name] = dict(w=conv_mat(p).astype(jnp.bfloat16),
                        gamma=p["gamma"].reshape(1, -1).astype(jnp.float32),
                        beta=p["beta"].reshape(1, -1).astype(jnp.float32))

    # fc1: PyTorch NCHW-flatten column index is co*4 + p (p = oh*2 + ow); split
    # into one (512, 256) slab per spatial position p for the fused kernel.
    w_fc1 = params["fc1"]["w"]                                            # (256, 2048)
    w1_slabs = jnp.transpose(w_fc1.reshape(256, 512, 4), (2, 1, 0))       # (4, 512, 256)
    kp["fc"] = dict(
        w1=w1_slabs.astype(jnp.bfloat16),
        g1=params["fc1"]["gamma"].reshape(1, -1).astype(jnp.float32),
        bt1=params["fc1"]["beta"].reshape(1, -1).astype(jnp.float32),
        w2=params["fc2"]["w"].T.astype(jnp.bfloat16),                     # (256, 128)
        g2=params["fc2"]["gamma"].reshape(1, -1).astype(jnp.float32),
        bt2=params["fc2"]["beta"].reshape(1, -1).astype(jnp.float32),
        w3=params["fc3"]["w"].astype(jnp.float32),                        # (1, 128)
        b3=params["fc3"]["b"].reshape(1, 1).astype(jnp.float32),
    )
    return kp


# ---------------------------------------------------------------------------
# Full forward
# ---------------------------------------------------------------------------
@jax.jit
def discriminator_forward(kparams, x, condition):
    # torch.cat([x, condition], 1) in NCHW, then ONE relayout to NHWC bf16.
    h = jnp.concatenate([x, condition], axis=1)                # (N, 4, 32, 32)
    h = jnp.transpose(h, (0, 2, 3, 1)).astype(jnp.bfloat16)    # (N, 32, 32, 4)

    for name in ("conv1", "conv2", "conv3"):
        cfg = _CONV_CFG[name]
        h = conv_bn_lrelu(h, kparams[name], cfg["k"], cfg["stride"], cfg["pad"])

    # conv4 + flatten + fc stack fused in one kernel.
    return conv4_fc(h, kparams["conv4"], kparams["fc"])        # (N, 1) f32


if __name__ == "__main__":
    key = jax.random.PRNGKey(0)
    kx, kc = jax.random.split(key)
    # 32x32 spatial so four stride-2 convs give 2x2 (=> Linear(512*2*2, 256)).
    x = jax.random.normal(kx, (2, 3, 32, 32), jnp.float32)
    condition = jax.random.normal(kc, (2, 1, 32, 32), jnp.float32)

    params = init_params(jax.random.PRNGKey(42))
    kparams = prepare_params(params)

    out = jax.block_until_ready(discriminator_forward(kparams, x, condition))

    assert out.shape == (2, 1), out.shape
    assert bool(jnp.all(jnp.isfinite(out)))
    assert bool(jnp.all((out >= 0.0) & (out <= 1.0)))
    print("KERNEL_OK")
</pallas_src>

<mosaic_0001>
module attributes {stable_mosaic.version = 11 : i64} {
  func.func @_conv_bn_lrelu_kernel(%arg0: memref<512x100xbf16, #tpu.memory_space<vmem>>, %arg1: memref<100x128xbf16, #tpu.memory_space<vmem>>, %arg2: memref<1x128xf32, #tpu.memory_space<vmem>>, %arg3: memref<1x128xf32, #tpu.memory_space<vmem>>, %arg4: memref<512x128xbf16, #tpu.memory_space<vmem>>) attributes {dimension_semantics = [], scalar_prefetch = 0 : i64, scratch_operands = 0 : i64, tpu.core_type = #tpu.core_type<tc>} {
    %c0 = arith.constant 0 : index
    %c0_0 = arith.constant 0 : index
    %0 = vector.load %arg0[%c0, %c0_0] : memref<512x100xbf16, #tpu.memory_space<vmem>>, vector<512x100xbf16>
    %c0_1 = arith.constant 0 : index
    %c0_2 = arith.constant 0 : index
    %1 = vector.load %arg1[%c0_1, %c0_2] : memref<100x128xbf16, #tpu.memory_space<vmem>>, vector<100x128xbf16>
    %cst = arith.constant dense<0.000000e+00> : vector<512x128xf32>
    %2 = tpu.matmul %0, %1, %cst {dimension_numbers = #tpu.dot_dimension_numbers<[1], [0], [0], [1], [0, 0, 1, 1], [], []>} : vector<512x100xbf16>, vector<100x128xbf16>, vector<512x128xf32> -> vector<512x128xf32>
    %c0_3 = arith.constant 0 : index
    %c0_4 = arith.constant 0 : index
    %3 = vector.load %arg2[%c0_3, %c0_4] : memref<1x128xf32, #tpu.memory_space<vmem>>, vector<1x128xf32>
    %c0_5 = arith.constant 0 : index
    %c0_6 = arith.constant 0 : index
    %4 = vector.load %arg3[%c0_5, %c0_6] : memref<1x128xf32, #tpu.memory_space<vmem>>, vector<1x128xf32>
    %cst_7 = arith.constant dense<0.000000e+00> : vector<128xf32>
    %5 = vector.multi_reduction <add>, %2, %cst_7 [0] : vector<512x128xf32> to vector<128xf32>
    %6 = vector.shape_cast %5 : vector<128xf32> to vector<1x128xf32>
    %cst_8 = arith.constant 0.001953125 : f32
    %7 = vector.broadcast %cst_8 : f32 to vector<1x128xf32>
    %8 = arith.mulf %6, %7 : vector<1x128xf32>
    %9 = vector.broadcast %8 : vector<1x128xf32> to vector<512x128xf32>
    %10 = arith.subf %2, %9 : vector<512x128xf32>
    %11 = arith.mulf %10, %10 : vector<512x128xf32>
    %cst_9 = arith.constant dense<0.000000e+00> : vector<128xf32>
    %12 = vector.multi_reduction <add>, %11, %cst_9 [0] : vector<512x128xf32> to vector<128xf32>
    %13 = vector.shape_cast %12 : vector<128xf32> to vector<1x128xf32>
    %cst_10 = arith.constant 0.001953125 : f32
    %14 = vector.broadcast %cst_10 : f32 to vector<1x128xf32>
    %15 = arith.mulf %13, %14 : vector<1x128xf32>
    %cst_11 = arith.constant 9.99999974E-6 : f32
    %16 = vector.broadcast %cst_11 : f32 to vector<1x128xf32>
    %17 = arith.addf %15, %16 : vector<1x128xf32>
    %18 = math.rsqrt %17 : vector<1x128xf32>
    %19 = vector.broadcast %18 : vector<1x128xf32> to vector<512x128xf32>
    %20 = arith.mulf %10, %19 : vector<512x128xf32>
    %21 = vector.broadcast %3 : vector<1x128xf32> to vector<512x128xf32>
    %22 = arith.mulf %20, %21 : vector<512x128xf32>
    %23 = vector.broadcast %4 : vector<1x128xf32> to vector<512x128xf32>
    %24 = arith.addf %22, %23 : vector<512x128xf32>
    %cst_12 = arith.constant 0.000000e+00 : f32
    %25 = vector.broadcast %cst_12 : f32 to vector<512x128xf32>
    %26 = arith.cmpf ogt, %24, %25 : vector<512x128xf32>
    %cst_13 = arith.constant 0.00999999977 : f32
    %27 = vector.broadcast %cst_13 : f32 to vector<512x128xf32>
    %28 = arith.mulf %27, %24 : vector<512x128xf32>
    %29 = arith.select %26, %24, %28 : vector<512x128xi1>, vector<512x128xf32>
    %30 = arith.truncf %29 : vector<512x128xf32> to vector<512x128xbf16>
    %c0_14 = arith.constant 0 : index
    %c0_15 = arith.constant 0 : index
    %31 = vector.load %arg4[%c0_14, %c0_15] : memref<512x128xbf16, #tpu.memory_space<vmem>>, vector<512x128xbf16>
    tpu.vector_store %arg4[%c0_14, %c0_15], %30 {strides = array<i32>} : memref<512x128xbf16, #tpu.memory_space<vmem>>, vector<512x128xbf16>,
    return
  }
}

module attributes {stable_mosaic.version = 11 : i64} {
  func.func @_conv_bn_lrelu_kernel(%arg0: memref<128x1152xbf16, #tpu.memory_space<vmem>>, %arg1: memref<1152x128xbf16, #tpu.memory_space<vmem>>, %arg2: memref<1x128xf32, #tpu.memory_space<vmem>>, %arg3: memref<1x128xf32, #tpu.memory_space<vmem>>, %arg4: memref<128x128xbf16, #tpu.memory_space<vmem>>) attributes {dimension_semantics = [], scalar_prefetch = 0 : i64, scratch_operands = 0 : i64, tpu.core_type = #tpu.core_type<tc>} {
    %c0 = arith.constant 0 : index
    %c0_0 = arith.constant 0 : index
    %0 = vector.load %arg0[%c0, %c0_0] : memref<128x1152xbf16, #tpu.memory_space<vmem>>, vector<128x1152xbf16>
    %c0_1 = arith.constant 0 : index
    %c0_2 = arith.constant 0 : index
    %1 = vector.load %arg1[%c0_1, %c0_2] : memref<1152x128xbf16, #tpu.memory_space<vmem>>, vector<1152x128xbf16>
    %cst = arith.constant dense<0.000000e+00> : vector<128x128xf32>
    %2 = tpu.matmul %0, %1, %cst {dimension_numbers = #tpu.dot_dimension_numbers<[1], [0], [0], [1], [0, 0, 1, 1], [], []>} : vector<128x1152xbf16>, vector<1152x128xbf16>, vector<128x128xf32> -> vector<128x128xf32>
    %c0_3 = arith.constant 0 : index
    %c0_4 = arith.constant 0 : index
    %3 = vector.load %arg2[%c0_3, %c0_4] : memref<1x128xf32, #tpu.memory_space<vmem>>, vector<1x128xf32>
    %c0_5 = arith.constant 0 : index
    %c0_6 = arith.constant 0 : index
    %4 = vector.load %arg3[%c0_5, %c0_6] : memref<1x128xf32, #tpu.memory_space<vmem>>, vector<1x128xf32>
    %cst_7 = arith.constant dense<0.000000e+00> : vector<128xf32>
    %5 = vector.multi_reduction <add>, %2, %cst_7 [0] : vector<128x128xf32> to vector<128xf32>
    %6 = vector.shape_cast %5 : vector<128xf32> to vector<1x128xf32>
    %cst_8 = arith.constant 7.812500e-03 : f32
    %7 = vector.broadcast %cst_8 : f32 to vector<1x128xf32>
    %8 = arith.mulf %6, %7 : vector<1x128xf32>
    %9 = vector.broadcast %8 : vector<1x128xf32> to vector<128x128xf32>
    %10 = arith.subf %2, %9 : vector<128x128xf32>
    %11 = arith.mulf %10, %10 : vector<128x128xf32>
    %cst_9 = arith.constant dense<0.000000e+00> : vector<128xf32>
    %12 = vector.multi_reduction <add>, %11, %cst_9 [0] : vector<128x128xf32> to vector<128xf32>
    %13 = vector.shape_cast %12 : vector<128xf32> to vector<1x128xf32>
    %cst_10 = arith.constant 7.812500e-03 : f32
    %14 = vector.broadcast %cst_10 : f32 to vector<1x128xf32>
    %15 = arith.mulf %13, %14 : vector<1x128xf32>
    %cst_11 = arith.constant 9.99999974E-6 : f32
    %16 = vector.broadcast %cst_11 : f32 to vector<1x128xf32>
    %17 = arith.addf %15, %16 : vector<1x128xf32>
    %18 = math.rsqrt %17 : vector<1x128xf32>
    %19 = vector.broadcast %18 : vector<1x128xf32> to vector<128x128xf32>
    %20 = arith.mulf %10, %19 : vector<128x128xf32>
    %21 = vector.broadcast %3 : vector<1x128xf32> to vector<128x128xf32>
    %22 = arith.mulf %20, %21 : vector<128x128xf32>
    %23 = vector.broadcast %4 : vector<1x128xf32> to vector<128x128xf32>
    %24 = arith.addf %22, %23 : vector<128x128xf32>
    %cst_12 = arith.constant 0.000000e+00 : f32
    %25 = vector.broadcast %cst_12 : f32 to vector<128x128xf32>
    %26 = arith.cmpf ogt, %24, %25 : vector<128x128xf32>
    %cst_13 = arith.constant 0.00999999977 : f32
    %27 = vector.broadcast %cst_13 : f32 to vector<128x128xf32>
    %28 = arith.mulf %27, %24 : vector<128x128xf32>
    %29 = arith.select %26, %24, %28 : vector<128x128xi1>, vector<128x128xf32>
    %30 = arith.truncf %29 : vector<128x128xf32> to vector<128x128xbf16>
    %c0_14 = arith.constant 0 : index
    %c0_15 = arith.constant 0 : index
    %31 = vector.load %arg4[%c0_14, %c0_15] : memref<128x128xbf16, #tpu.memory_space<vmem>>, vector<128x128xbf16>
    tpu.vector_store %arg4[%c0_14, %c0_15], %30 {strides = array<i32>} : memref<128x128xbf16, #tpu.memory_space<vmem>>, vector<128x128xbf16>,
    return
  }
}

module attributes {stable_mosaic.version = 11 : i64} {
  func.func @_conv_bn_lrelu_kernel(%arg0: memref<32x1152xbf16, #tpu.memory_space<vmem>>, %arg1: memref<1152x256xbf16, #tpu.memory_space<vmem>>, %arg2: memref<1x256xf32, #tpu.memory_space<vmem>>, %arg3: memref<1x256xf32, #tpu.memory_space<vmem>>, %arg4: memref<32x256xbf16, #tpu.memory_space<vmem>>) attributes {dimension_semantics = [], scalar_prefetch = 0 : i64, scratch_operands = 0 : i64, tpu.core_type = #tpu.core_type<tc>} {
    %c0 = arith.constant 0 : index
    %c0_0 = arith.constant 0 : index
    %0 = vector.load %arg0[%c0, %c0_0] : memref<32x1152xbf16, #tpu.memory_space<vmem>>, vector<32x1152xbf16>
    %c0_1 = arith.constant 0 : index
    %c0_2 = arith.constant 0 : index
    %1 = vector.load %arg1[%c0_1, %c0_2] : memref<1152x256xbf16, #tpu.memory_space<vmem>>, vector<1152x256xbf16>
    %cst = arith.constant dense<0.000000e+00> : vector<32x256xf32>
    %2 = tpu.matmul %0, %1, %cst {dimension_numbers = #tpu.dot_dimension_numbers<[1], [0], [0], [1], [0, 0, 1, 1], [], []>} : vector<32x1152xbf16>, vector<1152x256xbf16>, vector<32x256xf32> -> vector<32x256xf32>
    %c0_3 = arith.constant 0 : index
    %c0_4 = arith.constant 0 : index
    %3 = vector.load %arg2[%c0_3, %c0_4] : memref<1x256xf32, #tpu.memory_space<vmem>>, vector<1x256xf32>
    %c0_5 = arith.constant 0 : index
    %c0_6 = arith.constant 0 : index
    %4 = vector.load %arg3[%c0_5, %c0_6] : memref<1x256xf32, #tpu.memory_space<vmem>>, vector<1x256xf32>
    %cst_7 = arith.constant dense<0.000000e+00> : vector<256xf32>
    %5 = vector.multi_reduction <add>, %2, %cst_7 [0] : vector<32x256xf32> to vector<256xf32>
    %6 = vector.shape_cast %5 : vector<256xf32> to vector<1x256xf32>
    %cst_8 = arith.constant 3.125000e-02 : f32
    %7 = vector.broadcast %cst_8 : f32 to vector<1x256xf32>
    %8 = arith.mulf %6, %7 : vector<1x256xf32>
    %9 = vector.broadcast %8 : vector<1x256xf32> to vector<32x256xf32>
    %10 = arith.subf %2, %9 : vector<32x256xf32>
    %11 = arith.mulf %10, %10 : vector<32x256xf32>
    %cst_9 = arith.constant dense<0.000000e+00> : vector<256xf32>
    %12 = vector.multi_reduction <add>, %11, %cst_9 [0] : vector<32x256xf32> to vector<256xf32>
    %13 = vector.shape_cast %12 : vector<256xf32> to vector<1x256xf32>
    %cst_10 = arith.constant 3.125000e-02 : f32
    %14 = vector.broadcast %cst_10 : f32 to vector<1x256xf32>
    %15 = arith.mulf %13, %14 : vector<1x256xf32>
    %cst_11 = arith.constant 9.99999974E-6 : f32
    %16 = vector.broadcast %cst_11 : f32 to vector<1x256xf32>
    %17 = arith.addf %15, %16 : vector<1x256xf32>
    %18 = math.rsqrt %17 : vector<1x256xf32>
    %19 = vector.broadcast %18 : vector<1x256xf32> to vector<32x256xf32>
    %20 = arith.mulf %10, %19 : vector<32x256xf32>
    %21 = vector.broadcast %3 : vector<1x256xf32> to vector<32x256xf32>
    %22 = arith.mulf %20, %21 : vector<32x256xf32>
    %23 = vector.broadcast %4 : vector<1x256xf32> to vector<32x256xf32>
    %24 = arith.addf %22, %23 : vector<32x256xf32>
    %cst_12 = arith.constant 0.000000e+00 : f32
    %25 = vector.broadcast %cst_12 : f32 to vector<32x256xf32>
    %26 = arith.cmpf ogt, %24, %25 : vector<32x256xf32>
    %cst_13 = arith.constant 0.00999999977 : f32
    %27 = vector.broadcast %cst_13 : f32 to vector<32x256xf32>
    %28 = arith.mulf %27, %24 : vector<32x256xf32>
    %29 = arith.select %26, %24, %28 : vector<32x256xi1>, vector<32x256xf32>
    %30 = arith.truncf %29 : vector<32x256xf32> to vector<32x256xbf16>
    %c0_14 = arith.constant 0 : index
    %c0_15 = arith.constant 0 : index
    %31 = vector.load %arg4[%c0_14, %c0_15] : memref<32x256xbf16, #tpu.memory_space<vmem>>, vector<32x256xbf16>
    tpu.vector_store %arg4[%c0_14, %c0_15], %30 {strides = array<i32>} : memref<32x256xbf16, #tpu.memory_space<vmem>>, vector<32x256xbf16>,
    return
  }
}

module attributes {stable_mosaic.version = 11 : i64} {
  func.func @_conv4_fc_kernel(%arg0: memref<4x2x2304xbf16, #tpu.memory_space<vmem>>, %arg1: memref<2304x512xbf16, #tpu.memory_space<vmem>>, %arg2: memref<1x512xf32, #tpu.memory_space<vmem>>, %arg3: memref<1x512xf32, #tpu.memory_space<vmem>>, %arg4: memref<4x512x256xbf16, #tpu.memory_space<vmem>>, %arg5: memref<1x256xf32, #tpu.memory_space<vmem>>, %arg6: memref<1x256xf32, #tpu.memory_space<vmem>>, %arg7: memref<256x128xbf16, #tpu.memory_space<vmem>>, %arg8: memref<1x128xf32, #tpu.memory_space<vmem>>, %arg9: memref<1x128xf32, #tpu.memory_space<vmem>>, %arg10: memref<1x128xf32, #tpu.memory_space<vmem>>, %arg11: memref<1x1xf32, #tpu.memory_space<vmem>>, %arg12: memref<2x1xf32, #tpu.memory_space<vmem>>) attributes {dimension_semantics = [], scalar_prefetch = 0 : i64, scratch_operands = 0 : i64, tpu.core_type = #tpu.core_type<tc>} {
    %c0 = arith.constant 0 : index
    %c0_0 = arith.constant 0 : index
    %c0_1 = arith.constant 0 : index
    %0 = vector.load %arg0[%c0, %c0_0, %c0_1] : memref<4x2x2304xbf16, #tpu.memory_space<vmem>>, vector<1x2x2304xbf16>
    %1 = vector.shape_cast %0 : vector<1x2x2304xbf16> to vector<2x2304xbf16>
    %c0_2 = arith.constant 0 : index
    %c0_3 = arith.constant 0 : index
    %2 = vector.load %arg1[%c0_2, %c0_3] : memref<2304x512xbf16, #tpu.memory_space<vmem>>, vector<2304x512xbf16>
    %cst = arith.constant dense<0.000000e+00> : vector<2x512xf32>
    %3 = tpu.matmul %1, %2, %cst {dimension_numbers = #tpu.dot_dimension_numbers<[1], [0], [0], [1], [0, 0, 1, 1], [], []>} : vector<2x2304xbf16>, vector<2304x512xbf16>, vector<2x512xf32> -> vector<2x512xf32>
    %c1 = arith.constant 1 : index
    %c0_4 = arith.constant 0 : index
    %c0_5 = arith.constant 0 : index
    %4 = vector.load %arg0[%c1, %c0_4, %c0_5] : memref<4x2x2304xbf16, #tpu.memory_space<vmem>>, vector<1x2x2304xbf16>
    %5 = vector.shape_cast %4 : vector<1x2x2304xbf16> to vector<2x2304xbf16>
    %c0_6 = arith.constant 0 : index
    %c0_7 = arith.constant 0 : index
    %6 = vector.load %arg1[%c0_6, %c0_7] : memref<2304x512xbf16, #tpu.memory_space<vmem>>, vector<2304x512xbf16>
    %cst_8 = arith.constant dense<0.000000e+00> : vector<2x512xf32>
    %7 = tpu.matmul %5, %6, %cst_8 {dimension_numbers = #tpu.dot_dimension_numbers<[1], [0], [0], [1], [0, 0, 1, 1], [], []>} : vector<2x2304xbf16>, vector<2304x512xbf16>, vector<2x512xf32> -> vector<2x512xf32>
    %c2 = arith.constant 2 : index
    %c0_9 = arith.constant 0 : index
    %c0_10 = arith.constant 0 : index
    %8 = vector.load %arg0[%c2, %c0_9, %c0_10] : memref<4x2x2304xbf16, #tpu.memory_space<vmem>>, vector<1x2x2304xbf16>
    %9 = vector.shape_cast %8 : vector<1x2x2304xbf16> to vector<2x2304xbf16>
    %c0_11 = arith.constant 0 : index
    %c0_12 = arith.constant 0 : index
    %10 = vector.load %arg1[%c0_11, %c0_12] : memref<2304x512xbf16, #tpu.memory_space<vmem>>, vector<2304x512xbf16>
    %cst_13 = arith.constant dense<0.000000e+00> : vector<2x512xf32>
    %11 = tpu.matmul %9, %10, %cst_13 {dimension_numbers = #tpu.dot_dimension_numbers<[1], [0], [0], [1], [0, 0, 1, 1], [], []>} : vector<2x2304xbf16>, vector<2304x512xbf16>, vector<2x512xf32> -> vector<2x512xf32>
    %c3 = arith.constant 3 : index
    %c0_14 = arith.constant 0 : index
    %c0_15 = arith.constant 0 : index
    %12 = vector.load %arg0[%c3, %c0_14, %c0_15] : memref<4x2x2304xbf16, #tpu.memory_space<vmem>>, vector<1x2x2304xbf16>
    %13 = vector.shape_cast %12 : vector<1x2x2304xbf16> to vector<2x2304xbf16>
    %c0_16 = arith.constant 0 : index
    %c0_17 = arith.constant 0 : index
    %14 = vector.load %arg1[%c0_16, %c0_17] : memref<2304x512xbf16, #tpu.memory_space<vmem>>, vector<2304x512xbf16>
    %cst_18 = arith.constant dense<0.000000e+00> : vector<2x512xf32>
    %15 = tpu.matmul %13, %14, %cst_18 {dimension_numbers = #tpu.dot_dimension_numbers<[1], [0], [0], [1], [0, 0, 1, 1], [], []>} : vector<2x2304xbf16>, vector<2304x512xbf16>, vector<2x512xf32> -> vector<2x512xf32>
    %16 = arith.addf %3, %7 : vector<2x512xf32>
    %17 = arith.addf %16, %11 : vector<2x512xf32>
    %18 = arith.addf %17, %15 : vector<2x512xf32>
    %cst_19 = arith.constant dense<0.000000e+00> : vector<512xf32>
    %19 = vector.multi_reduction <add>, %18, %cst_19 [0] : vector<2x512xf32> to vector<512xf32>
    %20 = vector.shape_cast %19 : vector<512xf32> to vector<1x512xf32>
    %cst_20 = arith.constant 1.250000e-01 : f32
    %21 = vector.broadcast %cst_20 : f32 to vector<1x512xf32>
    %22 = arith.mulf %20, %21 : vector<1x512xf32>
    %23 = vector.broadcast %22 : vector<1x512xf32> to vector<2x512xf32>
    %24 = arith.subf %3, %23 : vector<2x512xf32>
    %25 = vector.broadcast %22 : vector<1x512xf32> to vector<2x512xf32>
    %26 = arith.subf %7, %25 : vector<2x512xf32>
    %27 = vector.broadcast %22 : vector<1x512xf32> to vector<2x512xf32>
    %28 = arith.subf %11, %27 : vector<2x512xf32>
    %29 = vector.broadcast %22 : vector<1x512xf32> to vector<2x512xf32>
    %30 = arith.subf %15, %29 : vector<2x512xf32>
    %31 = arith.mulf %24, %24 : vector<2x512xf32>
    %32 = arith.mulf %26, %26 : vector<2x512xf32>
    %33 = arith.addf %31, %32 : vector<2x512xf32>
    %34 = arith.mulf %28, %28 : vector<2x512xf32>
    %35 = arith.addf %33, %34 : vector<2x512xf32>
    %36 = arith.mulf %30, %30 : vector<2x512xf32>
    %37 = arith.addf %35, %36 : vector<2x512xf32>
    %cst_21 = arith.constant dense<0.000000e+00> : vector<512xf32>
    %38 = vector.multi_reduction <add>, %37, %cst_21 [0] : vector<2x512xf32> to vector<512xf32>
    %39 = vector.shape_cast %38 : vector<512xf32> to vector<1x512xf32>
    %cst_22 = arith.constant 1.250000e-01 : f32
    %40 = vector.broadcast %cst_22 : f32 to vector<1x512xf32>
    %41 = arith.mulf %39, %40 : vector<1x512xf32>
    %cst_23 = arith.constant 9.99999974E-6 : f32
    %42 = vector.broadcast %cst_23 : f32 to vector<1x512xf32>
    %43 = arith.addf %41, %42 : vector<1x512xf32>
    %44 = math.rsqrt %43 : vector<1x512xf32>
    %c0_24 = arith.constant 0 : index
    %c0_25 = arith.constant 0 : index
    %45 = vector.load %arg2[%c0_24, %c0_25] : memref<1x512xf32, #tpu.memory_space<vmem>>, vector<1x512xf32>
    %46 = arith.mulf %44, %45 : vector<1x512xf32>
    %47 = vector.broadcast %46 : vector<1x512xf32> to vector<2x512xf32>
    %48 = arith.mulf %24, %47 : vector<2x512xf32>
    %c0_26 = arith.constant 0 : index
    %c0_27 = arith.constant 0 : index
    %49 = vector.load %arg3[%c0_26, %c0_27] : memref<1x512xf32, #tpu.memory_space<vmem>>, vector<1x512xf32>
    %50 = vector.broadcast %49 : vector<1x512xf32> to vector<2x512xf32>
    %51 = arith.addf %48, %50 : vector<2x512xf32>
    %cst_28 = arith.constant 0.000000e+00 : f32
    %52 = vector.broadcast %cst_28 : f32 to vector<2x512xf32>
    %53 = arith.cmpf ogt, %51, %52 : vector<2x512xf32>
    %cst_29 = arith.constant 0.00999999977 : f32
    %54 = vector.broadcast %cst_29 : f32 to vector<2x512xf32>
    %55 = arith.mulf %54, %51 : vector<2x512xf32>
    %56 = arith.select %53, %51, %55 : vector<2x512xi1>, vector<2x512xf32>
    %57 = arith.truncf %56 : vector<2x512xf32> to vector<2x512xbf16>
    %c0_30 = arith.constant 0 : index
    %c0_31 = arith.constant 0 : index
    %c0_32 = arith.constant 0 : index
    %58 = vector.load %arg4[%c0_30, %c0_31, %c0_32] : memref<4x512x256xbf16, #tpu.memory_space<vmem>>, vector<1x512x256xbf16>
    %59 = vector.shape_cast %58 : vector<1x512x256xbf16> to vector<512x256xbf16>
    %cst_33 = arith.constant dense<0.000000e+00> : vector<2x256xf32>
    %60 = tpu.matmul %57, %59, %cst_33 {dimension_numbers = #tpu.dot_dimension_numbers<[1], [0], [0], [1], [0, 0, 1, 1], [], []>} : vector<2x512xbf16>, vector<512x256xbf16>, vector<2x256xf32> -> vector<2x256xf32>
    %61 = vector.broadcast %46 : vector<1x512xf32> to vector<2x512xf32>
    %62 = arith.mulf %26, %61 : vector<2x512xf32>
    %c0_34 = arith.constant 0 : index
    %c0_35 = arith.constant 0 : index
    %63 = vector.load %arg3[%c0_34, %c0_35] : memref<1x512xf32, #tpu.memory_space<vmem>>, vector<1x512xf32>
    %64 = vector.broadcast %63 : vector<1x512xf32> to vector<2x512xf32>
    %65 = arith.addf %62, %64 : vector<2x512xf32>
    %cst_36 = arith.constant 0.000000e+00 : f32
    %66 = vector.broadcast %cst_36 : f32 to vector<2x512xf32>
    %67 = arith.cmpf ogt, %65, %66 : vector<2x512xf32>
    %cst_37 = arith.constant 0.00999999977 : f32
    %68 = vector.broadcast %cst_37 : f32 to vector<2x512xf32>
    %69 = arith.mulf %68, %65 : vector<2x512xf32>
    %70 = arith.select %67, %65, %69 : vector<2x512xi1>, vector<2x512xf32>
    %71 = arith.truncf %70 : vector<2x512xf32> to vector<2x512xbf16>
    %c1_38 = arith.constant 1 : index
    %c0_39 = arith.constant 0 : index
    %c0_40 = arith.constant 0 : index
    %72 = vector.load %arg4[%c1_38, %c0_39, %c0_40] : memref<4x512x256xbf16, #tpu.memory_space<vmem>>, vector<1x512x256xbf16>
    %73 = vector.shape_cast %72 : vector<1x512x256xbf16> to vector<512x256xbf16>
    %cst_41 = arith.constant dense<0.000000e+00> : vector<2x256xf32>
    %74 = tpu.matmul %71, %73, %cst_41 {dimension_numbers = #tpu.dot_dimension_numbers<[1], [0], [0], [1], [0, 0, 1, 1], [], []>} : vector<2x512xbf16>, vector<512x256xbf16>, vector<2x256xf32> -> vector<2x256xf32>
    %75 = arith.addf %60, %74 : vector<2x256xf32>
    %76 = vector.broadcast %46 : vector<1x512xf32> to vector<2x512xf32>
    %77 = arith.mulf %28, %76 : vector<2x512xf32>
    %c0_42 = arith.constant 0 : index
    %c0_43 = arith.constant 0 : index
    %78 = vector.load %arg3[%c0_42, %c0_43] : memref<1x512xf32, #tpu.memory_space<vmem>>, vector<1x512xf32>
    %79 = vector.broadcast %78 : vector<1x512xf32> to vector<2x512xf32>
    %80 = arith.addf %77, %79 : vector<2x512xf32>
    %cst_44 = arith.constant 0.000000e+00 : f32
    %81 = vector.broadcast %cst_44 : f32 to vector<2x512xf32>
    %82 = arith.cmpf ogt, %80, %81 : vector<2x512xf32>
    %cst_45 = arith.constant 0.00999999977 : f32
    %83 = vector.broadcast %cst_45 : f32 to vector<2x512xf32>
    %84 = arith.mulf %83, %80 : vector<2x512xf32>
    %85 = arith.select %82, %80, %84 : vector<2x512xi1>, vector<2x512xf32>
    %86 = arith.truncf %85 : vector<2x512xf32> to vector<2x512xbf16>
    %c2_46 = arith.constant 2 : index
    %c0_47 = arith.constant 0 : index
    %c0_48 = arith.constant 0 : index
    %87 = vector.load %arg4[%c2_46, %c0_47, %c0_48] : memref<4x512x256xbf16, #tpu.memory_space<vmem>>, vector<1x512x256xbf16>
    %88 = vector.shape_cast %87 : vector<1x512x256xbf16> to vector<512x256xbf16>
    %cst_49 = arith.constant dense<0.000000e+00> : vector<2x256xf32>
    %89 = tpu.matmul %86, %88, %cst_49 {dimension_numbers = #tpu.dot_dimension_numbers<[1], [0], [0], [1], [0, 0, 1, 1], [], []>} : vector<2x512xbf16>, vector<512x256xbf16>, vector<2x256xf32> -> vector<2x256xf32>
    %90 = arith.addf %75, %89 : vector<2x256xf32>
    %91 = vector.broadcast %46 : vector<1x512xf32> to vector<2x512xf32>
    %92 = arith.mulf %30, %91 : vector<2x512xf32>
    %c0_50 = arith.constant 0 : index
    %c0_51 = arith.constant 0 : index
    %93 = vector.load %arg3[%c0_50, %c0_51] : memref<1x512xf32, #tpu.memory_space<vmem>>, vector<1x512xf32>
    %94 = vector.broadcast %93 : vector<1x512xf32> to vector<2x512xf32>
    %95 = arith.addf %92, %94 : vector<2x512xf32>
    %cst_52 = arith.constant 0.000000e+00 : f32
    %96 = vector.broadcast %cst_52 : f32 to vector<2x512xf32>
    %97 = arith.cmpf ogt, %95, %96 : vector<2x512xf32>
    %cst_53 = arith.constant 0.00999999977 : f32
    %98 = vector.broadcast %cst_53 : f32 to vector<2x512xf32>
    %99 = arith.mulf %98, %95 : vector<2x512xf32>
    %100 = arith.select %97, %95, %99 : vector<2x512xi1>, vector<2x512xf32>
    %101 = arith.truncf %100 : vector<2x512xf32> to vector<2x512xbf16>
    %c3_54 = arith.constant 3 : index
    %c0_55 = arith.constant 0 : index
    %c0_56 = arith.constant 0 : index
    %102 = vector.load %arg4[%c3_54, %c0_55, %c0_56] : memref<4x512x256xbf16, #tpu.memory_space<vmem>>, vector<1x512x256xbf16>
    %103 = vector.shape_cast %102 : vector<1x512x256xbf16> to vector<512x256xbf16>
    %cst_57 = arith.constant dense<0.000000e+00> : vector<2x256xf32>
    %104 = tpu.matmul %101, %103, %cst_57 {dimension_numbers = #tpu.dot_dimension_numbers<[1], [0], [0], [1], [0, 0, 1, 1], [], []>} : vector<2x512xbf16>, vector<512x256xbf16>, vector<2x256xf32> -> vector<2x256xf32>
    %105 = arith.addf %90, %104 : vector<2x256xf32>
    %c0_58 = arith.constant 0 : index
    %c0_59 = arith.constant 0 : index
    %106 = vector.load %arg5[%c0_58, %c0_59] : memref<1x256xf32, #tpu.memory_space<vmem>>, vector<1x256xf32>
    %c0_60 = arith.constant 0 : index
    %c0_61 = arith.constant 0 : index
    %107 = vector.load %arg6[%c0_60, %c0_61] : memref<1x256xf32, #tpu.memory_space<vmem>>, vector<1x256xf32>
    %cst_62 = arith.constant dense<0.000000e+00> : vector<256xf32>
    %108 = vector.multi_reduction <add>, %105, %cst_62 [0] : vector<2x256xf32> to vector<256xf32>
    %109 = vector.shape_cast %108 : vector<256xf32> to vector<1x256xf32>
    %cst_63 = arith.constant 5.000000e-01 : f32
    %110 = vector.broadcast %cst_63 : f32 to vector<1x256xf32>
    %111 = arith.mulf %109, %110 : vector<1x256xf32>
    %112 = vector.broadcast %111 : vector<1x256xf32> to vector<2x256xf32>
    %113 = arith.subf %105, %112 : vector<2x256xf32>
    %114 = arith.mulf %113, %113 : vector<2x256xf32>
    %cst_64 = arith.constant dense<0.000000e+00> : vector<256xf32>
    %115 = vector.multi_reduction <add>, %114, %cst_64 [0] : vector<2x256xf32> to vector<256xf32>
    %116 = vector.shape_cast %115 : vector<256xf32> to vector<1x256xf32>
    %cst_65 = arith.constant 5.000000e-01 : f32
    %117 = vector.broadcast %cst_65 : f32 to vector<1x256xf32>
    %118 = arith.mulf %116, %117 : vector<1x256xf32>
    %cst_66 = arith.constant 9.99999974E-6 : f32
    %119 = vector.broadcast %cst_66 : f32 to vector<1x256xf32>
    %120 = arith.addf %118, %119 : vector<1x256xf32>
    %121 = math.rsqrt %120 : vector<1x256xf32>
    %122 = vector.broadcast %121 : vector<1x256xf32> to vector<2x256xf32>
    %123 = arith.mulf %113, %122 : vector<2x256xf32>
    %124 = vector.broadcast %106 : vector<1x256xf32> to vector<2x256xf32>
    %125 = arith.mulf %123, %124 : vector<2x256xf32>
    %126 = vector.broadcast %107 : vector<1x256xf32> to vector<2x256xf32>
    %127 = arith.addf %125, %126 : vector<2x256xf32>
    %cst_67 = arith.constant 0.000000e+00 : f32
    %128 = vector.broadcast %cst_67 : f32 to vector<2x256xf32>
    %129 = arith.cmpf ogt, %127, %128 : vector<2x256xf32>
    %cst_68 = arith.constant 0.00999999977 : f32
    %130 = vector.broadcast %cst_68 : f32 to vector<2x256xf32>
    %131 = arith.mulf %130, %127 : vector<2x256xf32>
    %132 = arith.select %129, %127, %131 : vector<2x256xi1>, vector<2x256xf32>
    %133 = arith.truncf %132 : vector<2x256xf32> to vector<2x256xbf16>
    %c0_69 = arith.constant 0 : index
    %c0_70 = arith.constant 0 : index
    %134 = vector.load %arg7[%c0_69, %c0_70] : memref<256x128xbf16, #tpu.memory_space<vmem>>, vector<256x128xbf16>
    %cst_71 = arith.constant dense<0.000000e+00> : vector<2x128xf32>
    %135 = tpu.matmul %133, %134, %cst_71 {dimension_numbers = #tpu.dot_dimension_numbers<[1], [0], [0], [1], [0, 0, 1, 1], [], []>} : vector<2x256xbf16>, vector<256x128xbf16>, vector<2x128xf32> -> vector<2x128xf32>
    %c0_72 = arith.constant 0 : index
    %c0_73 = arith.constant 0 : index
    %136 = vector.load %arg8[%c0_72, %c0_73] : memref<1x128xf32, #tpu.memory_space<vmem>>, vector<1x128xf32>
    %c0_74 = arith.constant 0 : index
    %c0_75 = arith.constant 0 : index
    %137 = vector.load %arg9[%c0_74, %c0_75] : memref<1x128xf32, #tpu.memory_space<vmem>>, vector<1x128xf32>
    %cst_76 = arith.constant dense<0.000000e+00> : vector<128xf32>
    %138 = vector.multi_reduction <add>, %135, %cst_76 [0] : vector<2x128xf32> to vector<128xf32>
    %139 = vector.shape_cast %138 : vector<128xf32> to vector<1x128xf32>
    %cst_77 = arith.constant 5.000000e-01 : f32
    %140 = vector.broadcast %cst_77 : f32 to vector<1x128xf32>
    %141 = arith.mulf %139, %140 : vector<1x128xf32>
    %142 = vector.broadcast %141 : vector<1x128xf32> to vector<2x128xf32>
    %143 = arith.subf %135, %142 : vector<2x128xf32>
    %144 = arith.mulf %143, %143 : vector<2x128xf32>
    %cst_78 = arith.constant dense<0.000000e+00> : vector<128xf32>
    %145 = vector.multi_reduction <add>, %144, %cst_78 [0] : vector<2x128xf32> to vector<128xf32>
    %146 = vector.shape_cast %145 : vector<128xf32> to vector<1x128xf32>
    %cst_79 = arith.constant 5.000000e-01 : f32
    %147 = vector.broadcast %cst_79 : f32 to vector<1x128xf32>
    %148 = arith.mulf %146, %147 : vector<1x128xf32>
    %cst_80 = arith.constant 9.99999974E-6 : f32
    %149 = vector.broadcast %cst_80 : f32 to vector<1x128xf32>
    %150 = arith.addf %148, %149 : vector<1x128xf32>
    %151 = math.rsqrt %150 : vector<1x128xf32>
    %152 = vector.broadcast %151 : vector<1x128xf32> to vector<2x128xf32>
    %153 = arith.mulf %143, %152 : vector<2x128xf32>
    %154 = vector.broadcast %136 : vector<1x128xf32> to vector<2x128xf32>
    %155 = arith.mulf %153, %154 : vector<2x128xf32>
    %156 = vector.broadcast %137 : vector<1x128xf32> to vector<2x128xf32>
    %157 = arith.addf %155, %156 : vector<2x128xf32>
    %cst_81 = arith.constant 0.000000e+00 : f32
    %158 = vector.broadcast %cst_81 : f32 to vector<2x128xf32>
    %159 = arith.cmpf ogt, %157, %158 : vector<2x128xf32>
    %cst_82 = arith.constant 0.00999999977 : f32
    %160 = vector.broadcast %cst_82 : f32 to vector<2x128xf32>
    %161 = arith.mulf %160, %157 : vector<2x128xf32>
    %162 = arith.select %159, %157, %161 : vector<2x128xi1>, vector<2x128xf32>
    %c0_83 = arith.constant 0 : index
    %c0_84 = arith.constant 0 : index
    %163 = vector.load %arg10[%c0_83, %c0_84] : memref<1x128xf32, #tpu.memory_space<vmem>>, vector<1x128xf32>
    %164 = vector.broadcast %163 : vector<1x128xf32> to vector<2x128xf32>
    %165 = arith.mulf %162, %164 : vector<2x128xf32>
    %cst_85 = arith.constant dense<0.000000e+00> : vector<2xf32>
    %166 = vector.multi_reduction <add>, %165, %cst_85 [1] : vector<2x128xf32> to vector<2xf32>
    %167 = vector.shape_cast %166 : vector<2xf32> to vector<2x1xf32>
    %c0_86 = arith.constant 0 : index
    %c0_87 = arith.constant 0 : index
    %168 = vector.load %arg11[%c0_86, %c0_87] : memref<1x1xf32, #tpu.memory_space<vmem>>, vector<1x1xf32>
    %169 = vector.broadcast %168 : vector<1x1xf32> to vector<2x1xf32>
    %170 = arith.addf %167, %169 : vector<2x1xf32>
    %cst_88 = arith.constant 0.000000e+00 : f32
    %171 = vector.broadcast %cst_88 : f32 to vector<2x1xf32>
    %172 = arith.subf %171, %170 : vector<2x1xf32>
    %173 = math.exp %172 : vector<2x1xf32>
    %cst_89 = arith.constant 1.000000e+00 : f32
    %174 = vector.broadcast %cst_89 : f32 to vector<2x1xf32>
    %175 = arith.addf %174, %173 : vector<2x1xf32>
    %cst_90 = arith.constant 1.000000e+00 : f32
    %176 = vector.broadcast %cst_90 : f32 to vector<2x1xf32>
    %177 = arith.divf %176, %175 : vector<2x1xf32>
    %c0_91 = arith.constant 0 : index
    %c0_92 = arith.constant 0 : index
    %178 = vector.load %arg12[%c0_91, %c0_92] : memref<2x1xf32, #tpu.memory_space<vmem>>, vector<2x1xf32>
    tpu.vector_store %arg12[%c0_91, %c0_92], %177 {strides = array<i32>} : memref<2x1xf32, #tpu.memory_space<vmem>>, vector<2x1xf32>,
    return
  }
}

</mosaic_0001>

<llo_original>
// kernel: discriminator_forward.4
$region0: #{discriminator_forward.4}
  #allocation0 [shape = 'u32[]', space=smem, size = 0x4, offset = 0x4, fixed_abs, tag = 'smem constant byte address 0x4 - core index']
  #allocation1 [shape = 'u32[144,128]{1,0:T(1,128)}', space=vmem, size = 0x12000, scoped, tag = 'internal scratch']
  %s0 = inlined_call_operand.vmem [shape: bf16[512,100], index: 0, kind: input, shape index: {}]
  %s1 = inlined_call_operand.hbm [shape: bf16[100,128], index: 1, kind: input, shape index: {}]
  %s2 = inlined_call_operand.hbm [shape: f32[1,128], index: 2, kind: input, shape index: {}]
  %s3 = inlined_call_operand.hbm [shape: f32[1,128], index: 3, kind: input, shape index: {}]
  %s4 = inlined_call_operand.vmem [shape: bf16[512,128], index: 4, kind: output, shape index: {}]
  %s5 = sld [smem:[#allocation0]]
  $region38: #{discriminator_forward.4} parent=0
    _
  %s7 = ssub.s32 1, %s5
  %s8 = scalar_select 0, %s7, %s5
  $region1: #{discriminator_forward.4} parent=0
    #allocation2 [shape = 'u8[26624]{0}', space=vmem, size = 0x6800, scoped, tag = 'input window, operand 1, single buffered']
    #allocation3 [shape = 's32[1]{0}', space=sflag, size = 0x4, scoped, tag = 'scoped memory for discriminator_forward.4']
    #allocation4 [shape = 'u8[512]{0}', space=vmem, size = 0x400, scoped, tag = 'input window, operand 2, single buffered']
    #allocation5 [shape = 's32[1]{0}', space=sflag, size = 0x4, scoped, tag = 'scoped memory for discriminator_forward.4']
    #allocation6 [shape = 'u8[512]{0}', space=vmem, size = 0x400, scoped, tag = 'input window, operand 3, single buffered']
    %9 = vsyncpa [#allocation3], 0
    %10 = vsyncpa [#allocation5], 0
    // Predicated region
    $region2: #{discriminator_forward.4} parent=1 // pred_check
      _
    $region3: #{discriminator_forward.4} parent=1 // pred_check_branch
      %12 = sbr.rel (0) target = $region5
    $region4: #{discriminator_forward.4} parent=1 // pred_region
      _
    $region5: #{discriminator_forward.4} parent=1 // pred_fallthru
      _
    // Predicated region
    $region6: #{discriminator_forward.4} parent=1 // pred_check
      _
    $region7: #{discriminator_forward.4} parent=1 // pred_check_branch
      %14 = sbr.rel (0) target = $region9
    $region8: #{discriminator_forward.4} parent=1 // pred_region
      %s16 = ssub.s32 832, 832
      %17 = vsyncadd [#allocation3], %s16
      %s18 = sshll.u32 [#allocation2], 4
      %s19 = int_to_ptr.vmem [resolvable:$true] %s18
      %24 = dma.hbm_to_vmem [thread:$0]  %s1, 832, %s19, [#allocation3], 64, 64, 4
    $region9: #{discriminator_forward.4} parent=1 // pred_fallthru
      _
    // Predicated region
    $region10: #{discriminator_forward.4} parent=1 // pred_check
      _
    $region11: #{discriminator_forward.4} parent=1 // pred_check_branch
      %26 = sbr.rel (0) target = $region13
    $region12: #{discriminator_forward.4} parent=1 // pred_region
      %s28 = ssub.s32 16, 16
      %29 = vsyncadd [#allocation5], %s28
      %s31 = sshll.u32 [#allocation4], 4
      %s32 = int_to_ptr.vmem [resolvable:$true] %s31
      %34 = dma.hbm_to_vmem [thread:$0]  %s2, 16, %s32, [#allocation5]
    $region13: #{discriminator_forward.4} parent=1 // pred_fallthru
      _
    // Predicated region
    $region14: #{discriminator_forward.4} parent=1 // pred_check
      _
    $region15: #{discriminator_forward.4} parent=1 // pred_check_branch
      %36 = sbr.rel (0) target = $region17
    $region16: #{discriminator_forward.4} parent=1 // pred_region
      %s38 = ssub.s32 16, 16
      %39 = vsyncadd [#allocation5], %s38
      %s41 = sshll.u32 [#allocation6], 4
      %s42 = int_to_ptr.vmem [resolvable:$true] %s41
      %44 = dma.hbm_to_vmem [thread:$0]  %s3, 16, %s42, [#allocation5]
    $region17: #{discriminator_forward.4} parent=1 // pred_fallthru
      _
    // Predicated region
    $region18: #{discriminator_forward.4} parent=1 // pred_check
      _
    $region19: #{discriminator_forward.4} parent=1 // pred_check_branch
      %46 = sbr.rel (0) target = $region21
    $region20: #{discriminator_forward.4} parent=1 // pred_region
      %47 = dma.done [#allocation3], 832
    $region21: #{discriminator_forward.4} parent=1 // pred_fallthru
      _
    // Predicated region
    $region22: #{discriminator_forward.4} parent=1 // pred_check
      _
    $region23: #{discriminator_forward.4} parent=1 // pred_check_branch
      %49 = sbr.rel (0) target = $region25
    $region24: #{discriminator_forward.4} parent=1 // pred_region
      %50 = dma.done [#allocation5], 16
    $region25: #{discriminator_forward.4} parent=1 // pred_fallthru
      _
    // Predicated region
    $region26: #{discriminator_forward.4} parent=1 // pred_check
      _
    $region27: #{discriminator_forward.4} parent=1 // pred_check_branch
      %52 = sbr.rel (0) target = $region29
    $region28: #{discriminator_forward.4} parent=1 // pred_region
      %53 = dma.done [#allocation5], 16
    $region29: #{discriminator_forward.4} parent=1 // pred_fallthru
      _
    %v55 = vld [vmem:[%s0] sm:$0xf]
    %v56 = vld [vmem:[%s0 + $0x4] sm:$0xf]
    %v57 = vld [vmem:[%s0 + $0x8] sm:$0xf]
    %v58 = vld [vmem:[%s0 + $0xc] sm:$0xf]
    %v59 = vld [vmem:[%s0 + $0x10] sm:$0xf]
    %v60 = vld [vmem:[%s0 + $0x14] sm:$0xf]
    %v61 = vld [vmem:[%s0 + $0x18] sm:$0xf]
    %v62 = vld [vmem:[%s0 + $0x1c] sm:$0xf]
    %v63 = vld [vmem:[%s0 + $0x20] sm:$0xf]
    %v64 = vld [vmem:[%s0 + $0x24] sm:$0xf]
    %v65 = vld [vmem:[%s0 + $0x28] sm:$0xf]
    %v66 = vld [vmem:[%s0 + $0x2c] sm:$0xf]
    %v67 = vld [vmem:[%s0 + $0x30] sm:$0xf]
    %v68 = vld [vmem:[%s0 + $0x34] sm:$0xf]
    %v69 = vld [vmem:[%s0 + $0x38] sm:$0xf]
    %v70 = vld [vmem:[%s0 + $0x3c] sm:$0xf]
    %v71 = vld [vmem:[%s0 + $0x40] sm:$0xf]
    %v72 = vld [vmem:[%s0 + $0x44] sm:$0xf]
    %v73 = vld [vmem:[%s0 + $0x48] sm:$0xf]
    %v74 = vld [vmem:[%s0 + $0x4c] sm:$0xf]
    %v75 = vld [vmem:[%s0 + $0x50] sm:$0xf]
    %v76 = vld [vmem:[%s0 + $0x54] sm:$0xf]
    %v77 = vld [vmem:[%s0 + $0x58] sm:$0xf]
    %v78 = vld [vmem:[%s0 + $0x5c] sm:$0xf]
    %v79 = vld [vmem:[%s0 + $0x60] sm:$0xf]
    %v80 = vld [vmem:[%s0 + $0x64] sm:$0xf]
    %v81 = vld [vmem:[%s0 + $0x68] sm:$0xf]
    %v82 = vld [vmem:[%s0 + $0x6c] sm:$0xf]
    %v83 = vld [vmem:[%s0 + $0x70] sm:$0xf]
    %v84 = vld [vmem:[%s0 + $0x74] sm:$0xf]
    %v85 = vld [vmem:[%s0 + $0x78] sm:$0xf]
    %v86 = vld [vmem:[%s0 + $0x7c] sm:$0xf]
    %v87 = vld [vmem:[%s0 + $0x80] sm:$0xf]
    %v88 = vld [vmem:[%s0 + $0x84] sm:$0xf]
    %v89 = vld [vmem:[%s0 + $0x88] sm:$0xf]
    %v90 = vld [vmem:[%s0 + $0x8c] sm:$0xf]
    %v91 = vld [vmem:[%s0 + $0x90] sm:$0xf]
    %v92 = vld [vmem:[%s0 + $0x94] sm:$0xf]
    %v93 = vld [vmem:[%s0 + $0x98] sm:$0xf]
    %v94 = vld [vmem:[%s0 + $0x9c] sm:$0xf]
    %v95 = vld [vmem:[%s0 + $0xa0] sm:$0xf]
    %v96 = vld [vmem:[%s0 + $0xa4] sm:$0xf]
    %v97 = vld [vmem:[%s0 + $0xa8] sm:$0xf]
    %v98 = vld [vmem:[%s0 + $0xac] sm:$0xf]
    %v99 = vld [vmem:[%s0 + $0xb0] sm:$0xf]
    %v100 = vld [vmem:[%s0 + $0xb4] sm:$0xf]
    %v101 = vld [vmem:[%s0 + $0xb8] sm:$0xf]
    %v102 = vld [vmem:[%s0 + $0xbc] sm:$0xf]
    %v103 = vld [vmem:[%s0 + $0xc0] sm:$0xf]
    %v104 = vld [vmem:[%s0 + $0xc4] sm:$0xf]
    %v105 = vld [vmem:[%s0 + $0xc8] sm:$0xf]
    %v106 = vld [vmem:[%s0 + $0xcc] sm:$0xf]
    %v107 = vld [vmem:[%s0 + $0xd0] sm:$0xf]
    %v108 = vld [vmem:[%s0 + $0xd4] sm:$0xf]
    %v109 = vld [vmem:[%s0 + $0xd8] sm:$0xf]
    %v110 = vld [vmem:[%s0 + $0xdc] sm:$0xf]
    %v111 = vld [vmem:[%s0 + $0xe0] sm:$0xf]
    %v112 = vld [vmem:[%s0 + $0xe4] sm:$0xf]
    %v113 = vld [vmem:[%s0 + $0xe8] sm:$0xf]
    %v114 = vld [vmem:[%s0 + $0xec] sm:$0xf]
    %v115 = vld [vmem:[%s0 + $0xf0] sm:$0xf]
    %v116 = vld [vmem:[%s0 + $0xf4] sm:$0xf]
    %v117 = vld [vmem:[%s0 + $0xf8] sm:$0xf]
    %v118 = vld [vmem:[%s0 + $0xfc] sm:$0xf]
    %v119 = vld [vmem:[#allocation2] sm:$0xf]
    %v120 = vld [vmem:[#allocation2 + $0x4] sm:$0xf]
    %v121 = vld [vmem:[#allocation2 + $0x8] sm:$0xf]
    %v122 = vld [vmem:[#allocation2 + $0xc] sm:$0xf]
    %v123 = vld [vmem:[#allocation2 + $0x10] sm:$0xf]
    %v124 = vld [vmem:[#allocation2 + $0x14] sm:$0xf]
    %v125 = vld [vmem:[#allocation2 + $0x18] sm:$0xf]
    %v126 = vld [vmem:[#allocation2 + $0x1c] sm:$0xf]
    %v127 = vld [vmem:[#allocation2 + $0x20] sm:$0xf]
    %v128 = vld [vmem:[#allocation2 + $0x24] sm:$0xf]
    %v129 = vld [vmem:[#allocation2 + $0x28] sm:$0xf]
    %v130 = vld [vmem:[#allocation2 + $0x2c] sm:$0xf]
    %v131 = vld [vmem:[#allocation2 + $0x30] sm:$0x3]
    %v196 = vunpack.c.l.b16 %v55
    %v197 = vunpack.c.l.b16 %v56
    %v198 = vunpack.c.l.b16 %v57
    %v199 = vunpack.c.l.b16 %v58
    %v200 = vunpack.c.l.b16 %v59
    %v201 = vunpack.c.l.b16 %v60
    %v202 = vunpack.c.l.b16 %v61
    %v203 = vunpack.c.l.b16 %v62
    %v204 = vunpack.c.l.b16 %v63
    %v205 = vunpack.c.l.b16 %v64
    %v206 = vunpack.c.l.b16 %v65
    %v207 = vunpack.c.l.b16 %v66
    %v208 = vunpack.c.l.b16 %v67
    %v209 = vunpack.c.l.b16 %v68
    %v210 = vunpack.c.l.b16 %v69
    %v211 = vunpack.c.l.b16 %v70
    %v212 = vunpack.c.l.b16 %v71
    %v213 = vunpack.c.l.b16 %v72
    %v214 = vunpack.c.l.b16 %v73
    %v215 = vunpack.c.l.b16 %v74
    %v216 = vunpack.c.l.b16 %v75
    %v217 = vunpack.c.l.b16 %v76
    %v218 = vunpack.c.l.b16 %v77
    %v219 = vunpack.c.l.b16 %v78
    %v220 = vunpack.c.l.b16 %v79
    %v221 = vunpack.c.l.b16 %v80
    %v222 = vunpack.c.l.b16 %v81
    %v223 = vunpack.c.l.b16 %v82
    %v224 = vunpack.c.l.b16 %v83
    %v225 = vunpack.c.l.b16 %v84
    %v226 = vunpack.c.l.b16 %v85
    %v227 = vunpack.c.l.b16 %v86
    %v228 = vunpack.c.l.b16 %v87
    %v229 = vunpack.c.l.b16 %v88
    %v230 = vunpack.c.l.b16 %v89
    %v231 = vunpack.c.l.b16 %v90
    %v232 = vunpack.c.l.b16 %v91
    %v233 = vunpack.c.l.b16 %v92
    %v234 = vunpack.c.l.b16 %v93
    %v235 = vunpack.c.l.b16 %v94
    %v236 = vunpack.c.l.b16 %v95
    %v237 = vunpack.c.l.b16 %v96
    %v238 = vunpack.c.l.b16 %v97
    %v239 = vunpack.c.l.b16 %v98
    %v240 = vunpack.c.l.b16 %v99
    %v241 = vunpack.c.l.b16 %v100
    %v242 = vunpack.c.l.b16 %v101
    %v243 = vunpack.c.l.b16 %v102
    %v244 = vunpack.c.l.b16 %v103
    %v245 = vunpack.c.l.b16 %v104
    %v246 = vunpack.c.l.b16 %v105
    %v247 = vunpack.c.l.b16 %v106
    %v248 = vunpack.c.l.b16 %v107
    %v249 = vunpack.c.l.b16 %v108
    %v250 = vunpack.c.l.b16 %v109
    %v251 = vunpack.c.l.b16 %v110
    %v252 = vunpack.c.l.b16 %v111
    %v253 = vunpack.c.l.b16 %v112
    %v254 = vunpack.c.l.b16 %v113
    %v255 = vunpack.c.l.b16 %v114
    %v256 = vunpack.c.l.b16 %v115
    %v257 = vunpack.c.l.b16 %v116
    %v258 = vunpack.c.l.b16 %v117
    %v259 = vunpack.c.l.b16 %v118
    %v260 = vpack.c.b16 %v197, %v196
    %v261 = vpack.c.b16 %v199, %v198
    %v262 = vpack.c.b16 %v201, %v200
    %v263 = vpack.c.b16 %v203, %v202
    %v264 = vpack.c.b16 %v205, %v204
    %v265 = vpack.c.b16 %v207, %v206
    %v266 = vpack.c.b16 %v209, %v208
    %v267 = vpack.c.b16 %v211, %v210
    %v268 = vpack.c.b16 %v213, %v212
    %v269 = vpack.c.b16 %v215, %v214
    %v270 = vpack.c.b16 %v217, %v216
    %v271 = vpack.c.b16 %v219, %v218
    %v272 = vpack.c.b16 %v221, %v220
    %v273 = vpack.c.b16 %v223, %v222
    %v274 = vpack.c.b16 %v225, %v224
    %v275 = vpack.c.b16 %v227, %v226
    %v276 = vpack.c.b16 %v229, %v228
    %v277 = vpack.c.b16 %v231, %v230
    %v278 = vpack.c.b16 %v233, %v232
    %v279 = vpack.c.b16 %v235, %v234
    %v280 = vpack.c.b16 %v237, %v236
    %v281 = vpack.c.b16 %v239, %v238
    %v282 = vpack.c.b16 %v241, %v240
    %v283 = vpack.c.b16 %v243, %v242
    %v284 = vpack.c.b16 %v245, %v244
    %v285 = vpack.c.b16 %v247, %v246
    %v286 = vpack.c.b16 %v249, %v248
    %v287 = vpack.c.b16 %v251, %v250
    %v288 = vpack.c.b16 %v253, %v252
    %v289 = vpack.c.b16 %v255, %v254
    %v290 = vpack.c.b16 %v257, %v256
    %v291 = vpack.c.b16 %v259, %v258
    %v305 = vunpack.c.l.b16 %v119
    %v306 = vunpack.c.l.b16 %v120
    %v307 = vunpack.c.l.b16 %v121
    %v308 = vunpack.c.l.b16 %v122
    %v309 = vunpack.c.l.b16 %v123
    %v310 = vunpack.c.l.b16 %v124
    %v311 = vunpack.c.l.b16 %v125
    %v312 = vunpack.c.l.b16 %v126
    %v313 = vunpack.c.l.b16 %v127
    %v314 = vunpack.c.l.b16 %v128
    %v315 = vunpack.c.l.b16 %v129
    %v316 = vunpack.c.l.b16 %v130
    %v317 = vunpack.c.l.b16 %v131
    %v318 = vpack.c.b16 %v306, %v305
    %v319 = vpack.c.b16 %v308, %v307
    %v320 = vpack.c.b16 %v310, %v309
    %v321 = vpack.c.b16 %v312, %v311
    %v322 = vpack.c.b16 %v314, %v313
    %v323 = vpack.c.b16 %v316, %v315
    %v324 = vpack.c.b16 %v317, %v317
    %vm331 = vcmask 818176
    %v333 = vsel %vm331, %v260, 0
    %v336 = vsel %vm331, %v261, 0
    %v339 = vsel %vm331, %v262, 0
    %v342 = vsel %vm331, %v263, 0
    %v345 = vsel %vm331, %v264, 0
    %v348 = vsel %vm331, %v265, 0
    %v351 = vsel %vm331, %v266, 0
    %v354 = vsel %vm331, %v267, 0
    %v357 = vsel %vm331, %v268, 0
    %v360 = vsel %vm331, %v269, 0
    %v363 = vsel %vm331, %v270, 0
    %v366 = vsel %vm331, %v271, 0
    %v369 = vsel %vm331, %v272, 0
    %v372 = vsel %vm331, %v273, 0
    %v375 = vsel %vm331, %v274, 0
    %v378 = vsel %vm331, %v275, 0
    %v381 = vsel %vm331, %v276, 0
    %v384 = vsel %vm331, %v277, 0
    %v387 = vsel %vm331, %v278, 0
    %v390 = vsel %vm331, %v279, 0
    %v393 = vsel %vm331, %v280, 0
    %v396 = vsel %vm331, %v281, 0
    %v399 = vsel %vm331, %v282, 0
    %v402 = vsel %vm331, %v283, 0
    %v405 = vsel %vm331, %v284, 0
    %v408 = vsel %vm331, %v285, 0
    %v411 = vsel %vm331, %v286, 0
    %v414 = vsel %vm331, %v287, 0
    %v417 = vsel %vm331, %v288, 0
    %v420 = vsel %vm331, %v289, 0
    %v423 = vsel %vm331, %v290, 0
    %v426 = vsel %vm331, %v291, 0
    %vm428 = vcmask 1041408
    %v430 = vsel %vm428, %v324, 0
    %432 = vmatprep.subr.bf16.mxu0 0
    %433 = vmatpush1.bf16.msra.mxu0 0
    %434 = vmatprep.subr.bf16.mxu0 0
    %435 = vmatpush1.bf16.msra.mxu0 %v430
    %436 = vmatprep.subr.bf16.mxu0 0
    %437 = vmatpush1.bf16.msra.mxu0 %v323
    %438 = vmatprep.subr.bf16.mxu0 0
    %439 = vmatpush1.bf16.msra.mxu0 %v322
    %440 = vmatprep.subr.bf16.mxu0 0
    %441 = vmatpush1.bf16.msra.mxu0 %v321
    %442 = vmatprep.subr.bf16.mxu0 0
    %443 = vmatpush1.bf16.msra.mxu0 %v320
    %444 = vmatprep.subr.bf16.mxu0 0
    %445 = vmatpush1.bf16.msra.mxu0 %v319
    %446 = vmatprep.subr.bf16.mxu0 0
    %447 = vmatpush1.bf16.msra.mxu0 %v318
    %448 = vmatprep.subr.bf16.mxu0 0
    %449 = vmatpush2.bf16.msra.mxu0 0
    %450 = vmatprep.subr.bf16.mxu0 0
    %451 = vmatpush2.bf16.msra.mxu0 0
    %452 = vmatprep.subr.bf16.mxu0 0
    %453 = vmatpush2.bf16.msra.mxu0 0
    %454 = vmatprep.subr.bf16.mxu0 0
    %455 = vmatpush2.bf16.msra.mxu0 0
    %456 = vmatprep.subr.bf16.mxu0 0
    %457 = vmatpush2.bf16.msra.mxu0 0
    %458 = vmatprep.subr.bf16.mxu0 0
    %459 = vmatpush2.bf16.msra.mxu0 0
    %460 = vmatprep.subr.bf16.mxu0 0
    %461 = vmatpush2.bf16.msra.mxu0 0
    %462 = vmatprep.subr.bf16.mxu0 0
    %463 = vmatpush2.bf16.msra.mxu0 0
    %464 = vmatprep.mubr.bf16.mxu0 0
    %465 = vmatmul.mubr.bf16.gmra.mxu0 %v333
    %v466 = vpop.f32.mrf.mxu0
    %v467 = vadd.f32 0.0, %v466
    %v468 = vpop.f32.mrf.mxu0
    %v469 = vpop.f32.mrf.mxu0
    %v470 = vadd.f32 0.0, %v469
    %v471 = vpop.f32.mrf.mxu0
    %472 = vmatprep.mubr.bf16.mxu0 0
    %473 = vmatmul.mubr.bf16.gmra.mxu0 %v336
    %v474 = vpop.f32.mrf.mxu0
    %v475 = vadd.f32 0.0, %v474
    %v476 = vpop.f32.mrf.mxu0
    %v477 = vpop.f32.mrf.mxu0
    %v478 = vadd.f32 0.0, %v477
    %v479 = vpop.f32.mrf.mxu0
    %480 = vmatprep.mubr.bf16.mxu0 0
    %481 = vmatmul.mubr.bf16.gmra.mxu0 %v339
    %v482 = vpop.f32.mrf.mxu0
    %v483 = vadd.f32 0.0, %v482
    %v484 = vpop.f32.mrf.mxu0
    %v485 = vpop.f32.mrf.mxu0
    %v486 = vadd.f32 0.0, %v485
    %v487 = vpop.f32.mrf.mxu0
    %488 = vmatprep.mubr.bf16.mxu0 0
    %489 = vmatmul.mubr.bf16.gmra.mxu0 %v342
    %v490 = vpop.f32.mrf.mxu0
    %v491 = vadd.f32 0.0, %v490
    %v492 = vpop.f32.mrf.mxu0
    %v493 = vpop.f32.mrf.mxu0
    %v494 = vadd.f32 0.0, %v493
    %v495 = vpop.f32.mrf.mxu0
    %496 = vmatprep.mubr.bf16.mxu0 0
    %497 = vmatmul.mubr.bf16.gmra.mxu0 %v345
    %v498 = vpop.f32.mrf.mxu0
    %v499 = vadd.f32 0.0, %v498
    %v500 = vpop.f32.mrf.mxu0
    %v501 = vpop.f32.mrf.mxu0
    %v502 = vadd.f32 0.0, %v501
    %v503 = vpop.f32.mrf.mxu0
    %504 = vmatprep.mubr.bf16.mxu0 0
    %505 = vmatmul.mubr.bf16.gmra.mxu0 %v348
    %v506 = vpop.f32.mrf.mxu0
    %v507 = vadd.f32 0.0, %v506
    %v508 = vpop.f32.mrf.mxu0
    %v509 = vpop.f32.mrf.mxu0
    %v510 = vadd.f32 0.0, %v509
    %v511 = vpop.f32.mrf.mxu0
    %512 = vmatprep.mubr.bf16.mxu0 0
    %513 = vmatmul.mubr.bf16.gmra.mxu0 %v351
    %v514 = vpop.f32.mrf.mxu0
    %v515 = vadd.f32 0.0, %v514
    %v516 = vpop.f32.mrf.mxu0
    %v517 = vpop.f32.mrf.mxu0
    %v518 = vadd.f32 0.0, %v517
    %v519 = vpop.f32.mrf.mxu0
    %520 = vmatprep.mubr.bf16.mxu0 0
    %521 = vmatmul.mubr.bf16.gmra.mxu0 %v354
    %v522 = vpop.f32.mrf.mxu0
    %v523 = vadd.f32 0.0, %v522
    %v524 = vpop.f32.mrf.mxu0
    %v525 = vpop.f32.mrf.mxu0
    %v526 = vadd.f32 0.0, %v525
    %v527 = vpop.f32.mrf.mxu0
    %528 = vmatprep.mubr.bf16.mxu0 0
    %529 = vmatmul.mubr.bf16.gmra.mxu0 %v357
    %v530 = vpop.f32.mrf.mxu0
    %v531 = vadd.f32 0.0, %v530
    %v532 = vpop.f32.mrf.mxu0
    %v533 = vpop.f32.mrf.mxu0
    %v534 = vadd.f32 0.0, %v533
    %v535 = vpop.f32.mrf.mxu0
    %536 = vmatprep.mubr.bf16.mxu0 0
    %537 = vmatmul.mubr.bf16.gmra.mxu0 %v360
    %v538 = vpop.f32.mrf.mxu0
    %v539 = vadd.f32 0.0, %v538
    %v540 = vpop.f32.mrf.mxu0
    %v541 = vpop.f32.mrf.mxu0
    %v542 = vadd.f32 0.0, %v541
    %v543 = vpop.f32.mrf.mxu0
    %544 = vmatprep.mubr.bf16.mxu0 0
    %545 = vmatmul.mubr.bf16.gmra.mxu0 %v363
    %v546 = vpop.f32.mrf.mxu0
    %v547 = vadd.f32 0.0, %v546
    %v548 = vpop.f32.mrf.mxu0
    %v549 = vpop.f32.mrf.mxu0
    %v550 = vadd.f32 0.0, %v549
    %v551 = vpop.f32.mrf.mxu0
    %552 = vmatprep.mubr.bf16.mxu0 0
    %553 = vmatmul.mubr.bf16.gmra.mxu0 %v366
    %v554 = vpop.f32.mrf.mxu0
    %v555 = vadd.f32 0.0, %v554
    %v556 = vpop.f32.mrf.mxu0
    %v557 = vpop.f32.mrf.mxu0
    %v558 = vadd.f32 0.0, %v557
    %v559 = vpop.f32.mrf.mxu0
    %560 = vmatprep.mubr.bf16.mxu0 0
    %561 = vmatmul.mubr.bf16.gmra.mxu0 %v369
    %v562 = vpop.f32.mrf.mxu0
    %v563 = vadd.f32 0.0, %v562
    %v564 = vpop.f32.mrf.mxu0
    %v565 = vpop.f32.mrf.mxu0
    %v566 = vadd.f32 0.0, %v565
    %v567 = vpop.f32.mrf.mxu0
    %568 = vmatprep.mubr.bf16.mxu0 0
    %569 = vmatmul.mubr.bf16.gmra.mxu0 %v372
    %v570 = vpop.f32.mrf.mxu0
    %v571 = vadd.f32 0.0, %v570
    %v572 = vpop.f32.mrf.mxu0
    %v573 = vpop.f32.mrf.mxu0
    %v574 = vadd.f32 0.0, %v573
    %v575 = vpop.f32.mrf.mxu0
    %576 = vmatprep.mubr.bf16.mxu0 0
    %577 = vmatmul.mubr.bf16.gmra.mxu0 %v375
    %v578 = vpop.f32.mrf.mxu0
    %v579 = vadd.f32 0.0, %v578
    %v580 = vpop.f32.mrf.mxu0
    %v581 = vpop.f32.mrf.mxu0
    %v582 = vadd.f32 0.0, %v581
    %v583 = vpop.f32.mrf.mxu0
    %584 = vmatprep.mubr.bf16.mxu0 0
    %585 = vmatmul.mubr.bf16.gmra.mxu0 %v378
    %v586 = vpop.f32.mrf.mxu0
    %v587 = vadd.f32 0.0, %v586
    %v588 = vpop.f32.mrf.mxu0
    %v589 = vpop.f32.mrf.mxu0
    %v590 = vadd.f32 0.0, %v589
    %v591 = vpop.f32.mrf.mxu0
    %592 = vmatprep.mubr.bf16.mxu0 0
    %593 = vmatmul.mubr.bf16.gmra.mxu0 %v381
    %v594 = vpop.f32.mrf.mxu0
    %v595 = vadd.f32 0.0, %v594
    %v596 = vpop.f32.mrf.mxu0
    %v597 = vpop.f32.mrf.mxu0
    %v598 = vadd.f32 0.0, %v597
    %v599 = vpop.f32.mrf.mxu0
    %600 = vmatprep.mubr.bf16.mxu0 0
    %601 = vmatmul.mubr.bf16.gmra.mxu0 %v384
    %v602 = vpop.f32.mrf.mxu0
    %v603 = vadd.f32 0.0, %v602
    %v604 = vpop.f32.mrf.mxu0
    %v605 = vpop.f32.mrf.mxu0
    %v606 = vadd.f32 0.0, %v605
    %v607 = vpop.f32.mrf.mxu0
    %608 = vmatprep.mubr.bf16.mxu0 0
    %609 = vmatmul.mubr.bf16.gmra.mxu0 %v387
    %v610 = vpop.f32.mrf.mxu0
    %v611 = vadd.f32 0.0, %v610
    %v612 = vpop.f32.mrf.mxu0
    %v613 = vpop.f32.mrf.mxu0
    %v614 = vadd.f32 0.0, %v613
    %v615 = vpop.f32.mrf.mxu0
    %616 = vmatprep.mubr.bf16.mxu0 0
    %617 = vmatmul.mubr.bf16.gmra.mxu0 %v390
    %v618 = vpop.f32.mrf.mxu0
    %v619 = vadd.f32 0.0, %v618
    %v620 = vpop.f32.mrf.mxu0
    %v621 = vpop.f32.mrf.mxu0
    %v622 = vadd.f32 0.0, %v621
    %v623 = vpop.f32.mrf.mxu0
    %624 = vmatprep.mubr.bf16.mxu0 0
    %625 = vmatmul.mubr.bf16.gmra.mxu0 %v393
    %v626 = vpop.f32.mrf.mxu0
    %v627 = vadd.f32 0.0, %v626
    %v628 = vpop.f32.mrf.mxu0
    %v629 = vpop.f32.mrf.mxu0
    %v630 = vadd.f32 0.0, %v629
    %v631 = vpop.f32.mrf.mxu0
    %632 = vmatprep.mubr.bf16.mxu0 0
    %633 = vmatmul.mubr.bf16.gmra.mxu0 %v396
    %v634 = vpop.f32.mrf.mxu0
    %v635 = vadd.f32 0.0, %v634
    %v636 = vpop.f32.mrf.mxu0
    %v637 = vpop.f32.mrf.mxu0
    %v638 = vadd.f32 0.0, %v637
    %v639 = vpop.f32.mrf.mxu0
    %640 = vmatprep.mubr.bf16.mxu0 0
    %641 = vmatmul.mubr.bf16.gmra.mxu0 %v399
    %v642 = vpop.f32.mrf.mxu0
    %v643 = vadd.f32 0.0, %v642
    %v644 = vpop.f32.mrf.mxu0
    %v645 = vpop.f32.mrf.mxu0
    %v646 = vadd.f32 0.0, %v645
    %v647 = vpop.f32.mrf.mxu0
    %648 = vmatprep.mubr.bf16.mxu0 0
    %649 = vmatmul.mubr.bf16.gmra.mxu0 %v402
    %v650 = vpop.f32.mrf.mxu0
    %v651 = vadd.f32 0.0, %v650
    %v652 = vpop.f32.mrf.mxu0
    %v653 = vpop.f32.mrf.mxu0
    %v654 = vadd.f32 0.0, %v653
    %v655 = vpop.f32.mrf.mxu0
    %656 = vmatprep.mubr.bf16.mxu0 0
    %657 = vmatmul.mubr.bf16.gmra.mxu0 %v405
    %v658 = vpop.f32.mrf.mxu0
    %v659 = vadd.f32 0.0, %v658
    %v660 = vpop.f32.mrf.mxu0
    %v661 = vpop.f32.mrf.mxu0
    %v662 = vadd.f32 0.0, %v661
    %v663 = vpop.f32.mrf.mxu0
    %664 = vmatprep.mubr.bf16.mxu0 0
    %665 = vmatmul.mubr.bf16.gmra.mxu0 %v408
    %v666 = vpop.f32.mrf.mxu0
    %v667 = vadd.f32 0.0, %v666
    %v668 = vpop.f32.mrf.mxu0
    %v669 = vpop.f32.mrf.mxu0
    %v670 = vadd.f32 0.0, %v669
    %v671 = vpop.f32.mrf.mxu0
    %672 = vmatprep.mubr.bf16.mxu0 0
    %673 = vmatmul.mubr.bf16.gmra.mxu0 %v411
    %v674 = vpop.f32.mrf.mxu0
    %v675 = vadd.f32 0.0, %v674
    %v676 = vpop.f32.mrf.mxu0
    %v677 = vpop.f32.mrf.mxu0
    %v678 = vadd.f32 0.0, %v677
    %v679 = vpop.f32.mrf.mxu0
    %680 = vmatprep.mubr.bf16.mxu0 0
    %681 = vmatmul.mubr.bf16.gmra.mxu0 %v414
    %v682 = vpop.f32.mrf.mxu0
    %v683 = vadd.f32 0.0, %v682
    %v684 = vpop.f32.mrf.mxu0
    %v685 = vpop.f32.mrf.mxu0
    %v686 = vadd.f32 0.0, %v685
    %v687 = vpop.f32.mrf.mxu0
    %688 = vmatprep.mubr.bf16.mxu0 0
    %689 = vmatmul.mubr.bf16.gmra.mxu0 %v417
    %v690 = vpop.f32.mrf.mxu0
    %v691 = vadd.f32 0.0, %v690
    %v692 = vpop.f32.mrf.mxu0
    %v693 = vpop.f32.mrf.mxu0
    %v694 = vadd.f32 0.0, %v693
    %v695 = vpop.f32.mrf.mxu0
    %696 = vmatprep.mubr.bf16.mxu0 0
    %697 = vmatmul.mubr.bf16.gmra.mxu0 %v420
    %v698 = vpop.f32.mrf.mxu0
    %v699 = vadd.f32 0.0, %v698
    %v700 = vpop.f32.mrf.mxu0
    %v701 = vpop.f32.mrf.mxu0
    %v702 = vadd.f32 0.0, %v701
    %v703 = vpop.f32.mrf.mxu0
    %704 = vmatprep.mubr.bf16.mxu0 0
    %705 = vmatmul.mubr.bf16.gmra.mxu0 %v423
    %v706 = vpop.f32.mrf.mxu0
    %v707 = vadd.f32 0.0, %v706
    %v708 = vpop.f32.mrf.mxu0
    %v709 = vpop.f32.mrf.mxu0
    %v710 = vadd.f32 0.0, %v709
    %v711 = vpop.f32.mrf.mxu0
    %712 = vmatprep.mubr.bf16.mxu0 0
    %713 = vmatmul.mubr.bf16.gmra.mxu0 %v426
    %v714 = vpop.f32.mrf.mxu0
    %v715 = vadd.f32 0.0, %v714
    %v716 = vpop.f32.mrf.mxu0
    %v717 = vpop.f32.mrf.mxu0
    %v718 = vadd.f32 0.0, %v717
    %v719 = vpop.f32.mrf.mxu0
    %720 = vdwg.mxu0
    %v721 = vld [vmem:[#allocation4] sm:$0x1]
    %v722 = vld [vmem:[#allocation6] sm:$0x1]
    %v723 = vadd.f32 %v467, %v470
    %v724 = vadd.f32 %v723, %v475
    %v725 = vadd.f32 %v724, %v478
    %v726 = vadd.f32 %v725, %v483
    %v727 = vadd.f32 %v726, %v486
    %v728 = vadd.f32 %v727, %v491
    %v729 = vadd.f32 %v728, %v494
    %v730 = vadd.f32 %v729, %v499
    %v731 = vadd.f32 %v730, %v502
    %v732 = vadd.f32 %v731, %v507
    %v733 = vadd.f32 %v732, %v510
    %v734 = vadd.f32 %v733, %v515
    %v735 = vadd.f32 %v734, %v518
    %v736 = vadd.f32 %v735, %v523
    %v737 = vadd.f32 %v736, %v526
    %v738 = vadd.f32 %v737, %v531
    %v739 = vadd.f32 %v738, %v534
    %v740 = vadd.f32 %v739, %v539
    %v741 = vadd.f32 %v740, %v542
    %v742 = vadd.f32 %v741, %v547
    %v743 = vadd.f32 %v742, %v550
    %v744 = vadd.f32 %v743, %v555
    %v745 = vadd.f32 %v744, %v558
    %v746 = vadd.f32 %v745, %v563
    %v747 = vadd.f32 %v746, %v566
    %v748 = vadd.f32 %v747, %v571
    %v749 = vadd.f32 %v748, %v574
    %v750 = vadd.f32 %v749, %v579
    %v751 = vadd.f32 %v750, %v582
    %v752 = vadd.f32 %v751, %v587
    %v753 = vadd.f32 %v752, %v590
    %v754 = vadd.f32 %v753, %v595
    %v755 = vadd.f32 %v754, %v598
    %v756 = vadd.f32 %v755, %v603
    %v757 = vadd.f32 %v756, %v606
    %v758 = vadd.f32 %v757, %v611
    %v759 = vadd.f32 %v758, %v614
    %v760 = vadd.f32 %v759, %v619
    %v761 = vadd.f32 %v760, %v622
    %v762 = vadd.f32 %v761, %v627
    %v763 = vadd.f32 %v762, %v630
    %v764 = vadd.f32 %v763, %v635
    %v765 = vadd.f32 %v764, %v638
    %v766 = vadd.f32 %v765, %v643
    %v767 = vadd.f32 %v766, %v646
    %v768 = vadd.f32 %v767, %v651
    %v769 = vadd.f32 %v768, %v654
    %v770 = vadd.f32 %v769, %v659
    %v771 = vadd.f32 %v770, %v662
    %v772 = vadd.f32 %v771, %v667
    %v773 = vadd.f32 %v772, %v670
    %v774 = vadd.f32 %v773, %v675
    %v775 = vadd.f32 %v774, %v678
    %v776 = vadd.f32 %v775, %v683
    %v777 = vadd.f32 %v776, %v686
    %v778 = vadd.f32 %v777, %v691
    %v779 = vadd.f32 %v778, %v694
    %v780 = vadd.f32 %v779, %v699
    %v781 = vadd.f32 %v780, %v702
    %v782 = vadd.f32 %v781, %v707
    %v783 = vadd.f32 %v782, %v710
    %v784 = vadd.f32 %v783, %v715
    %v785 = vadd.f32 %v784, %v718
    %v786 = vrot.slane %v785, 4
    %v787 = vadd.f32 %v785, %v786
    %v788 = vrot.slane %v787, 2
    %v789 = vadd.f32 %v787, %v788
    %v790 = vrot.slane %v789, 1
    %v791 = vadd.f32 %v789, %v790
    %v792 = vmul.f32 %v791, 0.001953125
    %v793 = vsub.f32 %v467, %v792
    %v794 = vsub.f32 %v470, %v792
    %v795 = vsub.f32 %v475, %v792
    %v796 = vsub.f32 %v478, %v792
    %v797 = vsub.f32 %v483, %v792
    %v798 = vsub.f32 %v486, %v792
    %v799 = vsub.f32 %v491, %v792
    %v800 = vsub.f32 %v494, %v792
    %v801 = vsub.f32 %v499, %v792
    %v802 = vsub.f32 %v502, %v792
    %v803 = vsub.f32 %v507, %v792
    %v804 = vsub.f32 %v510, %v792
    %v805 = vsub.f32 %v515, %v792
    %v806 = vsub.f32 %v518, %v792
    %v807 = vsub.f32 %v523, %v792
    %v808 = vsub.f32 %v526, %v792
    %v809 = vsub.f32 %v531, %v792
    %v810 = vsub.f32 %v534, %v792
    %v811 = vsub.f32 %v539, %v792
    %v812 = vsub.f32 %v542, %v792
    %v813 = vsub.f32 %v547, %v792
    %v814 = vsub.f32 %v550, %v792
    %v815 = vsub.f32 %v555, %v792
    %v816 = vsub.f32 %v558, %v792
    %v817 = vsub.f32 %v563, %v792
    %v818 = vsub.f32 %v566, %v792
    %v819 = vsub.f32 %v571, %v792
    %v820 = vsub.f32 %v574, %v792
    %v821 = vsub.f32 %v579, %v792
    %v822 = vsub.f32 %v582, %v792
    %v823 = vsub.f32 %v587, %v792
    %v824 = vsub.f32 %v590, %v792
    %v825 = vsub.f32 %v595, %v792
    %v826 = vsub.f32 %v598, %v792
    %v827 = vsub.f32 %v603, %v792
    %v828 = vsub.f32 %v606, %v792
    %v829 = vsub.f32 %v611, %v792
    %v830 = vsub.f32 %v614, %v792
    %v831 = vsub.f32 %v619, %v792
    %v832 = vsub.f32 %v622, %v792
    %v833 = vsub.f32 %v627, %v792
    %v834 = vsub.f32 %v630, %v792
    %v835 = vsub.f32 %v635, %v792
    %v836 = vsub.f32 %v638, %v792
    %v837 = vsub.f32 %v643, %v792
    %v838 = vsub.f32 %v646, %v792
    %v839 = vsub.f32 %v651, %v792
    %v840 = vsub.f32 %v654, %v792
    %v841 = vsub.f32 %v659, %v792
    %v842 = vsub.f32 %v662, %v792
    %v843 = vsub.f32 %v667, %v792
    %v844 = vsub.f32 %v670, %v792
    %v845 = vsub.f32 %v675, %v792
    %v846 = vsub.f32 %v678, %v792
    %v847 = vsub.f32 %v683, %v792
    %v848 = vsub.f32 %v686, %v792
    %v849 = vsub.f32 %v691, %v792
    %v850 = vsub.f32 %v694, %v792
    %v851 = vsub.f32 %v699, %v792
    %v852 = vsub.f32 %v702, %v792
    %v853 = vsub.f32 %v707, %v792
    %v854 = vsub.f32 %v710, %v792
    %v855 = vsub.f32 %v715, %v792
    %v856 = vsub.f32 %v718, %v792
    %v857 = vmul.f32 %v793, %v793
    %v858 = vmul.f32 %v794, %v794
    %v859 = vmul.f32 %v795, %v795
    %v860 = vmul.f32 %v796, %v796
    %v861 = vmul.f32 %v797, %v797
    %v862 = vmul.f32 %v798, %v798
    %v863 = vmul.f32 %v799, %v799
    %v864 = vmul.f32 %v800, %v800
    %v865 = vmul.f32 %v801, %v801
    %v866 = vmul.f32 %v802, %v802
    %v867 = vmul.f32 %v803, %v803
    %v868 = vmul.f32 %v804, %v804
    %v869 = vmul.f32 %v805, %v805
    %v870 = vmul.f32 %v806, %v806
    %v871 = vmul.f32 %v807, %v807
    %v872 = vmul.f32 %v808, %v808
    %v873 = vmul.f32 %v809, %v809
    %v874 = vmul.f32 %v810, %v810
    %v875 = vmul.f32 %v811, %v811
    %v876 = vmul.f32 %v812, %v812
    %v877 = vmul.f32 %v813, %v813
    %v878 = vmul.f32 %v814, %v814
    %v879 = vmul.f32 %v815, %v815
    %v880 = vmul.f32 %v816, %v816
    %v881 = vmul.f32 %v817, %v817
    %v882 = vmul.f32 %v818, %v818
    %v883 = vmul.f32 %v819, %v819
    %v884 = vmul.f32 %v820, %v820
    %v885 = vmul.f32 %v821, %v821
    %v886 = vmul.f32 %v822, %v822
    %v887 = vmul.f32 %v823, %v823
    %v888 = vmul.f32 %v824, %v824
    %v889 = vmul.f32 %v825, %v825
    %v890 = vmul.f32 %v826, %v826
    %v891 = vmul.f32 %v827, %v827
    %v892 = vmul.f32 %v828, %v828
    %v893 = vmul.f32 %v829, %v829
    %v894 = vmul.f32 %v830, %v830
    %v895 = vmul.f32 %v831, %v831
    %v896 = vmul.f32 %v832, %v832
    %v897 = vmul.f32 %v833, %v833
    %v898 = vmul.f32 %v834, %v834
    %v899 = vmul.f32 %v835, %v835
    %v900 = vmul.f32 %v836, %v836
    %v901 = vmul.f32 %v837, %v837
    %v902 = vmul.f32 %v838, %v838
    %v903 = vmul.f32 %v839, %v839
    %v904 = vmul.f32 %v840, %v840
    %v905 = vmul.f32 %v841, %v841
    %v906 = vmul.f32 %v842, %v842
    %v907 = vmul.f32 %v843, %v843
    %v908 = vmul.f32 %v844, %v844
    %v909 = vmul.f32 %v845, %v845
    %v910 = vmul.f32 %v846, %v846
    %v911 = vmul.f32 %v847, %v847
    %v912 = vmul.f32 %v848, %v848
    %v913 = vmul.f32 %v849, %v849
    %v914 = vmul.f32 %v850, %v850
    %v915 = vmul.f32 %v851, %v851
    %v916 = vmul.f32 %v852, %v852
    %v917 = vmul.f32 %v853, %v853
    %v918 = vmul.f32 %v854, %v854
    %v919 = vmul.f32 %v855, %v855
    %v920 = vmul.f32 %v856, %v856
    %v921 = vadd.f32 %v857, %v858
    %v922 = vadd.f32 %v921, %v859
    %v923 = vadd.f32 %v922, %v860
    %v924 = vadd.f32 %v923, %v861
    %v925 = vadd.f32 %v924, %v862
    %v926 = vadd.f32 %v925, %v863
    %v927 = vadd.f32 %v926, %v864
    %v928 = vadd.f32 %v927, %v865
    %v929 = vadd.f32 %v928, %v866
    %v930 = vadd.f32 %v929, %v867
    %v931 = vadd.f32 %v930, %v868
    %v932 = vadd.f32 %v931, %v869
    %v933 = vadd.f32 %v932, %v870
    %v934 = vadd.f32 %v933, %v871
    %v935 = vadd.f32 %v934, %v872
    %v936 = vadd.f32 %v935, %v873
    %v937 = vadd.f32 %v936, %v874
    %v938 = vadd.f32 %v937, %v875
    %v939 = vadd.f32 %v938, %v876
    %v940 = vadd.f32 %v939, %v877
    %v941 = vadd.f32 %v940, %v878
    %v942 = vadd.f32 %v941, %v879
    %v943 = vadd.f32 %v942, %v880
    %v944 = vadd.f32 %v943, %v881
    %v945 = vadd.f32 %v944, %v882
    %v946 = vadd.f32 %v945, %v883
    %v947 = vadd.f32 %v946, %v884
    %v948 = vadd.f32 %v947, %v885
    %v949 = vadd.f32 %v948, %v886
    %v950 = vadd.f32 %v949, %v887
    %v951 = vadd.f32 %v950, %v888
    %v952 = vadd.f32 %v951, %v889
    %v953 = vadd.f32 %v952, %v890
    %v954 = vadd.f32 %v953, %v891
    %v955 = vadd.f32 %v954, %v892
    %v956 = vadd.f32 %v955, %v893
    %v957 = vadd.f32 %v956, %v894
    %v958 = vadd.f32 %v957, %v895
    %v959 = vadd.f32 %v958, %v896
    %v960 = vadd.f32 %v959, %v897
    %v961 = vadd.f32 %v960, %v898
    %v962 = vadd.f32 %v961, %v899
    %v963 = vadd.f32 %v962, %v900
    %v964 = vadd.f32 %v963, %v901
    %v965 = vadd.f32 %v964, %v902
    %v966 = vadd.f32 %v965, %v903
    %v967 = vadd.f32 %v966, %v904
    %v968 = vadd.f32 %v967, %v905
    %v969 = vadd.f32 %v968, %v906
    %v970 = vadd.f32 %v969, %v907
    %v971 = vadd.f32 %v970, %v908
    %v972 = vadd.f32 %v971, %v909
    %v973 = vadd.f32 %v972, %v910
    %v974 = vadd.f32 %v973, %v911
    %v975 = vadd.f32 %v974, %v912
    %v976 = vadd.f32 %v975, %v913
    %v977 = vadd.f32 %v976, %v914
    %v978 = vadd.f32 %v977, %v915
    %v979 = vadd.f32 %v978, %v916
    %v980 = vadd.f32 %v979, %v917
    %v981 = vadd.f32 %v980, %v918
    %v982 = vadd.f32 %v981, %v919
    %v983 = vadd.f32 %v982, %v920
    %v984 = vrot.slane %v983, 4
    %v985 = vadd.f32 %v983, %v984
    %v986 = vrot.slane %v985, 2
    %v987 = vadd.f32 %v985, %v986
    %v988 = vrot.slane %v987, 1
    %v989 = vadd.f32 %v987, %v988
    %v990 = vmul.f32 %v989, 0.001953125
    %v991 = vadd.f32 %v990, 1e-05
    %v992 = vrsqrt.pop %v991
    %v993 = vmul.f32 %v793, %v992
    %v994 = vmul.f32 %v794, %v992
    %v995 = vmul.f32 %v795, %v992
    %v996 = vmul.f32 %v796, %v992
    %v997 = vmul.f32 %v797, %v992
    %v998 = vmul.f32 %v798, %v992
    %v999 = vmul.f32 %v799, %v992
    %v1000 = vmul.f32 %v800, %v992
    %v1001 = vmul.f32 %v801, %v992
    %v1002 = vmul.f32 %v802, %v992
    %v1003 = vmul.f32 %v803, %v992
    %v1004 = vmul.f32 %v804, %v992
    %v1005 = vmul.f32 %v805, %v992
    %v1006 = vmul.f32 %v806, %v992
    %v1007 = vmul.f32 %v807, %v992
    %v1008 = vmul.f32 %v808, %v992
    %v1009 = vmul.f32 %v809, %v992
    %v1010 = vmul.f32 %v810, %v992
    %v1011 = vmul.f32 %v811, %v992
    %v1012 = vmul.f32 %v812, %v992
    %v1013 = vmul.f32 %v813, %v992
    %v1014 = vmul.f32 %v814, %v992
    %v1015 = vmul.f32 %v815, %v992
    %v1016 = vmul.f32 %v816, %v992
    %v1017 = vmul.f32 %v817, %v992
    %v1018 = vmul.f32 %v818, %v992
    %v1019 = vmul.f32 %v819, %v992
    %v1020 = vmul.f32 %v820, %v992
    %v1021 = vmul.f32 %v821, %v992
    %v1022 = vmul.f32 %v822, %v992
    %v1023 = vmul.f32 %v823, %v992
    %v1024 = vmul.f32 %v824, %v992
    %v1025 = vmul.f32 %v825, %v992
    %v1026 = vmul.f32 %v826, %v992
    %v1027 = vmul.f32 %v827, %v992
    %v1028 = vmul.f32 %v828, %v992
    %v1029 = vmul.f32 %v829, %v992
    %v1030 = vmul.f32 %v830, %v992
    %v1031 = vmul.f32 %v831, %v992
    %v1032 = vmul.f32 %v832, %v992
    %v1033 = vmul.f32 %v833, %v992
    %v1034 = vmul.f32 %v834, %v992
    %v1035 = vmul.f32 %v835, %v992
    %v1036 = vmul.f32 %v836, %v992
    %v1037 = vmul.f32 %v837, %v992
    %v1038 = vmul.f32 %v838, %v992
    %v1039 = vmul.f32 %v839, %v992
    %v1040 = vmul.f32 %v840, %v992
    %v1041 = vmul.f32 %v841, %v992
    %v1042 = vmul.f32 %v842, %v992
    %v1043 = vmul.f32 %v843, %v992
    %v1044 = vmul.f32 %v844, %v992
    %v1045 = vmul.f32 %v845, %v992
    %v1046 = vmul.f32 %v846, %v992
    %v1047 = vmul.f32 %v847, %v992
    %v1048 = vmul.f32 %v848, %v992
    %v1049 = vmul.f32 %v849, %v992
    %v1050 = vmul.f32 %v850, %v992
    %v1051 = vmul.f32 %v851, %v992
    %v1052 = vmul.f32 %v852, %v992
    %v1053 = vmul.f32 %v853, %v992
    %v1054 = vmul.f32 %v854, %v992
    %v1055 = vmul.f32 %v855, %v992
    %v1056 = vmul.f32 %v856, %v992
    %v1058 = vlaneseq
    %v1059 = vshrl.u32 %v1058, 7
    %v1060 = vsub.s32 0, %v1059
    %v1061 = vrot.slane %v721, %v1060
    %v1063 = vmul.f32 %v993, %v1061
    %v1064 = vmul.f32 %v994, %v1061
    %v1065 = vmul.f32 %v995, %v1061
    %v1066 = vmul.f32 %v996, %v1061
    %v1067 = vmul.f32 %v997, %v1061
    %v1068 = vmul.f32 %v998, %v1061
    %v1069 = vmul.f32 %v999, %v1061
    %v1070 = vmul.f32 %v1000, %v1061
    %v1071 = vmul.f32 %v1001, %v1061
    %v1072 = vmul.f32 %v1002, %v1061
    %v1073 = vmul.f32 %v1003, %v1061
    %v1074 = vmul.f32 %v1004, %v1061
    %v1075 = vmul.f32 %v1005, %v1061
    %v1076 = vmul.f32 %v1006, %v1061
    %v1077 = vmul.f32 %v1007, %v1061
    %v1078 = vmul.f32 %v1008, %v1061
    %v1079 = vmul.f32 %v1009, %v1061
    %v1080 = vmul.f32 %v1010, %v1061
    %v1081 = vmul.f32 %v1011, %v1061
    %v1082 = vmul.f32 %v1012, %v1061
    %v1083 = vmul.f32 %v1013, %v1061
    %v1084 = vmul.f32 %v1014, %v1061
    %v1085 = vmul.f32 %v1015, %v1061
    %v1086 = vmul.f32 %v1016, %v1061
    %v1087 = vmul.f32 %v1017, %v1061
    %v1088 = vmul.f32 %v1018, %v1061
    %v1089 = vmul.f32 %v1019, %v1061
    %v1090 = vmul.f32 %v1020, %v1061
    %v1091 = vmul.f32 %v1021, %v1061
    %v1092 = vmul.f32 %v1022, %v1061
    %v1093 = vmul.f32 %v1023, %v1061
    %v1094 = vmul.f32 %v1024, %v1061
    %v1095 = vmul.f32 %v1025, %v1061
    %v1096 = vmul.f32 %v1026, %v1061
    %v1097 = vmul.f32 %v1027, %v1061
    %v1098 = vmul.f32 %v1028, %v1061
    %v1099 = vmul.f32 %v1029, %v1061
    %v1100 = vmul.f32 %v1030, %v1061
    %v1101 = vmul.f32 %v1031, %v1061
    %v1102 = vmul.f32 %v1032, %v1061
    %v1103 = vmul.f32 %v1033, %v1061
    %v1104 = vmul.f32 %v1034, %v1061
    %v1105 = vmul.f32 %v1035, %v1061
    %v1106 = vmul.f32 %v1036, %v1061
    %v1107 = vmul.f32 %v1037, %v1061
    %v1108 = vmul.f32 %v1038, %v1061
    %v1109 = vmul.f32 %v1039, %v1061
    %v1110 = vmul.f32 %v1040, %v1061
    %v1111 = vmul.f32 %v1041, %v1061
    %v1112 = vmul.f32 %v1042, %v1061
    %v1113 = vmul.f32 %v1043, %v1061
    %v1114 = vmul.f32 %v1044, %v1061
    %v1115 = vmul.f32 %v1045, %v1061
    %v1116 = vmul.f32 %v1046, %v1061
    %v1117 = vmul.f32 %v1047, %v1061
    %v1118 = vmul.f32 %v1048, %v1061
    %v1119 = vmul.f32 %v1049, %v1061
    %v1120 = vmul.f32 %v1050, %v1061
    %v1121 = vmul.f32 %v1051, %v1061
    %v1122 = vmul.f32 %v1052, %v1061
    %v1123 = vmul.f32 %v1053, %v1061
    %v1124 = vmul.f32 %v1054, %v1061
    %v1125 = vmul.f32 %v1055, %v1061
    %v1126 = vmul.f32 %v1056, %v1061
    %v1128 = vlaneseq
    %v1129 = vshrl.u32 %v1128, 7
    %v1130 = vsub.s32 0, %v1129
    %v1131 = vrot.slane %v722, %v1130
    %v1133 = vadd.f32 %v1063, %v1131
    %v1134 = vadd.f32 %v1064, %v1131
    %v1135 = vadd.f32 %v1065, %v1131
    %v1136 = vadd.f32 %v1066, %v1131
    %v1137 = vadd.f32 %v1067, %v1131
    %v1138 = vadd.f32 %v1068, %v1131
    %v1139 = vadd.f32 %v1069, %v1131
    %v1140 = vadd.f32 %v1070, %v1131
    %v1141 = vadd.f32 %v1071, %v1131
    %v1142 = vadd.f32 %v1072, %v1131
    %v1143 = vadd.f32 %v1073, %v1131
    %v1144 = vadd.f32 %v1074, %v1131
    %v1145 = vadd.f32 %v1075, %v1131
    %v1146 = vadd.f32 %v1076, %v1131
    %v1147 = vadd.f32 %v1077, %v1131
    %v1148 = vadd.f32 %v1078, %v1131
    %v1149 = vadd.f32 %v1079, %v1131
    %v1150 = vadd.f32 %v1080, %v1131
    %v1151 = vadd.f32 %v1081, %v1131
    %v1152 = vadd.f32 %v1082, %v1131
    %v1153 = vadd.f32 %v1083, %v1131
    %v1154 = vadd.f32 %v1084, %v1131
    %v1155 = vadd.f32 %v1085, %v1131
    %v1156 = vadd.f32 %v1086, %v1131
    %v1157 = vadd.f32 %v1087, %v1131
    %v1158 = vadd.f32 %v1088, %v1131
    %v1159 = vadd.f32 %v1089, %v1131
    %v1160 = vadd.f32 %v1090, %v1131
    %v1161 = vadd.f32 %v1091, %v1131
    %v1162 = vadd.f32 %v1092, %v1131
    %v1163 = vadd.f32 %v1093, %v1131
    %v1164 = vadd.f32 %v1094, %v1131
    %v1165 = vadd.f32 %v1095, %v1131
    %v1166 = vadd.f32 %v1096, %v1131
    %v1167 = vadd.f32 %v1097, %v1131
    %v1168 = vadd.f32 %v1098, %v1131
    %v1169 = vadd.f32 %v1099, %v1131
    %v1170 = vadd.f32 %v1100, %v1131
    %v1171 = vadd.f32 %v1101, %v1131
    %v1172 = vadd.f32 %v1102, %v1131
    %v1173 = vadd.f32 %v1103, %v1131
    %v1174 = vadd.f32 %v1104, %v1131
    %v1175 = vadd.f32 %v1105, %v1131
    %v1176 = vadd.f32 %v1106, %v1131
    %v1177 = vadd.f32 %v1107, %v1131
    %v1178 = vadd.f32 %v1108, %v1131
    %v1179 = vadd.f32 %v1109, %v1131
    %v1180 = vadd.f32 %v1110, %v1131
    %v1181 = vadd.f32 %v1111, %v1131
    %v1182 = vadd.f32 %v1112, %v1131
    %v1183 = vadd.f32 %v1113, %v1131
    %v1184 = vadd.f32 %v1114, %v1131
    %v1185 = vadd.f32 %v1115, %v1131
    %v1186 = vadd.f32 %v1116, %v1131
    %v1187 = vadd.f32 %v1117, %v1131
    %v1188 = vadd.f32 %v1118, %v1131
    %v1189 = vadd.f32 %v1119, %v1131
    %v1190 = vadd.f32 %v1120, %v1131
    %v1191 = vadd.f32 %v1121, %v1131
    %v1192 = vadd.f32 %v1122, %v1131
    %v1193 = vadd.f32 %v1123, %v1131
    %v1194 = vadd.f32 %v1124, %v1131
    %v1195 = vadd.f32 %v1125, %v1131
    %v1196 = vadd.f32 %v1126, %v1131
    %vm1197 = vcmp.gt.f32.partialorder %v1133, 0.0
    %vm1198 = vcmp.gt.f32.partialorder %v1134, 0.0
    %vm1199 = vcmp.gt.f32.partialorder %v1135, 0.0
    %vm1200 = vcmp.gt.f32.partialorder %v1136, 0.0
    %vm1201 = vcmp.gt.f32.partialorder %v1137, 0.0
    %vm1202 = vcmp.gt.f32.partialorder %v1138, 0.0
    %vm1203 = vcmp.gt.f32.partialorder %v1139, 0.0
    %vm1204 = vcmp.gt.f32.partialorder %v1140, 0.0
    %vm1205 = vcmp.gt.f32.partialorder %v1141, 0.0
    %vm1206 = vcmp.gt.f32.partialorder %v1142, 0.0
    %vm1207 = vcmp.gt.f32.partialorder %v1143, 0.0
    %vm1208 = vcmp.gt.f32.partialorder %v1144, 0.0
    %vm1209 = vcmp.gt.f32.partialorder %v1145, 0.0
    %vm1210 = vcmp.gt.f32.partialorder %v1146, 0.0
    %vm1211 = vcmp.gt.f32.partialorder %v1147, 0.0
    %vm1212 = vcmp.gt.f32.partialorder %v1148, 0.0
    %vm1213 = vcmp.gt.f32.partialorder %v1149, 0.0
    %vm1214 = vcmp.gt.f32.partialorder %v1150, 0.0
    %vm1215 = vcmp.gt.f32.partialorder %v1151, 0.0
    %vm1216 = vcmp.gt.f32.partialorder %v1152, 0.0
    %vm1217 = vcmp.gt.f32.partialorder %v1153, 0.0
    %vm1218 = vcmp.gt.f32.partialorder %v1154, 0.0
    %vm1219 = vcmp.gt.f32.partialorder %v1155, 0.0
    %vm1220 = vcmp.gt.f32.partialorder %v1156, 0.0
    %vm1221 = vcmp.gt.f32.partialorder %v1157, 0.0
    %vm1222 = vcmp.gt.f32.partialorder %v1158, 0.0
    %vm1223 = vcmp.gt.f32.partialorder %v1159, 0.0
    %vm1224 = vcmp.gt.f32.partialorder %v1160, 0.0
    %vm1225 = vcmp.gt.f32.partialorder %v1161, 0.0
    %vm1226 = vcmp.gt.f32.partialorder %v1162, 0.0
    %vm1227 = vcmp.gt.f32.partialorder %v1163, 0.0
    %vm1228 = vcmp.gt.f32.partialorder %v1164, 0.0
    %vm1229 = vcmp.gt.f32.partialorder %v1165, 0.0
    %vm1230 = vcmp.gt.f32.partialorder %v1166, 0.0
    %vm1231 = vcmp.gt.f32.partialorder %v1167, 0.0
    %vm1232 = vcmp.gt.f32.partialorder %v1168, 0.0
    %vm1233 = vcmp.gt.f32.partialorder %v1169, 0.0
    %vm1234 = vcmp.gt.f32.partialorder %v1170, 0.0
    %vm1235 = vcmp.gt.f32.partialorder %v1171, 0.0
    %vm1236 = vcmp.gt.f32.partialorder %v1172, 0.0
    %vm1237 = vcmp.gt.f32.partialorder %v1173, 0.0
    %vm1238 = vcmp.gt.f32.partialorder %v1174, 0.0
    %vm1239 = vcmp.gt.f32.partialorder %v1175, 0.0
    %vm1240 = vcmp.gt.f32.partialorder %v1176, 0.0
    %vm1241 = vcmp.gt.f32.partialorder %v1177, 0.0
    %vm1242 = vcmp.gt.f32.partialorder %v1178, 0.0
    %vm1243 = vcmp.gt.f32.partialorder %v1179, 0.0
    %vm1244 = vcmp.gt.f32.partialorder %v1180, 0.0
    %vm1245 = vcmp.gt.f32.partialorder %v1181, 0.0
    %vm1246 = vcmp.gt.f32.partialorder %v1182, 0.0
    %vm1247 = vcmp.gt.f32.partialorder %v1183, 0.0
    %vm1248 = vcmp.gt.f32.partialorder %v1184, 0.0
    %vm1249 = vcmp.gt.f32.partialorder %v1185, 0.0
    %vm1250 = vcmp.gt.f32.partialorder %v1186, 0.0
    %vm1251 = vcmp.gt.f32.partialorder %v1187, 0.0
    %vm1252 = vcmp.gt.f32.partialorder %v1188, 0.0
    %vm1253 = vcmp.gt.f32.partialorder %v1189, 0.0
    %vm1254 = vcmp.gt.f32.partialorder %v1190, 0.0
    %vm1255 = vcmp.gt.f32.partialorder %v1191, 0.0
    %vm1256 = vcmp.gt.f32.partialorder %v1192, 0.0
    %vm1257 = vcmp.gt.f32.partialorder %v1193, 0.0
    %vm1258 = vcmp.gt.f32.partialorder %v1194, 0.0
    %vm1259 = vcmp.gt.f32.partialorder %v1195, 0.0
    %vm1260 = vcmp.gt.f32.partialorder %v1196, 0.0
    %v1261 = vmul.f32 %v1133, 0.01
    %v1262 = vmul.f32 %v1134, 0.01
    %v1263 = vmul.f32 %v1135, 0.01
    %v1264 = vmul.f32 %v1136, 0.01
    %v1265 = vmul.f32 %v1137, 0.01
    %v1266 = vmul.f32 %v1138, 0.01
    %v1267 = vmul.f32 %v1139, 0.01
    %v1268 = vmul.f32 %v1140, 0.01
    %v1269 = vmul.f32 %v1141, 0.01
    %v1270 = vmul.f32 %v1142, 0.01
    %v1271 = vmul.f32 %v1143, 0.01
    %v1272 = vmul.f32 %v1144, 0.01
    %v1273 = vmul.f32 %v1145, 0.01
    %v1274 = vmul.f32 %v1146, 0.01
    %v1275 = vmul.f32 %v1147, 0.01
    %v1276 = vmul.f32 %v1148, 0.01
    %v1277 = vmul.f32 %v1149, 0.01
    %v1278 = vmul.f32 %v1150, 0.01
    %v1279 = vmul.f32 %v1151, 0.01
    %v1280 = vmul.f32 %v1152, 0.01
    %v1281 = vmul.f32 %v1153, 0.01
    %v1282 = vmul.f32 %v1154, 0.01
    %v1283 = vmul.f32 %v1155, 0.01
    %v1284 = vmul.f32 %v1156, 0.01
    %v1285 = vmul.f32 %v1157, 0.01
    %v1286 = vmul.f32 %v1158, 0.01
    %v1287 = vmul.f32 %v1159, 0.01
    %v1288 = vmul.f32 %v1160, 0.01
    %v1289 = vmul.f32 %v1161, 0.01
    %v1290 = vmul.f32 %v1162, 0.01
    %v1291 = vmul.f32 %v1163, 0.01
    %v1292 = vmul.f32 %v1164, 0.01
    %v1293 = vmul.f32 %v1165, 0.01
    %v1294 = vmul.f32 %v1166, 0.01
    %v1295 = vmul.f32 %v1167, 0.01
    %v1296 = vmul.f32 %v1168, 0.01
    %v1297 = vmul.f32 %v1169, 0.01
    %v1298 = vmul.f32 %v1170, 0.01
    %v1299 = vmul.f32 %v1171, 0.01
    %v1300 = vmul.f32 %v1172, 0.01
    %v1301 = vmul.f32 %v1173, 0.01
    %v1302 = vmul.f32 %v1174, 0.01
    %v1303 = vmul.f32 %v1175, 0.01
    %v1304 = vmul.f32 %v1176, 0.01
    %v1305 = vmul.f32 %v1177, 0.01
    %v1306 = vmul.f32 %v1178, 0.01
    %v1307 = vmul.f32 %v1179, 0.01
    %v1308 = vmul.f32 %v1180, 0.01
    %v1309 = vmul.f32 %v1181, 0.01
    %v1310 = vmul.f32 %v1182, 0.01
    %v1311 = vmul.f32 %v1183, 0.01
    %v1312 = vmul.f32 %v1184, 0.01
    %v1313 = vmul.f32 %v1185, 0.01
    %v1314 = vmul.f32 %v1186, 0.01
    %v1315 = vmul.f32 %v1187, 0.01
    %v1316 = vmul.f32 %v1188, 0.01
    %v1317 = vmul.f32 %v1189, 0.01
    %v1318 = vmul.f32 %v1190, 0.01
    %v1319 = vmul.f32 %v1191, 0.01
    %v1320 = vmul.f32 %v1192, 0.01
    %v1321 = vmul.f32 %v1193, 0.01
    %v1322 = vmul.f32 %v1194, 0.01
    %v1323 = vmul.f32 %v1195, 0.01
    %v1324 = vmul.f32 %v1196, 0.01
    %v1325 = vsel %vm1197, %v1133, %v1261
    %v1326 = vsel %vm1198, %v1134, %v1262
    %v1327 = vsel %vm1199, %v1135, %v1263
    %v1328 = vsel %vm1200, %v1136, %v1264
    %v1329 = vsel %vm1201, %v1137, %v1265
    %v1330 = vsel %vm1202, %v1138, %v1266
    %v1331 = vsel %vm1203, %v1139, %v1267
    %v1332 = vsel %vm1204, %v1140, %v1268
    %v1333 = vsel %vm1205, %v1141, %v1269
    %v1334 = vsel %vm1206, %v1142, %v1270
    %v1335 = vsel %vm1207, %v1143, %v1271
    %v1336 = vsel %vm1208, %v1144, %v1272
    %v1337 = vsel %vm1209, %v1145, %v1273
    %v1338 = vsel %vm1210, %v1146, %v1274
    %v1339 = vsel %vm1211, %v1147, %v1275
    %v1340 = vsel %vm1212, %v1148, %v1276
    %v1341 = vsel %vm1213, %v1149, %v1277
    %v1342 = vsel %vm1214, %v1150, %v1278
    %v1343 = vsel %vm1215, %v1151, %v1279
    %v1344 = vsel %vm1216, %v1152, %v1280
    %v1345 = vsel %vm1217, %v1153, %v1281
    %v1346 = vsel %vm1218, %v1154, %v1282
    %v1347 = vsel %vm1219, %v1155, %v1283
    %v1348 = vsel %vm1220, %v1156, %v1284
    %v1349 = vsel %vm1221, %v1157, %v1285
    %v1350 = vsel %vm1222, %v1158, %v1286
    %v1351 = vsel %vm1223, %v1159, %v1287
    %v1352 = vsel %vm1224, %v1160, %v1288
    %v1353 = vsel %vm1225, %v1161, %v1289
    %v1354 = vsel %vm1226, %v1162, %v1290
    %v1355 = vsel %vm1227, %v1163, %v1291
    %v1356 = vsel %vm1228, %v1164, %v1292
    %v1357 = vsel %vm1229, %v1165, %v1293
    %v1358 = vsel %vm1230, %v1166, %v1294
    %v1359 = vsel %vm1231, %v1167, %v1295
    %v1360 = vsel %vm1232, %v1168, %v1296
    %v1361 = vsel %vm1233, %v1169, %v1297
    %v1362 = vsel %vm1234, %v1170, %v1298
    %v1363 = vsel %vm1235, %v1171, %v1299
    %v1364 = vsel %vm1236, %v1172, %v1300
    %v1365 = vsel %vm1237, %v1173, %v1301
    %v1366 = vsel %vm1238, %v1174, %v1302
    %v1367 = vsel %vm1239, %v1175, %v1303
    %v1368 = vsel %vm1240, %v1176, %v1304
    %v1369 = vsel %vm1241, %v1177, %v1305
    %v1370 = vsel %vm1242, %v1178, %v1306
    %v1371 = vsel %vm1243, %v1179, %v1307
    %v1372 = vsel %vm1244, %v1180, %v1308
    %v1373 = vsel %vm1245, %v1181, %v1309
    %v1374 = vsel %vm1246, %v1182, %v1310
    %v1375 = vsel %vm1247, %v1183, %v1311
    %v1376 = vsel %vm1248, %v1184, %v1312
    %v1377 = vsel %vm1249, %v1185, %v1313
    %v1378 = vsel %vm1250, %v1186, %v1314
    %v1379 = vsel %vm1251, %v1187, %v1315
    %v1380 = vsel %vm1252, %v1188, %v1316
    %v1381 = vsel %vm1253, %v1189, %v1317
    %v1382 = vsel %vm1254, %v1190, %v1318
    %v1383 = vsel %vm1255, %v1191, %v1319
    %v1384 = vsel %vm1256, %v1192, %v1320
    %v1385 = vsel %vm1257, %v1193, %v1321
    %v1386 = vsel %vm1258, %v1194, %v1322
    %v1387 = vsel %vm1259, %v1195, %v1323
    %v1388 = vsel %vm1260, %v1196, %v1324
    %v1389 = vpack.c.bf16 %v1326, %v1325
    %v1390 = vpack.c.bf16 %v1328, %v1327
    %v1391 = vpack.c.bf16 %v1330, %v1329
    %v1392 = vpack.c.bf16 %v1332, %v1331
    %v1393 = vpack.c.bf16 %v1334, %v1333
    %v1394 = vpack.c.bf16 %v1336, %v1335
    %v1395 = vpack.c.bf16 %v1338, %v1337
    %v1396 = vpack.c.bf16 %v1340, %v1339
    %v1397 = vpack.c.bf16 %v1342, %v1341
    %v1398 = vpack.c.bf16 %v1344, %v1343
    %v1399 = vpack.c.bf16 %v1346, %v1345
    %v1400 = vpack.c.bf16 %v1348, %v1347
    %v1401 = vpack.c.bf16 %v1350, %v1349
    %v1402 = vpack.c.bf16 %v1352, %v1351
    %v1403 = vpack.c.bf16 %v1354, %v1353
    %v1404 = vpack.c.bf16 %v1356, %v1355
    %v1405 = vpack.c.bf16 %v1358, %v1357
    %v1406 = vpack.c.bf16 %v1360, %v1359
    %v1407 = vpack.c.bf16 %v1362, %v1361
    %v1408 = vpack.c.bf16 %v1364, %v1363
    %v1409 = vpack.c.bf16 %v1366, %v1365
    %v1410 = vpack.c.bf16 %v1368, %v1367
    %v1411 = vpack.c.bf16 %v1370, %v1369
    %v1412 = vpack.c.bf16 %v1372, %v1371
    %v1413 = vpack.c.bf16 %v1374, %v1373
    %v1414 = vpack.c.bf16 %v1376, %v1375
    %v1415 = vpack.c.bf16 %v1378, %v1377
    %v1416 = vpack.c.bf16 %v1380, %v1379
    %v1417 = vpack.c.bf16 %v1382, %v1381
    %v1418 = vpack.c.bf16 %v1384, %v1383
    %v1419 = vpack.c.bf16 %v1386, %v1385
    %v1420 = vpack.c.bf16 %v1388, %v1387
    %v1453 = vunpack.c.l.b16 %v1389
    %v1454 = vunpack.c.h.b16 %v1389
    %v1455 = vunpack.c.l.b16 %v1390
    %v1456 = vunpack.c.h.b16 %v1390
    %v1457 = vunpack.c.l.b16 %v1391
    %v1458 = vunpack.c.h.b16 %v1391
    %v1459 = vunpack.c.l.b16 %v1392
    %v1460 = vunpack.c.h.b16 %v1392
    %v1461 = vunpack.c.l.b16 %v1393
    %v1462 = vunpack.c.h.b16 %v1393
    %v1463 = vunpack.c.l.b16 %v1394
    %v1464 = vunpack.c.h.b16 %v1394
    %v1465 = vunpack.c.l.b16 %v1395
    %v1466 = vunpack.c.h.b16 %v1395
    %v1467 = vunpack.c.l.b16 %v1396
    %v1468 = vunpack.c.h.b16 %v1396
    %v1469 = vunpack.c.l.b16 %v1397
    %v1470 = vunpack.c.h.b16 %v1397
    %v1471 = vunpack.c.l.b16 %v1398
    %v1472 = vunpack.c.h.b16 %v1398
    %v1473 = vunpack.c.l.b16 %v1399
    %v1474 = vunpack.c.h.b16 %v1399
    %v1475 = vunpack.c.l.b16 %v1400
    %v1476 = vunpack.c.h.b16 %v1400
    %v1477 = vunpack.c.l.b16 %v1401
    %v1478 = vunpack.c.h.b16 %v1401
    %v1479 = vunpack.c.l.b16 %v1402
    %v1480 = vunpack.c.h.b16 %v1402
    %v1481 = vunpack.c.l.b16 %v1403
    %v1482 = vunpack.c.h.b16 %v1403
    %v1483 = vunpack.c.l.b16 %v1404
    %v1484 = vunpack.c.h.b16 %v1404
    %v1485 = vunpack.c.l.b16 %v1405
    %v1486 = vunpack.c.h.b16 %v1405
    %v1487 = vunpack.c.l.b16 %v1406
    %v1488 = vunpack.c.h.b16 %v1406
    %v1489 = vunpack.c.l.b16 %v1407
    %v1490 = vunpack.c.h.b16 %v1407
    %v1491 = vunpack.c.l.b16 %v1408
    %v1492 = vunpack.c.h.b16 %v1408
    %v1493 = vunpack.c.l.b16 %v1409
    %v1494 = vunpack.c.h.b16 %v1409
    %v1495 = vunpack.c.l.b16 %v1410
    %v1496 = vunpack.c.h.b16 %v1410
    %v1497 = vunpack.c.l.b16 %v1411
    %v1498 = vunpack.c.h.b16 %v1411
    %v1499 = vunpack.c.l.b16 %v1412
    %v1500 = vunpack.c.h.b16 %v1412
    %v1501 = vunpack.c.l.b16 %v1413
    %v1502 = vunpack.c.h.b16 %v1413
    %v1503 = vunpack.c.l.b16 %v1414
    %v1504 = vunpack.c.h.b16 %v1414
    %v1505 = vunpack.c.l.b16 %v1415
    %v1506 = vunpack.c.h.b16 %v1415
    %v1507 = vunpack.c.l.b16 %v1416
    %v1508 = vunpack.c.h.b16 %v1416
    %v1509 = vunpack.c.l.b16 %v1417
    %v1510 = vunpack.c.h.b16 %v1417
    %v1511 = vunpack.c.l.b16 %v1418
    %v1512 = vunpack.c.h.b16 %v1418
    %v1513 = vunpack.c.l.b16 %v1419
    %v1514 = vunpack.c.h.b16 %v1419
    %v1515 = vunpack.c.l.b16 %v1420
    %v1516 = vunpack.c.h.b16 %v1420
    %v1517 = vpack.c.b16 %v1453, %v1453
    %v1518 = vpack.c.b16 %v1454, %v1454
    %v1519 = vpack.c.b16 %v1455, %v1455
    %v1520 = vpack.c.b16 %v1456, %v1456
    %v1521 = vpack.c.b16 %v1457, %v1457
    %v1522 = vpack.c.b16 %v1458, %v1458
    %v1523 = vpack.c.b16 %v1459, %v1459
    %v1524 = vpack.c.b16 %v1460, %v1460
    %v1525 = vpack.c.b16 %v1461, %v1461
    %v1526 = vpack.c.b16 %v1462, %v1462
    %v1527 = vpack.c.b16 %v1463, %v1463
    %v1528 = vpack.c.b16 %v1464, %v1464
    %v1529 = vpack.c.b16 %v1465, %v1465
    %v1530 = vpack.c.b16 %v1466, %v1466
    %v1531 = vpack.c.b16 %v1467, %v1467
    %v1532 = vpack.c.b16 %v1468, %v1468
    %v1533 = vpack.c.b16 %v1469, %v1469
    %v1534 = vpack.c.b16 %v1470, %v1470
    %v1535 = vpack.c.b16 %v1471, %v1471
    %v1536 = vpack.c.b16 %v1472, %v1472
    %v1537 = vpack.c.b16 %v1473, %v1473
    %v1538 = vpack.c.b16 %v1474, %v1474
    %v1539 = vpack.c.b16 %v1475, %v1475
    %v1540 = vpack.c.b16 %v1476, %v1476
    %v1541 = vpack.c.b16 %v1477, %v1477
    %v1542 = vpack.c.b16 %v1478, %v1478
    %v1543 = vpack.c.b16 %v1479, %v1479
    %v1544 = vpack.c.b16 %v1480, %v1480
    %v1545 = vpack.c.b16 %v1481, %v1481
    %v1546 = vpack.c.b16 %v1482, %v1482
    %v1547 = vpack.c.b16 %v1483, %v1483
    %v1548 = vpack.c.b16 %v1484, %v1484
    %v1549 = vpack.c.b16 %v1485, %v1485
    %v1550 = vpack.c.b16 %v1486, %v1486
    %v1551 = vpack.c.b16 %v1487, %v1487
    %v1552 = vpack.c.b16 %v1488, %v1488
    %v1553 = vpack.c.b16 %v1489, %v1489
    %v1554 = vpack.c.b16 %v1490, %v1490
    %v1555 = vpack.c.b16 %v1491, %v1491
    %v1556 = vpack.c.b16 %v1492, %v1492
    %v1557 = vpack.c.b16 %v1493, %v1493
    %v1558 = vpack.c.b16 %v1494, %v1494
    %v1559 = vpack.c.b16 %v1495, %v1495
    %v1560 = vpack.c.b16 %v1496, %v1496
    %v1561 = vpack.c.b16 %v1497, %v1497
    %v1562 = vpack.c.b16 %v1498, %v1498
    %v1563 = vpack.c.b16 %v1499, %v1499
    %v1564 = vpack.c.b16 %v1500, %v1500
    %v1565 = vpack.c.b16 %v1501, %v1501
    %v1566 = vpack.c.b16 %v1502, %v1502
    %v1567 = vpack.c.b16 %v1503, %v1503
    %v1568 = vpack.c.b16 %v1504, %v1504
    %v1569 = vpack.c.b16 %v1505, %v1505
    %v1570 = vpack.c.b16 %v1506, %v1506
    %v1571 = vpack.c.b16 %v1507, %v1507
    %v1572 = vpack.c.b16 %v1508, %v1508
    %v1573 = vpack.c.b16 %v1509, %v1509
    %v1574 = vpack.c.b16 %v1510, %v1510
    %v1575 = vpack.c.b16 %v1511, %v1511
    %v1576 = vpack.c.b16 %v1512, %v1512
    %v1577 = vpack.c.b16 %v1513, %v1513
    %v1578 = vpack.c.b16 %v1514, %v1514
    %v1579 = vpack.c.b16 %v1515, %v1515
    %v1580 = vpack.c.b16 %v1516, %v1516
    %1645 = vst [vmem:[%s4] sm:$0xf] %v1517
    %1646 = vst [vmem:[%s4 + $0x4] sm:$0xf] %v1518
    %1647 = vst [vmem:[%s4 + $0x8] sm:$0xf] %v1519
    %1648 = vst [vmem:[%s4 + $0xc] sm:$0xf] %v1520
    %1649 = vst [vmem:[%s4 + $0x10] sm:$0xf] %v1521
    %1650 = vst [vmem:[%s4 + $0x14] sm:$0xf] %v1522
    %1651 = vst [vmem:[%s4 + $0x18] sm:$0xf] %v1523
    %1652 = vst [vmem:[%s4 + $0x1c] sm:$0xf] %v1524
    %1653 = vst [vmem:[%s4 + $0x20] sm:$0xf] %v1525
    %1654 = vst [vmem:[%s4 + $0x24] sm:$0xf] %v1526
    %1655 = vst [vmem:[%s4 + $0x28] sm:$0xf] %v1527
    %1656 = vst [vmem:[%s4 + $0x2c] sm:$0xf] %v1528
    %1657 = vst [vmem:[%s4 + $0x30] sm:$0xf] %v1529
    %1658 = vst [vmem:[%s4 + $0x34] sm:$0xf] %v1530
    %1659 = vst [vmem:[%s4 + $0x38] sm:$0xf] %v1531
    %1660 = vst [vmem:[%s4 + $0x3c] sm:$0xf] %v1532
    %1661 = vst [vmem:[%s4 + $0x40] sm:$0xf] %v1533
    %1662 = vst [vmem:[%s4 + $0x44] sm:$0xf] %v1534
    %1663 = vst [vmem:[%s4 + $0x48] sm:$0xf] %v1535
    %1664 = vst [vmem:[%s4 + $0x4c] sm:$0xf] %v1536
    %1665 = vst [vmem:[%s4 + $0x50] sm:$0xf] %v1537
    %1666 = vst [vmem:[%s4 + $0x54] sm:$0xf] %v1538
    %1667 = vst [vmem:[%s4 + $0x58] sm:$0xf] %v1539
    %1668 = vst [vmem:[%s4 + $0x5c] sm:$0xf] %v1540
    %1669 = vst [vmem:[%s4 + $0x60] sm:$0xf] %v1541
    %1670 = vst [vmem:[%s4 + $0x64] sm:$0xf] %v1542
    %1671 = vst [vmem:[%s4 + $0x68] sm:$0xf] %v1543
    %1672 = vst [vmem:[%s4 + $0x6c] sm:$0xf] %v1544
    %1673 = vst [vmem:[%s4 + $0x70] sm:$0xf] %v1545
    %1674 = vst [vmem:[%s4 + $0x74] sm:$0xf] %v1546
    %1675 = vst [vmem:[%s4 + $0x78] sm:$0xf] %v1547
    %1676 = vst [vmem:[%s4 + $0x7c] sm:$0xf] %v1548
    %1677 = vst [vmem:[%s4 + $0x80] sm:$0xf] %v1549
    %1678 = vst [vmem:[%s4 + $0x84] sm:$0xf] %v1550
    %1679 = vst [vmem:[%s4 + $0x88] sm:$0xf] %v1551
    %1680 = vst [vmem:[%s4 + $0x8c] sm:$0xf] %v1552
    %1681 = vst [vmem:[%s4 + $0x90] sm:$0xf] %v1553
    %1682 = vst [vmem:[%s4 + $0x94] sm:$0xf] %v1554
    %1683 = vst [vmem:[%s4 + $0x98] sm:$0xf] %v1555
    %1684 = vst [vmem:[%s4 + $0x9c] sm:$0xf] %v1556
    %1685 = vst [vmem:[%s4 + $0xa0] sm:$0xf] %v1557
    %1686 = vst [vmem:[%s4 + $0xa4] sm:$0xf] %v1558
    %1687 = vst [vmem:[%s4 + $0xa8] sm:$0xf] %v1559
    %1688 = vst [vmem:[%s4 + $0xac] sm:$0xf] %v1560
    %1689 = vst [vmem:[%s4 + $0xb0] sm:$0xf] %v1561
    %1690 = vst [vmem:[%s4 + $0xb4] sm:$0xf] %v1562
    %1691 = vst [vmem:[%s4 + $0xb8] sm:$0xf] %v1563
    %1692 = vst [vmem:[%s4 + $0xbc] sm:$0xf] %v1564
    %1693 = vst [vmem:[%s4 + $0xc0] sm:$0xf] %v1565
    %1694 = vst [vmem:[%s4 + $0xc4] sm:$0xf] %v1566
    %1695 = vst [vmem:[%s4 + $0xc8] sm:$0xf] %v1567
    %1696 = vst [vmem:[%s4 + $0xcc] sm:$0xf] %v1568
    %1697 = vst [vmem:[%s4 + $0xd0] sm:$0xf] %v1569
    %1698 = vst [vmem:[%s4 + $0xd4] sm:$0xf] %v1570
    %1699 = vst [vmem:[%s4 + $0xd8] sm:$0xf] %v1571
    %1700 = vst [vmem:[%s4 + $0xdc] sm:$0xf] %v1572
    %1701 = vst [vmem:[%s4 + $0xe0] sm:$0xf] %v1573
    %1702 = vst [vmem:[%s4 + $0xe4] sm:$0xf] %v1574
    %1703 = vst [vmem:[%s4 + $0xe8] sm:$0xf] %v1575
    %1704 = vst [vmem:[%s4 + $0xec] sm:$0xf] %v1576
    %1705 = vst [vmem:[%s4 + $0xf0] sm:$0xf] %v1577
    %1706 = vst [vmem:[%s4 + $0xf4] sm:$0xf] %v1578
    %1707 = vst [vmem:[%s4 + $0xf8] sm:$0xf] %v1579
    %1708 = vst [vmem:[%s4 + $0xfc] sm:$0xf] %v1580
    // Predicated region
    $region30: #{discriminator_forward.4} parent=1 // pred_check
      _
    $region31: #{discriminator_forward.4} parent=1 // pred_check_branch
      %1710 = sbr.rel (0) target = $region33
    $region32: #{discriminator_forward.4} parent=1 // pred_region
      _
    $region33: #{discriminator_forward.4} parent=1 // pred_fallthru
      _
    // Predicated region
    $region34: #{discriminator_forward.4} parent=1 // pred_check
      _
    $region35: #{discriminator_forward.4} parent=1 // pred_check_branch
      %1712 = sbr.rel (0) target = $region37
    $region36: #{discriminator_forward.4} parent=1 // pred_region
      _
    $region37: #{discriminator_forward.4} parent=1 // pred_fallthru
      _
    %1713 = vsyncpa [#allocation3], 1
    %1714 = vsyncpa [#allocation5], 1

// kernel: discriminator_forward.5
$region0: #{discriminator_forward.5}
  #allocation0 [shape = 'u32[]', space=smem, size = 0x4, offset = 0x4, fixed_abs, tag = 'smem constant byte address 0x4 - core index']
  #allocation1 [shape = 'u32[144,128]{1,0:T(1,128)}', space=vmem, size = 0x12000, scoped, tag = 'internal scratch']
  %s0 = inlined_call_operand.vmem [shape: bf16[128,1152], index: 0, kind: input, shape index: {}]
  %s1 = inlined_call_operand.vmem [shape: bf16[1152,128], index: 1, kind: input, shape index: {}]
  %s2 = inlined_call_operand.vmem [shape: f32[1,128], index: 2, kind: input, shape index: {}]
  %s3 = inlined_call_operand.vmem [shape: f32[1,128], index: 3, kind: input, shape index: {}]
  %s4 = inlined_call_operand.vmem [shape: bf16[128,128], index: 4, kind: output, shape index: {}]
  %s5 = sld [smem:[#allocation0]]
  $region26: #{discriminator_forward.5} parent=0
    _
  %s7 = ssub.s32 1, %s5
  %s8 = scalar_select 0, %s7, %s5
  // Predicated region
  $region2: #{discriminator_forward.5} parent=0 // pred_check
    _
  $region3: #{discriminator_forward.5} parent=0 // pred_check_branch
    %10 = sbr.rel (0) target = $region5
  $region4: #{discriminator_forward.5} parent=0 // pred_region
    _
  $region5: #{discriminator_forward.5} parent=0 // pred_fallthru
    _
  // Predicated region
  $region6: #{discriminator_forward.5} parent=0 // pred_check
    _
  $region7: #{discriminator_forward.5} parent=0 // pred_check_branch
    %12 = sbr.rel (0) target = $region9
  $region8: #{discriminator_forward.5} parent=0 // pred_region
    _
  $region9: #{discriminator_forward.5} parent=0 // pred_fallthru
    _
  // Predicated region
  $region10: #{discriminator_forward.5} parent=0 // pred_check
    _
  $region11: #{discriminator_forward.5} parent=0 // pred_check_branch
    %14 = sbr.rel (0) target = $region13
  $region12: #{discriminator_forward.5} parent=0 // pred_region
    _
  $region13: #{discriminator_forward.5} parent=0 // pred_fallthru
    _
  // Predicated region
  $region14: #{discriminator_forward.5} parent=0 // pred_check
    _
  $region15: #{discriminator_forward.5} parent=0 // pred_check_branch
    %16 = sbr.rel (0) target = $region17
  $region16: #{discriminator_forward.5} parent=0 // pred_region
    _
  $region17: #{discriminator_forward.5} parent=0 // pred_fallthru
    _
  %v18 = vld [vmem:[%s0] sm:$0xff]
  %v19 = vld [vmem:[%s0 + $0x8] sm:$0xff]
  %v20 = vld [vmem:[%s0 + $0x10] sm:$0xff]
  %v21 = vld [vmem:[%s0 + $0x18] sm:$0xff]
  %v22 = vld [vmem:[%s0 + $0x20] sm:$0xf]
  %v23 = vld [vmem:[%s0 + $0x24] sm:$0xff]
  %v24 = vld [vmem:[%s0 + $0x2c] sm:$0xff]
  %v25 = vld [vmem:[%s0 + $0x34] sm:$0xff]
  %v26 = vld [vmem:[%s0 + $0x3c] sm:$0xff]
  %v27 = vld [vmem:[%s0 + $0x44] sm:$0xf]
  %v28 = vld [vmem:[%s0 + $0x48] sm:$0xff]
  %v29 = vld [vmem:[%s0 + $0x50] sm:$0xff]
  %v30 = vld [vmem:[%s0 + $0x58] sm:$0xff]
  %v31 = vld [vmem:[%s0 + $0x60] sm:$0xff]
  %v32 = vld [vmem:[%s0 + $0x68] sm:$0xf]
  %v33 = vld [vmem:[%s0 + $0x6c] sm:$0xff]
  %v34 = vld [vmem:[%s0 + $0x74] sm:$0xff]
  %v35 = vld [vmem:[%s0 + $0x7c] sm:$0xff]
  %v36 = vld [vmem:[%s0 + $0x84] sm:$0xff]
  %v37 = vld [vmem:[%s0 + $0x8c] sm:$0xf]
  %v38 = vld [vmem:[%s0 + $0x90] sm:$0xff]
  %v39 = vld [vmem:[%s0 + $0x98] sm:$0xff]
  %v40 = vld [vmem:[%s0 + $0xa0] sm:$0xff]
  %v41 = vld [vmem:[%s0 + $0xa8] sm:$0xff]
  %v42 = vld [vmem:[%s0 + $0xb0] sm:$0xf]
  %v43 = vld [vmem:[%s0 + $0xb4] sm:$0xff]
  %v44 = vld [vmem:[%s0 + $0xbc] sm:$0xff]
  %v45 = vld [vmem:[%s0 + $0xc4] sm:$0xff]
  %v46 = vld [vmem:[%s0 + $0xcc] sm:$0xff]
  %v47 = vld [vmem:[%s0 + $0xd4] sm:$0xf]
  %v48 = vld [vmem:[%s0 + $0xd8] sm:$0xff]
  %v49 = vld [vmem:[%s0 + $0xe0] sm:$0xff]
  %v50 = vld [vmem:[%s0 + $0xe8] sm:$0xff]
  %v51 = vld [vmem:[%s0 + $0xf0] sm:$0xff]
  %v52 = vld [vmem:[%s0 + $0xf8] sm:$0xf]
  %v53 = vld [vmem:[%s0 + $0xfc] sm:$0xff]
  %v54 = vld [vmem:[%s0 + $0x104] sm:$0xff]
  %v55 = vld [vmem:[%s0 + $0x10c] sm:$0xff]
  %v56 = vld [vmem:[%s0 + $0x114] sm:$0xff]
  %v57 = vld [vmem:[%s0 + $0x11c] sm:$0xf]
  %v58 = vld [vmem:[%s0 + $0x120] sm:$0xff]
  %v59 = vld [vmem:[%s0 + $0x128] sm:$0xff]
  %v60 = vld [vmem:[%s0 + $0x130] sm:$0xff]
  %v61 = vld [vmem:[%s0 + $0x138] sm:$0xff]
  %v62 = vld [vmem:[%s0 + $0x140] sm:$0xf]
  %v63 = vld [vmem:[%s0 + $0x144] sm:$0xff]
  %v64 = vld [vmem:[%s0 + $0x14c] sm:$0xff]
  %v65 = vld [vmem:[%s0 + $0x154] sm:$0xff]
  %v66 = vld [vmem:[%s0 + $0x15c] sm:$0xff]
  %v67 = vld [vmem:[%s0 + $0x164] sm:$0xf]
  %v68 = vld [vmem:[%s0 + $0x168] sm:$0xff]
  %v69 = vld [vmem:[%s0 + $0x170] sm:$0xff]
  %v70 = vld [vmem:[%s0 + $0x178] sm:$0xff]
  %v71 = vld [vmem:[%s0 + $0x180] sm:$0xff]
  %v72 = vld [vmem:[%s0 + $0x188] sm:$0xf]
  %v73 = vld [vmem:[%s0 + $0x18c] sm:$0xff]
  %v74 = vld [vmem:[%s0 + $0x194] sm:$0xff]
  %v75 = vld [vmem:[%s0 + $0x19c] sm:$0xff]
  %v76 = vld [vmem:[%s0 + $0x1a4] sm:$0xff]
  %v77 = vld [vmem:[%s0 + $0x1ac] sm:$0xf]
  %v78 = vld [vmem:[%s0 + $0x1b0] sm:$0xff]
  %v79 = vld [vmem:[%s0 + $0x1b8] sm:$0xff]
  %v80 = vld [vmem:[%s0 + $0x1c0] sm:$0xff]
  %v81 = vld [vmem:[%s0 + $0x1c8] sm:$0xff]
  %v82 = vld [vmem:[%s0 + $0x1d0] sm:$0xf]
  %v83 = vld [vmem:[%s0 + $0x1d4] sm:$0xff]
  %v84 = vld [vmem:[%s0 + $0x1dc] sm:$0xff]
  %v85 = vld [vmem:[%s0 + $0x1e4] sm:$0xff]
  %v86 = vld [vmem:[%s0 + $0x1ec] sm:$0xff]
  %v87 = vld [vmem:[%s0 + $0x1f4] sm:$0xf]
  %v88 = vld [vmem:[%s0 + $0x1f8] sm:$0xff]
  %v89 = vld [vmem:[%s0 + $0x200] sm:$0xff]
  %v90 = vld [vmem:[%s0 + $0x208] sm:$0xff]
  %v91 = vld [vmem:[%s0 + $0x210] sm:$0xff]
  %v92 = vld [vmem:[%s0 + $0x218] sm:$0xf]
  %v93 = vld [vmem:[%s0 + $0x21c] sm:$0xff]
  %v94 = vld [vmem:[%s0 + $0x224] sm:$0xff]
  %v95 = vld [vmem:[%s0 + $0x22c] sm:$0xff]
  %v96 = vld [vmem:[%s0 + $0x234] sm:$0xff]
  %v97 = vld [vmem:[%s0 + $0x23c] sm:$0xf]
  %v98 = vld [vmem:[%s1] sm:$0xf]
  %v99 = vld [vmem:[%s1 + $0x4] sm:$0xf]
  %v100 = vld [vmem:[%s1 + $0x8] sm:$0xf]
  %v101 = vld [vmem:[%s1 + $0xc] sm:$0xf]
  %v102 = vld [vmem:[%s1 + $0x10] sm:$0xf]
  %v103 = vld [vmem:[%s1 + $0x14] sm:$0xf]
  %v104 = vld [vmem:[%s1 + $0x18] sm:$0xf]
  %v105 = vld [vmem:[%s1 + $0x1c] sm:$0xf]
  %v106 = vld [vmem:[%s1 + $0x20] sm:$0xf]
  %v107 = vld [vmem:[%s1 + $0x24] sm:$0xf]
  %v108 = vld [vmem:[%s1 + $0x28] sm:$0xf]
  %v109 = vld [vmem:[%s1 + $0x2c] sm:$0xf]
  %v110 = vld [vmem:[%s1 + $0x30] sm:$0xf]
  %v111 = vld [vmem:[%s1 + $0x34] sm:$0xf]
  %v112 = vld [vmem:[%s1 + $0x38] sm:$0xf]
  %v113 = vld [vmem:[%s1 + $0x3c] sm:$0xf]
  %v114 = vld [vmem:[%s1 + $0x40] sm:$0xf]
  %v115 = vld [vmem:[%s1 + $0x44] sm:$0xf]
  %v116 = vld [vmem:[%s1 + $0x48] sm:$0xf]
  %v117 = vld [vmem:[%s1 + $0x4c] sm:$0xf]
  %v118 = vld [vmem:[%s1 + $0x50] sm:$0xf]
  %v119 = vld [vmem:[%s1 + $0x54] sm:$0xf]
  %v120 = vld [vmem:[%s1 + $0x58] sm:$0xf]
  %v121 = vld [vmem:[%s1 + $0x5c] sm:$0xf]
  %v122 = vld [vmem:[%s1 + $0x60] sm:$0xf]
  %v123 = vld [vmem:[%s1 + $0x64] sm:$0xf]
  %v124 = vld [vmem:[%s1 + $0x68] sm:$0xf]
  %v125 = vld [vmem:[%s1 + $0x6c] sm:$0xf]
  %v126 = vld [vmem:[%s1 + $0x70] sm:$0xf]
  %v127 = vld [vmem:[%s1 + $0x74] sm:$0xf]
  %v128 = vld [vmem:[%s1 + $0x78] sm:$0xf]
  %v129 = vld [vmem:[%s1 + $0x7c] sm:$0xf]
  %v130 = vld [vmem:[%s1 + $0x80] sm:$0xf]
  %v131 = vld [vmem:[%s1 + $0x84] sm:$0xf]
  %v132 = vld [vmem:[%s1 + $0x88] sm:$0xf]
  %v133 = vld [vmem:[%s1 + $0x8c] sm:$0xf]
  %v134 = vld [vmem:[%s1 + $0x90] sm:$0xf]
  %v135 = vld [vmem:[%s1 + $0x94] sm:$0xf]
  %v136 = vld [vmem:[%s1 + $0x98] sm:$0xf]
  %v137 = vld [vmem:[%s1 + $0x9c] sm:$0xf]
  %v138 = vld [vmem:[%s1 + $0xa0] sm:$0xf]
  %v139 = vld [vmem:[%s1 + $0xa4] sm:$0xf]
  %v140 = vld [vmem:[%s1 + $0xa8] sm:$0xf]
  %v141 = vld [vmem:[%s1 + $0xac] sm:$0xf]
  %v142 = vld [vmem:[%s1 + $0xb0] sm:$0xf]
  %v143 = vld [vmem:[%s1 + $0xb4] sm:$0xf]
  %v144 = vld [vmem:[%s1 + $0xb8] sm:$0xf]
  %v145 = vld [vmem:[%s1 + $0xbc] sm:$0xf]
  %v146 = vld [vmem:[%s1 + $0xc0] sm:$0xf]
  %v147 = vld [vmem:[%s1 + $0xc4] sm:$0xf]
  %v148 = vld [vmem:[%s1 + $0xc8] sm:$0xf]
  %v149 = vld [vmem:[%s1 + $0xcc] sm:$0xf]
  %v150 = vld [vmem:[%s1 + $0xd0] sm:$0xf]
  %v151 = vld [vmem:[%s1 + $0xd4] sm:$0xf]
  %v152 = vld [vmem:[%s1 + $0xd8] sm:$0xf]
  %v153 = vld [vmem:[%s1 + $0xdc] sm:$0xf]
  %v154 = vld [vmem:[%s1 + $0xe0] sm:$0xf]
  %v155 = vld [vmem:[%s1 + $0xe4] sm:$0xf]
  %v156 = vld [vmem:[%s1 + $0xe8] sm:$0xf]
  %v157 = vld [vmem:[%s1 + $0xec] sm:$0xf]
  %v158 = vld [vmem:[%s1 + $0xf0] sm:$0xf]
  %v159 = vld [vmem:[%s1 + $0xf4] sm:$0xf]
  %v160 = vld [vmem:[%s1 + $0xf8] sm:$0xf]
  %v161 = vld [vmem:[%s1 + $0xfc] sm:$0xf]
  %v162 = vld [vmem:[%s1 + $0x100] sm:$0xf]
  %v163 = vld [vmem:[%s1 + $0x104] sm:$0xf]
  %v164 = vld [vmem:[%s1 + $0x108] sm:$0xf]
  %v165 = vld [vmem:[%s1 + $0x10c] sm:$0xf]
  %v166 = vld [vmem:[%s1 + $0x110] sm:$0xf]
  %v167 = vld [vmem:[%s1 + $0x114] sm:$0xf]
  %v168 = vld [vmem:[%s1 + $0x118] sm:$0xf]
  %v169 = vld [vmem:[%s1 + $0x11c] sm:$0xf]
  %v170 = vld [vmem:[%s1 + $0x120] sm:$0xf]
  %v171 = vld [vmem:[%s1 + $0x124] sm:$0xf]
  %v172 = vld [vmem:[%s1 + $0x128] sm:$0xf]
  %v173 = vld [vmem:[%s1 + $0x12c] sm:$0xf]
  %v174 = vld [vmem:[%s1 + $0x130] sm:$0xf]
  %v175 = vld [vmem:[%s1 + $0x134] sm:$0xf]
  %v176 = vld [vmem:[%s1 + $0x138] sm:$0xf]
  %v177 = vld [vmem:[%s1 + $0x13c] sm:$0xf]
  %v178 = vld [vmem:[%s1 + $0x140] sm:$0xf]
  %v179 = vld [vmem:[%s1 + $0x144] sm:$0xf]
  %v180 = vld [vmem:[%s1 + $0x148] sm:$0xf]
  %v181 = vld [vmem:[%s1 + $0x14c] sm:$0xf]
  %v182 = vld [vmem:[%s1 + $0x150] sm:$0xf]
  %v183 = vld [vmem:[%s1 + $0x154] sm:$0xf]
  %v184 = vld [vmem:[%s1 + $0x158] sm:$0xf]
  %v185 = vld [vmem:[%s1 + $0x15c] sm:$0xf]
  %v186 = vld [vmem:[%s1 + $0x160] sm:$0xf]
  %v187 = vld [vmem:[%s1 + $0x164] sm:$0xf]
  %v188 = vld [vmem:[%s1 + $0x168] sm:$0xf]
  %v189 = vld [vmem:[%s1 + $0x16c] sm:$0xf]
  %v190 = vld [vmem:[%s1 + $0x170] sm:$0xf]
  %v191 = vld [vmem:[%s1 + $0x174] sm:$0xf]
  %v192 = vld [vmem:[%s1 + $0x178] sm:$0xf]
  %v193 = vld [vmem:[%s1 + $0x17c] sm:$0xf]
  %v194 = vld [vmem:[%s1 + $0x180] sm:$0xf]
  %v195 = vld [vmem:[%s1 + $0x184] sm:$0xf]
  %v196 = vld [vmem:[%s1 + $0x188] sm:$0xf]
  %v197 = vld [vmem:[%s1 + $0x18c] sm:$0xf]
  %v198 = vld [vmem:[%s1 + $0x190] sm:$0xf]
  %v199 = vld [vmem:[%s1 + $0x194] sm:$0xf]
  %v200 = vld [vmem:[%s1 + $0x198] sm:$0xf]
  %v201 = vld [vmem:[%s1 + $0x19c] sm:$0xf]
  %v202 = vld [vmem:[%s1 + $0x1a0] sm:$0xf]
  %v203 = vld [vmem:[%s1 + $0x1a4] sm:$0xf]
  %v204 = vld [vmem:[%s1 + $0x1a8] sm:$0xf]
  %v205 = vld [vmem:[%s1 + $0x1ac] sm:$0xf]
  %v206 = vld [vmem:[%s1 + $0x1b0] sm:$0xf]
  %v207 = vld [vmem:[%s1 + $0x1b4] sm:$0xf]
  %v208 = vld [vmem:[%s1 + $0x1b8] sm:$0xf]
  %v209 = vld [vmem:[%s1 + $0x1bc] sm:$0xf]
  %v210 = vld [vmem:[%s1 + $0x1c0] sm:$0xf]
  %v211 = vld [vmem:[%s1 + $0x1c4] sm:$0xf]
  %v212 = vld [vmem:[%s1 + $0x1c8] sm:$0xf]
  %v213 = vld [vmem:[%s1 + $0x1cc] sm:$0xf]
  %v214 = vld [vmem:[%s1 + $0x1d0] sm:$0xf]
  %v215 = vld [vmem:[%s1 + $0x1d4] sm:$0xf]
  %v216 = vld [vmem:[%s1 + $0x1d8] sm:$0xf]
  %v217 = vld [vmem:[%s1 + $0x1dc] sm:$0xf]
  %v218 = vld [vmem:[%s1 + $0x1e0] sm:$0xf]
  %v219 = vld [vmem:[%s1 + $0x1e4] sm:$0xf]
  %v220 = vld [vmem:[%s1 + $0x1e8] sm:$0xf]
  %v221 = vld [vmem:[%s1 + $0x1ec] sm:$0xf]
  %v222 = vld [vmem:[%s1 + $0x1f0] sm:$0xf]
  %v223 = vld [vmem:[%s1 + $0x1f4] sm:$0xf]
  %v224 = vld [vmem:[%s1 + $0x1f8] sm:$0xf]
  %v225 = vld [vmem:[%s1 + $0x1fc] sm:$0xf]
  %v226 = vld [vmem:[%s1 + $0x200] sm:$0xf]
  %v227 = vld [vmem:[%s1 + $0x204] sm:$0xf]
  %v228 = vld [vmem:[%s1 + $0x208] sm:$0xf]
  %v229 = vld [vmem:[%s1 + $0x20c] sm:$0xf]
  %v230 = vld [vmem:[%s1 + $0x210] sm:$0xf]
  %v231 = vld [vmem:[%s1 + $0x214] sm:$0xf]
  %v232 = vld [vmem:[%s1 + $0x218] sm:$0xf]
  %v233 = vld [vmem:[%s1 + $0x21c] sm:$0xf]
  %v234 = vld [vmem:[%s1 + $0x220] sm:$0xf]
  %v235 = vld [vmem:[%s1 + $0x224] sm:$0xf]
  %v236 = vld [vmem:[%s1 + $0x228] sm:$0xf]
  %v237 = vld [vmem:[%s1 + $0x22c] sm:$0xf]
  %v238 = vld [vmem:[%s1 + $0x230] sm:$0xf]
  %v239 = vld [vmem:[%s1 + $0x234] sm:$0xf]
  %v240 = vld [vmem:[%s1 + $0x238] sm:$0xf]
  %v241 = vld [vmem:[%s1 + $0x23c] sm:$0xf]
  %v322 = vunpack.c.l.b16 %v18
  %v323 = vunpack.c.h.b16 %v18
  %v324 = vunpack.c.l.b16 %v19
  %v325 = vunpack.c.h.b16 %v19
  %v326 = vunpack.c.l.b16 %v20
  %v327 = vunpack.c.h.b16 %v20
  %v328 = vunpack.c.l.b16 %v21
  %v329 = vunpack.c.h.b16 %v21
  %v330 = vunpack.c.l.b16 %v22
  %v331 = vunpack.c.l.b16 %v23
  %v332 = vunpack.c.h.b16 %v23
  %v333 = vunpack.c.l.b16 %v24
  %v334 = vunpack.c.h.b16 %v24
  %v335 = vunpack.c.l.b16 %v25
  %v336 = vunpack.c.h.b16 %v25
  %v337 = vunpack.c.l.b16 %v26
  %v338 = vunpack.c.h.b16 %v26
  %v339 = vunpack.c.l.b16 %v27
  %v340 = vunpack.c.l.b16 %v28
  %v341 = vunpack.c.h.b16 %v28
  %v342 = vunpack.c.l.b16 %v29
  %v343 = vunpack.c.h.b16 %v29
  %v344 = vunpack.c.l.b16 %v30
  %v345 = vunpack.c.h.b16 %v30
  %v346 = vunpack.c.l.b16 %v31
  %v347 = vunpack.c.h.b16 %v31
  %v348 = vunpack.c.l.b16 %v32
  %v349 = vunpack.c.l.b16 %v33
  %v350 = vunpack.c.h.b16 %v33
  %v351 = vunpack.c.l.b16 %v34
  %v352 = vunpack.c.h.b16 %v34
  %v353 = vunpack.c.l.b16 %v35
  %v354 = vunpack.c.h.b16 %v35
  %v355 = vunpack.c.l.b16 %v36
  %v356 = vunpack.c.h.b16 %v36
  %v357 = vunpack.c.l.b16 %v37
  %v358 = vunpack.c.l.b16 %v38
  %v359 = vunpack.c.h.b16 %v38
  %v360 = vunpack.c.l.b16 %v39
  %v361 = vunpack.c.h.b16 %v39
  %v362 = vunpack.c.l.b16 %v40
  %v363 = vunpack.c.h.b16 %v40
  %v364 = vunpack.c.l.b16 %v41
  %v365 = vunpack.c.h.b16 %v41
  %v366 = vunpack.c.l.b16 %v42
  %v367 = vunpack.c.l.b16 %v43
  %v368 = vunpack.c.h.b16 %v43
  %v369 = vunpack.c.l.b16 %v44
  %v370 = vunpack.c.h.b16 %v44
  %v371 = vunpack.c.l.b16 %v45
  %v372 = vunpack.c.h.b16 %v45
  %v373 = vunpack.c.l.b16 %v46
  %v374 = vunpack.c.h.b16 %v46
  %v375 = vunpack.c.l.b16 %v47
  %v376 = vunpack.c.l.b16 %v48
  %v377 = vunpack.c.h.b16 %v48
  %v378 = vunpack.c.l.b16 %v49
  %v379 = vunpack.c.h.b16 %v49
  %v380 = vunpack.c.l.b16 %v50
  %v381 = vunpack.c.h.b16 %v50
  %v382 = vunpack.c.l.b16 %v51
  %v383 = vunpack.c.h.b16 %v51
  %v384 = vunpack.c.l.b16 %v52
  %v385 = vunpack.c.l.b16 %v53
  %v386 = vunpack.c.h.b16 %v53
  %v387 = vunpack.c.l.b16 %v54
  %v388 = vunpack.c.h.b16 %v54
  %v389 = vunpack.c.l.b16 %v55
  %v390 = vunpack.c.h.b16 %v55
  %v391 = vunpack.c.l.b16 %v56
  %v392 = vunpack.c.h.b16 %v56
  %v393 = vunpack.c.l.b16 %v57
  %v394 = vunpack.c.l.b16 %v58
  %v395 = vunpack.c.h.b16 %v58
  %v396 = vunpack.c.l.b16 %v59
  %v397 = vunpack.c.h.b16 %v59
  %v398 = vunpack.c.l.b16 %v60
  %v399 = vunpack.c.h.b16 %v60
  %v400 = vunpack.c.l.b16 %v61
  %v401 = vunpack.c.h.b16 %v61
  %v402 = vunpack.c.l.b16 %v62
  %v403 = vunpack.c.l.b16 %v63
  %v404 = vunpack.c.h.b16 %v63
  %v405 = vunpack.c.l.b16 %v64
  %v406 = vunpack.c.h.b16 %v64
  %v407 = vunpack.c.l.b16 %v65
  %v408 = vunpack.c.h.b16 %v65
  %v409 = vunpack.c.l.b16 %v66
  %v410 = vunpack.c.h.b16 %v66
  %v411 = vunpack.c.l.b16 %v67
  %v412 = vunpack.c.l.b16 %v68
  %v413 = vunpack.c.h.b16 %v68
  %v414 = vunpack.c.l.b16 %v69
  %v415 = vunpack.c.h.b16 %v69
  %v416 = vunpack.c.l.b16 %v70
  %v417 = vunpack.c.h.b16 %v70
  %v418 = vunpack.c.l.b16 %v71
  %v419 = vunpack.c.h.b16 %v71
  %v420 = vunpack.c.l.b16 %v72
  %v421 = vunpack.c.l.b16 %v73
  %v422 = vunpack.c.h.b16 %v73
  %v423 = vunpack.c.l.b16 %v74
  %v424 = vunpack.c.h.b16 %v74
  %v425 = vunpack.c.l.b16 %v75
  %v426 = vunpack.c.h.b16 %v75
  %v427 = vunpack.c.l.b16 %v76
  %v428 = vunpack.c.h.b16 %v76
  %v429 = vunpack.c.l.b16 %v77
  %v430 = vunpack.c.l.b16 %v78
  %v431 = vunpack.c.h.b16 %v78
  %v432 = vunpack.c.l.b16 %v79
  %v433 = vunpack.c.h.b16 %v79
  %v434 = vunpack.c.l.b16 %v80
  %v435 = vunpack.c.h.b16 %v80
  %v436 = vunpack.c.l.b16 %v81
  %v437 = vunpack.c.h.b16 %v81
  %v438 = vunpack.c.l.b16 %v82
  %v439 = vunpack.c.l.b16 %v83
  %v440 = vunpack.c.h.b16 %v83
  %v441 = vunpack.c.l.b16 %v84
  %v442 = vunpack.c.h.b16 %v84
  %v443 = vunpack.c.l.b16 %v85
  %v444 = vunpack.c.h.b16 %v85
  %v445 = vunpack.c.l.b16 %v86
  %v446 = vunpack.c.h.b16 %v86
  %v447 = vunpack.c.l.b16 %v87
  %v448 = vunpack.c.l.b16 %v88
  %v449 = vunpack.c.h.b16 %v88
  %v450 = vunpack.c.l.b16 %v89
  %v451 = vunpack.c.h.b16 %v89
  %v452 = vunpack.c.l.b16 %v90
  %v453 = vunpack.c.h.b16 %v90
  %v454 = vunpack.c.l.b16 %v91
  %v455 = vunpack.c.h.b16 %v91
  %v456 = vunpack.c.l.b16 %v92
  %v457 = vunpack.c.l.b16 %v93
  %v458 = vunpack.c.h.b16 %v93
  %v459 = vunpack.c.l.b16 %v94
  %v460 = vunpack.c.h.b16 %v94
  %v461 = vunpack.c.l.b16 %v95
  %v462 = vunpack.c.h.b16 %v95
  %v463 = vunpack.c.l.b16 %v96
  %v464 = vunpack.c.h.b16 %v96
  %v465 = vunpack.c.l.b16 %v97
  %v466 = vpack.c.b16 %v331, %v322
  %v467 = vpack.c.b16 %v332, %v323
  %v468 = vpack.c.b16 %v333, %v324
  %v469 = vpack.c.b16 %v334, %v325
  %v470 = vpack.c.b16 %v335, %v326
  %v471 = vpack.c.b16 %v336, %v327
  %v472 = vpack.c.b16 %v337, %v328
  %v473 = vpack.c.b16 %v338, %v329
  %v474 = vpack.c.b16 %v339, %v330
  %v475 = vpack.c.b16 %v349, %v340
  %v476 = vpack.c.b16 %v350, %v341
  %v477 = vpack.c.b16 %v351, %v342
  %v478 = vpack.c.b16 %v352, %v343
  %v479 = vpack.c.b16 %v353, %v344
  %v480 = vpack.c.b16 %v354, %v345
  %v481 = vpack.c.b16 %v355, %v346
  %v482 = vpack.c.b16 %v356, %v347
  %v483 = vpack.c.b16 %v357, %v348
  %v484 = vpack.c.b16 %v367, %v358
  %v485 = vpack.c.b16 %v368, %v359
  %v486 = vpack.c.b16 %v369, %v360
  %v487 = vpack.c.b16 %v370, %v361
  %v488 = vpack.c.b16 %v371, %v362
  %v489 = vpack.c.b16 %v372, %v363
  %v490 = vpack.c.b16 %v373, %v364
  %v491 = vpack.c.b16 %v374, %v365
  %v492 = vpack.c.b16 %v375, %v366
  %v493 = vpack.c.b16 %v385, %v376
  %v494 = vpack.c.b16 %v386, %v377
  %v495 = vpack.c.b16 %v387, %v378
  %v496 = vpack.c.b16 %v388, %v379
  %v497 = vpack.c.b16 %v389, %v380
  %v498 = vpack.c.b16 %v390, %v381
  %v499 = vpack.c.b16 %v391, %v382
  %v500 = vpack.c.b16 %v392, %v383
  %v501 = vpack.c.b16 %v393, %v384
  %v502 = vpack.c.b16 %v403, %v394
  %v503 = vpack.c.b16 %v404, %v395
  %v504 = vpack.c.b16 %v405, %v396
  %v505 = vpack.c.b16 %v406, %v397
  %v506 = vpack.c.b16 %v407, %v398
  %v507 = vpack.c.b16 %v408, %v399
  %v508 = vpack.c.b16 %v409, %v400
  %v509 = vpack.c.b16 %v410, %v401
  %v510 = vpack.c.b16 %v411, %v402
  %v511 = vpack.c.b16 %v421, %v412
  %v512 = vpack.c.b16 %v422, %v413
  %v513 = vpack.c.b16 %v423, %v414
  %v514 = vpack.c.b16 %v424, %v415
  %v515 = vpack.c.b16 %v425, %v416
  %v516 = vpack.c.b16 %v426, %v417
  %v517 = vpack.c.b16 %v427, %v418
  %v518 = vpack.c.b16 %v428, %v419
  %v519 = vpack.c.b16 %v429, %v420
  %v520 = vpack.c.b16 %v439, %v430
  %v521 = vpack.c.b16 %v440, %v431
  %v522 = vpack.c.b16 %v441, %v432
  %v523 = vpack.c.b16 %v442, %v433
  %v524 = vpack.c.b16 %v443, %v434
  %v525 = vpack.c.b16 %v444, %v435
  %v526 = vpack.c.b16 %v445, %v436
  %v527 = vpack.c.b16 %v446, %v437
  %v528 = vpack.c.b16 %v447, %v438
  %v529 = vpack.c.b16 %v457, %v448
  %v530 = vpack.c.b16 %v458, %v449
  %v531 = vpack.c.b16 %v459, %v450
  %v532 = vpack.c.b16 %v460, %v451
  %v533 = vpack.c.b16 %v461, %v452
  %v534 = vpack.c.b16 %v462, %v453
  %v535 = vpack.c.b16 %v463, %v454
  %v536 = vpack.c.b16 %v464, %v455
  %v537 = vpack.c.b16 %v465, %v456
  %v754 = vunpack.c.l.b16 %v98
  %v755 = vunpack.c.l.b16 %v99
  %v756 = vunpack.c.l.b16 %v100
  %v757 = vunpack.c.l.b16 %v101
  %v758 = vunpack.c.l.b16 %v102
  %v759 = vunpack.c.l.b16 %v103
  %v760 = vunpack.c.l.b16 %v104
  %v761 = vunpack.c.l.b16 %v105
  %v762 = vunpack.c.l.b16 %v106
  %v763 = vunpack.c.l.b16 %v107
  %v764 = vunpack.c.l.b16 %v108
  %v765 = vunpack.c.l.b16 %v109
  %v766 = vunpack.c.l.b16 %v110
  %v767 = vunpack.c.l.b16 %v111
  %v768 = vunpack.c.l.b16 %v112
  %v769 = vunpack.c.l.b16 %v113
  %v770 = vunpack.c.l.b16 %v114
  %v771 = vunpack.c.l.b16 %v115
  %v772 = vunpack.c.l.b16 %v116
  %v773 = vunpack.c.l.b16 %v117
  %v774 = vunpack.c.l.b16 %v118
  %v775 = vunpack.c.l.b16 %v119
  %v776 = vunpack.c.l.b16 %v120
  %v777 = vunpack.c.l.b16 %v121
  %v778 = vunpack.c.l.b16 %v122
  %v779 = vunpack.c.l.b16 %v123
  %v780 = vunpack.c.l.b16 %v124
  %v781 = vunpack.c.l.b16 %v125
  %v782 = vunpack.c.l.b16 %v126
  %v783 = vunpack.c.l.b16 %v127
  %v784 = vunpack.c.l.b16 %v128
  %v785 = vunpack.c.l.b16 %v129
  %v786 = vunpack.c.l.b16 %v130
  %v787 = vunpack.c.l.b16 %v131
  %v788 = vunpack.c.l.b16 %v132
  %v789 = vunpack.c.l.b16 %v133
  %v790 = vunpack.c.l.b16 %v134
  %v791 = vunpack.c.l.b16 %v135
  %v792 = vunpack.c.l.b16 %v136
  %v793 = vunpack.c.l.b16 %v137
  %v794 = vunpack.c.l.b16 %v138
  %v795 = vunpack.c.l.b16 %v139
  %v796 = vunpack.c.l.b16 %v140
  %v797 = vunpack.c.l.b16 %v141
  %v798 = vunpack.c.l.b16 %v142
  %v799 = vunpack.c.l.b16 %v143
  %v800 = vunpack.c.l.b16 %v144
  %v801 = vunpack.c.l.b16 %v145
  %v802 = vunpack.c.l.b16 %v146
  %v803 = vunpack.c.l.b16 %v147
  %v804 = vunpack.c.l.b16 %v148
  %v805 = vunpack.c.l.b16 %v149
  %v806 = vunpack.c.l.b16 %v150
  %v807 = vunpack.c.l.b16 %v151
  %v808 = vunpack.c.l.b16 %v152
  %v809 = vunpack.c.l.b16 %v153
  %v810 = vunpack.c.l.b16 %v154
  %v811 = vunpack.c.l.b16 %v155
  %v812 = vunpack.c.l.b16 %v156
  %v813 = vunpack.c.l.b16 %v157
  %v814 = vunpack.c.l.b16 %v158
  %v815 = vunpack.c.l.b16 %v159
  %v816 = vunpack.c.l.b16 %v160
  %v817 = vunpack.c.l.b16 %v161
  %v818 = vunpack.c.l.b16 %v162
  %v819 = vunpack.c.l.b16 %v163
  %v820 = vunpack.c.l.b16 %v164
  %v821 = vunpack.c.l.b16 %v165
  %v822 = vunpack.c.l.b16 %v166
  %v823 = vunpack.c.l.b16 %v167
  %v824 = vunpack.c.l.b16 %v168
  %v825 = vunpack.c.l.b16 %v169
  %v826 = vunpack.c.l.b16 %v170
  %v827 = vunpack.c.l.b16 %v171
  %v828 = vunpack.c.l.b16 %v172
  %v829 = vunpack.c.l.b16 %v173
  %v830 = vunpack.c.l.b16 %v174
  %v831 = vunpack.c.l.b16 %v175
  %v832 = vunpack.c.l.b16 %v176
  %v833 = vunpack.c.l.b16 %v177
  %v834 = vunpack.c.l.b16 %v178
  %v835 = vunpack.c.l.b16 %v179
  %v836 = vunpack.c.l.b16 %v180
  %v837 = vunpack.c.l.b16 %v181
  %v838 = vunpack.c.l.b16 %v182
  %v839 = vunpack.c.l.b16 %v183
  %v840 = vunpack.c.l.b16 %v184
  %v841 = vunpack.c.l.b16 %v185
  %v842 = vunpack.c.l.b16 %v186
  %v843 = vunpack.c.l.b16 %v187
  %v844 = vunpack.c.l.b16 %v188
  %v845 = vunpack.c.l.b16 %v189
  %v846 = vunpack.c.l.b16 %v190
  %v847 = vunpack.c.l.b16 %v191
  %v848 = vunpack.c.l.b16 %v192
  %v849 = vunpack.c.l.b16 %v193
  %v850 = vunpack.c.l.b16 %v194
  %v851 = vunpack.c.l.b16 %v195
  %v852 = vunpack.c.l.b16 %v196
  %v853 = vunpack.c.l.b16 %v197
  %v854 = vunpack.c.l.b16 %v198
  %v855 = vunpack.c.l.b16 %v199
  %v856 = vunpack.c.l.b16 %v200
  %v857 = vunpack.c.l.b16 %v201
  %v858 = vunpack.c.l.b16 %v202
  %v859 = vunpack.c.l.b16 %v203
  %v860 = vunpack.c.l.b16 %v204
  %v861 = vunpack.c.l.b16 %v205
  %v862 = vunpack.c.l.b16 %v206
  %v863 = vunpack.c.l.b16 %v207
  %v864 = vunpack.c.l.b16 %v208
  %v865 = vunpack.c.l.b16 %v209
  %v866 = vunpack.c.l.b16 %v210
  %v867 = vunpack.c.l.b16 %v211
  %v868 = vunpack.c.l.b16 %v212
  %v869 = vunpack.c.l.b16 %v213
  %v870 = vunpack.c.l.b16 %v214
  %v871 = vunpack.c.l.b16 %v215
  %v872 = vunpack.c.l.b16 %v216
  %v873 = vunpack.c.l.b16 %v217
  %v874 = vunpack.c.l.b16 %v218
  %v875 = vunpack.c.l.b16 %v219
  %v876 = vunpack.c.l.b16 %v220
  %v877 = vunpack.c.l.b16 %v221
  %v878 = vunpack.c.l.b16 %v222
  %v879 = vunpack.c.l.b16 %v223
  %v880 = vunpack.c.l.b16 %v224
  %v881 = vunpack.c.l.b16 %v225
  %v882 = vunpack.c.l.b16 %v226
  %v883 = vunpack.c.l.b16 %v227
  %v884 = vunpack.c.l.b16 %v228
  %v885 = vunpack.c.l.b16 %v229
  %v886 = vunpack.c.l.b16 %v230
  %v887 = vunpack.c.l.b16 %v231
  %v888 = vunpack.c.l.b16 %v232
  %v889 = vunpack.c.l.b16 %v233
  %v890 = vunpack.c.l.b16 %v234
  %v891 = vunpack.c.l.b16 %v235
  %v892 = vunpack.c.l.b16 %v236
  %v893 = vunpack.c.l.b16 %v237
  %v894 = vunpack.c.l.b16 %v238
  %v895 = vunpack.c.l.b16 %v239
  %v896 = vunpack.c.l.b16 %v240
  %v897 = vunpack.c.l.b16 %v241
  %v898 = vpack.c.b16 %v755, %v754
  %v899 = vpack.c.b16 %v757, %v756
  %v900 = vpack.c.b16 %v759, %v758
  %v901 = vpack.c.b16 %v761, %v760
  %v902 = vpack.c.b16 %v763, %v762
  %v903 = vpack.c.b16 %v765, %v764
  %v904 = vpack.c.b16 %v767, %v766
  %v905 = vpack.c.b16 %v769, %v768
  %v906 = vpack.c.b16 %v771, %v770
  %v907 = vpack.c.b16 %v773, %v772
  %v908 = vpack.c.b16 %v775, %v774
  %v909 = vpack.c.b16 %v777, %v776
  %v910 = vpack.c.b16 %v779, %v778
  %v911 = vpack.c.b16 %v781, %v780
  %v912 = vpack.c.b16 %v783, %v782
  %v913 = vpack.c.b16 %v785, %v784
  %v914 = vpack.c.b16 %v787, %v786
  %v915 = vpack.c.b16 %v789, %v788
  %v916 = vpack.c.b16 %v791, %v790
  %v917 = vpack.c.b16 %v793, %v792
  %v918 = vpack.c.b16 %v795, %v794
  %v919 = vpack.c.b16 %v797, %v796
  %v920 = vpack.c.b16 %v799, %v798
  %v921 = vpack.c.b16 %v801, %v800
  %v922 = vpack.c.b16 %v803, %v802
  %v923 = vpack.c.b16 %v805, %v804
  %v924 = vpack.c.b16 %v807, %v806
  %v925 = vpack.c.b16 %v809, %v808
  %v926 = vpack.c.b16 %v811, %v810
  %v927 = vpack.c.b16 %v813, %v812
  %v928 = vpack.c.b16 %v815, %v814
  %v929 = vpack.c.b16 %v817, %v816
  %v930 = vpack.c.b16 %v819, %v818
  %v931 = vpack.c.b16 %v821, %v820
  %v932 = vpack.c.b16 %v823, %v822
  %v933 = vpack.c.b16 %v825, %v824
  %v934 = vpack.c.b16 %v827, %v826
  %v935 = vpack.c.b16 %v829, %v828
  %v936 = vpack.c.b16 %v831, %v830
  %v937 = vpack.c.b16 %v833, %v832
  %v938 = vpack.c.b16 %v835, %v834
  %v939 = vpack.c.b16 %v837, %v836
  %v940 = vpack.c.b16 %v839, %v838
  %v941 = vpack.c.b16 %v841, %v840
  %v942 = vpack.c.b16 %v843, %v842
  %v943 = vpack.c.b16 %v845, %v844
  %v944 = vpack.c.b16 %v847, %v846
  %v945 = vpack.c.b16 %v849, %v848
  %v946 = vpack.c.b16 %v851, %v850
  %v947 = vpack.c.b16 %v853, %v852
  %v948 = vpack.c.b16 %v855, %v854
  %v949 = vpack.c.b16 %v857, %v856
  %v950 = vpack.c.b16 %v859, %v858
  %v951 = vpack.c.b16 %v861, %v860
  %v952 = vpack.c.b16 %v863, %v862
  %v953 = vpack.c.b16 %v865, %v864
  %v954 = vpack.c.b16 %v867, %v866
  %v955 = vpack.c.b16 %v869, %v868
  %v956 = vpack.c.b16 %v871, %v870
  %v957 = vpack.c.b16 %v873, %v872
  %v958 = vpack.c.b16 %v875, %v874
  %v959 = vpack.c.b16 %v877, %v876
  %v960 = vpack.c.b16 %v879, %v878
  %v961 = vpack.c.b16 %v881, %v880
  %v962 = vpack.c.b16 %v883, %v882
  %v963 = vpack.c.b16 %v885, %v884
  %v964 = vpack.c.b16 %v887, %v886
  %v965 = vpack.c.b16 %v889, %v888
  %v966 = vpack.c.b16 %v891, %v890
  %v967 = vpack.c.b16 %v893, %v892
  %v968 = vpack.c.b16 %v895, %v894
  %v969 = vpack.c.b16 %v897, %v896
  %1042 = vmatprep.subr.bf16.mxu0 0
  %1043 = vmatpush1.bf16.msra.mxu0 %v905
  %1044 = vmatprep.subr.bf16.mxu0 0
  %1045 = vmatpush1.bf16.msra.mxu0 %v904
  %1046 = vmatprep.subr.bf16.mxu0 0
  %1047 = vmatpush1.bf16.msra.mxu0 %v903
  %1048 = vmatprep.subr.bf16.mxu0 0
  %1049 = vmatpush1.bf16.msra.mxu0 %v902
  %1050 = vmatprep.subr.bf16.mxu0 0
  %1051 = vmatpush1.bf16.msra.mxu0 %v901
  %1052 = vmatprep.subr.bf16.mxu0 0
  %1053 = vmatpush1.bf16.msra.mxu0 %v900
  %1054 = vmatprep.subr.bf16.mxu0 0
  %1055 = vmatpush1.bf16.msra.mxu0 %v899
  %1056 = vmatprep.subr.bf16.mxu0 0
  %1057 = vmatpush1.bf16.msra.mxu0 %v898
  %1058 = vmatprep.subr.bf16.mxu0 0
  %1059 = vmatpush2.bf16.msra.mxu0 %v913
  %1060 = vmatprep.subr.bf16.mxu0 0
  %1061 = vmatpush2.bf16.msra.mxu0 %v912
  %1062 = vmatprep.subr.bf16.mxu0 0
  %1063 = vmatpush2.bf16.msra.mxu0 %v911
  %1064 = vmatprep.subr.bf16.mxu0 0
  %1065 = vmatpush2.bf16.msra.mxu0 %v910
  %1066 = vmatprep.subr.bf16.mxu0 0
  %1067 = vmatpush2.bf16.msra.mxu0 %v909
  %1068 = vmatprep.subr.bf16.mxu0 0
  %1069 = vmatpush2.bf16.msra.mxu0 %v908
  %1070 = vmatprep.subr.bf16.mxu0 0
  %1071 = vmatpush2.bf16.msra.mxu0 %v907
  %1072 = vmatprep.subr.bf16.mxu0 0
  %1073 = vmatpush2.bf16.msra.mxu0 %v906
  %1074 = vmatprep.mubr.bf16.mxu0 %v467
  %1075 = vmatmul.mubr.bf16.gmra.mxu0 %v466
  %v1076 = vpop.f32.mrf.mxu0
  %v1077 = vadd.f32 0.0, %v1076
  %v1078 = vpop.f32.mrf.mxu0
  %v1079 = vpop.f32.mrf.mxu0
  %v1080 = vadd.f32 0.0, %v1079
  %v1081 = vpop.f32.mrf.mxu0
  %1082 = vmatprep.mubr.bf16.mxu0 %v476
  %1083 = vmatmul.mubr.bf16.gmra.mxu0 %v475
  %v1084 = vpop.f32.mrf.mxu0
  %v1085 = vadd.f32 0.0, %v1084
  %v1086 = vpop.f32.mrf.mxu0
  %v1087 = vpop.f32.mrf.mxu0
  %v1088 = vadd.f32 0.0, %v1087
  %v1089 = vpop.f32.mrf.mxu0
  %1090 = vmatprep.mubr.bf16.mxu0 %v485
  %1091 = vmatmul.mubr.bf16.gmra.mxu0 %v484
  %v1092 = vpop.f32.mrf.mxu0
  %v1093 = vadd.f32 0.0, %v1092
  %v1094 = vpop.f32.mrf.mxu0
  %v1095 = vpop.f32.mrf.mxu0
  %v1096 = vadd.f32 0.0, %v1095
  %v1097 = vpop.f32.mrf.mxu0
  %1098 = vmatprep.mubr.bf16.mxu0 %v494
  %1099 = vmatmul.mubr.bf16.gmra.mxu0 %v493
  %v1100 = vpop.f32.mrf.mxu0
  %v1101 = vadd.f32 0.0, %v1100
  %v1102 = vpop.f32.mrf.mxu0
  %v1103 = vpop.f32.mrf.mxu0
  %v1104 = vadd.f32 0.0, %v1103
  %v1105 = vpop.f32.mrf.mxu0
  %1106 = vmatprep.mubr.bf16.mxu0 %v503
  %1107 = vmatmul.mubr.bf16.gmra.mxu0 %v502
  %v1108 = vpop.f32.mrf.mxu0
  %v1109 = vadd.f32 0.0, %v1108
  %v1110 = vpop.f32.mrf.mxu0
  %v1111 = vpop.f32.mrf.mxu0
  %v1112 = vadd.f32 0.0, %v1111
  %v1113 = vpop.f32.mrf.mxu0
  %1114 = vmatprep.mubr.bf16.mxu0 %v512
  %1115 = vmatmul.mubr.bf16.gmra.mxu0 %v511
  %v1116 = vpop.f32.mrf.mxu0
  %v1117 = vadd.f32 0.0, %v1116
  %v1118 = vpop.f32.mrf.mxu0
  %v1119 = vpop.f32.mrf.mxu0
  %v1120 = vadd.f32 0.0, %v1119
  %v1121 = vpop.f32.mrf.mxu0
  %1122 = vmatprep.mubr.bf16.mxu0 %v521
  %1123 = vmatmul.mubr.bf16.gmra.mxu0 %v520
  %v1124 = vpop.f32.mrf.mxu0
  %v1125 = vadd.f32 0.0, %v1124
  %v1126 = vpop.f32.mrf.mxu0
  %v1127 = vpop.f32.mrf.mxu0
  %v1128 = vadd.f32 0.0, %v1127
  %v1129 = vpop.f32.mrf.mxu0
  %1130 = vmatprep.mubr.bf16.mxu0 %v530
  %1131 = vmatmul.mubr.bf16.gmra.mxu0 %v529
  %v1132 = vpop.f32.mrf.mxu0
  %v1133 = vadd.f32 0.0, %v1132
  %v1134 = vpop.f32.mrf.mxu0
  %v1135 = vpop.f32.mrf.mxu0
  %v1136 = vadd.f32 0.0, %v1135
  %v1137 = vpop.f32.mrf.mxu0
  %1138 = vdwg.mxu0
  %1139 = vmatprep.subr.bf16.mxu0 0
  %1140 = vmatpush1.bf16.msra.mxu0 %v921
  %1141 = vmatprep.subr.bf16.mxu0 0
  %1142 = vmatpush1.bf16.msra.mxu0 %v920
  %1143 = vmatprep.subr.bf16.mxu0 0
  %1144 = vmatpush1.bf16.msra.mxu0 %v919
  %1145 = vmatprep.subr.bf16.mxu0 0
  %1146 = vmatpush1.bf16.msra.mxu0 %v918
  %1147 = vmatprep.subr.bf16.mxu0 0
  %1148 = vmatpush1.bf16.msra.mxu0 %v917
  %1149 = vmatprep.subr.bf16.mxu0 0
  %1150 = vmatpush1.bf16.msra.mxu0 %v916
  %1151 = vmatprep.subr.bf16.mxu0 0
  %1152 = vmatpush1.bf16.msra.mxu0 %v915
  %1153 = vmatprep.subr.bf16.mxu0 0
  %1154 = vmatpush1.bf16.msra.mxu0 %v914
  %1155 = vmatprep.subr.bf16.mxu0 0
  %1156 = vmatpush2.bf16.msra.mxu0 %v929
  %1157 = vmatprep.subr.bf16.mxu0 0
  %1158 = vmatpush2.bf16.msra.mxu0 %v928
  %1159 = vmatprep.subr.bf16.mxu0 0
  %1160 = vmatpush2.bf16.msra.mxu0 %v927
  %1161 = vmatprep.subr.bf16.mxu0 0
  %1162 = vmatpush2.bf16.msra.mxu0 %v926
  %1163 = vmatprep.subr.bf16.mxu0 0
  %1164 = vmatpush2.bf16.msra.mxu0 %v925
  %1165 = vmatprep.subr.bf16.mxu0 0
  %1166 = vmatpush2.bf16.msra.mxu0 %v924
  %1167 = vmatprep.subr.bf16.mxu0 0
  %1168 = vmatpush2.bf16.msra.mxu0 %v923
  %1169 = vmatprep.subr.bf16.mxu0 0
  %1170 = vmatpush2.bf16.msra.mxu0 %v922
  %1171 = vmatprep.mubr.bf16.mxu0 %v469
  %1172 = vmatmul.mubr.bf16.gmra.mxu0 %v468
  %v1173 = vpop.f32.mrf.mxu0
  %v1174 = vadd.f32 %v1077, %v1173
  %v1175 = vpop.f32.mrf.mxu0
  %v1176 = vpop.f32.mrf.mxu0
  %v1177 = vadd.f32 %v1080, %v1176
  %v1178 = vpop.f32.mrf.mxu0
  %1179 = vmatprep.mubr.bf16.mxu0 %v478
  %1180 = vmatmul.mubr.bf16.gmra.mxu0 %v477
  %v1181 = vpop.f32.mrf.mxu0
  %v1182 = vadd.f32 %v1085, %v1181
  %v1183 = vpop.f32.mrf.mxu0
  %v1184 = vpop.f32.mrf.mxu0
  %v1185 = vadd.f32 %v1088, %v1184
  %v1186 = vpop.f32.mrf.mxu0
  %1187 = vmatprep.mubr.bf16.mxu0 %v487
  %1188 = vmatmul.mubr.bf16.gmra.mxu0 %v486
  %v1189 = vpop.f32.mrf.mxu0
  %v1190 = vadd.f32 %v1093, %v1189
  %v1191 = vpop.f32.mrf.mxu0
  %v1192 = vpop.f32.mrf.mxu0
  %v1193 = vadd.f32 %v1096, %v1192
  %v1194 = vpop.f32.mrf.mxu0
  %1195 = vmatprep.mubr.bf16.mxu0 %v496
  %1196 = vmatmul.mubr.bf16.gmra.mxu0 %v495
  %v1197 = vpop.f32.mrf.mxu0
  %v1198 = vadd.f32 %v1101, %v1197
  %v1199 = vpop.f32.mrf.mxu0
  %v1200 = vpop.f32.mrf.mxu0
  %v1201 = vadd.f32 %v1104, %v1200
  %v1202 = vpop.f32.mrf.mxu0
  %1203 = vmatprep.mubr.bf16.mxu0 %v505
  %1204 = vmatmul.mubr.bf16.gmra.mxu0 %v504
  %v1205 = vpop.f32.mrf.mxu0
  %v1206 = vadd.f32 %v1109, %v1205
  %v1207 = vpop.f32.mrf.mxu0
  %v1208 = vpop.f32.mrf.mxu0
  %v1209 = vadd.f32 %v1112, %v1208
  %v1210 = vpop.f32.mrf.mxu0
  %1211 = vmatprep.mubr.bf16.mxu0 %v514
  %1212 = vmatmul.mubr.bf16.gmra.mxu0 %v513
  %v1213 = vpop.f32.mrf.mxu0
  %v1214 = vadd.f32 %v1117, %v1213
  %v1215 = vpop.f32.mrf.mxu0
  %v1216 = vpop.f32.mrf.mxu0
  %v1217 = vadd.f32 %v1120, %v1216
  %v1218 = vpop.f32.mrf.mxu0
  %1219 = vmatprep.mubr.bf16.mxu0 %v523
  %1220 = vmatmul.mubr.bf16.gmra.mxu0 %v522
  %v1221 = vpop.f32.mrf.mxu0
  %v1222 = vadd.f32 %v1125, %v1221
  %v1223 = vpop.f32.mrf.mxu0
  %v1224 = vpop.f32.mrf.mxu0
  %v1225 = vadd.f32 %v1128, %v1224
  %v1226 = vpop.f32.mrf.mxu0
  %1227 = vmatprep.mubr.bf16.mxu0 %v532
  %1228 = vmatmul.mubr.bf16.gmra.mxu0 %v531
  %v1229 = vpop.f32.mrf.mxu0
  %v1230 = vadd.f32 %v1133, %v1229
  %v1231 = vpop.f32.mrf.mxu0
  %v1232 = vpop.f32.mrf.mxu0
  %v1233 = vadd.f32 %v1136, %v1232
  %v1234 = vpop.f32.mrf.mxu0
  %1235 = vdwg.mxu0
  %1236 = vmatprep.subr.bf16.mxu0 0
  %1237 = vmatpush1.bf16.msra.mxu0 %v937
  %1238 = vmatprep.subr.bf16.mxu0 0
  %1239 = vmatpush1.bf16.msra.mxu0 %v936
  %1240 = vmatprep.subr.bf16.mxu0 0
  %1241 = vmatpush1.bf16.msra.mxu0 %v935
  %1242 = vmatprep.subr.bf16.mxu0 0
  %1243 = vmatpush1.bf16.msra.mxu0 %v934
  %1244 = vmatprep.subr.bf16.mxu0 0
  %1245 = vmatpush1.bf16.msra.mxu0 %v933
  %1246 = vmatprep.subr.bf16.mxu0 0
  %1247 = vmatpush1.bf16.msra.mxu0 %v932
  %1248 = vmatprep.subr.bf16.mxu0 0
  %1249 = vmatpush1.bf16.msra.mxu0 %v931
  %1250 = vmatprep.subr.bf16.mxu0 0
  %1251 = vmatpush1.bf16.msra.mxu0 %v930
  %1252 = vmatprep.subr.bf16.mxu0 0
  %1253 = vmatpush2.bf16.msra.mxu0 %v945
  %1254 = vmatprep.subr.bf16.mxu0 0
  %1255 = vmatpush2.bf16.msra.mxu0 %v944
  %1256 = vmatprep.subr.bf16.mxu0 0
  %1257 = vmatpush2.bf16.msra.mxu0 %v943
  %1258 = vmatprep.subr.bf16.mxu0 0
  %1259 = vmatpush2.bf16.msra.mxu0 %v942
  %1260 = vmatprep.subr.bf16.mxu0 0
  %1261 = vmatpush2.bf16.msra.mxu0 %v941
  %1262 = vmatprep.subr.bf16.mxu0 0
  %1263 = vmatpush2.bf16.msra.mxu0 %v940
  %1264 = vmatprep.subr.bf16.mxu0 0
  %1265 = vmatpush2.bf16.msra.mxu0 %v939
  %1266 = vmatprep.subr.bf16.mxu0 0
  %1267 = vmatpush2.bf16.msra.mxu0 %v938
  %1268 = vmatprep.mubr.bf16.mxu0 %v471
  %1269 = vmatmul.mubr.bf16.gmra.mxu0 %v470
  %v1270 = vpop.f32.mrf.mxu0
  %v1271 = vadd.f32 %v1174, %v1270
  %v1272 = vpop.f32.mrf.mxu0
  %v1273 = vpop.f32.mrf.mxu0
  %v1274 = vadd.f32 %v1177, %v1273
  %v1275 = vpop.f32.mrf.mxu0
  %1276 = vmatprep.mubr.bf16.mxu0 %v480
  %1277 = vmatmul.mubr.bf16.gmra.mxu0 %v479
  %v1278 = vpop.f32.mrf.mxu0
  %v1279 = vadd.f32 %v1182, %v1278
  %v1280 = vpop.f32.mrf.mxu0
  %v1281 = vpop.f32.mrf.mxu0
  %v1282 = vadd.f32 %v1185, %v1281
  %v1283 = vpop.f32.mrf.mxu0
  %1284 = vmatprep.mubr.bf16.mxu0 %v489
  %1285 = vmatmul.mubr.bf16.gmra.mxu0 %v488
  %v1286 = vpop.f32.mrf.mxu0
  %v1287 = vadd.f32 %v1190, %v1286
  %v1288 = vpop.f32.mrf.mxu0
  %v1289 = vpop.f32.mrf.mxu0
  %v1290 = vadd.f32 %v1193, %v1289
  %v1291 = vpop.f32.mrf.mxu0
  %1292 = vmatprep.mubr.bf16.mxu0 %v498
  %1293 = vmatmul.mubr.bf16.gmra.mxu0 %v497
  %v1294 = vpop.f32.mrf.mxu0
  %v1295 = vadd.f32 %v1198, %v1294
  %v1296 = vpop.f32.mrf.mxu0
  %v1297 = vpop.f32.mrf.mxu0
  %v1298 = vadd.f32 %v1201, %v1297
  %v1299 = vpop.f32.mrf.mxu0
  %1300 = vmatprep.mubr.bf16.mxu0 %v507
  %1301 = vmatmul.mubr.bf16.gmra.mxu0 %v506
  %v1302 = vpop.f32.mrf.mxu0
  %v1303 = vadd.f32 %v1206, %v1302
  %v1304 = vpop.f32.mrf.mxu0
  %v1305 = vpop.f32.mrf.mxu0
  %v1306 = vadd.f32 %v1209, %v1305
  %v1307 = vpop.f32.mrf.mxu0
  %1308 = vmatprep.mubr.bf16.mxu0 %v516
  %1309 = vmatmul.mubr.bf16.gmra.mxu0 %v515
  %v1310 = vpop.f32.mrf.mxu0
  %v1311 = vadd.f32 %v1214, %v1310
  %v1312 = vpop.f32.mrf.mxu0
  %v1313 = vpop.f32.mrf.mxu0
  %v1314 = vadd.f32 %v1217, %v1313
  %v1315 = vpop.f32.mrf.mxu0
  %1316 = vmatprep.mubr.bf16.mxu0 %v525
  %1317 = vmatmul.mubr.bf16.gmra.mxu0 %v524
  %v1318 = vpop.f32.mrf.mxu0
  %v1319 = vadd.f32 %v1222, %v1318
  %v1320 = vpop.f32.mrf.mxu0
  %v1321 = vpop.f32.mrf.mxu0
  %v1322 = vadd.f32 %v1225, %v1321
  %v1323 = vpop.f32.mrf.mxu0
  %1324 = vmatprep.mubr.bf16.mxu0 %v534
  %1325 = vmatmul.mubr.bf16.gmra.mxu0 %v533
  %v1326 = vpop.f32.mrf.mxu0
  %v1327 = vadd.f32 %v1230, %v1326
  %v1328 = vpop.f32.mrf.mxu0
  %v1329 = vpop.f32.mrf.mxu0
  %v1330 = vadd.f32 %v1233, %v1329
  %v1331 = vpop.f32.mrf.mxu0
  %1332 = vdwg.mxu0
  %1333 = vmatprep.subr.bf16.mxu0 0
  %1334 = vmatpush1.bf16.msra.mxu0 %v953
  %1335 = vmatprep.subr.bf16.mxu0 0
  %1336 = vmatpush1.bf16.msra.mxu0 %v952
  %1337 = vmatprep.subr.bf16.mxu0 0
  %1338 = vmatpush1.bf16.msra.mxu0 %v951
  %1339 = vmatprep.subr.bf16.mxu0 0
  %1340 = vmatpush1.bf16.msra.mxu0 %v950
  %1341 = vmatprep.subr.bf16.mxu0 0
  %1342 = vmatpush1.bf16.msra.mxu0 %v949
  %1343 = vmatprep.subr.bf16.mxu0 0
  %1344 = vmatpush1.bf16.msra.mxu0 %v948
  %1345 = vmatprep.subr.bf16.mxu0 0
  %1346 = vmatpush1.bf16.msra.mxu0 %v947
  %1347 = vmatprep.subr.bf16.mxu0 0
  %1348 = vmatpush1.bf16.msra.mxu0 %v946
  %1349 = vmatprep.subr.bf16.mxu0 0
  %1350 = vmatpush2.bf16.msra.mxu0 %v961
  %1351 = vmatprep.subr.bf16.mxu0 0
  %1352 = vmatpush2.bf16.msra.mxu0 %v960
  %1353 = vmatprep.subr.bf16.mxu0 0
  %1354 = vmatpush2.bf16.msra.mxu0 %v959
  %1355 = vmatprep.subr.bf16.mxu0 0
  %1356 = vmatpush2.bf16.msra.mxu0 %v958
  %1357 = vmatprep.subr.bf16.mxu0 0
  %1358 = vmatpush2.bf16.msra.mxu0 %v957
  %1359 = vmatprep.subr.bf16.mxu0 0
  %1360 = vmatpush2.bf16.msra.mxu0 %v956
  %1361 = vmatprep.subr.bf16.mxu0 0
  %1362 = vmatpush2.bf16.msra.mxu0 %v955
  %1363 = vmatprep.subr.bf16.mxu0 0
  %1364 = vmatpush2.bf16.msra.mxu0 %v954
  %1365 = vmatprep.mubr.bf16.mxu0 %v473
  %1366 = vmatmul.mubr.bf16.gmra.mxu0 %v472
  %v1367 = vpop.f32.mrf.mxu0
  %v1368 = vadd.f32 %v1271, %v1367
  %v1369 = vpop.f32.mrf.mxu0
  %v1370 = vpop.f32.mrf.mxu0
  %v1371 = vadd.f32 %v1274, %v1370
  %v1372 = vpop.f32.mrf.mxu0
  %1373 = vmatprep.mubr.bf16.mxu0 %v482
  %1374 = vmatmul.mubr.bf16.gmra.mxu0 %v481
  %v1375 = vpop.f32.mrf.mxu0
  %v1376 = vadd.f32 %v1279, %v1375
  %v1377 = vpop.f32.mrf.mxu0
  %v1378 = vpop.f32.mrf.mxu0
  %v1379 = vadd.f32 %v1282, %v1378
  %v1380 = vpop.f32.mrf.mxu0
  %1381 = vmatprep.mubr.bf16.mxu0 %v491
  %1382 = vmatmul.mubr.bf16.gmra.mxu0 %v490
  %v1383 = vpop.f32.mrf.mxu0
  %v1384 = vadd.f32 %v1287, %v1383
  %v1385 = vpop.f32.mrf.mxu0
  %v1386 = vpop.f32.mrf.mxu0
  %v1387 = vadd.f32 %v1290, %v1386
  %v1388 = vpop.f32.mrf.mxu0
  %1389 = vmatprep.mubr.bf16.mxu0 %v500
  %1390 = vmatmul.mubr.bf16.gmra.mxu0 %v499
  %v1391 = vpop.f32.mrf.mxu0
  %v1392 = vadd.f32 %v1295, %v1391
  %v1393 = vpop.f32.mrf.mxu0
  %v1394 = vpop.f32.mrf.mxu0
  %v1395 = vadd.f32 %v1298, %v1394
  %v1396 = vpop.f32.mrf.mxu0
  %1397 = vmatprep.mubr.bf16.mxu0 %v509
  %1398 = vmatmul.mubr.bf16.gmra.mxu0 %v508
  %v1399 = vpop.f32.mrf.mxu0
  %v1400 = vadd.f32 %v1303, %v1399
  %v1401 = vpop.f32.mrf.mxu0
  %v1402 = vpop.f32.mrf.mxu0
  %v1403 = vadd.f32 %v1306, %v1402
  %v1404 = vpop.f32.mrf.mxu0
  %1405 = vmatprep.mubr.bf16.mxu0 %v518
  %1406 = vmatmul.mubr.bf16.gmra.mxu0 %v517
  %v1407 = vpop.f32.mrf.mxu0
  %v1408 = vadd.f32 %v1311, %v1407
  %v1409 = vpop.f32.mrf.mxu0
  %v1410 = vpop.f32.mrf.mxu0
  %v1411 = vadd.f32 %v1314, %v1410
  %v1412 = vpop.f32.mrf.mxu0
  %1413 = vmatprep.mubr.bf16.mxu0 %v527
  %1414 = vmatmul.mubr.bf16.gmra.mxu0 %v526
  %v1415 = vpop.f32.mrf.mxu0
  %v1416 = vadd.f32 %v1319, %v1415
  %v1417 = vpop.f32.mrf.mxu0
  %v1418 = vpop.f32.mrf.mxu0
  %v1419 = vadd.f32 %v1322, %v1418
  %v1420 = vpop.f32.mrf.mxu0
  %1421 = vmatprep.mubr.bf16.mxu0 %v536
  %1422 = vmatmul.mubr.bf16.gmra.mxu0 %v535
  %v1423 = vpop.f32.mrf.mxu0
  %v1424 = vadd.f32 %v1327, %v1423
  %v1425 = vpop.f32.mrf.mxu0
  %v1426 = vpop.f32.mrf.mxu0
  %v1427 = vadd.f32 %v1330, %v1426
  %v1428 = vpop.f32.mrf.mxu0
  %1429 = vdwg.mxu0
  %1430 = vmatprep.subr.bf16.mxu0 0
  %1431 = vmatpush1.bf16.msra.mxu0 %v969
  %1432 = vmatprep.subr.bf16.mxu0 0
  %1433 = vmatpush1.bf16.msra.mxu0 %v968
  %1434 = vmatprep.subr.bf16.mxu0 0
  %1435 = vmatpush1.bf16.msra.mxu0 %v967
  %1436 = vmatprep.subr.bf16.mxu0 0
  %1437 = vmatpush1.bf16.msra.mxu0 %v966
  %1438 = vmatprep.subr.bf16.mxu0 0
  %1439 = vmatpush1.bf16.msra.mxu0 %v965
  %1440 = vmatprep.subr.bf16.mxu0 0
  %1441 = vmatpush1.bf16.msra.mxu0 %v964
  %1442 = vmatprep.subr.bf16.mxu0 0
  %1443 = vmatpush1.bf16.msra.mxu0 %v963
  %1444 = vmatprep.subr.bf16.mxu0 0
  %1445 = vmatpush1.bf16.msra.mxu0 %v962
  %1446 = vmatprep.subr.bf16.mxu0 0
  %1447 = vmatpush2.bf16.msra.mxu0 0
  %1448 = vmatprep.subr.bf16.mxu0 0
  %1449 = vmatpush2.bf16.msra.mxu0 0
  %1450 = vmatprep.subr.bf16.mxu0 0
  %1451 = vmatpush2.bf16.msra.mxu0 0
  %1452 = vmatprep.subr.bf16.mxu0 0
  %1453 = vmatpush2.bf16.msra.mxu0 0
  %1454 = vmatprep.subr.bf16.mxu0 0
  %1455 = vmatpush2.bf16.msra.mxu0 0
  %1456 = vmatprep.subr.bf16.mxu0 0
  %1457 = vmatpush2.bf16.msra.mxu0 0
  %1458 = vmatprep.subr.bf16.mxu0 0
  %1459 = vmatpush2.bf16.msra.mxu0 0
  %1460 = vmatprep.subr.bf16.mxu0 0
  %1461 = vmatpush2.bf16.msra.mxu0 0
  %1462 = vmatprep.mubr.bf16.mxu0 0
  %1463 = vmatmul.mubr.bf16.gmra.mxu0 %v474
  %v1464 = vpop.f32.mrf.mxu0
  %v1465 = vadd.f32 %v1368, %v1464
  %v1466 = vpop.f32.mrf.mxu0
  %v1467 = vpop.f32.mrf.mxu0
  %v1468 = vadd.f32 %v1371, %v1467
  %v1469 = vpop.f32.mrf.mxu0
  %1470 = vmatprep.mubr.bf16.mxu0 0
  %1471 = vmatmul.mubr.bf16.gmra.mxu0 %v483
  %v1472 = vpop.f32.mrf.mxu0
  %v1473 = vadd.f32 %v1376, %v1472
  %v1474 = vpop.f32.mrf.mxu0
  %v1475 = vpop.f32.mrf.mxu0
  %v1476 = vadd.f32 %v1379, %v1475
  %v1477 = vpop.f32.mrf.mxu0
  %1478 = vmatprep.mubr.bf16.mxu0 0
  %1479 = vmatmul.mubr.bf16.gmra.mxu0 %v492
  %v1480 = vpop.f32.mrf.mxu0
  %v1481 = vadd.f32 %v1384, %v1480
  %v1482 = vpop.f32.mrf.mxu0
  %v1483 = vpop.f32.mrf.mxu0
  %v1484 = vadd.f32 %v1387, %v1483
  %v1485 = vpop.f32.mrf.mxu0
  %1486 = vmatprep.mubr.bf16.mxu0 0
  %1487 = vmatmul.mubr.bf16.gmra.mxu0 %v501
  %v1488 = vpop.f32.mrf.mxu0
  %v1489 = vadd.f32 %v1392, %v1488
  %v1490 = vpop.f32.mrf.mxu0
  %v1491 = vpop.f32.mrf.mxu0
  %v1492 = vadd.f32 %v1395, %v1491
  %v1493 = vpop.f32.mrf.mxu0
  %1494 = vmatprep.mubr.bf16.mxu0 0
  %1495 = vmatmul.mubr.bf16.gmra.mxu0 %v510
  %v1496 = vpop.f32.mrf.mxu0
  %v1497 = vadd.f32 %v1400, %v1496
  %v1498 = vpop.f32.mrf.mxu0
  %v1499 = vpop.f32.mrf.mxu0
  %v1500 = vadd.f32 %v1403, %v1499
  %v1501 = vpop.f32.mrf.mxu0
  %1502 = vmatprep.mubr.bf16.mxu0 0
  %1503 = vmatmul.mubr.bf16.gmra.mxu0 %v519
  %v1504 = vpop.f32.mrf.mxu0
  %v1505 = vadd.f32 %v1408, %v1504
  %v1506 = vpop.f32.mrf.mxu0
  %v1507 = vpop.f32.mrf.mxu0
  %v1508 = vadd.f32 %v1411, %v1507
  %v1509 = vpop.f32.mrf.mxu0
  %1510 = vmatprep.mubr.bf16.mxu0 0
  %1511 = vmatmul.mubr.bf16.gmra.mxu0 %v528
  %v1512 = vpop.f32.mrf.mxu0
  %v1513 = vadd.f32 %v1416, %v1512
  %v1514 = vpop.f32.mrf.mxu0
  %v1515 = vpop.f32.mrf.mxu0
  %v1516 = vadd.f32 %v1419, %v1515
  %v1517 = vpop.f32.mrf.mxu0
  %1518 = vmatprep.mubr.bf16.mxu0 0
  %1519 = vmatmul.mubr.bf16.gmra.mxu0 %v537
  %v1520 = vpop.f32.mrf.mxu0
  %v1521 = vadd.f32 %v1424, %v1520
  %v1522 = vpop.f32.mrf.mxu0
  %v1523 = vpop.f32.mrf.mxu0
  %v1524 = vadd.f32 %v1427, %v1523
  %v1525 = vpop.f32.mrf.mxu0
  %1526 = vdwg.mxu0
  %v1527 = vld [vmem:[%s2] sm:$0x1]
  %v1528 = vld [vmem:[%s3] sm:$0x1]
  %v1529 = vadd.f32 %v1465, %v1468
  %v1530 = vadd.f32 %v1529, %v1473
  %v1531 = vadd.f32 %v1530, %v1476
  %v1532 = vadd.f32 %v1531, %v1481
  %v1533 = vadd.f32 %v1532, %v1484
  %v1534 = vadd.f32 %v1533, %v1489
  %v1535 = vadd.f32 %v1534, %v1492
  %v1536 = vadd.f32 %v1535, %v1497
  %v1537 = vadd.f32 %v1536, %v1500
  %v1538 = vadd.f32 %v1537, %v1505
  %v1539 = vadd.f32 %v1538, %v1508
  %v1540 = vadd.f32 %v1539, %v1513
  %v1541 = vadd.f32 %v1540, %v1516
  %v1542 = vadd.f32 %v1541, %v1521
  %v1543 = vadd.f32 %v1542, %v1524
  %v1544 = vrot.slane %v1543, 4
  %v1545 = vadd.f32 %v1543, %v1544
  %v1546 = vrot.slane %v1545, 2
  %v1547 = vadd.f32 %v1545, %v1546
  %v1548 = vrot.slane %v1547, 1
  %v1549 = vadd.f32 %v1547, %v1548
  %v1550 = vmul.f32 %v1549, 0.0078125
  %v1551 = vsub.f32 %v1465, %v1550
  %v1552 = vsub.f32 %v1468, %v1550
  %v1553 = vsub.f32 %v1473, %v1550
  %v1554 = vsub.f32 %v1476, %v1550
  %v1555 = vsub.f32 %v1481, %v1550
  %v1556 = vsub.f32 %v1484, %v1550
  %v1557 = vsub.f32 %v1489, %v1550
  %v1558 = vsub.f32 %v1492, %v1550
  %v1559 = vsub.f32 %v1497, %v1550
  %v1560 = vsub.f32 %v1500, %v1550
  %v1561 = vsub.f32 %v1505, %v1550
  %v1562 = vsub.f32 %v1508, %v1550
  %v1563 = vsub.f32 %v1513, %v1550
  %v1564 = vsub.f32 %v1516, %v1550
  %v1565 = vsub.f32 %v1521, %v1550
  %v1566 = vsub.f32 %v1524, %v1550
  %v1567 = vmul.f32 %v1551, %v1551
  %v1568 = vmul.f32 %v1552, %v1552
  %v1569 = vmul.f32 %v1553, %v1553
  %v1570 = vmul.f32 %v1554, %v1554
  %v1571 = vmul.f32 %v1555, %v1555
  %v1572 = vmul.f32 %v1556, %v1556
  %v1573 = vmul.f32 %v1557, %v1557
  %v1574 = vmul.f32 %v1558, %v1558
  %v1575 = vmul.f32 %v1559, %v1559
  %v1576 = vmul.f32 %v1560, %v1560
  %v1577 = vmul.f32 %v1561, %v1561
  %v1578 = vmul.f32 %v1562, %v1562
  %v1579 = vmul.f32 %v1563, %v1563
  %v1580 = vmul.f32 %v1564, %v1564
  %v1581 = vmul.f32 %v1565, %v1565
  %v1582 = vmul.f32 %v1566, %v1566
  %v1583 = vadd.f32 %v1567, %v1568
  %v1584 = vadd.f32 %v1583, %v1569
  %v1585 = vadd.f32 %v1584, %v1570
  %v1586 = vadd.f32 %v1585, %v1571
  %v1587 = vadd.f32 %v1586, %v1572
  %v1588 = vadd.f32 %v1587, %v1573
  %v1589 = vadd.f32 %v1588, %v1574
  %v1590 = vadd.f32 %v1589, %v1575
  %v1591 = vadd.f32 %v1590, %v1576
  %v1592 = vadd.f32 %v1591, %v1577
  %v1593 = vadd.f32 %v1592, %v1578
  %v1594 = vadd.f32 %v1593, %v1579
  %v1595 = vadd.f32 %v1594, %v1580
  %v1596 = vadd.f32 %v1595, %v1581
  %v1597 = vadd.f32 %v1596, %v1582
  %v1598 = vrot.slane %v1597, 4
  %v1599 = vadd.f32 %v1597, %v1598
  %v1600 = vrot.slane %v1599, 2
  %v1601 = vadd.f32 %v1599, %v1600
  %v1602 = vrot.slane %v1601, 1
  %v1603 = vadd.f32 %v1601, %v1602
  %v1604 = vmul.f32 %v1603, 0.0078125
  %v1605 = vadd.f32 %v1604, 1e-05
  %v1606 = vrsqrt.pop %v1605
  %v1607 = vmul.f32 %v1551, %v1606
  %v1608 = vmul.f32 %v1552, %v1606
  %v1609 = vmul.f32 %v1553, %v1606
  %v1610 = vmul.f32 %v1554, %v1606
  %v1611 = vmul.f32 %v1555, %v1606
  %v1612 = vmul.f32 %v1556, %v1606
  %v1613 = vmul.f32 %v1557, %v1606
  %v1614 = vmul.f32 %v1558, %v1606
  %v1615 = vmul.f32 %v1559, %v1606
  %v1616 = vmul.f32 %v1560, %v1606
  %v1617 = vmul.f32 %v1561, %v1606
  %v1618 = vmul.f32 %v1562, %v1606
  %v1619 = vmul.f32 %v1563, %v1606
  %v1620 = vmul.f32 %v1564, %v1606
  %v1621 = vmul.f32 %v1565, %v1606
  %v1622 = vmul.f32 %v1566, %v1606
  %v1624 = vlaneseq
  %v1625 = vshrl.u32 %v1624, 7
  %v1626 = vsub.s32 0, %v1625
  %v1627 = vrot.slane %v1527, %v1626
  %v1629 = vmul.f32 %v1607, %v1627
  %v1630 = vmul.f32 %v1608, %v1627
  %v1631 = vmul.f32 %v1609, %v1627
  %v1632 = vmul.f32 %v1610, %v1627
  %v1633 = vmul.f32 %v1611, %v1627
  %v1634 = vmul.f32 %v1612, %v1627
  %v1635 = vmul.f32 %v1613, %v1627
  %v1636 = vmul.f32 %v1614, %v1627
  %v1637 = vmul.f32 %v1615, %v1627
  %v1638 = vmul.f32 %v1616, %v1627
  %v1639 = vmul.f32 %v1617, %v1627
  %v1640 = vmul.f32 %v1618, %v1627
  %v1641 = vmul.f32 %v1619, %v1627
  %v1642 = vmul.f32 %v1620, %v1627
  %v1643 = vmul.f32 %v1621, %v1627
  %v1644 = vmul.f32 %v1622, %v1627
  %v1646 = vlaneseq
  %v1647 = vshrl.u32 %v1646, 7
  %v1648 = vsub.s32 0, %v1647
  %v1649 = vrot.slane %v1528, %v1648
  %v1651 = vadd.f32 %v1629, %v1649
  %v1652 = vadd.f32 %v1630, %v1649
  %v1653 = vadd.f32 %v1631, %v1649
  %v1654 = vadd.f32 %v1632, %v1649
  %v1655 = vadd.f32 %v1633, %v1649
  %v1656 = vadd.f32 %v1634, %v1649
  %v1657 = vadd.f32 %v1635, %v1649
  %v1658 = vadd.f32 %v1636, %v1649
  %v1659 = vadd.f32 %v1637, %v1649
  %v1660 = vadd.f32 %v1638, %v1649
  %v1661 = vadd.f32 %v1639, %v1649
  %v1662 = vadd.f32 %v1640, %v1649
  %v1663 = vadd.f32 %v1641, %v1649
  %v1664 = vadd.f32 %v1642, %v1649
  %v1665 = vadd.f32 %v1643, %v1649
  %v1666 = vadd.f32 %v1644, %v1649
  %vm1667 = vcmp.gt.f32.partialorder %v1651, 0.0
  %vm1668 = vcmp.gt.f32.partialorder %v1652, 0.0
  %vm1669 = vcmp.gt.f32.partialorder %v1653, 0.0
  %vm1670 = vcmp.gt.f32.partialorder %v1654, 0.0
  %vm1671 = vcmp.gt.f32.partialorder %v1655, 0.0
  %vm1672 = vcmp.gt.f32.partialorder %v1656, 0.0
  %vm1673 = vcmp.gt.f32.partialorder %v1657, 0.0
  %vm1674 = vcmp.gt.f32.partialorder %v1658, 0.0
  %vm1675 = vcmp.gt.f32.partialorder %v1659, 0.0
  %vm1676 = vcmp.gt.f32.partialorder %v1660, 0.0
  %vm1677 = vcmp.gt.f32.partialorder %v1661, 0.0
  %vm1678 = vcmp.gt.f32.partialorder %v1662, 0.0
  %vm1679 = vcmp.gt.f32.partialorder %v1663, 0.0
  %vm1680 = vcmp.gt.f32.partialorder %v1664, 0.0
  %vm1681 = vcmp.gt.f32.partialorder %v1665, 0.0
  %vm1682 = vcmp.gt.f32.partialorder %v1666, 0.0
  %v1683 = vmul.f32 %v1651, 0.01
  %v1684 = vmul.f32 %v1652, 0.01
  %v1685 = vmul.f32 %v1653, 0.01
  %v1686 = vmul.f32 %v1654, 0.01
  %v1687 = vmul.f32 %v1655, 0.01
  %v1688 = vmul.f32 %v1656, 0.01
  %v1689 = vmul.f32 %v1657, 0.01
  %v1690 = vmul.f32 %v1658, 0.01
  %v1691 = vmul.f32 %v1659, 0.01
  %v1692 = vmul.f32 %v1660, 0.01
  %v1693 = vmul.f32 %v1661, 0.01
  %v1694 = vmul.f32 %v1662, 0.01
  %v1695 = vmul.f32 %v1663, 0.01
  %v1696 = vmul.f32 %v1664, 0.01
  %v1697 = vmul.f32 %v1665, 0.01
  %v1698 = vmul.f32 %v1666, 0.01
  %v1699 = vsel %vm1667, %v1651, %v1683
  %v1700 = vsel %vm1668, %v1652, %v1684
  %v1701 = vsel %vm1669, %v1653, %v1685
  %v1702 = vsel %vm1670, %v1654, %v1686
  %v1703 = vsel %vm1671, %v1655, %v1687
  %v1704 = vsel %vm1672, %v1656, %v1688
  %v1705 = vsel %vm1673, %v1657, %v1689
  %v1706 = vsel %vm1674, %v1658, %v1690
  %v1707 = vsel %vm1675, %v1659, %v1691
  %v1708 = vsel %vm1676, %v1660, %v1692
  %v1709 = vsel %vm1677, %v1661, %v1693
  %v1710 = vsel %vm1678, %v1662, %v1694
  %v1711 = vsel %vm1679, %v1663, %v1695
  %v1712 = vsel %vm1680, %v1664, %v1696
  %v1713 = vsel %vm1681, %v1665, %v1697
  %v1714 = vsel %vm1682, %v1666, %v1698
  %v1715 = vpack.c.bf16 %v1700, %v1699
  %v1716 = vpack.c.bf16 %v1702, %v1701
  %v1717 = vpack.c.bf16 %v1704, %v1703
  %v1718 = vpack.c.bf16 %v1706, %v1705
  %v1719 = vpack.c.bf16 %v1708, %v1707
  %v1720 = vpack.c.bf16 %v1710, %v1709
  %v1721 = vpack.c.bf16 %v1712, %v1711
  %v1722 = vpack.c.bf16 %v1714, %v1713
  %v1731 = vunpack.c.l.b16 %v1715
  %v1732 = vunpack.c.h.b16 %v1715
  %v1733 = vunpack.c.l.b16 %v1716
  %v1734 = vunpack.c.h.b16 %v1716
  %v1735 = vunpack.c.l.b16 %v1717
  %v1736 = vunpack.c.h.b16 %v1717
  %v1737 = vunpack.c.l.b16 %v1718
  %v1738 = vunpack.c.h.b16 %v1718
  %v1739 = vunpack.c.l.b16 %v1719
  %v1740 = vunpack.c.h.b16 %v1719
  %v1741 = vunpack.c.l.b16 %v1720
  %v1742 = vunpack.c.h.b16 %v1720
  %v1743 = vunpack.c.l.b16 %v1721
  %v1744 = vunpack.c.h.b16 %v1721
  %v1745 = vunpack.c.l.b16 %v1722
  %v1746 = vunpack.c.h.b16 %v1722
  %v1747 = vpack.c.b16 %v1731, %v1731
  %v1748 = vpack.c.b16 %v1732, %v1732
  %v1749 = vpack.c.b16 %v1733, %v1733
  %v1750 = vpack.c.b16 %v1734, %v1734
  %v1751 = vpack.c.b16 %v1735, %v1735
  %v1752 = vpack.c.b16 %v1736, %v1736
  %v1753 = vpack.c.b16 %v1737, %v1737
  %v1754 = vpack.c.b16 %v1738, %v1738
  %v1755 = vpack.c.b16 %v1739, %v1739
  %v1756 = vpack.c.b16 %v1740, %v1740
  %v1757 = vpack.c.b16 %v1741, %v1741
  %v1758 = vpack.c.b16 %v1742, %v1742
  %v1759 = vpack.c.b16 %v1743, %v1743
  %v1760 = vpack.c.b16 %v1744, %v1744
  %v1761 = vpack.c.b16 %v1745, %v1745
  %v1762 = vpack.c.b16 %v1746, %v1746
  %1779 = vst [vmem:[%s4] sm:$0xf] %v1747
  %1780 = vst [vmem:[%s4 + $0x4] sm:$0xf] %v1748
  %1781 = vst [vmem:[%s4 + $0x8] sm:$0xf] %v1749
  %1782 = vst [vmem:[%s4 + $0xc] sm:$0xf] %v1750
  %1783 = vst [vmem:[%s4 + $0x10] sm:$0xf] %v1751
  %1784 = vst [vmem:[%s4 + $0x14] sm:$0xf] %v1752
  %1785 = vst [vmem:[%s4 + $0x18] sm:$0xf] %v1753
  %1786 = vst [vmem:[%s4 + $0x1c] sm:$0xf] %v1754
  %1787 = vst [vmem:[%s4 + $0x20] sm:$0xf] %v1755
  %1788 = vst [vmem:[%s4 + $0x24] sm:$0xf] %v1756
  %1789 = vst [vmem:[%s4 + $0x28] sm:$0xf] %v1757
  %1790 = vst [vmem:[%s4 + $0x2c] sm:$0xf] %v1758
  %1791 = vst [vmem:[%s4 + $0x30] sm:$0xf] %v1759
  %1792 = vst [vmem:[%s4 + $0x34] sm:$0xf] %v1760
  %1793 = vst [vmem:[%s4 + $0x38] sm:$0xf] %v1761
  %1794 = vst [vmem:[%s4 + $0x3c] sm:$0xf] %v1762
  // Predicated region
  $region18: #{discriminator_forward.5} parent=0 // pred_check
    _
  $region19: #{discriminator_forward.5} parent=0 // pred_check_branch
    %1796 = sbr.rel (0) target = $region21
  $region20: #{discriminator_forward.5} parent=0 // pred_region
    _
  $region21: #{discriminator_forward.5} parent=0 // pred_fallthru
    _
  // Predicated region
  $region22: #{discriminator_forward.5} parent=0 // pred_check
    _
  $region23: #{discriminator_forward.5} parent=0 // pred_check_branch
    %1798 = sbr.rel (0) target = $region25
  $region24: #{discriminator_forward.5} parent=0 // pred_region
    _
  $region25: #{discriminator_forward.5} parent=0 // pred_fallthru
    _

// kernel: discriminator_forward.6
$region0: #{discriminator_forward.6}
  #allocation0 [shape = 'u32[]', space=smem, size = 0x4, offset = 0x4, fixed_abs, tag = 'smem constant byte address 0x4 - core index']
  #allocation1 [shape = 'u32[144,128]{1,0:T(1,128)}', space=vmem, size = 0x12000, scoped, tag = 'internal scratch']
  %s0 = inlined_call_operand.vmem [shape: bf16[32,1152], index: 0, kind: input, shape index: {}]
  %s1 = inlined_call_operand.vmem [shape: bf16[1152,256], index: 1, kind: input, shape index: {}]
  %s2 = inlined_call_operand.vmem [shape: f32[1,256], index: 2, kind: input, shape index: {}]
  %s3 = inlined_call_operand.vmem [shape: f32[1,256], index: 3, kind: input, shape index: {}]
  %s4 = inlined_call_operand.vmem [shape: bf16[32,256], index: 4, kind: output, shape index: {}]
  %s5 = sld [smem:[#allocation0]]
  $region26: #{discriminator_forward.6} parent=0
    _
  %s7 = ssub.s32 1, %s5
  %s8 = scalar_select 0, %s7, %s5
  // Predicated region
  $region2: #{discriminator_forward.6} parent=0 // pred_check
    _
  $region3: #{discriminator_forward.6} parent=0 // pred_check_branch
    %10 = sbr.rel (0) target = $region5
  $region4: #{discriminator_forward.6} parent=0 // pred_region
    _
  $region5: #{discriminator_forward.6} parent=0 // pred_fallthru
    _
  // Predicated region
  $region6: #{discriminator_forward.6} parent=0 // pred_check
    _
  $region7: #{discriminator_forward.6} parent=0 // pred_check_branch
    %12 = sbr.rel (0) target = $region9
  $region8: #{discriminator_forward.6} parent=0 // pred_region
    _
  $region9: #{discriminator_forward.6} parent=0 // pred_fallthru
    _
  // Predicated region
  $region10: #{discriminator_forward.6} parent=0 // pred_check
    _
  $region11: #{discriminator_forward.6} parent=0 // pred_check_branch
    %14 = sbr.rel (0) target = $region13
  $region12: #{discriminator_forward.6} parent=0 // pred_region
    _
  $region13: #{discriminator_forward.6} parent=0 // pred_fallthru
    _
  // Predicated region
  $region14: #{discriminator_forward.6} parent=0 // pred_check
    _
  $region15: #{discriminator_forward.6} parent=0 // pred_check_branch
    %16 = sbr.rel (0) target = $region17
  $region16: #{discriminator_forward.6} parent=0 // pred_region
    _
  $region17: #{discriminator_forward.6} parent=0 // pred_fallthru
    _
  %v18 = vld [vmem:[%s0] sm:$0xff]
  %v19 = vld [vmem:[%s0 + $0x8] sm:$0xff]
  %v20 = vld [vmem:[%s0 + $0x10] sm:$0xff]
  %v21 = vld [vmem:[%s0 + $0x18] sm:$0xff]
  %v22 = vld [vmem:[%s0 + $0x20] sm:$0xf]
  %v23 = vld [vmem:[%s0 + $0x24] sm:$0xff]
  %v24 = vld [vmem:[%s0 + $0x2c] sm:$0xff]
  %v25 = vld [vmem:[%s0 + $0x34] sm:$0xff]
  %v26 = vld [vmem:[%s0 + $0x3c] sm:$0xff]
  %v27 = vld [vmem:[%s0 + $0x44] sm:$0xf]
  %v28 = vld [vmem:[%s0 + $0x48] sm:$0xff]
  %v29 = vld [vmem:[%s0 + $0x50] sm:$0xff]
  %v30 = vld [vmem:[%s0 + $0x58] sm:$0xff]
  %v31 = vld [vmem:[%s0 + $0x60] sm:$0xff]
  %v32 = vld [vmem:[%s0 + $0x68] sm:$0xf]
  %v33 = vld [vmem:[%s0 + $0x6c] sm:$0xff]
  %v34 = vld [vmem:[%s0 + $0x74] sm:$0xff]
  %v35 = vld [vmem:[%s0 + $0x7c] sm:$0xff]
  %v36 = vld [vmem:[%s0 + $0x84] sm:$0xff]
  %v37 = vld [vmem:[%s0 + $0x8c] sm:$0xf]
  %v38 = vld [vmem:[%s1] sm:$0xff]
  %v39 = vld [vmem:[%s1 + $0x8] sm:$0xff]
  %v40 = vld [vmem:[%s1 + $0x10] sm:$0xff]
  %v41 = vld [vmem:[%s1 + $0x18] sm:$0xff]
  %v42 = vld [vmem:[%s1 + $0x20] sm:$0xff]
  %v43 = vld [vmem:[%s1 + $0x28] sm:$0xff]
  %v44 = vld [vmem:[%s1 + $0x30] sm:$0xff]
  %v45 = vld [vmem:[%s1 + $0x38] sm:$0xff]
  %v46 = vld [vmem:[%s1 + $0x40] sm:$0xff]
  %v47 = vld [vmem:[%s1 + $0x48] sm:$0xff]
  %v48 = vld [vmem:[%s1 + $0x50] sm:$0xff]
  %v49 = vld [vmem:[%s1 + $0x58] sm:$0xff]
  %v50 = vld [vmem:[%s1 + $0x60] sm:$0xff]
  %v51 = vld [vmem:[%s1 + $0x68] sm:$0xff]
  %v52 = vld [vmem:[%s1 + $0x70] sm:$0xff]
  %v53 = vld [vmem:[%s1 + $0x78] sm:$0xff]
  %v54 = vld [vmem:[%s1 + $0x80] sm:$0xff]
  %v55 = vld [vmem:[%s1 + $0x88] sm:$0xff]
  %v56 = vld [vmem:[%s1 + $0x90] sm:$0xff]
  %v57 = vld [vmem:[%s1 + $0x98] sm:$0xff]
  %v58 = vld [vmem:[%s1 + $0xa0] sm:$0xff]
  %v59 = vld [vmem:[%s1 + $0xa8] sm:$0xff]
  %v60 = vld [vmem:[%s1 + $0xb0] sm:$0xff]
  %v61 = vld [vmem:[%s1 + $0xb8] sm:$0xff]
  %v62 = vld [vmem:[%s1 + $0xc0] sm:$0xff]
  %v63 = vld [vmem:[%s1 + $0xc8] sm:$0xff]
  %v64 = vld [vmem:[%s1 + $0xd0] sm:$0xff]
  %v65 = vld [vmem:[%s1 + $0xd8] sm:$0xff]
  %v66 = vld [vmem:[%s1 + $0xe0] sm:$0xff]
  %v67 = vld [vmem:[%s1 + $0xe8] sm:$0xff]
  %v68 = vld [vmem:[%s1 + $0xf0] sm:$0xff]
  %v69 = vld [vmem:[%s1 + $0xf8] sm:$0xff]
  %v70 = vld [vmem:[%s1 + $0x100] sm:$0xff]
  %v71 = vld [vmem:[%s1 + $0x108] sm:$0xff]
  %v72 = vld [vmem:[%s1 + $0x110] sm:$0xff]
  %v73 = vld [vmem:[%s1 + $0x118] sm:$0xff]
  %v74 = vld [vmem:[%s1 + $0x120] sm:$0xff]
  %v75 = vld [vmem:[%s1 + $0x128] sm:$0xff]
  %v76 = vld [vmem:[%s1 + $0x130] sm:$0xff]
  %v77 = vld [vmem:[%s1 + $0x138] sm:$0xff]
  %v78 = vld [vmem:[%s1 + $0x140] sm:$0xff]
  %v79 = vld [vmem:[%s1 + $0x148] sm:$0xff]
  %v80 = vld [vmem:[%s1 + $0x150] sm:$0xff]
  %v81 = vld [vmem:[%s1 + $0x158] sm:$0xff]
  %v82 = vld [vmem:[%s1 + $0x160] sm:$0xff]
  %v83 = vld [vmem:[%s1 + $0x168] sm:$0xff]
  %v84 = vld [vmem:[%s1 + $0x170] sm:$0xff]
  %v85 = vld [vmem:[%s1 + $0x178] sm:$0xff]
  %v86 = vld [vmem:[%s1 + $0x180] sm:$0xff]
  %v87 = vld [vmem:[%s1 + $0x188] sm:$0xff]
  %v88 = vld [vmem:[%s1 + $0x190] sm:$0xff]
  %v89 = vld [vmem:[%s1 + $0x198] sm:$0xff]
  %v90 = vld [vmem:[%s1 + $0x1a0] sm:$0xff]
  %v91 = vld [vmem:[%s1 + $0x1a8] sm:$0xff]
  %v92 = vld [vmem:[%s1 + $0x1b0] sm:$0xff]
  %v93 = vld [vmem:[%s1 + $0x1b8] sm:$0xff]
  %v94 = vld [vmem:[%s1 + $0x1c0] sm:$0xff]
  %v95 = vld [vmem:[%s1 + $0x1c8] sm:$0xff]
  %v96 = vld [vmem:[%s1 + $0x1d0] sm:$0xff]
  %v97 = vld [vmem:[%s1 + $0x1d8] sm:$0xff]
  %v98 = vld [vmem:[%s1 + $0x1e0] sm:$0xff]
  %v99 = vld [vmem:[%s1 + $0x1e8] sm:$0xff]
  %v100 = vld [vmem:[%s1 + $0x1f0] sm:$0xff]
  %v101 = vld [vmem:[%s1 + $0x1f8] sm:$0xff]
  %v102 = vld [vmem:[%s1 + $0x200] sm:$0xff]
  %v103 = vld [vmem:[%s1 + $0x208] sm:$0xff]
  %v104 = vld [vmem:[%s1 + $0x210] sm:$0xff]
  %v105 = vld [vmem:[%s1 + $0x218] sm:$0xff]
  %v106 = vld [vmem:[%s1 + $0x220] sm:$0xff]
  %v107 = vld [vmem:[%s1 + $0x228] sm:$0xff]
  %v108 = vld [vmem:[%s1 + $0x230] sm:$0xff]
  %v109 = vld [vmem:[%s1 + $0x238] sm:$0xff]
  %v110 = vld [vmem:[%s1 + $0x240] sm:$0xff]
  %v111 = vld [vmem:[%s1 + $0x248] sm:$0xff]
  %v112 = vld [vmem:[%s1 + $0x250] sm:$0xff]
  %v113 = vld [vmem:[%s1 + $0x258] sm:$0xff]
  %v114 = vld [vmem:[%s1 + $0x260] sm:$0xff]
  %v115 = vld [vmem:[%s1 + $0x268] sm:$0xff]
  %v116 = vld [vmem:[%s1 + $0x270] sm:$0xff]
  %v117 = vld [vmem:[%s1 + $0x278] sm:$0xff]
  %v118 = vld [vmem:[%s1 + $0x280] sm:$0xff]
  %v119 = vld [vmem:[%s1 + $0x288] sm:$0xff]
  %v120 = vld [vmem:[%s1 + $0x290] sm:$0xff]
  %v121 = vld [vmem:[%s1 + $0x298] sm:$0xff]
  %v122 = vld [vmem:[%s1 + $0x2a0] sm:$0xff]
  %v123 = vld [vmem:[%s1 + $0x2a8] sm:$0xff]
  %v124 = vld [vmem:[%s1 + $0x2b0] sm:$0xff]
  %v125 = vld [vmem:[%s1 + $0x2b8] sm:$0xff]
  %v126 = vld [vmem:[%s1 + $0x2c0] sm:$0xff]
  %v127 = vld [vmem:[%s1 + $0x2c8] sm:$0xff]
  %v128 = vld [vmem:[%s1 + $0x2d0] sm:$0xff]
  %v129 = vld [vmem:[%s1 + $0x2d8] sm:$0xff]
  %v130 = vld [vmem:[%s1 + $0x2e0] sm:$0xff]
  %v131 = vld [vmem:[%s1 + $0x2e8] sm:$0xff]
  %v132 = vld [vmem:[%s1 + $0x2f0] sm:$0xff]
  %v133 = vld [vmem:[%s1 + $0x2f8] sm:$0xff]
  %v134 = vld [vmem:[%s1 + $0x300] sm:$0xff]
  %v135 = vld [vmem:[%s1 + $0x308] sm:$0xff]
  %v136 = vld [vmem:[%s1 + $0x310] sm:$0xff]
  %v137 = vld [vmem:[%s1 + $0x318] sm:$0xff]
  %v138 = vld [vmem:[%s1 + $0x320] sm:$0xff]
  %v139 = vld [vmem:[%s1 + $0x328] sm:$0xff]
  %v140 = vld [vmem:[%s1 + $0x330] sm:$0xff]
  %v141 = vld [vmem:[%s1 + $0x338] sm:$0xff]
  %v142 = vld [vmem:[%s1 + $0x340] sm:$0xff]
  %v143 = vld [vmem:[%s1 + $0x348] sm:$0xff]
  %v144 = vld [vmem:[%s1 + $0x350] sm:$0xff]
  %v145 = vld [vmem:[%s1 + $0x358] sm:$0xff]
  %v146 = vld [vmem:[%s1 + $0x360] sm:$0xff]
  %v147 = vld [vmem:[%s1 + $0x368] sm:$0xff]
  %v148 = vld [vmem:[%s1 + $0x370] sm:$0xff]
  %v149 = vld [vmem:[%s1 + $0x378] sm:$0xff]
  %v150 = vld [vmem:[%s1 + $0x380] sm:$0xff]
  %v151 = vld [vmem:[%s1 + $0x388] sm:$0xff]
  %v152 = vld [vmem:[%s1 + $0x390] sm:$0xff]
  %v153 = vld [vmem:[%s1 + $0x398] sm:$0xff]
  %v154 = vld [vmem:[%s1 + $0x3a0] sm:$0xff]
  %v155 = vld [vmem:[%s1 + $0x3a8] sm:$0xff]
  %v156 = vld [vmem:[%s1 + $0x3b0] sm:$0xff]
  %v157 = vld [vmem:[%s1 + $0x3b8] sm:$0xff]
  %v158 = vld [vmem:[%s1 + $0x3c0] sm:$0xff]
  %v159 = vld [vmem:[%s1 + $0x3c8] sm:$0xff]
  %v160 = vld [vmem:[%s1 + $0x3d0] sm:$0xff]
  %v161 = vld [vmem:[%s1 + $0x3d8] sm:$0xff]
  %v162 = vld [vmem:[%s1 + $0x3e0] sm:$0xff]
  %v163 = vld [vmem:[%s1 + $0x3e8] sm:$0xff]
  %v164 = vld [vmem:[%s1 + $0x3f0] sm:$0xff]
  %v165 = vld [vmem:[%s1 + $0x3f8] sm:$0xff]
  %v166 = vld [vmem:[%s1 + $0x400] sm:$0xff]
  %v167 = vld [vmem:[%s1 + $0x408] sm:$0xff]
  %v168 = vld [vmem:[%s1 + $0x410] sm:$0xff]
  %v169 = vld [vmem:[%s1 + $0x418] sm:$0xff]
  %v170 = vld [vmem:[%s1 + $0x420] sm:$0xff]
  %v171 = vld [vmem:[%s1 + $0x428] sm:$0xff]
  %v172 = vld [vmem:[%s1 + $0x430] sm:$0xff]
  %v173 = vld [vmem:[%s1 + $0x438] sm:$0xff]
  %v174 = vld [vmem:[%s1 + $0x440] sm:$0xff]
  %v175 = vld [vmem:[%s1 + $0x448] sm:$0xff]
  %v176 = vld [vmem:[%s1 + $0x450] sm:$0xff]
  %v177 = vld [vmem:[%s1 + $0x458] sm:$0xff]
  %v178 = vld [vmem:[%s1 + $0x460] sm:$0xff]
  %v179 = vld [vmem:[%s1 + $0x468] sm:$0xff]
  %v180 = vld [vmem:[%s1 + $0x470] sm:$0xff]
  %v181 = vld [vmem:[%s1 + $0x478] sm:$0xff]
  %v202 = vunpack.c.l.b16 %v18
  %v203 = vunpack.c.h.b16 %v18
  %v204 = vunpack.c.l.b16 %v19
  %v205 = vunpack.c.h.b16 %v19
  %v206 = vunpack.c.l.b16 %v20
  %v207 = vunpack.c.h.b16 %v20
  %v208 = vunpack.c.l.b16 %v21
  %v209 = vunpack.c.h.b16 %v21
  %v210 = vunpack.c.l.b16 %v22
  %v211 = vunpack.c.l.b16 %v23
  %v212 = vunpack.c.h.b16 %v23
  %v213 = vunpack.c.l.b16 %v24
  %v214 = vunpack.c.h.b16 %v24
  %v215 = vunpack.c.l.b16 %v25
  %v216 = vunpack.c.h.b16 %v25
  %v217 = vunpack.c.l.b16 %v26
  %v218 = vunpack.c.h.b16 %v26
  %v219 = vunpack.c.l.b16 %v27
  %v220 = vunpack.c.l.b16 %v28
  %v221 = vunpack.c.h.b16 %v28
  %v222 = vunpack.c.l.b16 %v29
  %v223 = vunpack.c.h.b16 %v29
  %v224 = vunpack.c.l.b16 %v30
  %v225 = vunpack.c.h.b16 %v30
  %v226 = vunpack.c.l.b16 %v31
  %v227 = vunpack.c.h.b16 %v31
  %v228 = vunpack.c.l.b16 %v32
  %v229 = vunpack.c.l.b16 %v33
  %v230 = vunpack.c.h.b16 %v33
  %v231 = vunpack.c.l.b16 %v34
  %v232 = vunpack.c.h.b16 %v34
  %v233 = vunpack.c.l.b16 %v35
  %v234 = vunpack.c.h.b16 %v35
  %v235 = vunpack.c.l.b16 %v36
  %v236 = vunpack.c.h.b16 %v36
  %v237 = vunpack.c.l.b16 %v37
  %v238 = vpack.c.b16 %v211, %v202
  %v239 = vpack.c.b16 %v212, %v203
  %v240 = vpack.c.b16 %v213, %v204
  %v241 = vpack.c.b16 %v214, %v205
  %v242 = vpack.c.b16 %v215, %v206
  %v243 = vpack.c.b16 %v216, %v207
  %v244 = vpack.c.b16 %v217, %v208
  %v245 = vpack.c.b16 %v218, %v209
  %v246 = vpack.c.b16 %v219, %v210
  %v247 = vpack.c.b16 %v229, %v220
  %v248 = vpack.c.b16 %v230, %v221
  %v249 = vpack.c.b16 %v231, %v222
  %v250 = vpack.c.b16 %v232, %v223
  %v251 = vpack.c.b16 %v233, %v224
  %v252 = vpack.c.b16 %v234, %v225
  %v253 = vpack.c.b16 %v235, %v226
  %v254 = vpack.c.b16 %v236, %v227
  %v255 = vpack.c.b16 %v237, %v228
  %v418 = vunpack.c.l.b16 %v38
  %v419 = vunpack.c.h.b16 %v38
  %v420 = vunpack.c.l.b16 %v39
  %v421 = vunpack.c.h.b16 %v39
  %v422 = vunpack.c.l.b16 %v40
  %v423 = vunpack.c.h.b16 %v40
  %v424 = vunpack.c.l.b16 %v41
  %v425 = vunpack.c.h.b16 %v41
  %v426 = vunpack.c.l.b16 %v42
  %v427 = vunpack.c.h.b16 %v42
  %v428 = vunpack.c.l.b16 %v43
  %v429 = vunpack.c.h.b16 %v43
  %v430 = vunpack.c.l.b16 %v44
  %v431 = vunpack.c.h.b16 %v44
  %v432 = vunpack.c.l.b16 %v45
  %v433 = vunpack.c.h.b16 %v45
  %v434 = vunpack.c.l.b16 %v46
  %v435 = vunpack.c.h.b16 %v46
  %v436 = vunpack.c.l.b16 %v47
  %v437 = vunpack.c.h.b16 %v47
  %v438 = vunpack.c.l.b16 %v48
  %v439 = vunpack.c.h.b16 %v48
  %v440 = vunpack.c.l.b16 %v49
  %v441 = vunpack.c.h.b16 %v49
  %v442 = vunpack.c.l.b16 %v50
  %v443 = vunpack.c.h.b16 %v50
  %v444 = vunpack.c.l.b16 %v51
  %v445 = vunpack.c.h.b16 %v51
  %v446 = vunpack.c.l.b16 %v52
  %v447 = vunpack.c.h.b16 %v52
  %v448 = vunpack.c.l.b16 %v53
  %v449 = vunpack.c.h.b16 %v53
  %v450 = vunpack.c.l.b16 %v54
  %v451 = vunpack.c.h.b16 %v54
  %v452 = vunpack.c.l.b16 %v55
  %v453 = vunpack.c.h.b16 %v55
  %v454 = vunpack.c.l.b16 %v56
  %v455 = vunpack.c.h.b16 %v56
  %v456 = vunpack.c.l.b16 %v57
  %v457 = vunpack.c.h.b16 %v57
  %v458 = vunpack.c.l.b16 %v58
  %v459 = vunpack.c.h.b16 %v58
  %v460 = vunpack.c.l.b16 %v59
  %v461 = vunpack.c.h.b16 %v59
  %v462 = vunpack.c.l.b16 %v60
  %v463 = vunpack.c.h.b16 %v60
  %v464 = vunpack.c.l.b16 %v61
  %v465 = vunpack.c.h.b16 %v61
  %v466 = vunpack.c.l.b16 %v62
  %v467 = vunpack.c.h.b16 %v62
  %v468 = vunpack.c.l.b16 %v63
  %v469 = vunpack.c.h.b16 %v63
  %v470 = vunpack.c.l.b16 %v64
  %v471 = vunpack.c.h.b16 %v64
  %v472 = vunpack.c.l.b16 %v65
  %v473 = vunpack.c.h.b16 %v65
  %v474 = vunpack.c.l.b16 %v66
  %v475 = vunpack.c.h.b16 %v66
  %v476 = vunpack.c.l.b16 %v67
  %v477 = vunpack.c.h.b16 %v67
  %v478 = vunpack.c.l.b16 %v68
  %v479 = vunpack.c.h.b16 %v68
  %v480 = vunpack.c.l.b16 %v69
  %v481 = vunpack.c.h.b16 %v69
  %v482 = vunpack.c.l.b16 %v70
  %v483 = vunpack.c.h.b16 %v70
  %v484 = vunpack.c.l.b16 %v71
  %v485 = vunpack.c.h.b16 %v71
  %v486 = vunpack.c.l.b16 %v72
  %v487 = vunpack.c.h.b16 %v72
  %v488 = vunpack.c.l.b16 %v73
  %v489 = vunpack.c.h.b16 %v73
  %v490 = vunpack.c.l.b16 %v74
  %v491 = vunpack.c.h.b16 %v74
  %v492 = vunpack.c.l.b16 %v75
  %v493 = vunpack.c.h.b16 %v75
  %v494 = vunpack.c.l.b16 %v76
  %v495 = vunpack.c.h.b16 %v76
  %v496 = vunpack.c.l.b16 %v77
  %v497 = vunpack.c.h.b16 %v77
  %v498 = vunpack.c.l.b16 %v78
  %v499 = vunpack.c.h.b16 %v78
  %v500 = vunpack.c.l.b16 %v79
  %v501 = vunpack.c.h.b16 %v79
  %v502 = vunpack.c.l.b16 %v80
  %v503 = vunpack.c.h.b16 %v80
  %v504 = vunpack.c.l.b16 %v81
  %v505 = vunpack.c.h.b16 %v81
  %v506 = vunpack.c.l.b16 %v82
  %v507 = vunpack.c.h.b16 %v82
  %v508 = vunpack.c.l.b16 %v83
  %v509 = vunpack.c.h.b16 %v83
  %v510 = vunpack.c.l.b16 %v84
  %v511 = vunpack.c.h.b16 %v84
  %v512 = vunpack.c.l.b16 %v85
  %v513 = vunpack.c.h.b16 %v85
  %v514 = vunpack.c.l.b16 %v86
  %v515 = vunpack.c.h.b16 %v86
  %v516 = vunpack.c.l.b16 %v87
  %v517 = vunpack.c.h.b16 %v87
  %v518 = vunpack.c.l.b16 %v88
  %v519 = vunpack.c.h.b16 %v88
  %v520 = vunpack.c.l.b16 %v89
  %v521 = vunpack.c.h.b16 %v89
  %v522 = vunpack.c.l.b16 %v90
  %v523 = vunpack.c.h.b16 %v90
  %v524 = vunpack.c.l.b16 %v91
  %v525 = vunpack.c.h.b16 %v91
  %v526 = vunpack.c.l.b16 %v92
  %v527 = vunpack.c.h.b16 %v92
  %v528 = vunpack.c.l.b16 %v93
  %v529 = vunpack.c.h.b16 %v93
  %v530 = vunpack.c.l.b16 %v94
  %v531 = vunpack.c.h.b16 %v94
  %v532 = vunpack.c.l.b16 %v95
  %v533 = vunpack.c.h.b16 %v95
  %v534 = vunpack.c.l.b16 %v96
  %v535 = vunpack.c.h.b16 %v96
  %v536 = vunpack.c.l.b16 %v97
  %v537 = vunpack.c.h.b16 %v97
  %v538 = vunpack.c.l.b16 %v98
  %v539 = vunpack.c.h.b16 %v98
  %v540 = vunpack.c.l.b16 %v99
  %v541 = vunpack.c.h.b16 %v99
  %v542 = vunpack.c.l.b16 %v100
  %v543 = vunpack.c.h.b16 %v100
  %v544 = vunpack.c.l.b16 %v101
  %v545 = vunpack.c.h.b16 %v101
  %v546 = vunpack.c.l.b16 %v102
  %v547 = vunpack.c.h.b16 %v102
  %v548 = vunpack.c.l.b16 %v103
  %v549 = vunpack.c.h.b16 %v103
  %v550 = vunpack.c.l.b16 %v104
  %v551 = vunpack.c.h.b16 %v104
  %v552 = vunpack.c.l.b16 %v105
  %v553 = vunpack.c.h.b16 %v105
  %v554 = vunpack.c.l.b16 %v106
  %v555 = vunpack.c.h.b16 %v106
  %v556 = vunpack.c.l.b16 %v107
  %v557 = vunpack.c.h.b16 %v107
  %v558 = vunpack.c.l.b16 %v108
  %v559 = vunpack.c.h.b16 %v108
  %v560 = vunpack.c.l.b16 %v109
  %v561 = vunpack.c.h.b16 %v109
  %v562 = vunpack.c.l.b16 %v110
  %v563 = vunpack.c.h.b16 %v110
  %v564 = vunpack.c.l.b16 %v111
  %v565 = vunpack.c.h.b16 %v111
  %v566 = vunpack.c.l.b16 %v112
  %v567 = vunpack.c.h.b16 %v112
  %v568 = vunpack.c.l.b16 %v113
  %v569 = vunpack.c.h.b16 %v113
  %v570 = vunpack.c.l.b16 %v114
  %v571 = vunpack.c.h.b16 %v114
  %v572 = vunpack.c.l.b16 %v115
  %v573 = vunpack.c.h.b16 %v115
  %v574 = vunpack.c.l.b16 %v116
  %v575 = vunpack.c.h.b16 %v116
  %v576 = vunpack.c.l.b16 %v117
  %v577 = vunpack.c.h.b16 %v117
  %v578 = vunpack.c.l.b16 %v118
  %v579 = vunpack.c.h.b16 %v118
  %v580 = vunpack.c.l.b16 %v119
  %v581 = vunpack.c.h.b16 %v119
  %v582 = vunpack.c.l.b16 %v120
  %v583 = vunpack.c.h.b16 %v120
  %v584 = vunpack.c.l.b16 %v121
  %v585 = vunpack.c.h.b16 %v121
  %v586 = vunpack.c.l.b16 %v122
  %v587 = vunpack.c.h.b16 %v122
  %v588 = vunpack.c.l.b16 %v123
  %v589 = vunpack.c.h.b16 %v123
  %v590 = vunpack.c.l.b16 %v124
  %v591 = vunpack.c.h.b16 %v124
  %v592 = vunpack.c.l.b16 %v125
  %v593 = vunpack.c.h.b16 %v125
  %v594 = vunpack.c.l.b16 %v126
  %v595 = vunpack.c.h.b16 %v126
  %v596 = vunpack.c.l.b16 %v127
  %v597 = vunpack.c.h.b16 %v127
  %v598 = vunpack.c.l.b16 %v128
  %v599 = vunpack.c.h.b16 %v128
  %v600 = vunpack.c.l.b16 %v129
  %v601 = vunpack.c.h.b16 %v129
  %v602 = vunpack.c.l.b16 %v130
  %v603 = vunpack.c.h.b16 %v130
  %v604 = vunpack.c.l.b16 %v131
  %v605 = vunpack.c.h.b16 %v131
  %v606 = vunpack.c.l.b16 %v132
  %v607 = vunpack.c.h.b16 %v132
  %v608 = vunpack.c.l.b16 %v133
  %v609 = vunpack.c.h.b16 %v133
  %v610 = vunpack.c.l.b16 %v134
  %v611 = vunpack.c.h.b16 %v134
  %v612 = vunpack.c.l.b16 %v135
  %v613 = vunpack.c.h.b16 %v135
  %v614 = vunpack.c.l.b16 %v136
  %v615 = vunpack.c.h.b16 %v136
  %v616 = vunpack.c.l.b16 %v137
  %v617 = vunpack.c.h.b16 %v137
  %v618 = vunpack.c.l.b16 %v138
  %v619 = vunpack.c.h.b16 %v138
  %v620 = vunpack.c.l.b16 %v139
  %v621 = vunpack.c.h.b16 %v139
  %v622 = vunpack.c.l.b16 %v140
  %v623 = vunpack.c.h.b16 %v140
  %v624 = vunpack.c.l.b16 %v141
  %v625 = vunpack.c.h.b16 %v141
  %v626 = vunpack.c.l.b16 %v142
  %v627 = vunpack.c.h.b16 %v142
  %v628 = vunpack.c.l.b16 %v143
  %v629 = vunpack.c.h.b16 %v143
  %v630 = vunpack.c.l.b16 %v144
  %v631 = vunpack.c.h.b16 %v144
  %v632 = vunpack.c.l.b16 %v145
  %v633 = vunpack.c.h.b16 %v145
  %v634 = vunpack.c.l.b16 %v146
  %v635 = vunpack.c.h.b16 %v146
  %v636 = vunpack.c.l.b16 %v147
  %v637 = vunpack.c.h.b16 %v147
  %v638 = vunpack.c.l.b16 %v148
  %v639 = vunpack.c.h.b16 %v148
  %v640 = vunpack.c.l.b16 %v149
  %v641 = vunpack.c.h.b16 %v149
  %v642 = vunpack.c.l.b16 %v150
  %v643 = vunpack.c.h.b16 %v150
  %v644 = vunpack.c.l.b16 %v151
  %v645 = vunpack.c.h.b16 %v151
  %v646 = vunpack.c.l.b16 %v152
  %v647 = vunpack.c.h.b16 %v152
  %v648 = vunpack.c.l.b16 %v153
  %v649 = vunpack.c.h.b16 %v153
  %v650 = vunpack.c.l.b16 %v154
  %v651 = vunpack.c.h.b16 %v154
  %v652 = vunpack.c.l.b16 %v155
  %v653 = vunpack.c.h.b16 %v155
  %v654 = vunpack.c.l.b16 %v156
  %v655 = vunpack.c.h.b16 %v156
  %v656 = vunpack.c.l.b16 %v157
  %v657 = vunpack.c.h.b16 %v157
  %v658 = vunpack.c.l.b16 %v158
  %v659 = vunpack.c.h.b16 %v158
  %v660 = vunpack.c.l.b16 %v159
  %v661 = vunpack.c.h.b16 %v159
  %v662 = vunpack.c.l.b16 %v160
  %v663 = vunpack.c.h.b16 %v160
  %v664 = vunpack.c.l.b16 %v161
  %v665 = vunpack.c.h.b16 %v161
  %v666 = vunpack.c.l.b16 %v162
  %v667 = vunpack.c.h.b16 %v162
  %v668 = vunpack.c.l.b16 %v163
  %v669 = vunpack.c.h.b16 %v163
  %v670 = vunpack.c.l.b16 %v164
  %v671 = vunpack.c.h.b16 %v164
  %v672 = vunpack.c.l.b16 %v165
  %v673 = vunpack.c.h.b16 %v165
  %v674 = vunpack.c.l.b16 %v166
  %v675 = vunpack.c.h.b16 %v166
  %v676 = vunpack.c.l.b16 %v167
  %v677 = vunpack.c.h.b16 %v167
  %v678 = vunpack.c.l.b16 %v168
  %v679 = vunpack.c.h.b16 %v168
  %v680 = vunpack.c.l.b16 %v169
  %v681 = vunpack.c.h.b16 %v169
  %v682 = vunpack.c.l.b16 %v170
  %v683 = vunpack.c.h.b16 %v170
  %v684 = vunpack.c.l.b16 %v171
  %v685 = vunpack.c.h.b16 %v171
  %v686 = vunpack.c.l.b16 %v172
  %v687 = vunpack.c.h.b16 %v172
  %v688 = vunpack.c.l.b16 %v173
  %v689 = vunpack.c.h.b16 %v173
  %v690 = vunpack.c.l.b16 %v174
  %v691 = vunpack.c.h.b16 %v174
  %v692 = vunpack.c.l.b16 %v175
  %v693 = vunpack.c.h.b16 %v175
  %v694 = vunpack.c.l.b16 %v176
  %v695 = vunpack.c.h.b16 %v176
  %v696 = vunpack.c.l.b16 %v177
  %v697 = vunpack.c.h.b16 %v177
  %v698 = vunpack.c.l.b16 %v178
  %v699 = vunpack.c.h.b16 %v178
  %v700 = vunpack.c.l.b16 %v179
  %v701 = vunpack.c.h.b16 %v179
  %v702 = vunpack.c.l.b16 %v180
  %v703 = vunpack.c.h.b16 %v180
  %v704 = vunpack.c.l.b16 %v181
  %v705 = vunpack.c.h.b16 %v181
  %v706 = vpack.c.b16 %v420, %v418
  %v707 = vpack.c.b16 %v421, %v419
  %v708 = vpack.c.b16 %v424, %v422
  %v709 = vpack.c.b16 %v425, %v423
  %v710 = vpack.c.b16 %v428, %v426
  %v711 = vpack.c.b16 %v429, %v427
  %v712 = vpack.c.b16 %v432, %v430
  %v713 = vpack.c.b16 %v433, %v431
  %v714 = vpack.c.b16 %v436, %v434
  %v715 = vpack.c.b16 %v437, %v435
  %v716 = vpack.c.b16 %v440, %v438
  %v717 = vpack.c.b16 %v441, %v439
  %v718 = vpack.c.b16 %v444, %v442
  %v719 = vpack.c.b16 %v445, %v443
  %v720 = vpack.c.b16 %v448, %v446
  %v721 = vpack.c.b16 %v449, %v447
  %v722 = vpack.c.b16 %v452, %v450
  %v723 = vpack.c.b16 %v453, %v451
  %v724 = vpack.c.b16 %v456, %v454
  %v725 = vpack.c.b16 %v457, %v455
  %v726 = vpack.c.b16 %v460, %v458
  %v727 = vpack.c.b16 %v461, %v459
  %v728 = vpack.c.b16 %v464, %v462
  %v729 = vpack.c.b16 %v465, %v463
  %v730 = vpack.c.b16 %v468, %v466
  %v731 = vpack.c.b16 %v469, %v467
  %v732 = vpack.c.b16 %v472, %v470
  %v733 = vpack.c.b16 %v473, %v471
  %v734 = vpack.c.b16 %v476, %v474
  %v735 = vpack.c.b16 %v477, %v475
  %v736 = vpack.c.b16 %v480, %v478
  %v737 = vpack.c.b16 %v481, %v479
  %v738 = vpack.c.b16 %v484, %v482
  %v739 = vpack.c.b16 %v485, %v483
  %v740 = vpack.c.b16 %v488, %v486
  %v741 = vpack.c.b16 %v489, %v487
  %v742 = vpack.c.b16 %v492, %v490
  %v743 = vpack.c.b16 %v493, %v491
  %v744 = vpack.c.b16 %v496, %v494
  %v745 = vpack.c.b16 %v497, %v495
  %v746 = vpack.c.b16 %v500, %v498
  %v747 = vpack.c.b16 %v501, %v499
  %v748 = vpack.c.b16 %v504, %v502
  %v749 = vpack.c.b16 %v505, %v503
  %v750 = vpack.c.b16 %v508, %v506
  %v751 = vpack.c.b16 %v509, %v507
  %v752 = vpack.c.b16 %v512, %v510
  %v753 = vpack.c.b16 %v513, %v511
  %v754 = vpack.c.b16 %v516, %v514
  %v755 = vpack.c.b16 %v517, %v515
  %v756 = vpack.c.b16 %v520, %v518
  %v757 = vpack.c.b16 %v521, %v519
  %v758 = vpack.c.b16 %v524, %v522
  %v759 = vpack.c.b16 %v525, %v523
  %v760 = vpack.c.b16 %v528, %v526
  %v761 = vpack.c.b16 %v529, %v527
  %v762 = vpack.c.b16 %v532, %v530
  %v763 = vpack.c.b16 %v533, %v531
  %v764 = vpack.c.b16 %v536, %v534
  %v765 = vpack.c.b16 %v537, %v535
  %v766 = vpack.c.b16 %v540, %v538
  %v767 = vpack.c.b16 %v541, %v539
  %v768 = vpack.c.b16 %v544, %v542
  %v769 = vpack.c.b16 %v545, %v543
  %v770 = vpack.c.b16 %v548, %v546
  %v771 = vpack.c.b16 %v549, %v547
  %v772 = vpack.c.b16 %v552, %v550
  %v773 = vpack.c.b16 %v553, %v551
  %v774 = vpack.c.b16 %v556, %v554
  %v775 = vpack.c.b16 %v557, %v555
  %v776 = vpack.c.b16 %v560, %v558
  %v777 = vpack.c.b16 %v561, %v559
  %v778 = vpack.c.b16 %v564, %v562
  %v779 = vpack.c.b16 %v565, %v563
  %v780 = vpack.c.b16 %v568, %v566
  %v781 = vpack.c.b16 %v569, %v567
  %v782 = vpack.c.b16 %v572, %v570
  %v783 = vpack.c.b16 %v573, %v571
  %v784 = vpack.c.b16 %v576, %v574
  %v785 = vpack.c.b16 %v577, %v575
  %v786 = vpack.c.b16 %v580, %v578
  %v787 = vpack.c.b16 %v581, %v579
  %v788 = vpack.c.b16 %v584, %v582
  %v789 = vpack.c.b16 %v585, %v583
  %v790 = vpack.c.b16 %v588, %v586
  %v791 = vpack.c.b16 %v589, %v587
  %v792 = vpack.c.b16 %v592, %v590
  %v793 = vpack.c.b16 %v593, %v591
  %v794 = vpack.c.b16 %v596, %v594
  %v795 = vpack.c.b16 %v597, %v595
  %v796 = vpack.c.b16 %v600, %v598
  %v797 = vpack.c.b16 %v601, %v599
  %v798 = vpack.c.b16 %v604, %v602
  %v799 = vpack.c.b16 %v605, %v603
  %v800 = vpack.c.b16 %v608, %v606
  %v801 = vpack.c.b16 %v609, %v607
  %v802 = vpack.c.b16 %v612, %v610
  %v803 = vpack.c.b16 %v613, %v611
  %v804 = vpack.c.b16 %v616, %v614
  %v805 = vpack.c.b16 %v617, %v615
  %v806 = vpack.c.b16 %v620, %v618
  %v807 = vpack.c.b16 %v621, %v619
  %v808 = vpack.c.b16 %v624, %v622
  %v809 = vpack.c.b16 %v625, %v623
  %v810 = vpack.c.b16 %v628, %v626
  %v811 = vpack.c.b16 %v629, %v627
  %v812 = vpack.c.b16 %v632, %v630
  %v813 = vpack.c.b16 %v633, %v631
  %v814 = vpack.c.b16 %v636, %v634
  %v815 = vpack.c.b16 %v637, %v635
  %v816 = vpack.c.b16 %v640, %v638
  %v817 = vpack.c.b16 %v641, %v639
  %v818 = vpack.c.b16 %v644, %v642
  %v819 = vpack.c.b16 %v645, %v643
  %v820 = vpack.c.b16 %v648, %v646
  %v821 = vpack.c.b16 %v649, %v647
  %v822 = vpack.c.b16 %v652, %v650
  %v823 = vpack.c.b16 %v653, %v651
  %v824 = vpack.c.b16 %v656, %v654
  %v825 = vpack.c.b16 %v657, %v655
  %v826 = vpack.c.b16 %v660, %v658
  %v827 = vpack.c.b16 %v661, %v659
  %v828 = vpack.c.b16 %v664, %v662
  %v829 = vpack.c.b16 %v665, %v663
  %v830 = vpack.c.b16 %v668, %v666
  %v831 = vpack.c.b16 %v669, %v667
  %v832 = vpack.c.b16 %v672, %v670
  %v833 = vpack.c.b16 %v673, %v671
  %v834 = vpack.c.b16 %v676, %v674
  %v835 = vpack.c.b16 %v677, %v675
  %v836 = vpack.c.b16 %v680, %v678
  %v837 = vpack.c.b16 %v681, %v679
  %v838 = vpack.c.b16 %v684, %v682
  %v839 = vpack.c.b16 %v685, %v683
  %v840 = vpack.c.b16 %v688, %v686
  %v841 = vpack.c.b16 %v689, %v687
  %v842 = vpack.c.b16 %v692, %v690
  %v843 = vpack.c.b16 %v693, %v691
  %v844 = vpack.c.b16 %v696, %v694
  %v845 = vpack.c.b16 %v697, %v695
  %v846 = vpack.c.b16 %v700, %v698
  %v847 = vpack.c.b16 %v701, %v699
  %v848 = vpack.c.b16 %v704, %v702
  %v849 = vpack.c.b16 %v705, %v703
  %994 = vmatprep.subr.bf16.mxu0 %v721
  %995 = vmatpush1.bf16.msra.mxu0 %v720
  %996 = vmatprep.subr.bf16.mxu0 %v719
  %997 = vmatpush1.bf16.msra.mxu0 %v718
  %998 = vmatprep.subr.bf16.mxu0 %v717
  %999 = vmatpush1.bf16.msra.mxu0 %v716
  %1000 = vmatprep.subr.bf16.mxu0 %v715
  %1001 = vmatpush1.bf16.msra.mxu0 %v714
  %1002 = vmatprep.subr.bf16.mxu0 %v713
  %1003 = vmatpush1.bf16.msra.mxu0 %v712
  %1004 = vmatprep.subr.bf16.mxu0 %v711
  %1005 = vmatpush1.bf16.msra.mxu0 %v710
  %1006 = vmatprep.subr.bf16.mxu0 %v709
  %1007 = vmatpush1.bf16.msra.mxu0 %v708
  %1008 = vmatprep.subr.bf16.mxu0 %v707
  %1009 = vmatpush1.bf16.msra.mxu0 %v706
  %1010 = vmatprep.subr.bf16.mxu0 %v737
  %1011 = vmatpush2.bf16.msra.mxu0 %v736
  %1012 = vmatprep.subr.bf16.mxu0 %v735
  %1013 = vmatpush2.bf16.msra.mxu0 %v734
  %1014 = vmatprep.subr.bf16.mxu0 %v733
  %1015 = vmatpush2.bf16.msra.mxu0 %v732
  %1016 = vmatprep.subr.bf16.mxu0 %v731
  %1017 = vmatpush2.bf16.msra.mxu0 %v730
  %1018 = vmatprep.subr.bf16.mxu0 %v729
  %1019 = vmatpush2.bf16.msra.mxu0 %v728
  %1020 = vmatprep.subr.bf16.mxu0 %v727
  %1021 = vmatpush2.bf16.msra.mxu0 %v726
  %1022 = vmatprep.subr.bf16.mxu0 %v725
  %1023 = vmatpush2.bf16.msra.mxu0 %v724
  %1024 = vmatprep.subr.bf16.mxu0 %v723
  %1025 = vmatpush2.bf16.msra.mxu0 %v722
  %1026 = vmatprep.mubr.bf16.mxu0 %v239
  %1027 = vmatmul.mubr.bf16.gmra.mxu0 %v238
  %v1028 = vpop.f32.mrf.mxu0
  %v1029 = vadd.f32 0.0, %v1028
  %v1030 = vpop.f32.mrf.mxu0
  %v1031 = vadd.f32 0.0, %v1030
  %v1032 = vpop.f32.mrf.mxu0
  %v1033 = vadd.f32 0.0, %v1032
  %v1034 = vpop.f32.mrf.mxu0
  %v1035 = vadd.f32 0.0, %v1034
  %1036 = vmatprep.mubr.bf16.mxu0 %v248
  %1037 = vmatmul.mubr.bf16.gmra.mxu0 %v247
  %v1038 = vpop.f32.mrf.mxu0
  %v1039 = vadd.f32 0.0, %v1038
  %v1040 = vpop.f32.mrf.mxu0
  %v1041 = vadd.f32 0.0, %v1040
  %v1042 = vpop.f32.mrf.mxu0
  %v1043 = vadd.f32 0.0, %v1042
  %v1044 = vpop.f32.mrf.mxu0
  %v1045 = vadd.f32 0.0, %v1044
  %1046 = vdwg.mxu0
  %1047 = vmatprep.subr.bf16.mxu0 %v753
  %1048 = vmatpush1.bf16.msra.mxu0 %v752
  %1049 = vmatprep.subr.bf16.mxu0 %v751
  %1050 = vmatpush1.bf16.msra.mxu0 %v750
  %1051 = vmatprep.subr.bf16.mxu0 %v749
  %1052 = vmatpush1.bf16.msra.mxu0 %v748
  %1053 = vmatprep.subr.bf16.mxu0 %v747
  %1054 = vmatpush1.bf16.msra.mxu0 %v746
  %1055 = vmatprep.subr.bf16.mxu0 %v745
  %1056 = vmatpush1.bf16.msra.mxu0 %v744
  %1057 = vmatprep.subr.bf16.mxu0 %v743
  %1058 = vmatpush1.bf16.msra.mxu0 %v742
  %1059 = vmatprep.subr.bf16.mxu0 %v741
  %1060 = vmatpush1.bf16.msra.mxu0 %v740
  %1061 = vmatprep.subr.bf16.mxu0 %v739
  %1062 = vmatpush1.bf16.msra.mxu0 %v738
  %1063 = vmatprep.subr.bf16.mxu0 %v769
  %1064 = vmatpush2.bf16.msra.mxu0 %v768
  %1065 = vmatprep.subr.bf16.mxu0 %v767
  %1066 = vmatpush2.bf16.msra.mxu0 %v766
  %1067 = vmatprep.subr.bf16.mxu0 %v765
  %1068 = vmatpush2.bf16.msra.mxu0 %v764
  %1069 = vmatprep.subr.bf16.mxu0 %v763
  %1070 = vmatpush2.bf16.msra.mxu0 %v762
  %1071 = vmatprep.subr.bf16.mxu0 %v761
  %1072 = vmatpush2.bf16.msra.mxu0 %v760
  %1073 = vmatprep.subr.bf16.mxu0 %v759
  %1074 = vmatpush2.bf16.msra.mxu0 %v758
  %1075 = vmatprep.subr.bf16.mxu0 %v757
  %1076 = vmatpush2.bf16.msra.mxu0 %v756
  %1077 = vmatprep.subr.bf16.mxu0 %v755
  %1078 = vmatpush2.bf16.msra.mxu0 %v754
  %1079 = vmatprep.mubr.bf16.mxu0 %v241
  %1080 = vmatmul.mubr.bf16.gmra.mxu0 %v240
  %v1081 = vpop.f32.mrf.mxu0
  %v1082 = vadd.f32 %v1029, %v1081
  %v1083 = vpop.f32.mrf.mxu0
  %v1084 = vadd.f32 %v1031, %v1083
  %v1085 = vpop.f32.mrf.mxu0
  %v1086 = vadd.f32 %v1033, %v1085
  %v1087 = vpop.f32.mrf.mxu0
  %v1088 = vadd.f32 %v1035, %v1087
  %1089 = vmatprep.mubr.bf16.mxu0 %v250
  %1090 = vmatmul.mubr.bf16.gmra.mxu0 %v249
  %v1091 = vpop.f32.mrf.mxu0
  %v1092 = vadd.f32 %v1039, %v1091
  %v1093 = vpop.f32.mrf.mxu0
  %v1094 = vadd.f32 %v1041, %v1093
  %v1095 = vpop.f32.mrf.mxu0
  %v1096 = vadd.f32 %v1043, %v1095
  %v1097 = vpop.f32.mrf.mxu0
  %v1098 = vadd.f32 %v1045, %v1097
  %1099 = vdwg.mxu0
  %1100 = vmatprep.subr.bf16.mxu0 %v785
  %1101 = vmatpush1.bf16.msra.mxu0 %v784
  %1102 = vmatprep.subr.bf16.mxu0 %v783
  %1103 = vmatpush1.bf16.msra.mxu0 %v782
  %1104 = vmatprep.subr.bf16.mxu0 %v781
  %1105 = vmatpush1.bf16.msra.mxu0 %v780
  %1106 = vmatprep.subr.bf16.mxu0 %v779
  %1107 = vmatpush1.bf16.msra.mxu0 %v778
  %1108 = vmatprep.subr.bf16.mxu0 %v777
  %1109 = vmatpush1.bf16.msra.mxu0 %v776
  %1110 = vmatprep.subr.bf16.mxu0 %v775
  %1111 = vmatpush1.bf16.msra.mxu0 %v774
  %1112 = vmatprep.subr.bf16.mxu0 %v773
  %1113 = vmatpush1.bf16.msra.mxu0 %v772
  %1114 = vmatprep.subr.bf16.mxu0 %v771
  %1115 = vmatpush1.bf16.msra.mxu0 %v770
  %1116 = vmatprep.subr.bf16.mxu0 %v801
  %1117 = vmatpush2.bf16.msra.mxu0 %v800
  %1118 = vmatprep.subr.bf16.mxu0 %v799
  %1119 = vmatpush2.bf16.msra.mxu0 %v798
  %1120 = vmatprep.subr.bf16.mxu0 %v797
  %1121 = vmatpush2.bf16.msra.mxu0 %v796
  %1122 = vmatprep.subr.bf16.mxu0 %v795
  %1123 = vmatpush2.bf16.msra.mxu0 %v794
  %1124 = vmatprep.subr.bf16.mxu0 %v793
  %1125 = vmatpush2.bf16.msra.mxu0 %v792
  %1126 = vmatprep.subr.bf16.mxu0 %v791
  %1127 = vmatpush2.bf16.msra.mxu0 %v790
  %1128 = vmatprep.subr.bf16.mxu0 %v789
  %1129 = vmatpush2.bf16.msra.mxu0 %v788
  %1130 = vmatprep.subr.bf16.mxu0 %v787
  %1131 = vmatpush2.bf16.msra.mxu0 %v786
  %1132 = vmatprep.mubr.bf16.mxu0 %v243
  %1133 = vmatmul.mubr.bf16.gmra.mxu0 %v242
  %v1134 = vpop.f32.mrf.mxu0
  %v1135 = vadd.f32 %v1082, %v1134
  %v1136 = vpop.f32.mrf.mxu0
  %v1137 = vadd.f32 %v1084, %v1136
  %v1138 = vpop.f32.mrf.mxu0
  %v1139 = vadd.f32 %v1086, %v1138
  %v1140 = vpop.f32.mrf.mxu0
  %v1141 = vadd.f32 %v1088, %v1140
  %1142 = vmatprep.mubr.bf16.mxu0 %v252
  %1143 = vmatmul.mubr.bf16.gmra.mxu0 %v251
  %v1144 = vpop.f32.mrf.mxu0
  %v1145 = vadd.f32 %v1092, %v1144
  %v1146 = vpop.f32.mrf.mxu0
  %v1147 = vadd.f32 %v1094, %v1146
  %v1148 = vpop.f32.mrf.mxu0
  %v1149 = vadd.f32 %v1096, %v1148
  %v1150 = vpop.f32.mrf.mxu0
  %v1151 = vadd.f32 %v1098, %v1150
  %1152 = vdwg.mxu0
  %1153 = vmatprep.subr.bf16.mxu0 %v817
  %1154 = vmatpush1.bf16.msra.mxu0 %v816
  %1155 = vmatprep.subr.bf16.mxu0 %v815
  %1156 = vmatpush1.bf16.msra.mxu0 %v814
  %1157 = vmatprep.subr.bf16.mxu0 %v813
  %1158 = vmatpush1.bf16.msra.mxu0 %v812
  %1159 = vmatprep.subr.bf16.mxu0 %v811
  %1160 = vmatpush1.bf16.msra.mxu0 %v810
  %1161 = vmatprep.subr.bf16.mxu0 %v809
  %1162 = vmatpush1.bf16.msra.mxu0 %v808
  %1163 = vmatprep.subr.bf16.mxu0 %v807
  %1164 = vmatpush1.bf16.msra.mxu0 %v806
  %1165 = vmatprep.subr.bf16.mxu0 %v805
  %1166 = vmatpush1.bf16.msra.mxu0 %v804
  %1167 = vmatprep.subr.bf16.mxu0 %v803
  %1168 = vmatpush1.bf16.msra.mxu0 %v802
  %1169 = vmatprep.subr.bf16.mxu0 %v833
  %1170 = vmatpush2.bf16.msra.mxu0 %v832
  %1171 = vmatprep.subr.bf16.mxu0 %v831
  %1172 = vmatpush2.bf16.msra.mxu0 %v830
  %1173 = vmatprep.subr.bf16.mxu0 %v829
  %1174 = vmatpush2.bf16.msra.mxu0 %v828
  %1175 = vmatprep.subr.bf16.mxu0 %v827
  %1176 = vmatpush2.bf16.msra.mxu0 %v826
  %1177 = vmatprep.subr.bf16.mxu0 %v825
  %1178 = vmatpush2.bf16.msra.mxu0 %v824
  %1179 = vmatprep.subr.bf16.mxu0 %v823
  %1180 = vmatpush2.bf16.msra.mxu0 %v822
  %1181 = vmatprep.subr.bf16.mxu0 %v821
  %1182 = vmatpush2.bf16.msra.mxu0 %v820
  %1183 = vmatprep.subr.bf16.mxu0 %v819
  %1184 = vmatpush2.bf16.msra.mxu0 %v818
  %1185 = vmatprep.mubr.bf16.mxu0 %v245
  %1186 = vmatmul.mubr.bf16.gmra.mxu0 %v244
  %v1187 = vpop.f32.mrf.mxu0
  %v1188 = vadd.f32 %v1135, %v1187
  %v1189 = vpop.f32.mrf.mxu0
  %v1190 = vadd.f32 %v1137, %v1189
  %v1191 = vpop.f32.mrf.mxu0
  %v1192 = vadd.f32 %v1139, %v1191
  %v1193 = vpop.f32.mrf.mxu0
  %v1194 = vadd.f32 %v1141, %v1193
  %1195 = vmatprep.mubr.bf16.mxu0 %v254
  %1196 = vmatmul.mubr.bf16.gmra.mxu0 %v253
  %v1197 = vpop.f32.mrf.mxu0
  %v1198 = vadd.f32 %v1145, %v1197
  %v1199 = vpop.f32.mrf.mxu0
  %v1200 = vadd.f32 %v1147, %v1199
  %v1201 = vpop.f32.mrf.mxu0
  %v1202 = vadd.f32 %v1149, %v1201
  %v1203 = vpop.f32.mrf.mxu0
  %v1204 = vadd.f32 %v1151, %v1203
  %1205 = vdwg.mxu0
  %1206 = vmatprep.subr.bf16.mxu0 %v849
  %1207 = vmatpush1.bf16.msra.mxu0 %v848
  %1208 = vmatprep.subr.bf16.mxu0 %v847
  %1209 = vmatpush1.bf16.msra.mxu0 %v846
  %1210 = vmatprep.subr.bf16.mxu0 %v845
  %1211 = vmatpush1.bf16.msra.mxu0 %v844
  %1212 = vmatprep.subr.bf16.mxu0 %v843
  %1213 = vmatpush1.bf16.msra.mxu0 %v842
  %1214 = vmatprep.subr.bf16.mxu0 %v841
  %1215 = vmatpush1.bf16.msra.mxu0 %v840
  %1216 = vmatprep.subr.bf16.mxu0 %v839
  %1217 = vmatpush1.bf16.msra.mxu0 %v838
  %1218 = vmatprep.subr.bf16.mxu0 %v837
  %1219 = vmatpush1.bf16.msra.mxu0 %v836
  %1220 = vmatprep.subr.bf16.mxu0 %v835
  %1221 = vmatpush1.bf16.msra.mxu0 %v834
  %1222 = vmatprep.subr.bf16.mxu0 0
  %1223 = vmatpush2.bf16.msra.mxu0 0
  %1224 = vmatprep.subr.bf16.mxu0 0
  %1225 = vmatpush2.bf16.msra.mxu0 0
  %1226 = vmatprep.subr.bf16.mxu0 0
  %1227 = vmatpush2.bf16.msra.mxu0 0
  %1228 = vmatprep.subr.bf16.mxu0 0
  %1229 = vmatpush2.bf16.msra.mxu0 0
  %1230 = vmatprep.subr.bf16.mxu0 0
  %1231 = vmatpush2.bf16.msra.mxu0 0
  %1232 = vmatprep.subr.bf16.mxu0 0
  %1233 = vmatpush2.bf16.msra.mxu0 0
  %1234 = vmatprep.subr.bf16.mxu0 0
  %1235 = vmatpush2.bf16.msra.mxu0 0
  %1236 = vmatprep.subr.bf16.mxu0 0
  %1237 = vmatpush2.bf16.msra.mxu0 0
  %1238 = vmatprep.mubr.bf16.mxu0 0
  %1239 = vmatmul.mubr.bf16.gmra.mxu0 %v246
  %v1240 = vpop.f32.mrf.mxu0
  %v1241 = vadd.f32 %v1188, %v1240
  %v1242 = vpop.f32.mrf.mxu0
  %v1243 = vadd.f32 %v1190, %v1242
  %v1244 = vpop.f32.mrf.mxu0
  %v1245 = vadd.f32 %v1192, %v1244
  %v1246 = vpop.f32.mrf.mxu0
  %v1247 = vadd.f32 %v1194, %v1246
  %1248 = vmatprep.mubr.bf16.mxu0 0
  %1249 = vmatmul.mubr.bf16.gmra.mxu0 %v255
  %v1250 = vpop.f32.mrf.mxu0
  %v1251 = vadd.f32 %v1198, %v1250
  %v1252 = vpop.f32.mrf.mxu0
  %v1253 = vadd.f32 %v1200, %v1252
  %v1254 = vpop.f32.mrf.mxu0
  %v1255 = vadd.f32 %v1202, %v1254
  %v1256 = vpop.f32.mrf.mxu0
  %v1257 = vadd.f32 %v1204, %v1256
  %1258 = vdwg.mxu0
  %v1259 = vld [vmem:[%s2] sm:$0x3]
  %v1260 = vld [vmem:[%s3] sm:$0x3]
  %v1261 = vadd.f32 %v1241, %v1245
  %v1262 = vadd.f32 %v1261, %v1251
  %v1263 = vadd.f32 %v1262, %v1255
  %v1264 = vrot.slane %v1263, 4
  %v1265 = vadd.f32 %v1263, %v1264
  %v1266 = vrot.slane %v1265, 2
  %v1267 = vadd.f32 %v1265, %v1266
  %v1268 = vrot.slane %v1267, 1
  %v1269 = vadd.f32 %v1267, %v1268
  %v1270 = vadd.f32 %v1243, %v1247
  %v1271 = vadd.f32 %v1270, %v1253
  %v1272 = vadd.f32 %v1271, %v1257
  %v1273 = vrot.slane %v1272, 4
  %v1274 = vadd.f32 %v1272, %v1273
  %v1275 = vrot.slane %v1274, 2
  %v1276 = vadd.f32 %v1274, %v1275
  %v1277 = vrot.slane %v1276, 1
  %v1278 = vadd.f32 %v1276, %v1277
  %v1279 = vmul.f32 %v1269, 0.03125
  %v1280 = vmul.f32 %v1278, 0.03125
  %v1281 = vsub.f32 %v1241, %v1279
  %v1282 = vsub.f32 %v1243, %v1280
  %v1283 = vsub.f32 %v1245, %v1279
  %v1284 = vsub.f32 %v1247, %v1280
  %v1285 = vsub.f32 %v1251, %v1279
  %v1286 = vsub.f32 %v1253, %v1280
  %v1287 = vsub.f32 %v1255, %v1279
  %v1288 = vsub.f32 %v1257, %v1280
  %v1289 = vmul.f32 %v1281, %v1281
  %v1290 = vmul.f32 %v1282, %v1282
  %v1291 = vmul.f32 %v1283, %v1283
  %v1292 = vmul.f32 %v1284, %v1284
  %v1293 = vmul.f32 %v1285, %v1285
  %v1294 = vmul.f32 %v1286, %v1286
  %v1295 = vmul.f32 %v1287, %v1287
  %v1296 = vmul.f32 %v1288, %v1288
  %v1297 = vadd.f32 %v1289, %v1291
  %v1298 = vadd.f32 %v1297, %v1293
  %v1299 = vadd.f32 %v1298, %v1295
  %v1300 = vrot.slane %v1299, 4
  %v1301 = vadd.f32 %v1299, %v1300
  %v1302 = vrot.slane %v1301, 2
  %v1303 = vadd.f32 %v1301, %v1302
  %v1304 = vrot.slane %v1303, 1
  %v1305 = vadd.f32 %v1303, %v1304
  %v1306 = vadd.f32 %v1290, %v1292
  %v1307 = vadd.f32 %v1306, %v1294
  %v1308 = vadd.f32 %v1307, %v1296
  %v1309 = vrot.slane %v1308, 4
  %v1310 = vadd.f32 %v1308, %v1309
  %v1311 = vrot.slane %v1310, 2
  %v1312 = vadd.f32 %v1310, %v1311
  %v1313 = vrot.slane %v1312, 1
  %v1314 = vadd.f32 %v1312, %v1313
  %v1315 = vmul.f32 %v1305, 0.03125
  %v1316 = vmul.f32 %v1314, 0.03125
  %v1317 = vadd.f32 %v1315, 1e-05
  %v1318 = vadd.f32 %v1316, 1e-05
  %v1319 = vrsqrt.pop %v1317
  %v1320 = vrsqrt.pop %v1318
  %v1321 = vmul.f32 %v1281, %v1319
  %v1322 = vmul.f32 %v1282, %v1320
  %v1323 = vmul.f32 %v1283, %v1319
  %v1324 = vmul.f32 %v1284, %v1320
  %v1325 = vmul.f32 %v1285, %v1319
  %v1326 = vmul.f32 %v1286, %v1320
  %v1327 = vmul.f32 %v1287, %v1319
  %v1328 = vmul.f32 %v1288, %v1320
  %v1330 = vlaneseq
  %v1331 = vshrl.u32 %v1330, 7
  %v1332 = vsub.s32 0, %v1331
  %v1333 = vrot.slane %v1259, %v1332
  %v1334 = vlaneseq
  %v1335 = vshrl.u32 %v1334, 7
  %v1336 = vsub.s32 1, %v1335
  %v1337 = vrot.slane %v1259, %v1336
  %v1340 = vmul.f32 %v1321, %v1333
  %v1341 = vmul.f32 %v1322, %v1337
  %v1342 = vmul.f32 %v1323, %v1333
  %v1343 = vmul.f32 %v1324, %v1337
  %v1344 = vmul.f32 %v1325, %v1333
  %v1345 = vmul.f32 %v1326, %v1337
  %v1346 = vmul.f32 %v1327, %v1333
  %v1347 = vmul.f32 %v1328, %v1337
  %v1349 = vlaneseq
  %v1350 = vshrl.u32 %v1349, 7
  %v1351 = vsub.s32 0, %v1350
  %v1352 = vrot.slane %v1260, %v1351
  %v1353 = vlaneseq
  %v1354 = vshrl.u32 %v1353, 7
  %v1355 = vsub.s32 1, %v1354
  %v1356 = vrot.slane %v1260, %v1355
  %v1359 = vadd.f32 %v1340, %v1352
  %v1360 = vadd.f32 %v1341, %v1356
  %v1361 = vadd.f32 %v1342, %v1352
  %v1362 = vadd.f32 %v1343, %v1356
  %v1363 = vadd.f32 %v1344, %v1352
  %v1364 = vadd.f32 %v1345, %v1356
  %v1365 = vadd.f32 %v1346, %v1352
  %v1366 = vadd.f32 %v1347, %v1356
  %vm1367 = vcmp.gt.f32.partialorder %v1359, 0.0
  %vm1368 = vcmp.gt.f32.partialorder %v1360, 0.0
  %vm1369 = vcmp.gt.f32.partialorder %v1361, 0.0
  %vm1370 = vcmp.gt.f32.partialorder %v1362, 0.0
  %vm1371 = vcmp.gt.f32.partialorder %v1363, 0.0
  %vm1372 = vcmp.gt.f32.partialorder %v1364, 0.0
  %vm1373 = vcmp.gt.f32.partialorder %v1365, 0.0
  %vm1374 = vcmp.gt.f32.partialorder %v1366, 0.0
  %v1375 = vmul.f32 %v1359, 0.01
  %v1376 = vmul.f32 %v1360, 0.01
  %v1377 = vmul.f32 %v1361, 0.01
  %v1378 = vmul.f32 %v1362, 0.01
  %v1379 = vmul.f32 %v1363, 0.01
  %v1380 = vmul.f32 %v1364, 0.01
  %v1381 = vmul.f32 %v1365, 0.01
  %v1382 = vmul.f32 %v1366, 0.01
  %v1383 = vsel %vm1367, %v1359, %v1375
  %v1384 = vsel %vm1368, %v1360, %v1376
  %v1385 = vsel %vm1369, %v1361, %v1377
  %v1386 = vsel %vm1370, %v1362, %v1378
  %v1387 = vsel %vm1371, %v1363, %v1379
  %v1388 = vsel %vm1372, %v1364, %v1380
  %v1389 = vsel %vm1373, %v1365, %v1381
  %v1390 = vsel %vm1374, %v1366, %v1382
  %v1391 = vpack.c.bf16 %v1385, %v1383
  %v1392 = vpack.c.bf16 %v1386, %v1384
  %v1393 = vpack.c.bf16 %v1389, %v1387
  %v1394 = vpack.c.bf16 %v1390, %v1388
  %v1399 = vunpack.c.l.b16 %v1391
  %v1400 = vunpack.c.l.b16 %v1392
  %v1401 = vunpack.c.h.b16 %v1391
  %v1402 = vunpack.c.h.b16 %v1392
  %v1403 = vunpack.c.l.b16 %v1393
  %v1404 = vunpack.c.l.b16 %v1394
  %v1405 = vunpack.c.h.b16 %v1393
  %v1406 = vunpack.c.h.b16 %v1394
  %v1407 = vpack.c.b16 %v1400, %v1399
  %v1408 = vpack.c.b16 %v1402, %v1401
  %v1409 = vpack.c.b16 %v1404, %v1403
  %v1410 = vpack.c.b16 %v1406, %v1405
  %1415 = vst [vmem:[%s4] sm:$0xff] %v1407
  %1416 = vst [vmem:[%s4 + $0x8] sm:$0xff] %v1408
  %1417 = vst [vmem:[%s4 + $0x10] sm:$0xff] %v1409
  %1418 = vst [vmem:[%s4 + $0x18] sm:$0xff] %v1410
  // Predicated region
  $region18: #{discriminator_forward.6} parent=0 // pred_check
    _
  $region19: #{discriminator_forward.6} parent=0 // pred_check_branch
    %1420 = sbr.rel (0) target = $region21
  $region20: #{discriminator_forward.6} parent=0 // pred_region
    _
  $region21: #{discriminator_forward.6} parent=0 // pred_fallthru
    _
  // Predicated region
  $region22: #{discriminator_forward.6} parent=0 // pred_check
    _
  $region23: #{discriminator_forward.6} parent=0 // pred_check_branch
    %1422 = sbr.rel (0) target = $region25
  $region24: #{discriminator_forward.6} parent=0 // pred_region
    _
  $region25: #{discriminator_forward.6} parent=0 // pred_fallthru
    _

// kernel: discriminator_forward.7
$region0: #{discriminator_forward.7}
  #allocation0 [shape = 'u32[]', space=smem, size = 0x4, offset = 0x4, fixed_abs, tag = 'smem constant byte address 0x4 - core index']
  #allocation1 [shape = 'u32[144,128]{1,0:T(1,128)}', space=vmem, size = 0x12000, scoped, tag = 'internal scratch']
  #allocation2 [shape = 'f32[1,1]{1,0:T(1,128)S(1)}', space=vmem, size = 0x200, scoped, tag = 'scoped memory for discriminator_forward.7']
  %s0 = inlined_call_operand.vmem [shape: bf16[4,2,2304], index: 0, kind: input, shape index: {}]
  %s1 = inlined_call_operand.vmem [shape: bf16[2304,512], index: 1, kind: input, shape index: {}]
  %s2 = inlined_call_operand.vmem [shape: f32[1,512], index: 2, kind: input, shape index: {}]
  %s3 = inlined_call_operand.vmem [shape: f32[1,512], index: 3, kind: input, shape index: {}]
  %s4 = inlined_call_operand.vmem [shape: bf16[4,512,256], index: 4, kind: input, shape index: {}]
  %s5 = inlined_call_operand.vmem [shape: f32[1,256], index: 5, kind: input, shape index: {}]
  %s6 = inlined_call_operand.vmem [shape: f32[1,256], index: 6, kind: input, shape index: {}]
  %s7 = inlined_call_operand.vmem [shape: bf16[256,128], index: 7, kind: input, shape index: {}]
  %s8 = inlined_call_operand.vmem [shape: f32[1,128], index: 8, kind: input, shape index: {}]
  %s9 = inlined_call_operand.vmem [shape: f32[1,128], index: 9, kind: input, shape index: {}]
  %s10 = inlined_call_operand.vmem [shape: f32[1,128], index: 10, kind: input, shape index: {}]
  %s11 = inlined_call_operand.<no memory space> [shape: f32[1,1], index: 11, kind: input, shape index: {}]
  %s12 = inlined_call_operand.vmem [shape: f32[2,1], index: 12, kind: output, shape index: {}]
  %s13 = sld [smem:[#allocation0]]
  $region58: #{discriminator_forward.7} parent=0
    _
  %s15 = ssub.s32 1, %s13
  %s16 = scalar_select 0, %s15, %s13
  %v17 = vstv %s11
  %18 = vst [vmem:[#allocation2] sm:$0x1] %v17
  // Predicated region
  $region2: #{discriminator_forward.7} parent=0 // pred_check
    _
  $region3: #{discriminator_forward.7} parent=0 // pred_check_branch
    %20 = sbr.rel (0) target = $region5
  $region4: #{discriminator_forward.7} parent=0 // pred_region
    _
  $region5: #{discriminator_forward.7} parent=0 // pred_fallthru
    _
  // Predicated region
  $region6: #{discriminator_forward.7} parent=0 // pred_check
    _
  $region7: #{discriminator_forward.7} parent=0 // pred_check_branch
    %22 = sbr.rel (0) target = $region9
  $region8: #{discriminator_forward.7} parent=0 // pred_region
    _
  $region9: #{discriminator_forward.7} parent=0 // pred_fallthru
    _
  // Predicated region
  $region10: #{discriminator_forward.7} parent=0 // pred_check
    _
  $region11: #{discriminator_forward.7} parent=0 // pred_check_branch
    %24 = sbr.rel (0) target = $region13
  $region12: #{discriminator_forward.7} parent=0 // pred_region
    _
  $region13: #{discriminator_forward.7} parent=0 // pred_fallthru
    _
  // Predicated region
  $region14: #{discriminator_forward.7} parent=0 // pred_check
    _
  $region15: #{discriminator_forward.7} parent=0 // pred_check_branch
    %26 = sbr.rel (0) target = $region17
  $region16: #{discriminator_forward.7} parent=0 // pred_region
    _
  $region17: #{discriminator_forward.7} parent=0 // pred_fallthru
    _
  // Predicated region
  $region18: #{discriminator_forward.7} parent=0 // pred_check
    _
  $region19: #{discriminator_forward.7} parent=0 // pred_check_branch
    %28 = sbr.rel (0) target = $region21
  $region20: #{discriminator_forward.7} parent=0 // pred_region
    _
  $region21: #{discriminator_forward.7} parent=0 // pred_fallthru
    _
  // Predicated region
  $region22: #{discriminator_forward.7} parent=0 // pred_check
    _
  $region23: #{discriminator_forward.7} parent=0 // pred_check_branch
    %30 = sbr.rel (0) target = $region25
  $region24: #{discriminator_forward.7} parent=0 // pred_region
    _
  $region25: #{discriminator_forward.7} parent=0 // pred_fallthru
    _
  // Predicated region
  $region26: #{discriminator_forward.7} parent=0 // pred_check
    _
  $region27: #{discriminator_forward.7} parent=0 // pred_check_branch
    %32 = sbr.rel (0) target = $region29
  $region28: #{discriminator_forward.7} parent=0 // pred_region
    _
  $region29: #{discriminator_forward.7} parent=0 // pred_fallthru
    _
  // Predicated region
  $region30: #{discriminator_forward.7} parent=0 // pred_check
    _
  $region31: #{discriminator_forward.7} parent=0 // pred_check_branch
    %34 = sbr.rel (0) target = $region33
  $region32: #{discriminator_forward.7} parent=0 // pred_region
    _
  $region33: #{discriminator_forward.7} parent=0 // pred_fallthru
    _
  // Predicated region
  $region34: #{discriminator_forward.7} parent=0 // pred_check
    _
  $region35: #{discriminator_forward.7} parent=0 // pred_check_branch
    %36 = sbr.rel (0) target = $region37
  $region36: #{discriminator_forward.7} parent=0 // pred_region
    _
  $region37: #{discriminator_forward.7} parent=0 // pred_fallthru
    _
  // Predicated region
  $region38: #{discriminator_forward.7} parent=0 // pred_check
    _
  $region39: #{discriminator_forward.7} parent=0 // pred_check_branch
    %38 = sbr.rel (0) target = $region41
  $region40: #{discriminator_forward.7} parent=0 // pred_region
    _
  $region41: #{discriminator_forward.7} parent=0 // pred_fallthru
    _
  // Predicated region
  $region42: #{discriminator_forward.7} parent=0 // pred_check
    _
  $region43: #{discriminator_forward.7} parent=0 // pred_check_branch
    %40 = sbr.rel (0) target = $region45
  $region44: #{discriminator_forward.7} parent=0 // pred_region
    _
  $region45: #{discriminator_forward.7} parent=0 // pred_fallthru
    _
  // Predicated region
  $region46: #{discriminator_forward.7} parent=0 // pred_check
    _
  $region47: #{discriminator_forward.7} parent=0 // pred_check_branch
    %42 = sbr.rel (0) target = $region49
  $region48: #{discriminator_forward.7} parent=0 // pred_region
    _
  $region49: #{discriminator_forward.7} parent=0 // pred_fallthru
    _
  %v44 = vld [vmem:[%s0] sm:$0xff]
  %v45 = vld [vmem:[%s0 + $0x8] sm:$0xff]
  %v46 = vld [vmem:[%s0 + $0x10] sm:$0x3]
  %v47 = vld [vmem:[%s1] sm:$0xff]
  %v48 = vld [vmem:[%s1 + $0x8] sm:$0xff]
  %v49 = vld [vmem:[%s1 + $0x10] sm:$0xff]
  %v50 = vld [vmem:[%s1 + $0x18] sm:$0xff]
  %v51 = vld [vmem:[%s1 + $0x20] sm:$0xff]
  %v52 = vld [vmem:[%s1 + $0x28] sm:$0xff]
  %v53 = vld [vmem:[%s1 + $0x30] sm:$0xff]
  %v54 = vld [vmem:[%s1 + $0x38] sm:$0xff]
  %v55 = vld [vmem:[%s1 + $0x40] sm:$0xff]
  %v56 = vld [vmem:[%s1 + $0x48] sm:$0xff]
  %v57 = vld [vmem:[%s1 + $0x50] sm:$0xff]
  %v58 = vld [vmem:[%s1 + $0x58] sm:$0xff]
  %v59 = vld [vmem:[%s1 + $0x60] sm:$0xff]
  %v60 = vld [vmem:[%s1 + $0x68] sm:$0xff]
  %v61 = vld [vmem:[%s1 + $0x70] sm:$0xff]
  %v62 = vld [vmem:[%s1 + $0x78] sm:$0xff]
  %v63 = vld [vmem:[%s1 + $0x80] sm:$0xff]
  %v64 = vld [vmem:[%s1 + $0x88] sm:$0xff]
  %v65 = vld [vmem:[%s1 + $0x90] sm:$0xff]
  %v66 = vld [vmem:[%s1 + $0x98] sm:$0xff]
  %v67 = vld [vmem:[%s1 + $0xa0] sm:$0xff]
  %v68 = vld [vmem:[%s1 + $0xa8] sm:$0xff]
  %v69 = vld [vmem:[%s1 + $0xb0] sm:$0xff]
  %v70 = vld [vmem:[%s1 + $0xb8] sm:$0xff]
  %v71 = vld [vmem:[%s1 + $0xc0] sm:$0xff]
  %v72 = vld [vmem:[%s1 + $0xc8] sm:$0xff]
  %v73 = vld [vmem:[%s1 + $0xd0] sm:$0xff]
  %v74 = vld [vmem:[%s1 + $0xd8] sm:$0xff]
  %v75 = vld [vmem:[%s1 + $0xe0] sm:$0xff]
  %v76 = vld [vmem:[%s1 + $0xe8] sm:$0xff]
  %v77 = vld [vmem:[%s1 + $0xf0] sm:$0xff]
  %v78 = vld [vmem:[%s1 + $0xf8] sm:$0xff]
  %v79 = vld [vmem:[%s1 + $0x100] sm:$0xff]
  %v80 = vld [vmem:[%s1 + $0x108] sm:$0xff]
  %v81 = vld [vmem:[%s1 + $0x110] sm:$0xff]
  %v82 = vld [vmem:[%s1 + $0x118] sm:$0xff]
  %v83 = vld [vmem:[%s1 + $0x120] sm:$0xff]
  %v84 = vld [vmem:[%s1 + $0x128] sm:$0xff]
  %v85 = vld [vmem:[%s1 + $0x130] sm:$0xff]
  %v86 = vld [vmem:[%s1 + $0x138] sm:$0xff]
  %v87 = vld [vmem:[%s1 + $0x140] sm:$0xff]
  %v88 = vld [vmem:[%s1 + $0x148] sm:$0xff]
  %v89 = vld [vmem:[%s1 + $0x150] sm:$0xff]
  %v90 = vld [vmem:[%s1 + $0x158] sm:$0xff]
  %v91 = vld [vmem:[%s1 + $0x160] sm:$0xff]
  %v92 = vld [vmem:[%s1 + $0x168] sm:$0xff]
  %v93 = vld [vmem:[%s1 + $0x170] sm:$0xff]
  %v94 = vld [vmem:[%s1 + $0x178] sm:$0xff]
  %v95 = vld [vmem:[%s1 + $0x180] sm:$0xff]
  %v96 = vld [vmem:[%s1 + $0x188] sm:$0xff]
  %v97 = vld [vmem:[%s1 + $0x190] sm:$0xff]
  %v98 = vld [vmem:[%s1 + $0x198] sm:$0xff]
  %v99 = vld [vmem:[%s1 + $0x1a0] sm:$0xff]
  %v100 = vld [vmem:[%s1 + $0x1a8] sm:$0xff]
  %v101 = vld [vmem:[%s1 + $0x1b0] sm:$0xff]
  %v102 = vld [vmem:[%s1 + $0x1b8] sm:$0xff]
  %v103 = vld [vmem:[%s1 + $0x1c0] sm:$0xff]
  %v104 = vld [vmem:[%s1 + $0x1c8] sm:$0xff]
  %v105 = vld [vmem:[%s1 + $0x1d0] sm:$0xff]
  %v106 = vld [vmem:[%s1 + $0x1d8] sm:$0xff]
  %v107 = vld [vmem:[%s1 + $0x1e0] sm:$0xff]
  %v108 = vld [vmem:[%s1 + $0x1e8] sm:$0xff]
  %v109 = vld [vmem:[%s1 + $0x1f0] sm:$0xff]
  %v110 = vld [vmem:[%s1 + $0x1f8] sm:$0xff]
  %v111 = vld [vmem:[%s1 + $0x200] sm:$0xff]
  %v112 = vld [vmem:[%s1 + $0x208] sm:$0xff]
  %v113 = vld [vmem:[%s1 + $0x210] sm:$0xff]
  %v114 = vld [vmem:[%s1 + $0x218] sm:$0xff]
  %v115 = vld [vmem:[%s1 + $0x220] sm:$0xff]
  %v116 = vld [vmem:[%s1 + $0x228] sm:$0xff]
  %v117 = vld [vmem:[%s1 + $0x230] sm:$0xff]
  %v118 = vld [vmem:[%s1 + $0x238] sm:$0xff]
  %v119 = vld [vmem:[%s1 + $0x240] sm:$0xff]
  %v120 = vld [vmem:[%s1 + $0x248] sm:$0xff]
  %v121 = vld [vmem:[%s1 + $0x250] sm:$0xff]
  %v122 = vld [vmem:[%s1 + $0x258] sm:$0xff]
  %v123 = vld [vmem:[%s1 + $0x260] sm:$0xff]
  %v124 = vld [vmem:[%s1 + $0x268] sm:$0xff]
  %v125 = vld [vmem:[%s1 + $0x270] sm:$0xff]
  %v126 = vld [vmem:[%s1 + $0x278] sm:$0xff]
  %v127 = vld [vmem:[%s1 + $0x280] sm:$0xff]
  %v128 = vld [vmem:[%s1 + $0x288] sm:$0xff]
  %v129 = vld [vmem:[%s1 + $0x290] sm:$0xff]
  %v130 = vld [vmem:[%s1 + $0x298] sm:$0xff]
  %v131 = vld [vmem:[%s1 + $0x2a0] sm:$0xff]
  %v132 = vld [vmem:[%s1 + $0x2a8] sm:$0xff]
  %v133 = vld [vmem:[%s1 + $0x2b0] sm:$0xff]
  %v134 = vld [vmem:[%s1 + $0x2b8] sm:$0xff]
  %v135 = vld [vmem:[%s1 + $0x2c0] sm:$0xff]
  %v136 = vld [vmem:[%s1 + $0x2c8] sm:$0xff]
  %v137 = vld [vmem:[%s1 + $0x2d0] sm:$0xff]
  %v138 = vld [vmem:[%s1 + $0x2d8] sm:$0xff]
  %v139 = vld [vmem:[%s1 + $0x2e0] sm:$0xff]
  %v140 = vld [vmem:[%s1 + $0x2e8] sm:$0xff]
  %v141 = vld [vmem:[%s1 + $0x2f0] sm:$0xff]
  %v142 = vld [vmem:[%s1 + $0x2f8] sm:$0xff]
  %v143 = vld [vmem:[%s1 + $0x300] sm:$0xff]
  %v144 = vld [vmem:[%s1 + $0x308] sm:$0xff]
  %v145 = vld [vmem:[%s1 + $0x310] sm:$0xff]
  %v146 = vld [vmem:[%s1 + $0x318] sm:$0xff]
  %v147 = vld [vmem:[%s1 + $0x320] sm:$0xff]
  %v148 = vld [vmem:[%s1 + $0x328] sm:$0xff]
  %v149 = vld [vmem:[%s1 + $0x330] sm:$0xff]
  %v150 = vld [vmem:[%s1 + $0x338] sm:$0xff]
  %v151 = vld [vmem:[%s1 + $0x340] sm:$0xff]
  %v152 = vld [vmem:[%s1 + $0x348] sm:$0xff]
  %v153 = vld [vmem:[%s1 + $0x350] sm:$0xff]
  %v154 = vld [vmem:[%s1 + $0x358] sm:$0xff]
  %v155 = vld [vmem:[%s1 + $0x360] sm:$0xff]
  %v156 = vld [vmem:[%s1 + $0x368] sm:$0xff]
  %v157 = vld [vmem:[%s1 + $0x370] sm:$0xff]
  %v158 = vld [vmem:[%s1 + $0x378] sm:$0xff]
  %v159 = vld [vmem:[%s1 + $0x380] sm:$0xff]
  %v160 = vld [vmem:[%s1 + $0x388] sm:$0xff]
  %v161 = vld [vmem:[%s1 + $0x390] sm:$0xff]
  %v162 = vld [vmem:[%s1 + $0x398] sm:$0xff]
  %v163 = vld [vmem:[%s1 + $0x3a0] sm:$0xff]
  %v164 = vld [vmem:[%s1 + $0x3a8] sm:$0xff]
  %v165 = vld [vmem:[%s1 + $0x3b0] sm:$0xff]
  %v166 = vld [vmem:[%s1 + $0x3b8] sm:$0xff]
  %v167 = vld [vmem:[%s1 + $0x3c0] sm:$0xff]
  %v168 = vld [vmem:[%s1 + $0x3c8] sm:$0xff]
  %v169 = vld [vmem:[%s1 + $0x3d0] sm:$0xff]
  %v170 = vld [vmem:[%s1 + $0x3d8] sm:$0xff]
  %v171 = vld [vmem:[%s1 + $0x3e0] sm:$0xff]
  %v172 = vld [vmem:[%s1 + $0x3e8] sm:$0xff]
  %v173 = vld [vmem:[%s1 + $0x3f0] sm:$0xff]
  %v174 = vld [vmem:[%s1 + $0x3f8] sm:$0xff]
  %v175 = vld [vmem:[%s1 + $0x400] sm:$0xff]
  %v176 = vld [vmem:[%s1 + $0x408] sm:$0xff]
  %v177 = vld [vmem:[%s1 + $0x410] sm:$0xff]
  %v178 = vld [vmem:[%s1 + $0x418] sm:$0xff]
  %v179 = vld [vmem:[%s1 + $0x420] sm:$0xff]
  %v180 = vld [vmem:[%s1 + $0x428] sm:$0xff]
  %v181 = vld [vmem:[%s1 + $0x430] sm:$0xff]
  %v182 = vld [vmem:[%s1 + $0x438] sm:$0xff]
  %v183 = vld [vmem:[%s1 + $0x440] sm:$0xff]
  %v184 = vld [vmem:[%s1 + $0x448] sm:$0xff]
  %v185 = vld [vmem:[%s1 + $0x450] sm:$0xff]
  %v186 = vld [vmem:[%s1 + $0x458] sm:$0xff]
  %v187 = vld [vmem:[%s1 + $0x460] sm:$0xff]
  %v188 = vld [vmem:[%s1 + $0x468] sm:$0xff]
  %v189 = vld [vmem:[%s1 + $0x470] sm:$0xff]
  %v190 = vld [vmem:[%s1 + $0x478] sm:$0xff]
  %v191 = vld [vmem:[%s1 + $0x480] sm:$0xff]
  %v192 = vld [vmem:[%s1 + $0x488] sm:$0xff]
  %v193 = vld [vmem:[%s1 + $0x490] sm:$0xff]
  %v194 = vld [vmem:[%s1 + $0x498] sm:$0xff]
  %v195 = vld [vmem:[%s1 + $0x4a0] sm:$0xff]
  %v196 = vld [vmem:[%s1 + $0x4a8] sm:$0xff]
  %v197 = vld [vmem:[%s1 + $0x4b0] sm:$0xff]
  %v198 = vld [vmem:[%s1 + $0x4b8] sm:$0xff]
  %v199 = vld [vmem:[%s1 + $0x4c0] sm:$0xff]
  %v200 = vld [vmem:[%s1 + $0x4c8] sm:$0xff]
  %v201 = vld [vmem:[%s1 + $0x4d0] sm:$0xff]
  %v202 = vld [vmem:[%s1 + $0x4d8] sm:$0xff]
  %v203 = vld [vmem:[%s1 + $0x4e0] sm:$0xff]
  %v204 = vld [vmem:[%s1 + $0x4e8] sm:$0xff]
  %v205 = vld [vmem:[%s1 + $0x4f0] sm:$0xff]
  %v206 = vld [vmem:[%s1 + $0x4f8] sm:$0xff]
  %v207 = vld [vmem:[%s1 + $0x500] sm:$0xff]
  %v208 = vld [vmem:[%s1 + $0x508] sm:$0xff]
  %v209 = vld [vmem:[%s1 + $0x510] sm:$0xff]
  %v210 = vld [vmem:[%s1 + $0x518] sm:$0xff]
  %v211 = vld [vmem:[%s1 + $0x520] sm:$0xff]
  %v212 = vld [vmem:[%s1 + $0x528] sm:$0xff]
  %v213 = vld [vmem:[%s1 + $0x530] sm:$0xff]
  %v214 = vld [vmem:[%s1 + $0x538] sm:$0xff]
  %v215 = vld [vmem:[%s1 + $0x540] sm:$0xff]
  %v216 = vld [vmem:[%s1 + $0x548] sm:$0xff]
  %v217 = vld [vmem:[%s1 + $0x550] sm:$0xff]
  %v218 = vld [vmem:[%s1 + $0x558] sm:$0xff]
  %v219 = vld [vmem:[%s1 + $0x560] sm:$0xff]
  %v220 = vld [vmem:[%s1 + $0x568] sm:$0xff]
  %v221 = vld [vmem:[%s1 + $0x570] sm:$0xff]
  %v222 = vld [vmem:[%s1 + $0x578] sm:$0xff]
  %v223 = vld [vmem:[%s1 + $0x580] sm:$0xff]
  %v224 = vld [vmem:[%s1 + $0x588] sm:$0xff]
  %v225 = vld [vmem:[%s1 + $0x590] sm:$0xff]
  %v226 = vld [vmem:[%s1 + $0x598] sm:$0xff]
  %v227 = vld [vmem:[%s1 + $0x5a0] sm:$0xff]
  %v228 = vld [vmem:[%s1 + $0x5a8] sm:$0xff]
  %v229 = vld [vmem:[%s1 + $0x5b0] sm:$0xff]
  %v230 = vld [vmem:[%s1 + $0x5b8] sm:$0xff]
  %v231 = vld [vmem:[%s1 + $0x5c0] sm:$0xff]
  %v232 = vld [vmem:[%s1 + $0x5c8] sm:$0xff]
  %v233 = vld [vmem:[%s1 + $0x5d0] sm:$0xff]
  %v234 = vld [vmem:[%s1 + $0x5d8] sm:$0xff]
  %v235 = vld [vmem:[%s1 + $0x5e0] sm:$0xff]
  %v236 = vld [vmem:[%s1 + $0x5e8] sm:$0xff]
  %v237 = vld [vmem:[%s1 + $0x5f0] sm:$0xff]
  %v238 = vld [vmem:[%s1 + $0x5f8] sm:$0xff]
  %v239 = vld [vmem:[%s1 + $0x600] sm:$0xff]
  %v240 = vld [vmem:[%s1 + $0x608] sm:$0xff]
  %v241 = vld [vmem:[%s1 + $0x610] sm:$0xff]
  %v242 = vld [vmem:[%s1 + $0x618] sm:$0xff]
  %v243 = vld [vmem:[%s1 + $0x620] sm:$0xff]
  %v244 = vld [vmem:[%s1 + $0x628] sm:$0xff]
  %v245 = vld [vmem:[%s1 + $0x630] sm:$0xff]
  %v246 = vld [vmem:[%s1 + $0x638] sm:$0xff]
  %v247 = vld [vmem:[%s1 + $0x640] sm:$0xff]
  %v248 = vld [vmem:[%s1 + $0x648] sm:$0xff]
  %v249 = vld [vmem:[%s1 + $0x650] sm:$0xff]
  %v250 = vld [vmem:[%s1 + $0x658] sm:$0xff]
  %v251 = vld [vmem:[%s1 + $0x660] sm:$0xff]
  %v252 = vld [vmem:[%s1 + $0x668] sm:$0xff]
  %v253 = vld [vmem:[%s1 + $0x670] sm:$0xff]
  %v254 = vld [vmem:[%s1 + $0x678] sm:$0xff]
  %v255 = vld [vmem:[%s1 + $0x680] sm:$0xff]
  %v256 = vld [vmem:[%s1 + $0x688] sm:$0xff]
  %v257 = vld [vmem:[%s1 + $0x690] sm:$0xff]
  %v258 = vld [vmem:[%s1 + $0x698] sm:$0xff]
  %v259 = vld [vmem:[%s1 + $0x6a0] sm:$0xff]
  %v260 = vld [vmem:[%s1 + $0x6a8] sm:$0xff]
  %v261 = vld [vmem:[%s1 + $0x6b0] sm:$0xff]
  %v262 = vld [vmem:[%s1 + $0x6b8] sm:$0xff]
  %v263 = vld [vmem:[%s1 + $0x6c0] sm:$0xff]
  %v264 = vld [vmem:[%s1 + $0x6c8] sm:$0xff]
  %v265 = vld [vmem:[%s1 + $0x6d0] sm:$0xff]
  %v266 = vld [vmem:[%s1 + $0x6d8] sm:$0xff]
  %v267 = vld [vmem:[%s1 + $0x6e0] sm:$0xff]
  %v268 = vld [vmem:[%s1 + $0x6e8] sm:$0xff]
  %v269 = vld [vmem:[%s1 + $0x6f0] sm:$0xff]
  %v270 = vld [vmem:[%s1 + $0x6f8] sm:$0xff]
  %v271 = vld [vmem:[%s1 + $0x700] sm:$0xff]
  %v272 = vld [vmem:[%s1 + $0x708] sm:$0xff]
  %v273 = vld [vmem:[%s1 + $0x710] sm:$0xff]
  %v274 = vld [vmem:[%s1 + $0x718] sm:$0xff]
  %v275 = vld [vmem:[%s1 + $0x720] sm:$0xff]
  %v276 = vld [vmem:[%s1 + $0x728] sm:$0xff]
  %v277 = vld [vmem:[%s1 + $0x730] sm:$0xff]
  %v278 = vld [vmem:[%s1 + $0x738] sm:$0xff]
  %v279 = vld [vmem:[%s1 + $0x740] sm:$0xff]
  %v280 = vld [vmem:[%s1 + $0x748] sm:$0xff]
  %v281 = vld [vmem:[%s1 + $0x750] sm:$0xff]
  %v282 = vld [vmem:[%s1 + $0x758] sm:$0xff]
  %v283 = vld [vmem:[%s1 + $0x760] sm:$0xff]
  %v284 = vld [vmem:[%s1 + $0x768] sm:$0xff]
  %v285 = vld [vmem:[%s1 + $0x770] sm:$0xff]
  %v286 = vld [vmem:[%s1 + $0x778] sm:$0xff]
  %v287 = vld [vmem:[%s1 + $0x780] sm:$0xff]
  %v288 = vld [vmem:[%s1 + $0x788] sm:$0xff]
  %v289 = vld [vmem:[%s1 + $0x790] sm:$0xff]
  %v290 = vld [vmem:[%s1 + $0x798] sm:$0xff]
  %v291 = vld [vmem:[%s1 + $0x7a0] sm:$0xff]
  %v292 = vld [vmem:[%s1 + $0x7a8] sm:$0xff]
  %v293 = vld [vmem:[%s1 + $0x7b0] sm:$0xff]
  %v294 = vld [vmem:[%s1 + $0x7b8] sm:$0xff]
  %v295 = vld [vmem:[%s1 + $0x7c0] sm:$0xff]
  %v296 = vld [vmem:[%s1 + $0x7c8] sm:$0xff]
  %v297 = vld [vmem:[%s1 + $0x7d0] sm:$0xff]
  %v298 = vld [vmem:[%s1 + $0x7d8] sm:$0xff]
  %v299 = vld [vmem:[%s1 + $0x7e0] sm:$0xff]
  %v300 = vld [vmem:[%s1 + $0x7e8] sm:$0xff]
  %v301 = vld [vmem:[%s1 + $0x7f0] sm:$0xff]
  %v302 = vld [vmem:[%s1 + $0x7f8] sm:$0xff]
  %v303 = vld [vmem:[%s1 + $0x800] sm:$0xff]
  %v304 = vld [vmem:[%s1 + $0x808] sm:$0xff]
  %v305 = vld [vmem:[%s1 + $0x810] sm:$0xff]
  %v306 = vld [vmem:[%s1 + $0x818] sm:$0xff]
  %v307 = vld [vmem:[%s1 + $0x820] sm:$0xff]
  %v308 = vld [vmem:[%s1 + $0x828] sm:$0xff]
  %v309 = vld [vmem:[%s1 + $0x830] sm:$0xff]
  %v310 = vld [vmem:[%s1 + $0x838] sm:$0xff]
  %v311 = vld [vmem:[%s1 + $0x840] sm:$0xff]
  %v312 = vld [vmem:[%s1 + $0x848] sm:$0xff]
  %v313 = vld [vmem:[%s1 + $0x850] sm:$0xff]
  %v314 = vld [vmem:[%s1 + $0x858] sm:$0xff]
  %v315 = vld [vmem:[%s1 + $0x860] sm:$0xff]
  %v316 = vld [vmem:[%s1 + $0x868] sm:$0xff]
  %v317 = vld [vmem:[%s1 + $0x870] sm:$0xff]
  %v318 = vld [vmem:[%s1 + $0x878] sm:$0xff]
  %v319 = vld [vmem:[%s1 + $0x880] sm:$0xff]
  %v320 = vld [vmem:[%s1 + $0x888] sm:$0xff]
  %v321 = vld [vmem:[%s1 + $0x890] sm:$0xff]
  %v322 = vld [vmem:[%s1 + $0x898] sm:$0xff]
  %v323 = vld [vmem:[%s1 + $0x8a0] sm:$0xff]
  %v324 = vld [vmem:[%s1 + $0x8a8] sm:$0xff]
  %v325 = vld [vmem:[%s1 + $0x8b0] sm:$0xff]
  %v326 = vld [vmem:[%s1 + $0x8b8] sm:$0xff]
  %v327 = vld [vmem:[%s1 + $0x8c0] sm:$0xff]
  %v328 = vld [vmem:[%s1 + $0x8c8] sm:$0xff]
  %v329 = vld [vmem:[%s1 + $0x8d0] sm:$0xff]
  %v330 = vld [vmem:[%s1 + $0x8d8] sm:$0xff]
  %v331 = vld [vmem:[%s1 + $0x8e0] sm:$0xff]
  %v332 = vld [vmem:[%s1 + $0x8e8] sm:$0xff]
  %v333 = vld [vmem:[%s1 + $0x8f0] sm:$0xff]
  %v334 = vld [vmem:[%s1 + $0x8f8] sm:$0xff]
  %v335 = vld [vmem:[%s1 + $0x900] sm:$0xff]
  %v336 = vld [vmem:[%s1 + $0x908] sm:$0xff]
  %v337 = vld [vmem:[%s1 + $0x910] sm:$0xff]
  %v338 = vld [vmem:[%s1 + $0x918] sm:$0xff]
  %v339 = vld [vmem:[%s1 + $0x920] sm:$0xff]
  %v340 = vld [vmem:[%s1 + $0x928] sm:$0xff]
  %v341 = vld [vmem:[%s1 + $0x930] sm:$0xff]
  %v342 = vld [vmem:[%s1 + $0x938] sm:$0xff]
  %v343 = vld [vmem:[%s1 + $0x940] sm:$0xff]
  %v344 = vld [vmem:[%s1 + $0x948] sm:$0xff]
  %v345 = vld [vmem:[%s1 + $0x950] sm:$0xff]
  %v346 = vld [vmem:[%s1 + $0x958] sm:$0xff]
  %v347 = vld [vmem:[%s1 + $0x960] sm:$0xff]
  %v348 = vld [vmem:[%s1 + $0x968] sm:$0xff]
  %v349 = vld [vmem:[%s1 + $0x970] sm:$0xff]
  %v350 = vld [vmem:[%s1 + $0x978] sm:$0xff]
  %v351 = vld [vmem:[%s1 + $0x980] sm:$0xff]
  %v352 = vld [vmem:[%s1 + $0x988] sm:$0xff]
  %v353 = vld [vmem:[%s1 + $0x990] sm:$0xff]
  %v354 = vld [vmem:[%s1 + $0x998] sm:$0xff]
  %v355 = vld [vmem:[%s1 + $0x9a0] sm:$0xff]
  %v356 = vld [vmem:[%s1 + $0x9a8] sm:$0xff]
  %v357 = vld [vmem:[%s1 + $0x9b0] sm:$0xff]
  %v358 = vld [vmem:[%s1 + $0x9b8] sm:$0xff]
  %v359 = vld [vmem:[%s1 + $0x9c0] sm:$0xff]
  %v360 = vld [vmem:[%s1 + $0x9c8] sm:$0xff]
  %v361 = vld [vmem:[%s1 + $0x9d0] sm:$0xff]
  %v362 = vld [vmem:[%s1 + $0x9d8] sm:$0xff]
  %v363 = vld [vmem:[%s1 + $0x9e0] sm:$0xff]
  %v364 = vld [vmem:[%s1 + $0x9e8] sm:$0xff]
  %v365 = vld [vmem:[%s1 + $0x9f0] sm:$0xff]
  %v366 = vld [vmem:[%s1 + $0x9f8] sm:$0xff]
  %v367 = vld [vmem:[%s1 + $0xa00] sm:$0xff]
  %v368 = vld [vmem:[%s1 + $0xa08] sm:$0xff]
  %v369 = vld [vmem:[%s1 + $0xa10] sm:$0xff]
  %v370 = vld [vmem:[%s1 + $0xa18] sm:$0xff]
  %v371 = vld [vmem:[%s1 + $0xa20] sm:$0xff]
  %v372 = vld [vmem:[%s1 + $0xa28] sm:$0xff]
  %v373 = vld [vmem:[%s1 + $0xa30] sm:$0xff]
  %v374 = vld [vmem:[%s1 + $0xa38] sm:$0xff]
  %v375 = vld [vmem:[%s1 + $0xa40] sm:$0xff]
  %v376 = vld [vmem:[%s1 + $0xa48] sm:$0xff]
  %v377 = vld [vmem:[%s1 + $0xa50] sm:$0xff]
  %v378 = vld [vmem:[%s1 + $0xa58] sm:$0xff]
  %v379 = vld [vmem:[%s1 + $0xa60] sm:$0xff]
  %v380 = vld [vmem:[%s1 + $0xa68] sm:$0xff]
  %v381 = vld [vmem:[%s1 + $0xa70] sm:$0xff]
  %v382 = vld [vmem:[%s1 + $0xa78] sm:$0xff]
  %v383 = vld [vmem:[%s1 + $0xa80] sm:$0xff]
  %v384 = vld [vmem:[%s1 + $0xa88] sm:$0xff]
  %v385 = vld [vmem:[%s1 + $0xa90] sm:$0xff]
  %v386 = vld [vmem:[%s1 + $0xa98] sm:$0xff]
  %v387 = vld [vmem:[%s1 + $0xaa0] sm:$0xff]
  %v388 = vld [vmem:[%s1 + $0xaa8] sm:$0xff]
  %v389 = vld [vmem:[%s1 + $0xab0] sm:$0xff]
  %v390 = vld [vmem:[%s1 + $0xab8] sm:$0xff]
  %v391 = vld [vmem:[%s1 + $0xac0] sm:$0xff]
  %v392 = vld [vmem:[%s1 + $0xac8] sm:$0xff]
  %v393 = vld [vmem:[%s1 + $0xad0] sm:$0xff]
  %v394 = vld [vmem:[%s1 + $0xad8] sm:$0xff]
  %v395 = vld [vmem:[%s1 + $0xae0] sm:$0xff]
  %v396 = vld [vmem:[%s1 + $0xae8] sm:$0xff]
  %v397 = vld [vmem:[%s1 + $0xaf0] sm:$0xff]
  %v398 = vld [vmem:[%s1 + $0xaf8] sm:$0xff]
  %v399 = vld [vmem:[%s1 + $0xb00] sm:$0xff]
  %v400 = vld [vmem:[%s1 + $0xb08] sm:$0xff]
  %v401 = vld [vmem:[%s1 + $0xb10] sm:$0xff]
  %v402 = vld [vmem:[%s1 + $0xb18] sm:$0xff]
  %v403 = vld [vmem:[%s1 + $0xb20] sm:$0xff]
  %v404 = vld [vmem:[%s1 + $0xb28] sm:$0xff]
  %v405 = vld [vmem:[%s1 + $0xb30] sm:$0xff]
  %v406 = vld [vmem:[%s1 + $0xb38] sm:$0xff]
  %v407 = vld [vmem:[%s1 + $0xb40] sm:$0xff]
  %v408 = vld [vmem:[%s1 + $0xb48] sm:$0xff]
  %v409 = vld [vmem:[%s1 + $0xb50] sm:$0xff]
  %v410 = vld [vmem:[%s1 + $0xb58] sm:$0xff]
  %v411 = vld [vmem:[%s1 + $0xb60] sm:$0xff]
  %v412 = vld [vmem:[%s1 + $0xb68] sm:$0xff]
  %v413 = vld [vmem:[%s1 + $0xb70] sm:$0xff]
  %v414 = vld [vmem:[%s1 + $0xb78] sm:$0xff]
  %v415 = vld [vmem:[%s1 + $0xb80] sm:$0xff]
  %v416 = vld [vmem:[%s1 + $0xb88] sm:$0xff]
  %v417 = vld [vmem:[%s1 + $0xb90] sm:$0xff]
  %v418 = vld [vmem:[%s1 + $0xb98] sm:$0xff]
  %v419 = vld [vmem:[%s1 + $0xba0] sm:$0xff]
  %v420 = vld [vmem:[%s1 + $0xba8] sm:$0xff]
  %v421 = vld [vmem:[%s1 + $0xbb0] sm:$0xff]
  %v422 = vld [vmem:[%s1 + $0xbb8] sm:$0xff]
  %v423 = vld [vmem:[%s1 + $0xbc0] sm:$0xff]
  %v424 = vld [vmem:[%s1 + $0xbc8] sm:$0xff]
  %v425 = vld [vmem:[%s1 + $0xbd0] sm:$0xff]
  %v426 = vld [vmem:[%s1 + $0xbd8] sm:$0xff]
  %v427 = vld [vmem:[%s1 + $0xbe0] sm:$0xff]
  %v428 = vld [vmem:[%s1 + $0xbe8] sm:$0xff]
  %v429 = vld [vmem:[%s1 + $0xbf0] sm:$0xff]
  %v430 = vld [vmem:[%s1 + $0xbf8] sm:$0xff]
  %v431 = vld [vmem:[%s1 + $0xc00] sm:$0xff]
  %v432 = vld [vmem:[%s1 + $0xc08] sm:$0xff]
  %v433 = vld [vmem:[%s1 + $0xc10] sm:$0xff]
  %v434 = vld [vmem:[%s1 + $0xc18] sm:$0xff]
  %v435 = vld [vmem:[%s1 + $0xc20] sm:$0xff]
  %v436 = vld [vmem:[%s1 + $0xc28] sm:$0xff]
  %v437 = vld [vmem:[%s1 + $0xc30] sm:$0xff]
  %v438 = vld [vmem:[%s1 + $0xc38] sm:$0xff]
  %v439 = vld [vmem:[%s1 + $0xc40] sm:$0xff]
  %v440 = vld [vmem:[%s1 + $0xc48] sm:$0xff]
  %v441 = vld [vmem:[%s1 + $0xc50] sm:$0xff]
  %v442 = vld [vmem:[%s1 + $0xc58] sm:$0xff]
  %v443 = vld [vmem:[%s1 + $0xc60] sm:$0xff]
  %v444 = vld [vmem:[%s1 + $0xc68] sm:$0xff]
  %v445 = vld [vmem:[%s1 + $0xc70] sm:$0xff]
  %v446 = vld [vmem:[%s1 + $0xc78] sm:$0xff]
  %v447 = vld [vmem:[%s1 + $0xc80] sm:$0xff]
  %v448 = vld [vmem:[%s1 + $0xc88] sm:$0xff]
  %v449 = vld [vmem:[%s1 + $0xc90] sm:$0xff]
  %v450 = vld [vmem:[%s1 + $0xc98] sm:$0xff]
  %v451 = vld [vmem:[%s1 + $0xca0] sm:$0xff]
  %v452 = vld [vmem:[%s1 + $0xca8] sm:$0xff]
  %v453 = vld [vmem:[%s1 + $0xcb0] sm:$0xff]
  %v454 = vld [vmem:[%s1 + $0xcb8] sm:$0xff]
  %v455 = vld [vmem:[%s1 + $0xcc0] sm:$0xff]
  %v456 = vld [vmem:[%s1 + $0xcc8] sm:$0xff]
  %v457 = vld [vmem:[%s1 + $0xcd0] sm:$0xff]
  %v458 = vld [vmem:[%s1 + $0xcd8] sm:$0xff]
  %v459 = vld [vmem:[%s1 + $0xce0] sm:$0xff]
  %v460 = vld [vmem:[%s1 + $0xce8] sm:$0xff]
  %v461 = vld [vmem:[%s1 + $0xcf0] sm:$0xff]
  %v462 = vld [vmem:[%s1 + $0xcf8] sm:$0xff]
  %v463 = vld [vmem:[%s1 + $0xd00] sm:$0xff]
  %v464 = vld [vmem:[%s1 + $0xd08] sm:$0xff]
  %v465 = vld [vmem:[%s1 + $0xd10] sm:$0xff]
  %v466 = vld [vmem:[%s1 + $0xd18] sm:$0xff]
  %v467 = vld [vmem:[%s1 + $0xd20] sm:$0xff]
  %v468 = vld [vmem:[%s1 + $0xd28] sm:$0xff]
  %v469 = vld [vmem:[%s1 + $0xd30] sm:$0xff]
  %v470 = vld [vmem:[%s1 + $0xd38] sm:$0xff]
  %v471 = vld [vmem:[%s1 + $0xd40] sm:$0xff]
  %v472 = vld [vmem:[%s1 + $0xd48] sm:$0xff]
  %v473 = vld [vmem:[%s1 + $0xd50] sm:$0xff]
  %v474 = vld [vmem:[%s1 + $0xd58] sm:$0xff]
  %v475 = vld [vmem:[%s1 + $0xd60] sm:$0xff]
  %v476 = vld [vmem:[%s1 + $0xd68] sm:$0xff]
  %v477 = vld [vmem:[%s1 + $0xd70] sm:$0xff]
  %v478 = vld [vmem:[%s1 + $0xd78] sm:$0xff]
  %v479 = vld [vmem:[%s1 + $0xd80] sm:$0xff]
  %v480 = vld [vmem:[%s1 + $0xd88] sm:$0xff]
  %v481 = vld [vmem:[%s1 + $0xd90] sm:$0xff]
  %v482 = vld [vmem:[%s1 + $0xd98] sm:$0xff]
  %v483 = vld [vmem:[%s1 + $0xda0] sm:$0xff]
  %v484 = vld [vmem:[%s1 + $0xda8] sm:$0xff]
  %v485 = vld [vmem:[%s1 + $0xdb0] sm:$0xff]
  %v486 = vld [vmem:[%s1 + $0xdb8] sm:$0xff]
  %v487 = vld [vmem:[%s1 + $0xdc0] sm:$0xff]
  %v488 = vld [vmem:[%s1 + $0xdc8] sm:$0xff]
  %v489 = vld [vmem:[%s1 + $0xdd0] sm:$0xff]
  %v490 = vld [vmem:[%s1 + $0xdd8] sm:$0xff]
  %v491 = vld [vmem:[%s1 + $0xde0] sm:$0xff]
  %v492 = vld [vmem:[%s1 + $0xde8] sm:$0xff]
  %v493 = vld [vmem:[%s1 + $0xdf0] sm:$0xff]
  %v494 = vld [vmem:[%s1 + $0xdf8] sm:$0xff]
  %v495 = vld [vmem:[%s1 + $0xe00] sm:$0xff]
  %v496 = vld [vmem:[%s1 + $0xe08] sm:$0xff]
  %v497 = vld [vmem:[%s1 + $0xe10] sm:$0xff]
  %v498 = vld [vmem:[%s1 + $0xe18] sm:$0xff]
  %v499 = vld [vmem:[%s1 + $0xe20] sm:$0xff]
  %v500 = vld [vmem:[%s1 + $0xe28] sm:$0xff]
  %v501 = vld [vmem:[%s1 + $0xe30] sm:$0xff]
  %v502 = vld [vmem:[%s1 + $0xe38] sm:$0xff]
  %v503 = vld [vmem:[%s1 + $0xe40] sm:$0xff]
  %v504 = vld [vmem:[%s1 + $0xe48] sm:$0xff]
  %v505 = vld [vmem:[%s1 + $0xe50] sm:$0xff]
  %v506 = vld [vmem:[%s1 + $0xe58] sm:$0xff]
  %v507 = vld [vmem:[%s1 + $0xe60] sm:$0xff]
  %v508 = vld [vmem:[%s1 + $0xe68] sm:$0xff]
  %v509 = vld [vmem:[%s1 + $0xe70] sm:$0xff]
  %v510 = vld [vmem:[%s1 + $0xe78] sm:$0xff]
  %v511 = vld [vmem:[%s1 + $0xe80] sm:$0xff]
  %v512 = vld [vmem:[%s1 + $0xe88] sm:$0xff]
  %v513 = vld [vmem:[%s1 + $0xe90] sm:$0xff]
  %v514 = vld [vmem:[%s1 + $0xe98] sm:$0xff]
  %v515 = vld [vmem:[%s1 + $0xea0] sm:$0xff]
  %v516 = vld [vmem:[%s1 + $0xea8] sm:$0xff]
  %v517 = vld [vmem:[%s1 + $0xeb0] sm:$0xff]
  %v518 = vld [vmem:[%s1 + $0xeb8] sm:$0xff]
  %v519 = vld [vmem:[%s1 + $0xec0] sm:$0xff]
  %v520 = vld [vmem:[%s1 + $0xec8] sm:$0xff]
  %v521 = vld [vmem:[%s1 + $0xed0] sm:$0xff]
  %v522 = vld [vmem:[%s1 + $0xed8] sm:$0xff]
  %v523 = vld [vmem:[%s1 + $0xee0] sm:$0xff]
  %v524 = vld [vmem:[%s1 + $0xee8] sm:$0xff]
  %v525 = vld [vmem:[%s1 + $0xef0] sm:$0xff]
  %v526 = vld [vmem:[%s1 + $0xef8] sm:$0xff]
  %v527 = vld [vmem:[%s1 + $0xf00] sm:$0xff]
  %v528 = vld [vmem:[%s1 + $0xf08] sm:$0xff]
  %v529 = vld [vmem:[%s1 + $0xf10] sm:$0xff]
  %v530 = vld [vmem:[%s1 + $0xf18] sm:$0xff]
  %v531 = vld [vmem:[%s1 + $0xf20] sm:$0xff]
  %v532 = vld [vmem:[%s1 + $0xf28] sm:$0xff]
  %v533 = vld [vmem:[%s1 + $0xf30] sm:$0xff]
  %v534 = vld [vmem:[%s1 + $0xf38] sm:$0xff]
  %v535 = vld [vmem:[%s1 + $0xf40] sm:$0xff]
  %v536 = vld [vmem:[%s1 + $0xf48] sm:$0xff]
  %v537 = vld [vmem:[%s1 + $0xf50] sm:$0xff]
  %v538 = vld [vmem:[%s1 + $0xf58] sm:$0xff]
  %v539 = vld [vmem:[%s1 + $0xf60] sm:$0xff]
  %v540 = vld [vmem:[%s1 + $0xf68] sm:$0xff]
  %v541 = vld [vmem:[%s1 + $0xf70] sm:$0xff]
  %v542 = vld [vmem:[%s1 + $0xf78] sm:$0xff]
  %v543 = vld [vmem:[%s1 + $0xf80] sm:$0xff]
  %v544 = vld [vmem:[%s1 + $0xf88] sm:$0xff]
  %v545 = vld [vmem:[%s1 + $0xf90] sm:$0xff]
  %v546 = vld [vmem:[%s1 + $0xf98] sm:$0xff]
  %v547 = vld [vmem:[%s1 + $0xfa0] sm:$0xff]
  %v548 = vld [vmem:[%s1 + $0xfa8] sm:$0xff]
  %v549 = vld [vmem:[%s1 + $0xfb0] sm:$0xff]
  %v550 = vld [vmem:[%s1 + $0xfb8] sm:$0xff]
  %v551 = vld [vmem:[%s1 + $0xfc0] sm:$0xff]
  %v552 = vld [vmem:[%s1 + $0xfc8] sm:$0xff]
  %v553 = vld [vmem:[%s1 + $0xfd0] sm:$0xff]
  %v554 = vld [vmem:[%s1 + $0xfd8] sm:$0xff]
  %v555 = vld [vmem:[%s1 + $0xfe0] sm:$0xff]
  %v556 = vld [vmem:[%s1 + $0xfe8] sm:$0xff]
  %v557 = vld [vmem:[%s1 + $0xff0] sm:$0xff]
  %v558 = vld [vmem:[%s1 + $0xff8] sm:$0xff]
  %v559 = vld [vmem:[%s1 + $0x1000] sm:$0xff]
  %v560 = vld [vmem:[%s1 + $0x1008] sm:$0xff]
  %v561 = vld [vmem:[%s1 + $0x1010] sm:$0xff]
  %v562 = vld [vmem:[%s1 + $0x1018] sm:$0xff]
  %v563 = vld [vmem:[%s1 + $0x1020] sm:$0xff]
  %v564 = vld [vmem:[%s1 + $0x1028] sm:$0xff]
  %v565 = vld [vmem:[%s1 + $0x1030] sm:$0xff]
  %v566 = vld [vmem:[%s1 + $0x1038] sm:$0xff]
  %v567 = vld [vmem:[%s1 + $0x1040] sm:$0xff]
  %v568 = vld [vmem:[%s1 + $0x1048] sm:$0xff]
  %v569 = vld [vmem:[%s1 + $0x1050] sm:$0xff]
  %v570 = vld [vmem:[%s1 + $0x1058] sm:$0xff]
  %v571 = vld [vmem:[%s1 + $0x1060] sm:$0xff]
  %v572 = vld [vmem:[%s1 + $0x1068] sm:$0xff]
  %v573 = vld [vmem:[%s1 + $0x1070] sm:$0xff]
  %v574 = vld [vmem:[%s1 + $0x1078] sm:$0xff]
  %v575 = vld [vmem:[%s1 + $0x1080] sm:$0xff]
  %v576 = vld [vmem:[%s1 + $0x1088] sm:$0xff]
  %v577 = vld [vmem:[%s1 + $0x1090] sm:$0xff]
  %v578 = vld [vmem:[%s1 + $0x1098] sm:$0xff]
  %v579 = vld [vmem:[%s1 + $0x10a0] sm:$0xff]
  %v580 = vld [vmem:[%s1 + $0x10a8] sm:$0xff]
  %v581 = vld [vmem:[%s1 + $0x10b0] sm:$0xff]
  %v582 = vld [vmem:[%s1 + $0x10b8] sm:$0xff]
  %v583 = vld [vmem:[%s1 + $0x10c0] sm:$0xff]
  %v584 = vld [vmem:[%s1 + $0x10c8] sm:$0xff]
  %v585 = vld [vmem:[%s1 + $0x10d0] sm:$0xff]
  %v586 = vld [vmem:[%s1 + $0x10d8] sm:$0xff]
  %v587 = vld [vmem:[%s1 + $0x10e0] sm:$0xff]
  %v588 = vld [vmem:[%s1 + $0x10e8] sm:$0xff]
  %v589 = vld [vmem:[%s1 + $0x10f0] sm:$0xff]
  %v590 = vld [vmem:[%s1 + $0x10f8] sm:$0xff]
  %v591 = vld [vmem:[%s1 + $0x1100] sm:$0xff]
  %v592 = vld [vmem:[%s1 + $0x1108] sm:$0xff]
  %v593 = vld [vmem:[%s1 + $0x1110] sm:$0xff]
  %v594 = vld [vmem:[%s1 + $0x1118] sm:$0xff]
  %v595 = vld [vmem:[%s1 + $0x1120] sm:$0xff]
  %v596 = vld [vmem:[%s1 + $0x1128] sm:$0xff]
  %v597 = vld [vmem:[%s1 + $0x1130] sm:$0xff]
  %v598 = vld [vmem:[%s1 + $0x1138] sm:$0xff]
  %v599 = vld [vmem:[%s1 + $0x1140] sm:$0xff]
  %v600 = vld [vmem:[%s1 + $0x1148] sm:$0xff]
  %v601 = vld [vmem:[%s1 + $0x1150] sm:$0xff]
  %v602 = vld [vmem:[%s1 + $0x1158] sm:$0xff]
  %v603 = vld [vmem:[%s1 + $0x1160] sm:$0xff]
  %v604 = vld [vmem:[%s1 + $0x1168] sm:$0xff]
  %v605 = vld [vmem:[%s1 + $0x1170] sm:$0xff]
  %v606 = vld [vmem:[%s1 + $0x1178] sm:$0xff]
  %v607 = vld [vmem:[%s1 + $0x1180] sm:$0xff]
  %v608 = vld [vmem:[%s1 + $0x1188] sm:$0xff]
  %v609 = vld [vmem:[%s1 + $0x1190] sm:$0xff]
  %v610 = vld [vmem:[%s1 + $0x1198] sm:$0xff]
  %v611 = vld [vmem:[%s1 + $0x11a0] sm:$0xff]
  %v612 = vld [vmem:[%s1 + $0x11a8] sm:$0xff]
  %v613 = vld [vmem:[%s1 + $0x11b0] sm:$0xff]
  %v614 = vld [vmem:[%s1 + $0x11b8] sm:$0xff]
  %v615 = vld [vmem:[%s1 + $0x11c0] sm:$0xff]
  %v616 = vld [vmem:[%s1 + $0x11c8] sm:$0xff]
  %v617 = vld [vmem:[%s1 + $0x11d0] sm:$0xff]
  %v618 = vld [vmem:[%s1 + $0x11d8] sm:$0xff]
  %v619 = vld [vmem:[%s1 + $0x11e0] sm:$0xff]
  %v620 = vld [vmem:[%s1 + $0x11e8] sm:$0xff]
  %v621 = vld [vmem:[%s1 + $0x11f0] sm:$0xff]
  %v622 = vld [vmem:[%s1 + $0x11f8] sm:$0xff]
  %v626 = vcombine.high %v44, %v44
  %v628 = vunpack.c.l.s4 1966171168
  %v629 = vunpack.c.0.s8 %v628
  %v630 = vlaneseq
  %v631 = vshrl.u32 %v630, 7
  %v632 = vsub.s32 %v629, %v631
  %v633 = vrot.slane %v44, %v632
  %v635 = vunpack.c.l.s4 1966171168
  %v636 = vunpack.c.0.s8 %v635
  %v637 = vlaneseq
  %v638 = vshrl.u32 %v637, 7
  %v639 = vsub.s32 %v636, %v638
  %v640 = vrot.slane %v626, %v639
  %v641 = vcombine.high %v633, %v633
  %v642 = vcombine.high %v640, %v640
  %v644 = vunpack.c.l.s4 1966171168
  %v645 = vunpack.c.0.s8 %v644
  %v646 = vlaneseq
  %v647 = vshrl.u32 %v646, 7
  %v648 = vsub.s32 %v645, %v647
  %v649 = vrot.slane %v633, %v648
  %v651 = vunpack.c.l.s4 1966171168
  %v652 = vunpack.c.0.s8 %v651
  %v653 = vlaneseq
  %v654 = vshrl.u32 %v653, 7
  %v655 = vsub.s32 %v652, %v654
  %v656 = vrot.slane %v640, %v655
  %v658 = vunpack.c.l.s4 1966171168
  %v659 = vunpack.c.0.s8 %v658
  %v660 = vlaneseq
  %v661 = vshrl.u32 %v660, 7
  %v662 = vsub.s32 %v659, %v661
  %v663 = vrot.slane %v641, %v662
  %v665 = vunpack.c.l.s4 1966171168
  %v666 = vunpack.c.0.s8 %v665
  %v667 = vlaneseq
  %v668 = vshrl.u32 %v667, 7
  %v669 = vsub.s32 %v666, %v668
  %v670 = vrot.slane %v642, %v669
  %v671 = vcombine.high %v649, %v649
  %v672 = vcombine.high %v656, %v656
  %v673 = vcombine.high %v663, %v663
  %v674 = vcombine.high %v670, %v670
  %v675 = vcombine.high %v45, %v45
  %v677 = vunpack.c.l.s4 1966171168
  %v678 = vunpack.c.0.s8 %v677
  %v679 = vlaneseq
  %v680 = vshrl.u32 %v679, 7
  %v681 = vsub.s32 %v678, %v680
  %v682 = vrot.slane %v45, %v681
  %v684 = vunpack.c.l.s4 1966171168
  %v685 = vunpack.c.0.s8 %v684
  %v686 = vlaneseq
  %v687 = vshrl.u32 %v686, 7
  %v688 = vsub.s32 %v685, %v687
  %v689 = vrot.slane %v675, %v688
  %v690 = vcombine.high %v682, %v682
  %v691 = vcombine.high %v689, %v689
  %v693 = vunpack.c.l.s4 1966171168
  %v694 = vunpack.c.0.s8 %v693
  %v695 = vlaneseq
  %v696 = vshrl.u32 %v695, 7
  %v697 = vsub.s32 %v694, %v696
  %v698 = vrot.slane %v682, %v697
  %v700 = vunpack.c.l.s4 1966171168
  %v701 = vunpack.c.0.s8 %v700
  %v702 = vlaneseq
  %v703 = vshrl.u32 %v702, 7
  %v704 = vsub.s32 %v701, %v703
  %v705 = vrot.slane %v689, %v704
  %v707 = vunpack.c.l.s4 1966171168
  %v708 = vunpack.c.0.s8 %v707
  %v709 = vlaneseq
  %v710 = vshrl.u32 %v709, 7
  %v711 = vsub.s32 %v708, %v710
  %v712 = vrot.slane %v690, %v711
  %v714 = vunpack.c.l.s4 1966171168
  %v715 = vunpack.c.0.s8 %v714
  %v716 = vlaneseq
  %v717 = vshrl.u32 %v716, 7
  %v718 = vsub.s32 %v715, %v717
  %v719 = vrot.slane %v691, %v718
  %v720 = vcombine.high %v698, %v698
  %v721 = vcombine.high %v705, %v705
  %v722 = vcombine.high %v712, %v712
  %v723 = vcombine.high %v719, %v719
  %v725 = vunpack.c.l.s4 1966171168
  %v726 = vunpack.c.0.s8 %v725
  %v727 = vlaneseq
  %v728 = vshrl.u32 %v727, 7
  %v729 = vsub.s32 %v726, %v728
  %v730 = vrot.slane %v46, %v729
  %v731 = vcombine.high %v730, %v730
  %v733 = vunpack.c.l.s4 1966171168
  %v734 = vunpack.c.0.s8 %v733
  %v735 = vlaneseq
  %v736 = vshrl.u32 %v735, 7
  %v737 = vsub.s32 %v734, %v736
  %v738 = vrot.slane %v730, %v737
  %v740 = vunpack.c.l.s4 1966171168
  %v741 = vunpack.c.0.s8 %v740
  %v742 = vlaneseq
  %v743 = vshrl.u32 %v742, 7
  %v744 = vsub.s32 %v741, %v743
  %v745 = vrot.slane %v731, %v744
  %v1340 = vunpack.c.l.b16 %v47
  %v1341 = vunpack.c.h.b16 %v47
  %v1342 = vunpack.c.l.b16 %v48
  %v1343 = vunpack.c.h.b16 %v48
  %v1344 = vunpack.c.l.b16 %v49
  %v1345 = vunpack.c.h.b16 %v49
  %v1346 = vunpack.c.l.b16 %v50
  %v1347 = vunpack.c.h.b16 %v50
  %v1348 = vunpack.c.l.b16 %v51
  %v1349 = vunpack.c.h.b16 %v51
  %v1350 = vunpack.c.l.b16 %v52
  %v1351 = vunpack.c.h.b16 %v52
  %v1352 = vunpack.c.l.b16 %v53
  %v1353 = vunpack.c.h.b16 %v53
  %v1354 = vunpack.c.l.b16 %v54
  %v1355 = vunpack.c.h.b16 %v54
  %v1356 = vunpack.c.l.b16 %v55
  %v1357 = vunpack.c.h.b16 %v55
  %v1358 = vunpack.c.l.b16 %v56
  %v1359 = vunpack.c.h.b16 %v56
  %v1360 = vunpack.c.l.b16 %v57
  %v1361 = vunpack.c.h.b16 %v57
  %v1362 = vunpack.c.l.b16 %v58
  %v1363 = vunpack.c.h.b16 %v58
  %v1364 = vunpack.c.l.b16 %v59
  %v1365 = vunpack.c.h.b16 %v59
  %v1366 = vunpack.c.l.b16 %v60
  %v1367 = vunpack.c.h.b16 %v60
  %v1368 = vunpack.c.l.b16 %v61
  %v1369 = vunpack.c.h.b16 %v61
  %v1370 = vunpack.c.l.b16 %v62
  %v1371 = vunpack.c.h.b16 %v62
  %v1372 = vunpack.c.l.b16 %v63
  %v1373 = vunpack.c.h.b16 %v63
  %v1374 = vunpack.c.l.b16 %v64
  %v1375 = vunpack.c.h.b16 %v64
  %v1376 = vunpack.c.l.b16 %v65
  %v1377 = vunpack.c.h.b16 %v65
  %v1378 = vunpack.c.l.b16 %v66
  %v1379 = vunpack.c.h.b16 %v66
  %v1380 = vunpack.c.l.b16 %v67
  %v1381 = vunpack.c.h.b16 %v67
  %v1382 = vunpack.c.l.b16 %v68
  %v1383 = vunpack.c.h.b16 %v68
  %v1384 = vunpack.c.l.b16 %v69
  %v1385 = vunpack.c.h.b16 %v69
  %v1386 = vunpack.c.l.b16 %v70
  %v1387 = vunpack.c.h.b16 %v70
  %v1388 = vunpack.c.l.b16 %v71
  %v1389 = vunpack.c.h.b16 %v71
  %v1390 = vunpack.c.l.b16 %v72
  %v1391 = vunpack.c.h.b16 %v72
  %v1392 = vunpack.c.l.b16 %v73
  %v1393 = vunpack.c.h.b16 %v73
  %v1394 = vunpack.c.l.b16 %v74
  %v1395 = vunpack.c.h.b16 %v74
  %v1396 = vunpack.c.l.b16 %v75
  %v1397 = vunpack.c.h.b16 %v75
  %v1398 = vunpack.c.l.b16 %v76
  %v1399 = vunpack.c.h.b16 %v76
  %v1400 = vunpack.c.l.b16 %v77
  %v1401 = vunpack.c.h.b16 %v77
  %v1402 = vunpack.c.l.b16 %v78
  %v1403 = vunpack.c.h.b16 %v78
  %v1404 = vunpack.c.l.b16 %v79
  %v1405 = vunpack.c.h.b16 %v79
  %v1406 = vunpack.c.l.b16 %v80
  %v1407 = vunpack.c.h.b16 %v80
  %v1408 = vunpack.c.l.b16 %v81
  %v1409 = vunpack.c.h.b16 %v81
  %v1410 = vunpack.c.l.b16 %v82
  %v1411 = vunpack.c.h.b16 %v82
  %v1412 = vunpack.c.l.b16 %v83
  %v1413 = vunpack.c.h.b16 %v83
  %v1414 = vunpack.c.l.b16 %v84
  %v1415 = vunpack.c.h.b16 %v84
  %v1416 = vunpack.c.l.b16 %v85
  %v1417 = vunpack.c.h.b16 %v85
  %v1418 = vunpack.c.l.b16 %v86
  %v1419 = vunpack.c.h.b16 %v86
  %v1420 = vunpack.c.l.b16 %v87
  %v1421 = vunpack.c.h.b16 %v87
  %v1422 = vunpack.c.l.b16 %v88
  %v1423 = vunpack.c.h.b16 %v88
  %v1424 = vunpack.c.l.b16 %v89
  %v1425 = vunpack.c.h.b16 %v89
  %v1426 = vunpack.c.l.b16 %v90
  %v1427 = vunpack.c.h.b16 %v90
  %v1428 = vunpack.c.l.b16 %v91
  %v1429 = vunpack.c.h.b16 %v91
  %v1430 = vunpack.c.l.b16 %v92
  %v1431 = vunpack.c.h.b16 %v92
  %v1432 = vunpack.c.l.b16 %v93
  %v1433 = vunpack.c.h.b16 %v93
  %v1434 = vunpack.c.l.b16 %v94
  %v1435 = vunpack.c.h.b16 %v94
  %v1436 = vunpack.c.l.b16 %v95
  %v1437 = vunpack.c.h.b16 %v95
  %v1438 = vunpack.c.l.b16 %v96
  %v1439 = vunpack.c.h.b16 %v96
  %v1440 = vunpack.c.l.b16 %v97
  %v1441 = vunpack.c.h.b16 %v97
  %v1442 = vunpack.c.l.b16 %v98
  %v1443 = vunpack.c.h.b16 %v98
  %v1444 = vunpack.c.l.b16 %v99
  %v1445 = vunpack.c.h.b16 %v99
  %v1446 = vunpack.c.l.b16 %v100
  %v1447 = vunpack.c.h.b16 %v100
  %v1448 = vunpack.c.l.b16 %v101
  %v1449 = vunpack.c.h.b16 %v101
  %v1450 = vunpack.c.l.b16 %v102
  %v1451 = vunpack.c.h.b16 %v102
  %v1452 = vunpack.c.l.b16 %v103
  %v1453 = vunpack.c.h.b16 %v103
  %v1454 = vunpack.c.l.b16 %v104
  %v1455 = vunpack.c.h.b16 %v104
  %v1456 = vunpack.c.l.b16 %v105
  %v1457 = vunpack.c.h.b16 %v105
  %v1458 = vunpack.c.l.b16 %v106
  %v1459 = vunpack.c.h.b16 %v106
  %v1460 = vunpack.c.l.b16 %v107
  %v1461 = vunpack.c.h.b16 %v107
  %v1462 = vunpack.c.l.b16 %v108
  %v1463 = vunpack.c.h.b16 %v108
  %v1464 = vunpack.c.l.b16 %v109
  %v1465 = vunpack.c.h.b16 %v109
  %v1466 = vunpack.c.l.b16 %v110
  %v1467 = vunpack.c.h.b16 %v110
  %v1468 = vunpack.c.l.b16 %v111
  %v1469 = vunpack.c.h.b16 %v111
  %v1470 = vunpack.c.l.b16 %v112
  %v1471 = vunpack.c.h.b16 %v112
  %v1472 = vunpack.c.l.b16 %v113
  %v1473 = vunpack.c.h.b16 %v113
  %v1474 = vunpack.c.l.b16 %v114
  %v1475 = vunpack.c.h.b16 %v114
  %v1476 = vunpack.c.l.b16 %v115
  %v1477 = vunpack.c.h.b16 %v115
  %v1478 = vunpack.c.l.b16 %v116
  %v1479 = vunpack.c.h.b16 %v116
  %v1480 = vunpack.c.l.b16 %v117
  %v1481 = vunpack.c.h.b16 %v117
  %v1482 = vunpack.c.l.b16 %v118
  %v1483 = vunpack.c.h.b16 %v118
  %v1484 = vunpack.c.l.b16 %v119
  %v1485 = vunpack.c.h.b16 %v119
  %v1486 = vunpack.c.l.b16 %v120
  %v1487 = vunpack.c.h.b16 %v120
  %v1488 = vunpack.c.l.b16 %v121
  %v1489 = vunpack.c.h.b16 %v121
  %v1490 = vunpack.c.l.b16 %v122
  %v1491 = vunpack.c.h.b16 %v122
  %v1492 = vunpack.c.l.b16 %v123
  %v1493 = vunpack.c.h.b16 %v123
  %v1494 = vunpack.c.l.b16 %v124
  %v1495 = vunpack.c.h.b16 %v124
  %v1496 = vunpack.c.l.b16 %v125
  %v1497 = vunpack.c.h.b16 %v125
  %v1498 = vunpack.c.l.b16 %v126
  %v1499 = vunpack.c.h.b16 %v126
  %v1500 = vunpack.c.l.b16 %v127
  %v1501 = vunpack.c.h.b16 %v127
  %v1502 = vunpack.c.l.b16 %v128
  %v1503 = vunpack.c.h.b16 %v128
  %v1504 = vunpack.c.l.b16 %v129
  %v1505 = vunpack.c.h.b16 %v129
  %v1506 = vunpack.c.l.b16 %v130
  %v1507 = vunpack.c.h.b16 %v130
  %v1508 = vunpack.c.l.b16 %v131
  %v1509 = vunpack.c.h.b16 %v131
  %v1510 = vunpack.c.l.b16 %v132
  %v1511 = vunpack.c.h.b16 %v132
  %v1512 = vunpack.c.l.b16 %v133
  %v1513 = vunpack.c.h.b16 %v133
  %v1514 = vunpack.c.l.b16 %v134
  %v1515 = vunpack.c.h.b16 %v134
  %v1516 = vunpack.c.l.b16 %v135
  %v1517 = vunpack.c.h.b16 %v135
  %v1518 = vunpack.c.l.b16 %v136
  %v1519 = vunpack.c.h.b16 %v136
  %v1520 = vunpack.c.l.b16 %v137
  %v1521 = vunpack.c.h.b16 %v137
  %v1522 = vunpack.c.l.b16 %v138
  %v1523 = vunpack.c.h.b16 %v138
  %v1524 = vunpack.c.l.b16 %v139
  %v1525 = vunpack.c.h.b16 %v139
  %v1526 = vunpack.c.l.b16 %v140
  %v1527 = vunpack.c.h.b16 %v140
  %v1528 = vunpack.c.l.b16 %v141
  %v1529 = vunpack.c.h.b16 %v141
  %v1530 = vunpack.c.l.b16 %v142
  %v1531 = vunpack.c.h.b16 %v142
  %v1532 = vunpack.c.l.b16 %v143
  %v1533 = vunpack.c.h.b16 %v143
  %v1534 = vunpack.c.l.b16 %v144
  %v1535 = vunpack.c.h.b16 %v144
  %v1536 = vunpack.c.l.b16 %v145
  %v1537 = vunpack.c.h.b16 %v145
  %v1538 = vunpack.c.l.b16 %v146
  %v1539 = vunpack.c.h.b16 %v146
  %v1540 = vunpack.c.l.b16 %v147
  %v1541 = vunpack.c.h.b16 %v147
  %v1542 = vunpack.c.l.b16 %v148
  %v1543 = vunpack.c.h.b16 %v148
  %v1544 = vunpack.c.l.b16 %v149
  %v1545 = vunpack.c.h.b16 %v149
  %v1546 = vunpack.c.l.b16 %v150
  %v1547 = vunpack.c.h.b16 %v150
  %v1548 = vunpack.c.l.b16 %v151
  %v1549 = vunpack.c.h.b16 %v151
  %v1550 = vunpack.c.l.b16 %v152
  %v1551 = vunpack.c.h.b16 %v152
  %v1552 = vunpack.c.l.b16 %v153
  %v1553 = vunpack.c.h.b16 %v153
  %v1554 = vunpack.c.l.b16 %v154
  %v1555 = vunpack.c.h.b16 %v154
  %v1556 = vunpack.c.l.b16 %v155
  %v1557 = vunpack.c.h.b16 %v155
  %v1558 = vunpack.c.l.b16 %v156
  %v1559 = vunpack.c.h.b16 %v156
  %v1560 = vunpack.c.l.b16 %v157
  %v1561 = vunpack.c.h.b16 %v157
  %v1562 = vunpack.c.l.b16 %v158
  %v1563 = vunpack.c.h.b16 %v158
  %v1564 = vunpack.c.l.b16 %v159
  %v1565 = vunpack.c.h.b16 %v159
  %v1566 = vunpack.c.l.b16 %v160
  %v1567 = vunpack.c.h.b16 %v160
  %v1568 = vunpack.c.l.b16 %v161
  %v1569 = vunpack.c.h.b16 %v161
  %v1570 = vunpack.c.l.b16 %v162
  %v1571 = vunpack.c.h.b16 %v162
  %v1572 = vunpack.c.l.b16 %v163
  %v1573 = vunpack.c.h.b16 %v163
  %v1574 = vunpack.c.l.b16 %v164
  %v1575 = vunpack.c.h.b16 %v164
  %v1576 = vunpack.c.l.b16 %v165
  %v1577 = vunpack.c.h.b16 %v165
  %v1578 = vunpack.c.l.b16 %v166
  %v1579 = vunpack.c.h.b16 %v166
  %v1580 = vunpack.c.l.b16 %v167
  %v1581 = vunpack.c.h.b16 %v167
  %v1582 = vunpack.c.l.b16 %v168
  %v1583 = vunpack.c.h.b16 %v168
  %v1584 = vunpack.c.l.b16 %v169
  %v1585 = vunpack.c.h.b16 %v169
  %v1586 = vunpack.c.l.b16 %v170
  %v1587 = vunpack.c.h.b16 %v170
  %v1588 = vunpack.c.l.b16 %v171
  %v1589 = vunpack.c.h.b16 %v171
  %v1590 = vunpack.c.l.b16 %v172
  %v1591 = vunpack.c.h.b16 %v172
  %v1592 = vunpack.c.l.b16 %v173
  %v1593 = vunpack.c.h.b16 %v173
  %v1594 = vunpack.c.l.b16 %v174
  %v1595 = vunpack.c.h.b16 %v174
  %v1596 = vunpack.c.l.b16 %v175
  %v1597 = vunpack.c.h.b16 %v175
  %v1598 = vunpack.c.l.b16 %v176
  %v1599 = vunpack.c.h.b16 %v176
  %v1600 = vunpack.c.l.b16 %v177
  %v1601 = vunpack.c.h.b16 %v177
  %v1602 = vunpack.c.l.b16 %v178
  %v1603 = vunpack.c.h.b16 %v178
  %v1604 = vunpack.c.l.b16 %v179
  %v1605 = vunpack.c.h.b16 %v179
  %v1606 = vunpack.c.l.b16 %v180
  %v1607 = vunpack.c.h.b16 %v180
  %v1608 = vunpack.c.l.b16 %v181
  %v1609 = vunpack.c.h.b16 %v181
  %v1610 = vunpack.c.l.b16 %v182
  %v1611 = vunpack.c.h.b16 %v182
  %v1612 = vunpack.c.l.b16 %v183
  %v1613 = vunpack.c.h.b16 %v183
  %v1614 = vunpack.c.l.b16 %v184
  %v1615 = vunpack.c.h.b16 %v184
  %v1616 = vunpack.c.l.b16 %v185
  %v1617 = vunpack.c.h.b16 %v185
  %v1618 = vunpack.c.l.b16 %v186
  %v1619 = vunpack.c.h.b16 %v186
  %v1620 = vunpack.c.l.b16 %v187
  %v1621 = vunpack.c.h.b16 %v187
  %v1622 = vunpack.c.l.b16 %v188
  %v1623 = vunpack.c.h.b16 %v188
  %v1624 = vunpack.c.l.b16 %v189
  %v1625 = vunpack.c.h.b16 %v189
  %v1626 = vunpack.c.l.b16 %v190
  %v1627 = vunpack.c.h.b16 %v190
  %v1628 = vunpack.c.l.b16 %v191
  %v1629 = vunpack.c.h.b16 %v191
  %v1630 = vunpack.c.l.b16 %v192
  %v1631 = vunpack.c.h.b16 %v192
  %v1632 = vunpack.c.l.b16 %v193
  %v1633 = vunpack.c.h.b16 %v193
  %v1634 = vunpack.c.l.b16 %v194
  %v1635 = vunpack.c.h.b16 %v194
  %v1636 = vunpack.c.l.b16 %v195
  %v1637 = vunpack.c.h.b16 %v195
  %v1638 = vunpack.c.l.b16 %v196
  %v1639 = vunpack.c.h.b16 %v196
  %v1640 = vunpack.c.l.b16 %v197
  %v1641 = vunpack.c.h.b16 %v197
  %v1642 = vunpack.c.l.b16 %v198
  %v1643 = vunpack.c.h.b16 %v198
  %v1644 = vunpack.c.l.b16 %v199
  %v1645 = vunpack.c.h.b16 %v199
  %v1646 = vunpack.c.l.b16 %v200
  %v1647 = vunpack.c.h.b16 %v200
  %v1648 = vunpack.c.l.b16 %v201
  %v1649 = vunpack.c.h.b16 %v201
  %v1650 = vunpack.c.l.b16 %v202
  %v1651 = vunpack.c.h.b16 %v202
  %v1652 = vunpack.c.l.b16 %v203
  %v1653 = vunpack.c.h.b16 %v203
  %v1654 = vunpack.c.l.b16 %v204
  %v1655 = vunpack.c.h.b16 %v204
  %v1656 = vunpack.c.l.b16 %v205
  %v1657 = vunpack.c.h.b16 %v205
  %v1658 = vunpack.c.l.b16 %v206
  %v1659 = vunpack.c.h.b16 %v206
  %v1660 = vunpack.c.l.b16 %v207
  %v1661 = vunpack.c.h.b16 %v207
  %v1662 = vunpack.c.l.b16 %v208
  %v1663 = vunpack.c.h.b16 %v208
  %v1664 = vunpack.c.l.b16 %v209
  %v1665 = vunpack.c.h.b16 %v209
  %v1666 = vunpack.c.l.b16 %v210
  %v1667 = vunpack.c.h.b16 %v210
  %v1668 = vunpack.c.l.b16 %v211
  %v1669 = vunpack.c.h.b16 %v211
  %v1670 = vunpack.c.l.b16 %v212
  %v1671 = vunpack.c.h.b16 %v212
  %v1672 = vunpack.c.l.b16 %v213
  %v1673 = vunpack.c.h.b16 %v213
  %v1674 = vunpack.c.l.b16 %v214
  %v1675 = vunpack.c.h.b16 %v214
  %v1676 = vunpack.c.l.b16 %v215
  %v1677 = vunpack.c.h.b16 %v215
  %v1678 = vunpack.c.l.b16 %v216
  %v1679 = vunpack.c.h.b16 %v216
  %v1680 = vunpack.c.l.b16 %v217
  %v1681 = vunpack.c.h.b16 %v217
  %v1682 = vunpack.c.l.b16 %v218
  %v1683 = vunpack.c.h.b16 %v218
  %v1684 = vunpack.c.l.b16 %v219
  %v1685 = vunpack.c.h.b16 %v219
  %v1686 = vunpack.c.l.b16 %v220
  %v1687 = vunpack.c.h.b16 %v220
  %v1688 = vunpack.c.l.b16 %v221
  %v1689 = vunpack.c.h.b16 %v221
  %v1690 = vunpack.c.l.b16 %v222
  %v1691 = vunpack.c.h.b16 %v222
  %v1692 = vunpack.c.l.b16 %v223
  %v1693 = vunpack.c.h.b16 %v223
  %v1694 = vunpack.c.l.b16 %v224
  %v1695 = vunpack.c.h.b16 %v224
  %v1696 = vunpack.c.l.b16 %v225
  %v1697 = vunpack.c.h.b16 %v225
  %v1698 = vunpack.c.l.b16 %v226
  %v1699 = vunpack.c.h.b16 %v226
  %v1700 = vunpack.c.l.b16 %v227
  %v1701 = vunpack.c.h.b16 %v227
  %v1702 = vunpack.c.l.b16 %v228
  %v1703 = vunpack.c.h.b16 %v228
  %v1704 = vunpack.c.l.b16 %v229
  %v1705 = vunpack.c.h.b16 %v229
  %v1706 = vunpack.c.l.b16 %v230
  %v1707 = vunpack.c.h.b16 %v230
  %v1708 = vunpack.c.l.b16 %v231
  %v1709 = vunpack.c.h.b16 %v231
  %v1710 = vunpack.c.l.b16 %v232
  %v1711 = vunpack.c.h.b16 %v232
  %v1712 = vunpack.c.l.b16 %v233
  %v1713 = vunpack.c.h.b16 %v233
  %v1714 = vunpack.c.l.b16 %v234
  %v1715 = vunpack.c.h.b16 %v234
  %v1716 = vunpack.c.l.b16 %v235
  %v1717 = vunpack.c.h.b16 %v235
  %v1718 = vunpack.c.l.b16 %v236
  %v1719 = vunpack.c.h.b16 %v236
  %v1720 = vunpack.c.l.b16 %v237
  %v1721 = vunpack.c.h.b16 %v237
  %v1722 = vunpack.c.l.b16 %v238
  %v1723 = vunpack.c.h.b16 %v238
  %v1724 = vunpack.c.l.b16 %v239
  %v1725 = vunpack.c.h.b16 %v239
  %v1726 = vunpack.c.l.b16 %v240
  %v1727 = vunpack.c.h.b16 %v240
  %v1728 = vunpack.c.l.b16 %v241
  %v1729 = vunpack.c.h.b16 %v241
  %v1730 = vunpack.c.l.b16 %v242
  %v1731 = vunpack.c.h.b16 %v242
  %v1732 = vunpack.c.l.b16 %v243
  %v1733 = vunpack.c.h.b16 %v243
  %v1734 = vunpack.c.l.b16 %v244
  %v1735 = vunpack.c.h.b16 %v244
  %v1736 = vunpack.c.l.b16 %v245
  %v1737 = vunpack.c.h.b16 %v245
  %v1738 = vunpack.c.l.b16 %v246
  %v1739 = vunpack.c.h.b16 %v246
  %v1740 = vunpack.c.l.b16 %v247
  %v1741 = vunpack.c.h.b16 %v247
  %v1742 = vunpack.c.l.b16 %v248
  %v1743 = vunpack.c.h.b16 %v248
  %v1744 = vunpack.c.l.b16 %v249
  %v1745 = vunpack.c.h.b16 %v249
  %v1746 = vunpack.c.l.b16 %v250
  %v1747 = vunpack.c.h.b16 %v250
  %v1748 = vunpack.c.l.b16 %v251
  %v1749 = vunpack.c.h.b16 %v251
  %v1750 = vunpack.c.l.b16 %v252
  %v1751 = vunpack.c.h.b16 %v252
  %v1752 = vunpack.c.l.b16 %v253
  %v1753 = vunpack.c.h.b16 %v253
  %v1754 = vunpack.c.l.b16 %v254
  %v1755 = vunpack.c.h.b16 %v254
  %v1756 = vunpack.c.l.b16 %v255
  %v1757 = vunpack.c.h.b16 %v255
  %v1758 = vunpack.c.l.b16 %v256
  %v1759 = vunpack.c.h.b16 %v256
  %v1760 = vunpack.c.l.b16 %v257
  %v1761 = vunpack.c.h.b16 %v257
  %v1762 = vunpack.c.l.b16 %v258
  %v1763 = vunpack.c.h.b16 %v258
  %v1764 = vunpack.c.l.b16 %v259
  %v1765 = vunpack.c.h.b16 %v259
  %v1766 = vunpack.c.l.b16 %v260
  %v1767 = vunpack.c.h.b16 %v260
  %v1768 = vunpack.c.l.b16 %v261
  %v1769 = vunpack.c.h.b16 %v261
  %v1770 = vunpack.c.l.b16 %v262
  %v1771 = vunpack.c.h.b16 %v262
  %v1772 = vunpack.c.l.b16 %v263
  %v1773 = vunpack.c.h.b16 %v263
  %v1774 = vunpack.c.l.b16 %v264
  %v1775 = vunpack.c.h.b16 %v264
  %v1776 = vunpack.c.l.b16 %v265
  %v1777 = vunpack.c.h.b16 %v265
  %v1778 = vunpack.c.l.b16 %v266
  %v1779 = vunpack.c.h.b16 %v266
  %v1780 = vunpack.c.l.b16 %v267
  %v1781 = vunpack.c.h.b16 %v267
  %v1782 = vunpack.c.l.b16 %v268
  %v1783 = vunpack.c.h.b16 %v268
  %v1784 = vunpack.c.l.b16 %v269
  %v1785 = vunpack.c.h.b16 %v269
  %v1786 = vunpack.c.l.b16 %v270
  %v1787 = vunpack.c.h.b16 %v270
  %v1788 = vunpack.c.l.b16 %v271
  %v1789 = vunpack.c.h.b16 %v271
  %v1790 = vunpack.c.l.b16 %v272
  %v1791 = vunpack.c.h.b16 %v272
  %v1792 = vunpack.c.l.b16 %v273
  %v1793 = vunpack.c.h.b16 %v273
  %v1794 = vunpack.c.l.b16 %v274
  %v1795 = vunpack.c.h.b16 %v274
  %v1796 = vunpack.c.l.b16 %v275
  %v1797 = vunpack.c.h.b16 %v275
  %v1798 = vunpack.c.l.b16 %v276
  %v1799 = vunpack.c.h.b16 %v276
  %v1800 = vunpack.c.l.b16 %v277
  %v1801 = vunpack.c.h.b16 %v277
  %v1802 = vunpack.c.l.b16 %v278
  %v1803 = vunpack.c.h.b16 %v278
  %v1804 = vunpack.c.l.b16 %v279
  %v1805 = vunpack.c.h.b16 %v279
  %v1806 = vunpack.c.l.b16 %v280
  %v1807 = vunpack.c.h.b16 %v280
  %v1808 = vunpack.c.l.b16 %v281
  %v1809 = vunpack.c.h.b16 %v281
  %v1810 = vunpack.c.l.b16 %v282
  %v1811 = vunpack.c.h.b16 %v282
  %v1812 = vunpack.c.l.b16 %v283
  %v1813 = vunpack.c.h.b16 %v283
  %v1814 = vunpack.c.l.b16 %v284
  %v1815 = vunpack.c.h.b16 %v284
  %v1816 = vunpack.c.l.b16 %v285
  %v1817 = vunpack.c.h.b16 %v285
  %v1818 = vunpack.c.l.b16 %v286
  %v1819 = vunpack.c.h.b16 %v286
  %v1820 = vunpack.c.l.b16 %v287
  %v1821 = vunpack.c.h.b16 %v287
  %v1822 = vunpack.c.l.b16 %v288
  %v1823 = vunpack.c.h.b16 %v288
  %v1824 = vunpack.c.l.b16 %v289
  %v1825 = vunpack.c.h.b16 %v289
  %v1826 = vunpack.c.l.b16 %v290
  %v1827 = vunpack.c.h.b16 %v290
  %v1828 = vunpack.c.l.b16 %v291
  %v1829 = vunpack.c.h.b16 %v291
  %v1830 = vunpack.c.l.b16 %v292
  %v1831 = vunpack.c.h.b16 %v292
  %v1832 = vunpack.c.l.b16 %v293
  %v1833 = vunpack.c.h.b16 %v293
  %v1834 = vunpack.c.l.b16 %v294
  %v1835 = vunpack.c.h.b16 %v294
  %v1836 = vunpack.c.l.b16 %v295
  %v1837 = vunpack.c.h.b16 %v295
  %v1838 = vunpack.c.l.b16 %v296
  %v1839 = vunpack.c.h.b16 %v296
  %v1840 = vunpack.c.l.b16 %v297
  %v1841 = vunpack.c.h.b16 %v297
  %v1842 = vunpack.c.l.b16 %v298
  %v1843 = vunpack.c.h.b16 %v298
  %v1844 = vunpack.c.l.b16 %v299
  %v1845 = vunpack.c.h.b16 %v299
  %v1846 = vunpack.c.l.b16 %v300
  %v1847 = vunpack.c.h.b16 %v300
  %v1848 = vunpack.c.l.b16 %v301
  %v1849 = vunpack.c.h.b16 %v301
  %v1850 = vunpack.c.l.b16 %v302
  %v1851 = vunpack.c.h.b16 %v302
  %v1852 = vunpack.c.l.b16 %v303
  %v1853 = vunpack.c.h.b16 %v303
  %v1854 = vunpack.c.l.b16 %v304
  %v1855 = vunpack.c.h.b16 %v304
  %v1856 = vunpack.c.l.b16 %v305
  %v1857 = vunpack.c.h.b16 %v305
  %v1858 = vunpack.c.l.b16 %v306
  %v1859 = vunpack.c.h.b16 %v306
  %v1860 = vunpack.c.l.b16 %v307
  %v1861 = vunpack.c.h.b16 %v307
  %v1862 = vunpack.c.l.b16 %v308
  %v1863 = vunpack.c.h.b16 %v308
  %v1864 = vunpack.c.l.b16 %v309
  %v1865 = vunpack.c.h.b16 %v309
  %v1866 = vunpack.c.l.b16 %v310
  %v1867 = vunpack.c.h.b16 %v310
  %v1868 = vunpack.c.l.b16 %v311
  %v1869 = vunpack.c.h.b16 %v311
  %v1870 = vunpack.c.l.b16 %v312
  %v1871 = vunpack.c.h.b16 %v312
  %v1872 = vunpack.c.l.b16 %v313
  %v1873 = vunpack.c.h.b16 %v313
  %v1874 = vunpack.c.l.b16 %v314
  %v1875 = vunpack.c.h.b16 %v314
  %v1876 = vunpack.c.l.b16 %v315
  %v1877 = vunpack.c.h.b16 %v315
  %v1878 = vunpack.c.l.b16 %v316
  %v1879 = vunpack.c.h.b16 %v316
  %v1880 = vunpack.c.l.b16 %v317
  %v1881 = vunpack.c.h.b16 %v317
  %v1882 = vunpack.c.l.b16 %v318
  %v1883 = vunpack.c.h.b16 %v318
  %v1884 = vunpack.c.l.b16 %v319
  %v1885 = vunpack.c.h.b16 %v319
  %v1886 = vunpack.c.l.b16 %v320
  %v1887 = vunpack.c.h.b16 %v320
  %v1888 = vunpack.c.l.b16 %v321
  %v1889 = vunpack.c.h.b16 %v321
  %v1890 = vunpack.c.l.b16 %v322
  %v1891 = vunpack.c.h.b16 %v322
  %v1892 = vunpack.c.l.b16 %v323
  %v1893 = vunpack.c.h.b16 %v323
  %v1894 = vunpack.c.l.b16 %v324
  %v1895 = vunpack.c.h.b16 %v324
  %v1896 = vunpack.c.l.b16 %v325
  %v1897 = vunpack.c.h.b16 %v325
  %v1898 = vunpack.c.l.b16 %v326
  %v1899 = vunpack.c.h.b16 %v326
  %v1900 = vunpack.c.l.b16 %v327
  %v1901 = vunpack.c.h.b16 %v327
  %v1902 = vunpack.c.l.b16 %v328
  %v1903 = vunpack.c.h.b16 %v328
  %v1904 = vunpack.c.l.b16 %v329
  %v1905 = vunpack.c.h.b16 %v329
  %v1906 = vunpack.c.l.b16 %v330
  %v1907 = vunpack.c.h.b16 %v330
  %v1908 = vunpack.c.l.b16 %v331
  %v1909 = vunpack.c.h.b16 %v331
  %v1910 = vunpack.c.l.b16 %v332
  %v1911 = vunpack.c.h.b16 %v332
  %v1912 = vunpack.c.l.b16 %v333
  %v1913 = vunpack.c.h.b16 %v333
  %v1914 = vunpack.c.l.b16 %v334
  %v1915 = vunpack.c.h.b16 %v334
  %v1916 = vunpack.c.l.b16 %v335
  %v1917 = vunpack.c.h.b16 %v335
  %v1918 = vunpack.c.l.b16 %v336
  %v1919 = vunpack.c.h.b16 %v336
  %v1920 = vunpack.c.l.b16 %v337
  %v1921 = vunpack.c.h.b16 %v337
  %v1922 = vunpack.c.l.b16 %v338
  %v1923 = vunpack.c.h.b16 %v338
  %v1924 = vunpack.c.l.b16 %v339
  %v1925 = vunpack.c.h.b16 %v339
  %v1926 = vunpack.c.l.b16 %v340
  %v1927 = vunpack.c.h.b16 %v340
  %v1928 = vunpack.c.l.b16 %v341
  %v1929 = vunpack.c.h.b16 %v341
  %v1930 = vunpack.c.l.b16 %v342
  %v1931 = vunpack.c.h.b16 %v342
  %v1932 = vunpack.c.l.b16 %v343
  %v1933 = vunpack.c.h.b16 %v343
  %v1934 = vunpack.c.l.b16 %v344
  %v1935 = vunpack.c.h.b16 %v344
  %v1936 = vunpack.c.l.b16 %v345
  %v1937 = vunpack.c.h.b16 %v345
  %v1938 = vunpack.c.l.b16 %v346
  %v1939 = vunpack.c.h.b16 %v346
  %v1940 = vunpack.c.l.b16 %v347
  %v1941 = vunpack.c.h.b16 %v347
  %v1942 = vunpack.c.l.b16 %v348
  %v1943 = vunpack.c.h.b16 %v348
  %v1944 = vunpack.c.l.b16 %v349
  %v1945 = vunpack.c.h.b16 %v349
  %v1946 = vunpack.c.l.b16 %v350
  %v1947 = vunpack.c.h.b16 %v350
  %v1948 = vunpack.c.l.b16 %v351
  %v1949 = vunpack.c.h.b16 %v351
  %v1950 = vunpack.c.l.b16 %v352
  %v1951 = vunpack.c.h.b16 %v352
  %v1952 = vunpack.c.l.b16 %v353
  %v1953 = vunpack.c.h.b16 %v353
  %v1954 = vunpack.c.l.b16 %v354
  %v1955 = vunpack.c.h.b16 %v354
  %v1956 = vunpack.c.l.b16 %v355
  %v1957 = vunpack.c.h.b16 %v355
  %v1958 = vunpack.c.l.b16 %v356
  %v1959 = vunpack.c.h.b16 %v356
  %v1960 = vunpack.c.l.b16 %v357
  %v1961 = vunpack.c.h.b16 %v357
  %v1962 = vunpack.c.l.b16 %v358
  %v1963 = vunpack.c.h.b16 %v358
  %v1964 = vunpack.c.l.b16 %v359
  %v1965 = vunpack.c.h.b16 %v359
  %v1966 = vunpack.c.l.b16 %v360
  %v1967 = vunpack.c.h.b16 %v360
  %v1968 = vunpack.c.l.b16 %v361
  %v1969 = vunpack.c.h.b16 %v361
  %v1970 = vunpack.c.l.b16 %v362
  %v1971 = vunpack.c.h.b16 %v362
  %v1972 = vunpack.c.l.b16 %v363
  %v1973 = vunpack.c.h.b16 %v363
  %v1974 = vunpack.c.l.b16 %v364
  %v1975 = vunpack.c.h.b16 %v364
  %v1976 = vunpack.c.l.b16 %v365
  %v1977 = vunpack.c.h.b16 %v365
  %v1978 = vunpack.c.l.b16 %v366
  %v1979 = vunpack.c.h.b16 %v366
  %v1980 = vunpack.c.l.b16 %v367
  %v1981 = vunpack.c.h.b16 %v367
  %v1982 = vunpack.c.l.b16 %v368
  %v1983 = vunpack.c.h.b16 %v368
  %v1984 = vunpack.c.l.b16 %v369
  %v1985 = vunpack.c.h.b16 %v369
  %v1986 = vunpack.c.l.b16 %v370
  %v1987 = vunpack.c.h.b16 %v370
  %v1988 = vunpack.c.l.b16 %v371
  %v1989 = vunpack.c.h.b16 %v371
  %v1990 = vunpack.c.l.b16 %v372
  %v1991 = vunpack.c.h.b16 %v372
  %v1992 = vunpack.c.l.b16 %v373
  %v1993 = vunpack.c.h.b16 %v373
  %v1994 = vunpack.c.l.b16 %v374
  %v1995 = vunpack.c.h.b16 %v374
  %v1996 = vunpack.c.l.b16 %v375
  %v1997 = vunpack.c.h.b16 %v375
  %v1998 = vunpack.c.l.b16 %v376
  %v1999 = vunpack.c.h.b16 %v376
  %v2000 = vunpack.c.l.b16 %v377
  %v2001 = vunpack.c.h.b16 %v377
  %v2002 = vunpack.c.l.b16 %v378
  %v2003 = vunpack.c.h.b16 %v378
  %v2004 = vunpack.c.l.b16 %v379
  %v2005 = vunpack.c.h.b16 %v379
  %v2006 = vunpack.c.l.b16 %v380
  %v2007 = vunpack.c.h.b16 %v380
  %v2008 = vunpack.c.l.b16 %v381
  %v2009 = vunpack.c.h.b16 %v381
  %v2010 = vunpack.c.l.b16 %v382
  %v2011 = vunpack.c.h.b16 %v382
  %v2012 = vunpack.c.l.b16 %v383
  %v2013 = vunpack.c.h.b16 %v383
  %v2014 = vunpack.c.l.b16 %v384
  %v2015 = vunpack.c.h.b16 %v384
  %v2016 = vunpack.c.l.b16 %v385
  %v2017 = vunpack.c.h.b16 %v385
  %v2018 = vunpack.c.l.b16 %v386
  %v2019 = vunpack.c.h.b16 %v386
  %v2020 = vunpack.c.l.b16 %v387
  %v2021 = vunpack.c.h.b16 %v387
  %v2022 = vunpack.c.l.b16 %v388
  %v2023 = vunpack.c.h.b16 %v388
  %v2024 = vunpack.c.l.b16 %v389
  %v2025 = vunpack.c.h.b16 %v389
  %v2026 = vunpack.c.l.b16 %v390
  %v2027 = vunpack.c.h.b16 %v390
  %v2028 = vunpack.c.l.b16 %v391
  %v2029 = vunpack.c.h.b16 %v391
  %v2030 = vunpack.c.l.b16 %v392
  %v2031 = vunpack.c.h.b16 %v392
  %v2032 = vunpack.c.l.b16 %v393
  %v2033 = vunpack.c.h.b16 %v393
  %v2034 = vunpack.c.l.b16 %v394
  %v2035 = vunpack.c.h.b16 %v394
  %v2036 = vunpack.c.l.b16 %v395
  %v2037 = vunpack.c.h.b16 %v395
  %v2038 = vunpack.c.l.b16 %v396
  %v2039 = vunpack.c.h.b16 %v396
  %v2040 = vunpack.c.l.b16 %v397
  %v2041 = vunpack.c.h.b16 %v397
  %v2042 = vunpack.c.l.b16 %v398
  %v2043 = vunpack.c.h.b16 %v398
  %v2044 = vunpack.c.l.b16 %v399
  %v2045 = vunpack.c.h.b16 %v399
  %v2046 = vunpack.c.l.b16 %v400
  %v2047 = vunpack.c.h.b16 %v400
  %v2048 = vunpack.c.l.b16 %v401
  %v2049 = vunpack.c.h.b16 %v401
  %v2050 = vunpack.c.l.b16 %v402
  %v2051 = vunpack.c.h.b16 %v402
  %v2052 = vunpack.c.l.b16 %v403
  %v2053 = vunpack.c.h.b16 %v403
  %v2054 = vunpack.c.l.b16 %v404
  %v2055 = vunpack.c.h.b16 %v404
  %v2056 = vunpack.c.l.b16 %v405
  %v2057 = vunpack.c.h.b16 %v405
  %v2058 = vunpack.c.l.b16 %v406
  %v2059 = vunpack.c.h.b16 %v406
  %v2060 = vunpack.c.l.b16 %v407
  %v2061 = vunpack.c.h.b16 %v407
  %v2062 = vunpack.c.l.b16 %v408
  %v2063 = vunpack.c.h.b16 %v408
  %v2064 = vunpack.c.l.b16 %v409
  %v2065 = vunpack.c.h.b16 %v409
  %v2066 = vunpack.c.l.b16 %v410
  %v2067 = vunpack.c.h.b16 %v410
  %v2068 = vunpack.c.l.b16 %v411
  %v2069 = vunpack.c.h.b16 %v411
  %v2070 = vunpack.c.l.b16 %v412
  %v2071 = vunpack.c.h.b16 %v412
  %v2072 = vunpack.c.l.b16 %v413
  %v2073 = vunpack.c.h.b16 %v413
  %v2074 = vunpack.c.l.b16 %v414
  %v2075 = vunpack.c.h.b16 %v414
  %v2076 = vunpack.c.l.b16 %v415
  %v2077 = vunpack.c.h.b16 %v415
  %v2078 = vunpack.c.l.b16 %v416
  %v2079 = vunpack.c.h.b16 %v416
  %v2080 = vunpack.c.l.b16 %v417
  %v2081 = vunpack.c.h.b16 %v417
  %v2082 = vunpack.c.l.b16 %v418
  %v2083 = vunpack.c.h.b16 %v418
  %v2084 = vunpack.c.l.b16 %v419
  %v2085 = vunpack.c.h.b16 %v419
  %v2086 = vunpack.c.l.b16 %v420
  %v2087 = vunpack.c.h.b16 %v420
  %v2088 = vunpack.c.l.b16 %v421
  %v2089 = vunpack.c.h.b16 %v421
  %v2090 = vunpack.c.l.b16 %v422
  %v2091 = vunpack.c.h.b16 %v422
  %v2092 = vunpack.c.l.b16 %v423
  %v2093 = vunpack.c.h.b16 %v423
  %v2094 = vunpack.c.l.b16 %v424
  %v2095 = vunpack.c.h.b16 %v424
  %v2096 = vunpack.c.l.b16 %v425
  %v2097 = vunpack.c.h.b16 %v425
  %v2098 = vunpack.c.l.b16 %v426
  %v2099 = vunpack.c.h.b16 %v426
  %v2100 = vunpack.c.l.b16 %v427
  %v2101 = vunpack.c.h.b16 %v427
  %v2102 = vunpack.c.l.b16 %v428
  %v2103 = vunpack.c.h.b16 %v428
  %v2104 = vunpack.c.l.b16 %v429
  %v2105 = vunpack.c.h.b16 %v429
  %v2106 = vunpack.c.l.b16 %v430
  %v2107 = vunpack.c.h.b16 %v430
  %v2108 = vunpack.c.l.b16 %v431
  %v2109 = vunpack.c.h.b16 %v431
  %v2110 = vunpack.c.l.b16 %v432
  %v2111 = vunpack.c.h.b16 %v432
  %v2112 = vunpack.c.l.b16 %v433
  %v2113 = vunpack.c.h.b16 %v433
  %v2114 = vunpack.c.l.b16 %v434
  %v2115 = vunpack.c.h.b16 %v434
  %v2116 = vunpack.c.l.b16 %v435
  %v2117 = vunpack.c.h.b16 %v435
  %v2118 = vunpack.c.l.b16 %v436
  %v2119 = vunpack.c.h.b16 %v436
  %v2120 = vunpack.c.l.b16 %v437
  %v2121 = vunpack.c.h.b16 %v437
  %v2122 = vunpack.c.l.b16 %v438
  %v2123 = vunpack.c.h.b16 %v438
  %v2124 = vunpack.c.l.b16 %v439
  %v2125 = vunpack.c.h.b16 %v439
  %v2126 = vunpack.c.l.b16 %v440
  %v2127 = vunpack.c.h.b16 %v440
  %v2128 = vunpack.c.l.b16 %v441
  %v2129 = vunpack.c.h.b16 %v441
  %v2130 = vunpack.c.l.b16 %v442
  %v2131 = vunpack.c.h.b16 %v442
  %v2132 = vunpack.c.l.b16 %v443
  %v2133 = vunpack.c.h.b16 %v443
  %v2134 = vunpack.c.l.b16 %v444
  %v2135 = vunpack.c.h.b16 %v444
  %v2136 = vunpack.c.l.b16 %v445
  %v2137 = vunpack.c.h.b16 %v445
  %v2138 = vunpack.c.l.b16 %v446
  %v2139 = vunpack.c.h.b16 %v446
  %v2140 = vunpack.c.l.b16 %v447
  %v2141 = vunpack.c.h.b16 %v447
  %v2142 = vunpack.c.l.b16 %v448
  %v2143 = vunpack.c.h.b16 %v448
  %v2144 = vunpack.c.l.b16 %v449
  %v2145 = vunpack.c.h.b16 %v449
  %v2146 = vunpack.c.l.b16 %v450
  %v2147 = vunpack.c.h.b16 %v450
  %v2148 = vunpack.c.l.b16 %v451
  %v2149 = vunpack.c.h.b16 %v451
  %v2150 = vunpack.c.l.b16 %v452
  %v2151 = vunpack.c.h.b16 %v452
  %v2152 = vunpack.c.l.b16 %v453
  %v2153 = vunpack.c.h.b16 %v453
  %v2154 = vunpack.c.l.b16 %v454
  %v2155 = vunpack.c.h.b16 %v454
  %v2156 = vunpack.c.l.b16 %v455
  %v2157 = vunpack.c.h.b16 %v455
  %v2158 = vunpack.c.l.b16 %v456
  %v2159 = vunpack.c.h.b16 %v456
  %v2160 = vunpack.c.l.b16 %v457
  %v2161 = vunpack.c.h.b16 %v457
  %v2162 = vunpack.c.l.b16 %v458
  %v2163 = vunpack.c.h.b16 %v458
  %v2164 = vunpack.c.l.b16 %v459
  %v2165 = vunpack.c.h.b16 %v459
  %v2166 = vunpack.c.l.b16 %v460
  %v2167 = vunpack.c.h.b16 %v460
  %v2168 = vunpack.c.l.b16 %v461
  %v2169 = vunpack.c.h.b16 %v461
  %v2170 = vunpack.c.l.b16 %v462
  %v2171 = vunpack.c.h.b16 %v462
  %v2172 = vunpack.c.l.b16 %v463
  %v2173 = vunpack.c.h.b16 %v463
  %v2174 = vunpack.c.l.b16 %v464
  %v2175 = vunpack.c.h.b16 %v464
  %v2176 = vunpack.c.l.b16 %v465
  %v2177 = vunpack.c.h.b16 %v465
  %v2178 = vunpack.c.l.b16 %v466
  %v2179 = vunpack.c.h.b16 %v466
  %v2180 = vunpack.c.l.b16 %v467
  %v2181 = vunpack.c.h.b16 %v467
  %v2182 = vunpack.c.l.b16 %v468
  %v2183 = vunpack.c.h.b16 %v468
  %v2184 = vunpack.c.l.b16 %v469
  %v2185 = vunpack.c.h.b16 %v469
  %v2186 = vunpack.c.l.b16 %v470
  %v2187 = vunpack.c.h.b16 %v470
  %v2188 = vunpack.c.l.b16 %v471
  %v2189 = vunpack.c.h.b16 %v471
  %v2190 = vunpack.c.l.b16 %v472
  %v2191 = vunpack.c.h.b16 %v472
  %v2192 = vunpack.c.l.b16 %v473
  %v2193 = vunpack.c.h.b16 %v473
  %v2194 = vunpack.c.l.b16 %v474
  %v2195 = vunpack.c.h.b16 %v474
  %v2196 = vunpack.c.l.b16 %v475
  %v2197 = vunpack.c.h.b16 %v475
  %v2198 = vunpack.c.l.b16 %v476
  %v2199 = vunpack.c.h.b16 %v476
  %v2200 = vunpack.c.l.b16 %v477
  %v2201 = vunpack.c.h.b16 %v477
  %v2202 = vunpack.c.l.b16 %v478
  %v2203 = vunpack.c.h.b16 %v478
  %v2204 = vunpack.c.l.b16 %v479
  %v2205 = vunpack.c.h.b16 %v479
  %v2206 = vunpack.c.l.b16 %v480
  %v2207 = vunpack.c.h.b16 %v480
  %v2208 = vunpack.c.l.b16 %v481
  %v2209 = vunpack.c.h.b16 %v481
  %v2210 = vunpack.c.l.b16 %v482
  %v2211 = vunpack.c.h.b16 %v482
  %v2212 = vunpack.c.l.b16 %v483
  %v2213 = vunpack.c.h.b16 %v483
  %v2214 = vunpack.c.l.b16 %v484
  %v2215 = vunpack.c.h.b16 %v484
  %v2216 = vunpack.c.l.b16 %v485
  %v2217 = vunpack.c.h.b16 %v485
  %v2218 = vunpack.c.l.b16 %v486
  %v2219 = vunpack.c.h.b16 %v486
  %v2220 = vunpack.c.l.b16 %v487
  %v2221 = vunpack.c.h.b16 %v487
  %v2222 = vunpack.c.l.b16 %v488
  %v2223 = vunpack.c.h.b16 %v488
  %v2224 = vunpack.c.l.b16 %v489
  %v2225 = vunpack.c.h.b16 %v489
  %v2226 = vunpack.c.l.b16 %v490
  %v2227 = vunpack.c.h.b16 %v490
  %v2228 = vunpack.c.l.b16 %v491
  %v2229 = vunpack.c.h.b16 %v491
  %v2230 = vunpack.c.l.b16 %v492
  %v2231 = vunpack.c.h.b16 %v492
  %v2232 = vunpack.c.l.b16 %v493
  %v2233 = vunpack.c.h.b16 %v493
  %v2234 = vunpack.c.l.b16 %v494
  %v2235 = vunpack.c.h.b16 %v494
  %v2236 = vunpack.c.l.b16 %v495
  %v2237 = vunpack.c.h.b16 %v495
  %v2238 = vunpack.c.l.b16 %v496
  %v2239 = vunpack.c.h.b16 %v496
  %v2240 = vunpack.c.l.b16 %v497
  %v2241 = vunpack.c.h.b16 %v497
  %v2242 = vunpack.c.l.b16 %v498
  %v2243 = vunpack.c.h.b16 %v498
  %v2244 = vunpack.c.l.b16 %v499
  %v2245 = vunpack.c.h.b16 %v499
  %v2246 = vunpack.c.l.b16 %v500
  %v2247 = vunpack.c.h.b16 %v500
  %v2248 = vunpack.c.l.b16 %v501
  %v2249 = vunpack.c.h.b16 %v501
  %v2250 = vunpack.c.l.b16 %v502
  %v2251 = vunpack.c.h.b16 %v502
  %v2252 = vunpack.c.l.b16 %v503
  %v2253 = vunpack.c.h.b16 %v503
  %v2254 = vunpack.c.l.b16 %v504
  %v2255 = vunpack.c.h.b16 %v504
  %v2256 = vunpack.c.l.b16 %v505
  %v2257 = vunpack.c.h.b16 %v505
  %v2258 = vunpack.c.l.b16 %v506
  %v2259 = vunpack.c.h.b16 %v506
  %v2260 = vunpack.c.l.b16 %v507
  %v2261 = vunpack.c.h.b16 %v507
  %v2262 = vunpack.c.l.b16 %v508
  %v2263 = vunpack.c.h.b16 %v508
  %v2264 = vunpack.c.l.b16 %v509
  %v2265 = vunpack.c.h.b16 %v509
  %v2266 = vunpack.c.l.b16 %v510
  %v2267 = vunpack.c.h.b16 %v510
  %v2268 = vunpack.c.l.b16 %v511
  %v2269 = vunpack.c.h.b16 %v511
  %v2270 = vunpack.c.l.b16 %v512
  %v2271 = vunpack.c.h.b16 %v512
  %v2272 = vunpack.c.l.b16 %v513
  %v2273 = vunpack.c.h.b16 %v513
  %v2274 = vunpack.c.l.b16 %v514
  %v2275 = vunpack.c.h.b16 %v514
  %v2276 = vunpack.c.l.b16 %v515
  %v2277 = vunpack.c.h.b16 %v515
  %v2278 = vunpack.c.l.b16 %v516
  %v2279 = vunpack.c.h.b16 %v516
  %v2280 = vunpack.c.l.b16 %v517
  %v2281 = vunpack.c.h.b16 %v517
  %v2282 = vunpack.c.l.b16 %v518
  %v2283 = vunpack.c.h.b16 %v518
  %v2284 = vunpack.c.l.b16 %v519
  %v2285 = vunpack.c.h.b16 %v519
  %v2286 = vunpack.c.l.b16 %v520
  %v2287 = vunpack.c.h.b16 %v520
  %v2288 = vunpack.c.l.b16 %v521
  %v2289 = vunpack.c.h.b16 %v521
  %v2290 = vunpack.c.l.b16 %v522
  %v2291 = vunpack.c.h.b16 %v522
  %v2292 = vunpack.c.l.b16 %v523
  %v2293 = vunpack.c.h.b16 %v523
  %v2294 = vunpack.c.l.b16 %v524
  %v2295 = vunpack.c.h.b16 %v524
  %v2296 = vunpack.c.l.b16 %v525
  %v2297 = vunpack.c.h.b16 %v525
  %v2298 = vunpack.c.l.b16 %v526
  %v2299 = vunpack.c.h.b16 %v526
  %v2300 = vunpack.c.l.b16 %v527
  %v2301 = vunpack.c.h.b16 %v527
  %v2302 = vunpack.c.l.b16 %v528
  %v2303 = vunpack.c.h.b16 %v528
  %v2304 = vunpack.c.l.b16 %v529
  %v2305 = vunpack.c.h.b16 %v529
  %v2306 = vunpack.c.l.b16 %v530
  %v2307 = vunpack.c.h.b16 %v530
  %v2308 = vunpack.c.l.b16 %v531
  %v2309 = vunpack.c.h.b16 %v531
  %v2310 = vunpack.c.l.b16 %v532
  %v2311 = vunpack.c.h.b16 %v532
  %v2312 = vunpack.c.l.b16 %v533
  %v2313 = vunpack.c.h.b16 %v533
  %v2314 = vunpack.c.l.b16 %v534
  %v2315 = vunpack.c.h.b16 %v534
  %v2316 = vunpack.c.l.b16 %v535
  %v2317 = vunpack.c.h.b16 %v535
  %v2318 = vunpack.c.l.b16 %v536
  %v2319 = vunpack.c.h.b16 %v536
  %v2320 = vunpack.c.l.b16 %v537
  %v2321 = vunpack.c.h.b16 %v537
  %v2322 = vunpack.c.l.b16 %v538
  %v2323 = vunpack.c.h.b16 %v538
  %v2324 = vunpack.c.l.b16 %v539
  %v2325 = vunpack.c.h.b16 %v539
  %v2326 = vunpack.c.l.b16 %v540
  %v2327 = vunpack.c.h.b16 %v540
  %v2328 = vunpack.c.l.b16 %v541
  %v2329 = vunpack.c.h.b16 %v541
  %v2330 = vunpack.c.l.b16 %v542
  %v2331 = vunpack.c.h.b16 %v542
  %v2332 = vunpack.c.l.b16 %v543
  %v2333 = vunpack.c.h.b16 %v543
  %v2334 = vunpack.c.l.b16 %v544
  %v2335 = vunpack.c.h.b16 %v544
  %v2336 = vunpack.c.l.b16 %v545
  %v2337 = vunpack.c.h.b16 %v545
  %v2338 = vunpack.c.l.b16 %v546
  %v2339 = vunpack.c.h.b16 %v546
  %v2340 = vunpack.c.l.b16 %v547
  %v2341 = vunpack.c.h.b16 %v547
  %v2342 = vunpack.c.l.b16 %v548
  %v2343 = vunpack.c.h.b16 %v548
  %v2344 = vunpack.c.l.b16 %v549
  %v2345 = vunpack.c.h.b16 %v549
  %v2346 = vunpack.c.l.b16 %v550
  %v2347 = vunpack.c.h.b16 %v550
  %v2348 = vunpack.c.l.b16 %v551
  %v2349 = vunpack.c.h.b16 %v551
  %v2350 = vunpack.c.l.b16 %v552
  %v2351 = vunpack.c.h.b16 %v552
  %v2352 = vunpack.c.l.b16 %v553
  %v2353 = vunpack.c.h.b16 %v553
  %v2354 = vunpack.c.l.b16 %v554
  %v2355 = vunpack.c.h.b16 %v554
  %v2356 = vunpack.c.l.b16 %v555
  %v2357 = vunpack.c.h.b16 %v555
  %v2358 = vunpack.c.l.b16 %v556
  %v2359 = vunpack.c.h.b16 %v556
  %v2360 = vunpack.c.l.b16 %v557
  %v2361 = vunpack.c.h.b16 %v557
  %v2362 = vunpack.c.l.b16 %v558
  %v2363 = vunpack.c.h.b16 %v558
  %v2364 = vunpack.c.l.b16 %v559
  %v2365 = vunpack.c.h.b16 %v559
  %v2366 = vunpack.c.l.b16 %v560
  %v2367 = vunpack.c.h.b16 %v560
  %v2368 = vunpack.c.l.b16 %v561
  %v2369 = vunpack.c.h.b16 %v561
  %v2370 = vunpack.c.l.b16 %v562
  %v2371 = vunpack.c.h.b16 %v562
  %v2372 = vunpack.c.l.b16 %v563
  %v2373 = vunpack.c.h.b16 %v563
  %v2374 = vunpack.c.l.b16 %v564
  %v2375 = vunpack.c.h.b16 %v564
  %v2376 = vunpack.c.l.b16 %v565
  %v2377 = vunpack.c.h.b16 %v565
  %v2378 = vunpack.c.l.b16 %v566
  %v2379 = vunpack.c.h.b16 %v566
  %v2380 = vunpack.c.l.b16 %v567
  %v2381 = vunpack.c.h.b16 %v567
  %v2382 = vunpack.c.l.b16 %v568
  %v2383 = vunpack.c.h.b16 %v568
  %v2384 = vunpack.c.l.b16 %v569
  %v2385 = vunpack.c.h.b16 %v569
  %v2386 = vunpack.c.l.b16 %v570
  %v2387 = vunpack.c.h.b16 %v570
  %v2388 = vunpack.c.l.b16 %v571
  %v2389 = vunpack.c.h.b16 %v571
  %v2390 = vunpack.c.l.b16 %v572
  %v2391 = vunpack.c.h.b16 %v572
  %v2392 = vunpack.c.l.b16 %v573
  %v2393 = vunpack.c.h.b16 %v573
  %v2394 = vunpack.c.l.b16 %v574
  %v2395 = vunpack.c.h.b16 %v574
  %v2396 = vunpack.c.l.b16 %v575
  %v2397 = vunpack.c.h.b16 %v575
  %v2398 = vunpack.c.l.b16 %v576
  %v2399 = vunpack.c.h.b16 %v576
  %v2400 = vunpack.c.l.b16 %v577
  %v2401 = vunpack.c.h.b16 %v577
  %v2402 = vunpack.c.l.b16 %v578
  %v2403 = vunpack.c.h.b16 %v578
  %v2404 = vunpack.c.l.b16 %v579
  %v2405 = vunpack.c.h.b16 %v579
  %v2406 = vunpack.c.l.b16 %v580
  %v2407 = vunpack.c.h.b16 %v580
  %v2408 = vunpack.c.l.b16 %v581
  %v2409 = vunpack.c.h.b16 %v581
  %v2410 = vunpack.c.l.b16 %v582
  %v2411 = vunpack.c.h.b16 %v582
  %v2412 = vunpack.c.l.b16 %v583
  %v2413 = vunpack.c.h.b16 %v583
  %v2414 = vunpack.c.l.b16 %v584
  %v2415 = vunpack.c.h.b16 %v584
  %v2416 = vunpack.c.l.b16 %v585
  %v2417 = vunpack.c.h.b16 %v585
  %v2418 = vunpack.c.l.b16 %v586
  %v2419 = vunpack.c.h.b16 %v586
  %v2420 = vunpack.c.l.b16 %v587
  %v2421 = vunpack.c.h.b16 %v587
  %v2422 = vunpack.c.l.b16 %v588
  %v2423 = vunpack.c.h.b16 %v588
  %v2424 = vunpack.c.l.b16 %v589
  %v2425 = vunpack.c.h.b16 %v589
  %v2426 = vunpack.c.l.b16 %v590
  %v2427 = vunpack.c.h.b16 %v590
  %v2428 = vunpack.c.l.b16 %v591
  %v2429 = vunpack.c.h.b16 %v591
  %v2430 = vunpack.c.l.b16 %v592
  %v2431 = vunpack.c.h.b16 %v592
  %v2432 = vunpack.c.l.b16 %v593
  %v2433 = vunpack.c.h.b16 %v593
  %v2434 = vunpack.c.l.b16 %v594
  %v2435 = vunpack.c.h.b16 %v594
  %v2436 = vunpack.c.l.b16 %v595
  %v2437 = vunpack.c.h.b16 %v595
  %v2438 = vunpack.c.l.b16 %v596
  %v2439 = vunpack.c.h.b16 %v596
  %v2440 = vunpack.c.l.b16 %v597
  %v2441 = vunpack.c.h.b16 %v597
  %v2442 = vunpack.c.l.b16 %v598
  %v2443 = vunpack.c.h.b16 %v598
  %v2444 = vunpack.c.l.b16 %v599
  %v2445 = vunpack.c.h.b16 %v599
  %v2446 = vunpack.c.l.b16 %v600
  %v2447 = vunpack.c.h.b16 %v600
  %v2448 = vunpack.c.l.b16 %v601
  %v2449 = vunpack.c.h.b16 %v601
  %v2450 = vunpack.c.l.b16 %v602
  %v2451 = vunpack.c.h.b16 %v602
  %v2452 = vunpack.c.l.b16 %v603
  %v2453 = vunpack.c.h.b16 %v603
  %v2454 = vunpack.c.l.b16 %v604
  %v2455 = vunpack.c.h.b16 %v604
  %v2456 = vunpack.c.l.b16 %v605
  %v2457 = vunpack.c.h.b16 %v605
  %v2458 = vunpack.c.l.b16 %v606
  %v2459 = vunpack.c.h.b16 %v606
  %v2460 = vunpack.c.l.b16 %v607
  %v2461 = vunpack.c.h.b16 %v607
  %v2462 = vunpack.c.l.b16 %v608
  %v2463 = vunpack.c.h.b16 %v608
  %v2464 = vunpack.c.l.b16 %v609
  %v2465 = vunpack.c.h.b16 %v609
  %v2466 = vunpack.c.l.b16 %v610
  %v2467 = vunpack.c.h.b16 %v610
  %v2468 = vunpack.c.l.b16 %v611
  %v2469 = vunpack.c.h.b16 %v611
  %v2470 = vunpack.c.l.b16 %v612
  %v2471 = vunpack.c.h.b16 %v612
  %v2472 = vunpack.c.l.b16 %v613
  %v2473 = vunpack.c.h.b16 %v613
  %v2474 = vunpack.c.l.b16 %v614
  %v2475 = vunpack.c.h.b16 %v614
  %v2476 = vunpack.c.l.b16 %v615
  %v2477 = vunpack.c.h.b16 %v615
  %v2478 = vunpack.c.l.b16 %v616
  %v2479 = vunpack.c.h.b16 %v616
  %v2480 = vunpack.c.l.b16 %v617
  %v2481 = vunpack.c.h.b16 %v617
  %v2482 = vunpack.c.l.b16 %v618
  %v2483 = vunpack.c.h.b16 %v618
  %v2484 = vunpack.c.l.b16 %v619
  %v2485 = vunpack.c.h.b16 %v619
  %v2486 = vunpack.c.l.b16 %v620
  %v2487 = vunpack.c.h.b16 %v620
  %v2488 = vunpack.c.l.b16 %v621
  %v2489 = vunpack.c.h.b16 %v621
  %v2490 = vunpack.c.l.b16 %v622
  %v2491 = vunpack.c.h.b16 %v622
  %v2492 = vpack.c.b16 %v1344, %v1340
  %v2493 = vpack.c.b16 %v1345, %v1341
  %v2494 = vpack.c.b16 %v1346, %v1342
  %v2495 = vpack.c.b16 %v1347, %v1343
  %v2496 = vpack.c.b16 %v1352, %v1348
  %v2497 = vpack.c.b16 %v1353, %v1349
  %v2498 = vpack.c.b16 %v1354, %v1350
  %v2499 = vpack.c.b16 %v1355, %v1351
  %v2500 = vpack.c.b16 %v1360, %v1356
  %v2501 = vpack.c.b16 %v1361, %v1357
  %v2502 = vpack.c.b16 %v1362, %v1358
  %v2503 = vpack.c.b16 %v1363, %v1359
  %v2504 = vpack.c.b16 %v1368, %v1364
  %v2505 = vpack.c.b16 %v1369, %v1365
  %v2506 = vpack.c.b16 %v1370, %v1366
  %v2507 = vpack.c.b16 %v1371, %v1367
  %v2508 = vpack.c.b16 %v1376, %v1372
  %v2509 = vpack.c.b16 %v1377, %v1373
  %v2510 = vpack.c.b16 %v1378, %v1374
  %v2511 = vpack.c.b16 %v1379, %v1375
  %v2512 = vpack.c.b16 %v1384, %v1380
  %v2513 = vpack.c.b16 %v1385, %v1381
  %v2514 = vpack.c.b16 %v1386, %v1382
  %v2515 = vpack.c.b16 %v1387, %v1383
  %v2516 = vpack.c.b16 %v1392, %v1388
  %v2517 = vpack.c.b16 %v1393, %v1389
  %v2518 = vpack.c.b16 %v1394, %v1390
  %v2519 = vpack.c.b16 %v1395, %v1391
  %v2520 = vpack.c.b16 %v1400, %v1396
  %v2521 = vpack.c.b16 %v1401, %v1397
  %v2522 = vpack.c.b16 %v1402, %v1398
  %v2523 = vpack.c.b16 %v1403, %v1399
  %v2524 = vpack.c.b16 %v1408, %v1404
  %v2525 = vpack.c.b16 %v1409, %v1405
  %v2526 = vpack.c.b16 %v1410, %v1406
  %v2527 = vpack.c.b16 %v1411, %v1407
  %v2528 = vpack.c.b16 %v1416, %v1412
  %v2529 = vpack.c.b16 %v1417, %v1413
  %v2530 = vpack.c.b16 %v1418, %v1414
  %v2531 = vpack.c.b16 %v1419, %v1415
  %v2532 = vpack.c.b16 %v1424, %v1420
  %v2533 = vpack.c.b16 %v1425, %v1421
  %v2534 = vpack.c.b16 %v1426, %v1422
  %v2535 = vpack.c.b16 %v1427, %v1423
  %v2536 = vpack.c.b16 %v1432, %v1428
  %v2537 = vpack.c.b16 %v1433, %v1429
  %v2538 = vpack.c.b16 %v1434, %v1430
  %v2539 = vpack.c.b16 %v1435, %v1431
  %v2540 = vpack.c.b16 %v1440, %v1436
  %v2541 = vpack.c.b16 %v1441, %v1437
  %v2542 = vpack.c.b16 %v1442, %v1438
  %v2543 = vpack.c.b16 %v1443, %v1439
  %v2544 = vpack.c.b16 %v1448, %v1444
  %v2545 = vpack.c.b16 %v1449, %v1445
  %v2546 = vpack.c.b16 %v1450, %v1446
  %v2547 = vpack.c.b16 %v1451, %v1447
  %v2548 = vpack.c.b16 %v1456, %v1452
  %v2549 = vpack.c.b16 %v1457, %v1453
  %v2550 = vpack.c.b16 %v1458, %v1454
  %v2551 = vpack.c.b16 %v1459, %v1455
  %v2552 = vpack.c.b16 %v1464, %v1460
  %v2553 = vpack.c.b16 %v1465, %v1461
  %v2554 = vpack.c.b16 %v1466, %v1462
  %v2555 = vpack.c.b16 %v1467, %v1463
  %v2556 = vpack.c.b16 %v1472, %v1468
  %v2557 = vpack.c.b16 %v1473, %v1469
  %v2558 = vpack.c.b16 %v1474, %v1470
  %v2559 = vpack.c.b16 %v1475, %v1471
  %v2560 = vpack.c.b16 %v1480, %v1476
  %v2561 = vpack.c.b16 %v1481, %v1477
  %v2562 = vpack.c.b16 %v1482, %v1478
  %v2563 = vpack.c.b16 %v1483, %v1479
  %v2564 = vpack.c.b16 %v1488, %v1484
  %v2565 = vpack.c.b16 %v1489, %v1485
  %v2566 = vpack.c.b16 %v1490, %v1486
  %v2567 = vpack.c.b16 %v1491, %v1487
  %v2568 = vpack.c.b16 %v1496, %v1492
  %v2569 = vpack.c.b16 %v1497, %v1493
  %v2570 = vpack.c.b16 %v1498, %v1494
  %v2571 = vpack.c.b16 %v1499, %v1495
  %v2572 = vpack.c.b16 %v1504, %v1500
  %v2573 = vpack.c.b16 %v1505, %v1501
  %v2574 = vpack.c.b16 %v1506, %v1502
  %v2575 = vpack.c.b16 %v1507, %v1503
  %v2576 = vpack.c.b16 %v1512, %v1508
  %v2577 = vpack.c.b16 %v1513, %v1509
  %v2578 = vpack.c.b16 %v1514, %v1510
  %v2579 = vpack.c.b16 %v1515, %v1511
  %v2580 = vpack.c.b16 %v1520, %v1516
  %v2581 = vpack.c.b16 %v1521, %v1517
  %v2582 = vpack.c.b16 %v1522, %v1518
  %v2583 = vpack.c.b16 %v1523, %v1519
  %v2584 = vpack.c.b16 %v1528, %v1524
  %v2585 = vpack.c.b16 %v1529, %v1525
  %v2586 = vpack.c.b16 %v1530, %v1526
  %v2587 = vpack.c.b16 %v1531, %v1527
  %v2588 = vpack.c.b16 %v1536, %v1532
  %v2589 = vpack.c.b16 %v1537, %v1533
  %v2590 = vpack.c.b16 %v1538, %v1534
  %v2591 = vpack.c.b16 %v1539, %v1535
  %v2592 = vpack.c.b16 %v1544, %v1540
  %v2593 = vpack.c.b16 %v1545, %v1541
  %v2594 = vpack.c.b16 %v1546, %v1542
  %v2595 = vpack.c.b16 %v1547, %v1543
  %v2596 = vpack.c.b16 %v1552, %v1548
  %v2597 = vpack.c.b16 %v1553, %v1549
  %v2598 = vpack.c.b16 %v1554, %v1550
  %v2599 = vpack.c.b16 %v1555, %v1551
  %v2600 = vpack.c.b16 %v1560, %v1556
  %v2601 = vpack.c.b16 %v1561, %v1557
  %v2602 = vpack.c.b16 %v1562, %v1558
  %v2603 = vpack.c.b16 %v1563, %v1559
  %v2604 = vpack.c.b16 %v1568, %v1564
  %v2605 = vpack.c.b16 %v1569, %v1565
  %v2606 = vpack.c.b16 %v1570, %v1566
  %v2607 = vpack.c.b16 %v1571, %v1567
  %v2608 = vpack.c.b16 %v1576, %v1572
  %v2609 = vpack.c.b16 %v1577, %v1573
  %v2610 = vpack.c.b16 %v1578, %v1574
  %v2611 = vpack.c.b16 %v1579, %v1575
  %v2612 = vpack.c.b16 %v1584, %v1580
  %v2613 = vpack.c.b16 %v1585, %v1581
  %v2614 = vpack.c.b16 %v1586, %v1582
  %v2615 = vpack.c.b16 %v1587, %v1583
  %v2616 = vpack.c.b16 %v1592, %v1588
  %v2617 = vpack.c.b16 %v1593, %v1589
  %v2618 = vpack.c.b16 %v1594, %v1590
  %v2619 = vpack.c.b16 %v1595, %v1591
  %v2620 = vpack.c.b16 %v1600, %v1596
  %v2621 = vpack.c.b16 %v1601, %v1597
  %v2622 = vpack.c.b16 %v1602, %v1598
  %v2623 = vpack.c.b16 %v1603, %v1599
  %v2624 = vpack.c.b16 %v1608, %v1604
  %v2625 = vpack.c.b16 %v1609, %v1605
  %v2626 = vpack.c.b16 %v1610, %v1606
  %v2627 = vpack.c.b16 %v1611, %v1607
  %v2628 = vpack.c.b16 %v1616, %v1612
  %v2629 = vpack.c.b16 %v1617, %v1613
  %v2630 = vpack.c.b16 %v1618, %v1614
  %v2631 = vpack.c.b16 %v1619, %v1615
  %v2632 = vpack.c.b16 %v1624, %v1620
  %v2633 = vpack.c.b16 %v1625, %v1621
  %v2634 = vpack.c.b16 %v1626, %v1622
  %v2635 = vpack.c.b16 %v1627, %v1623
  %v2636 = vpack.c.b16 %v1632, %v1628
  %v2637 = vpack.c.b16 %v1633, %v1629
  %v2638 = vpack.c.b16 %v1634, %v1630
  %v2639 = vpack.c.b16 %v1635, %v1631
  %v2640 = vpack.c.b16 %v1640, %v1636
  %v2641 = vpack.c.b16 %v1641, %v1637
  %v2642 = vpack.c.b16 %v1642, %v1638
  %v2643 = vpack.c.b16 %v1643, %v1639
  %v2644 = vpack.c.b16 %v1648, %v1644
  %v2645 = vpack.c.b16 %v1649, %v1645
  %v2646 = vpack.c.b16 %v1650, %v1646
  %v2647 = vpack.c.b16 %v1651, %v1647
  %v2648 = vpack.c.b16 %v1656, %v1652
  %v2649 = vpack.c.b16 %v1657, %v1653
  %v2650 = vpack.c.b16 %v1658, %v1654
  %v2651 = vpack.c.b16 %v1659, %v1655
  %v2652 = vpack.c.b16 %v1664, %v1660
  %v2653 = vpack.c.b16 %v1665, %v1661
  %v2654 = vpack.c.b16 %v1666, %v1662
  %v2655 = vpack.c.b16 %v1667, %v1663
  %v2656 = vpack.c.b16 %v1672, %v1668
  %v2657 = vpack.c.b16 %v1673, %v1669
  %v2658 = vpack.c.b16 %v1674, %v1670
  %v2659 = vpack.c.b16 %v1675, %v1671
  %v2660 = vpack.c.b16 %v1680, %v1676
  %v2661 = vpack.c.b16 %v1681, %v1677
  %v2662 = vpack.c.b16 %v1682, %v1678
  %v2663 = vpack.c.b16 %v1683, %v1679
  %v2664 = vpack.c.b16 %v1688, %v1684
  %v2665 = vpack.c.b16 %v1689, %v1685
  %v2666 = vpack.c.b16 %v1690, %v1686
  %v2667 = vpack.c.b16 %v1691, %v1687
  %v2668 = vpack.c.b16 %v1696, %v1692
  %v2669 = vpack.c.b16 %v1697, %v1693
  %v2670 = vpack.c.b16 %v1698, %v1694
  %v2671 = vpack.c.b16 %v1699, %v1695
  %v2672 = vpack.c.b16 %v1704, %v1700
  %v2673 = vpack.c.b16 %v1705, %v1701
  %v2674 = vpack.c.b16 %v1706, %v1702
  %v2675 = vpack.c.b16 %v1707, %v1703
  %v2676 = vpack.c.b16 %v1712, %v1708
  %v2677 = vpack.c.b16 %v1713, %v1709
  %v2678 = vpack.c.b16 %v1714, %v1710
  %v2679 = vpack.c.b16 %v1715, %v1711
  %v2680 = vpack.c.b16 %v1720, %v1716
  %v2681 = vpack.c.b16 %v1721, %v1717
  %v2682 = vpack.c.b16 %v1722, %v1718
  %v2683 = vpack.c.b16 %v1723, %v1719
  %v2684 = vpack.c.b16 %v1728, %v1724
  %v2685 = vpack.c.b16 %v1729, %v1725
  %v2686 = vpack.c.b16 %v1730, %v1726
  %v2687 = vpack.c.b16 %v1731, %v1727
  %v2688 = vpack.c.b16 %v1736, %v1732
  %v2689 = vpack.c.b16 %v1737, %v1733
  %v2690 = vpack.c.b16 %v1738, %v1734
  %v2691 = vpack.c.b16 %v1739, %v1735
  %v2692 = vpack.c.b16 %v1744, %v1740
  %v2693 = vpack.c.b16 %v1745, %v1741
  %v2694 = vpack.c.b16 %v1746, %v1742
  %v2695 = vpack.c.b16 %v1747, %v1743
  %v2696 = vpack.c.b16 %v1752, %v1748
  %v2697 = vpack.c.b16 %v1753, %v1749
  %v2698 = vpack.c.b16 %v1754, %v1750
  %v2699 = vpack.c.b16 %v1755, %v1751
  %v2700 = vpack.c.b16 %v1760, %v1756
  %v2701 = vpack.c.b16 %v1761, %v1757
  %v2702 = vpack.c.b16 %v1762, %v1758
  %v2703 = vpack.c.b16 %v1763, %v1759
  %v2704 = vpack.c.b16 %v1768, %v1764
  %v2705 = vpack.c.b16 %v1769, %v1765
  %v2706 = vpack.c.b16 %v1770, %v1766
  %v2707 = vpack.c.b16 %v1771, %v1767
  %v2708 = vpack.c.b16 %v1776, %v1772
  %v2709 = vpack.c.b16 %v1777, %v1773
  %v2710 = vpack.c.b16 %v1778, %v1774
  %v2711 = vpack.c.b16 %v1779, %v1775
  %v2712 = vpack.c.b16 %v1784, %v1780
  %v2713 = vpack.c.b16 %v1785, %v1781
  %v2714 = vpack.c.b16 %v1786, %v1782
  %v2715 = vpack.c.b16 %v1787, %v1783
  %v2716 = vpack.c.b16 %v1792, %v1788
  %v2717 = vpack.c.b16 %v1793, %v1789
  %v2718 = vpack.c.b16 %v1794, %v1790
  %v2719 = vpack.c.b16 %v1795, %v1791
  %v2720 = vpack.c.b16 %v1800, %v1796
  %v2721 = vpack.c.b16 %v1801, %v1797
  %v2722 = vpack.c.b16 %v1802, %v1798
  %v2723 = vpack.c.b16 %v1803, %v1799
  %v2724 = vpack.c.b16 %v1808, %v1804
  %v2725 = vpack.c.b16 %v1809, %v1805
  %v2726 = vpack.c.b16 %v1810, %v1806
  %v2727 = vpack.c.b16 %v1811, %v1807
  %v2728 = vpack.c.b16 %v1816, %v1812
  %v2729 = vpack.c.b16 %v1817, %v1813
  %v2730 = vpack.c.b16 %v1818, %v1814
  %v2731 = vpack.c.b16 %v1819, %v1815
  %v2732 = vpack.c.b16 %v1824, %v1820
  %v2733 = vpack.c.b16 %v1825, %v1821
  %v2734 = vpack.c.b16 %v1826, %v1822
  %v2735 = vpack.c.b16 %v1827, %v1823
  %v2736 = vpack.c.b16 %v1832, %v1828
  %v2737 = vpack.c.b16 %v1833, %v1829
  %v2738 = vpack.c.b16 %v1834, %v1830
  %v2739 = vpack.c.b16 %v1835, %v1831
  %v2740 = vpack.c.b16 %v1840, %v1836
  %v2741 = vpack.c.b16 %v1841, %v1837
  %v2742 = vpack.c.b16 %v1842, %v1838
  %v2743 = vpack.c.b16 %v1843, %v1839
  %v2744 = vpack.c.b16 %v1848, %v1844
  %v2745 = vpack.c.b16 %v1849, %v1845
  %v2746 = vpack.c.b16 %v1850, %v1846
  %v2747 = vpack.c.b16 %v1851, %v1847
  %v2748 = vpack.c.b16 %v1856, %v1852
  %v2749 = vpack.c.b16 %v1857, %v1853
  %v2750 = vpack.c.b16 %v1858, %v1854
  %v2751 = vpack.c.b16 %v1859, %v1855
  %v2752 = vpack.c.b16 %v1864, %v1860
  %v2753 = vpack.c.b16 %v1865, %v1861
  %v2754 = vpack.c.b16 %v1866, %v1862
  %v2755 = vpack.c.b16 %v1867, %v1863
  %v2756 = vpack.c.b16 %v1872, %v1868
  %v2757 = vpack.c.b16 %v1873, %v1869
  %v2758 = vpack.c.b16 %v1874, %v1870
  %v2759 = vpack.c.b16 %v1875, %v1871
  %v2760 = vpack.c.b16 %v1880, %v1876
  %v2761 = vpack.c.b16 %v1881, %v1877
  %v2762 = vpack.c.b16 %v1882, %v1878
  %v2763 = vpack.c.b16 %v1883, %v1879
  %v2764 = vpack.c.b16 %v1888, %v1884
  %v2765 = vpack.c.b16 %v1889, %v1885
  %v2766 = vpack.c.b16 %v1890, %v1886
  %v2767 = vpack.c.b16 %v1891, %v1887
  %v2768 = vpack.c.b16 %v1896, %v1892
  %v2769 = vpack.c.b16 %v1897, %v1893
  %v2770 = vpack.c.b16 %v1898, %v1894
  %v2771 = vpack.c.b16 %v1899, %v1895
  %v2772 = vpack.c.b16 %v1904, %v1900
  %v2773 = vpack.c.b16 %v1905, %v1901
  %v2774 = vpack.c.b16 %v1906, %v1902
  %v2775 = vpack.c.b16 %v1907, %v1903
  %v2776 = vpack.c.b16 %v1912, %v1908
  %v2777 = vpack.c.b16 %v1913, %v1909
  %v2778 = vpack.c.b16 %v1914, %v1910
  %v2779 = vpack.c.b16 %v1915, %v1911
  %v2780 = vpack.c.b16 %v1920, %v1916
  %v2781 = vpack.c.b16 %v1921, %v1917
  %v2782 = vpack.c.b16 %v1922, %v1918
  %v2783 = vpack.c.b16 %v1923, %v1919
  %v2784 = vpack.c.b16 %v1928, %v1924
  %v2785 = vpack.c.b16 %v1929, %v1925
  %v2786 = vpack.c.b16 %v1930, %v1926
  %v2787 = vpack.c.b16 %v1931, %v1927
  %v2788 = vpack.c.b16 %v1936, %v1932
  %v2789 = vpack.c.b16 %v1937, %v1933
  %v2790 = vpack.c.b16 %v1938, %v1934
  %v2791 = vpack.c.b16 %v1939, %v1935
  %v2792 = vpack.c.b16 %v1944, %v1940
  %v2793 = vpack.c.b16 %v1945, %v1941
  %v2794 = vpack.c.b16 %v1946, %v1942
  %v2795 = vpack.c.b16 %v1947, %v1943
  %v2796 = vpack.c.b16 %v1952, %v1948
  %v2797 = vpack.c.b16 %v1953, %v1949
  %v2798 = vpack.c.b16 %v1954, %v1950
  %v2799 = vpack.c.b16 %v1955, %v1951
  %v2800 = vpack.c.b16 %v1960, %v1956
  %v2801 = vpack.c.b16 %v1961, %v1957
  %v2802 = vpack.c.b16 %v1962, %v1958
  %v2803 = vpack.c.b16 %v1963, %v1959
  %v2804 = vpack.c.b16 %v1968, %v1964
  %v2805 = vpack.c.b16 %v1969, %v1965
  %v2806 = vpack.c.b16 %v1970, %v1966
  %v2807 = vpack.c.b16 %v1971, %v1967
  %v2808 = vpack.c.b16 %v1976, %v1972
  %v2809 = vpack.c.b16 %v1977, %v1973
  %v2810 = vpack.c.b16 %v1978, %v1974
  %v2811 = vpack.c.b16 %v1979, %v1975
  %v2812 = vpack.c.b16 %v1984, %v1980
  %v2813 = vpack.c.b16 %v1985, %v1981
  %v2814 = vpack.c.b16 %v1986, %v1982
  %v2815 = vpack.c.b16 %v1987, %v1983
  %v2816 = vpack.c.b16 %v1992, %v1988
  %v2817 = vpack.c.b16 %v1993, %v1989
  %v2818 = vpack.c.b16 %v1994, %v1990
  %v2819 = vpack.c.b16 %v1995, %v1991
  %v2820 = vpack.c.b16 %v2000, %v1996
  %v2821 = vpack.c.b16 %v2001, %v1997
  %v2822 = vpack.c.b16 %v2002, %v1998
  %v2823 = vpack.c.b16 %v2003, %v1999
  %v2824 = vpack.c.b16 %v2008, %v2004
  %v2825 = vpack.c.b16 %v2009, %v2005
  %v2826 = vpack.c.b16 %v2010, %v2006
  %v2827 = vpack.c.b16 %v2011, %v2007
  %v2828 = vpack.c.b16 %v2016, %v2012
  %v2829 = vpack.c.b16 %v2017, %v2013
  %v2830 = vpack.c.b16 %v2018, %v2014
  %v2831 = vpack.c.b16 %v2019, %v2015
  %v2832 = vpack.c.b16 %v2024, %v2020
  %v2833 = vpack.c.b16 %v2025, %v2021
  %v2834 = vpack.c.b16 %v2026, %v2022
  %v2835 = vpack.c.b16 %v2027, %v2023
  %v2836 = vpack.c.b16 %v2032, %v2028
  %v2837 = vpack.c.b16 %v2033, %v2029
  %v2838 = vpack.c.b16 %v2034, %v2030
  %v2839 = vpack.c.b16 %v2035, %v2031
  %v2840 = vpack.c.b16 %v2040, %v2036
  %v2841 = vpack.c.b16 %v2041, %v2037
  %v2842 = vpack.c.b16 %v2042, %v2038
  %v2843 = vpack.c.b16 %v2043, %v2039
  %v2844 = vpack.c.b16 %v2048, %v2044
  %v2845 = vpack.c.b16 %v2049, %v2045
  %v2846 = vpack.c.b16 %v2050, %v2046
  %v2847 = vpack.c.b16 %v2051, %v2047
  %v2848 = vpack.c.b16 %v2056, %v2052
  %v2849 = vpack.c.b16 %v2057, %v2053
  %v2850 = vpack.c.b16 %v2058, %v2054
  %v2851 = vpack.c.b16 %v2059, %v2055
  %v2852 = vpack.c.b16 %v2064, %v2060
  %v2853 = vpack.c.b16 %v2065, %v2061
  %v2854 = vpack.c.b16 %v2066, %v2062
  %v2855 = vpack.c.b16 %v2067, %v2063
  %v2856 = vpack.c.b16 %v2072, %v2068
  %v2857 = vpack.c.b16 %v2073, %v2069
  %v2858 = vpack.c.b16 %v2074, %v2070
  %v2859 = vpack.c.b16 %v2075, %v2071
  %v2860 = vpack.c.b16 %v2080, %v2076
  %v2861 = vpack.c.b16 %v2081, %v2077
  %v2862 = vpack.c.b16 %v2082, %v2078
  %v2863 = vpack.c.b16 %v2083, %v2079
  %v2864 = vpack.c.b16 %v2088, %v2084
  %v2865 = vpack.c.b16 %v2089, %v2085
  %v2866 = vpack.c.b16 %v2090, %v2086
  %v2867 = vpack.c.b16 %v2091, %v2087
  %v2868 = vpack.c.b16 %v2096, %v2092
  %v2869 = vpack.c.b16 %v2097, %v2093
  %v2870 = vpack.c.b16 %v2098, %v2094
  %v2871 = vpack.c.b16 %v2099, %v2095
  %v2872 = vpack.c.b16 %v2104, %v2100
  %v2873 = vpack.c.b16 %v2105, %v2101
  %v2874 = vpack.c.b16 %v2106, %v2102
  %v2875 = vpack.c.b16 %v2107, %v2103
  %v2876 = vpack.c.b16 %v2112, %v2108
  %v2877 = vpack.c.b16 %v2113, %v2109
  %v2878 = vpack.c.b16 %v2114, %v2110
  %v2879 = vpack.c.b16 %v2115, %v2111
  %v2880 = vpack.c.b16 %v2120, %v2116
  %v2881 = vpack.c.b16 %v2121, %v2117
  %v2882 = vpack.c.b16 %v2122, %v2118
  %v2883 = vpack.c.b16 %v2123, %v2119
  %v2884 = vpack.c.b16 %v2128, %v2124
  %v2885 = vpack.c.b16 %v2129, %v2125
  %v2886 = vpack.c.b16 %v2130, %v2126
  %v2887 = vpack.c.b16 %v2131, %v2127
  %v2888 = vpack.c.b16 %v2136, %v2132
  %v2889 = vpack.c.b16 %v2137, %v2133
  %v2890 = vpack.c.b16 %v2138, %v2134
  %v2891 = vpack.c.b16 %v2139, %v2135
  %v2892 = vpack.c.b16 %v2144, %v2140
  %v2893 = vpack.c.b16 %v2145, %v2141
  %v2894 = vpack.c.b16 %v2146, %v2142
  %v2895 = vpack.c.b16 %v2147, %v2143
  %v2896 = vpack.c.b16 %v2152, %v2148
  %v2897 = vpack.c.b16 %v2153, %v2149
  %v2898 = vpack.c.b16 %v2154, %v2150
  %v2899 = vpack.c.b16 %v2155, %v2151
  %v2900 = vpack.c.b16 %v2160, %v2156
  %v2901 = vpack.c.b16 %v2161, %v2157
  %v2902 = vpack.c.b16 %v2162, %v2158
  %v2903 = vpack.c.b16 %v2163, %v2159
  %v2904 = vpack.c.b16 %v2168, %v2164
  %v2905 = vpack.c.b16 %v2169, %v2165
  %v2906 = vpack.c.b16 %v2170, %v2166
  %v2907 = vpack.c.b16 %v2171, %v2167
  %v2908 = vpack.c.b16 %v2176, %v2172
  %v2909 = vpack.c.b16 %v2177, %v2173
  %v2910 = vpack.c.b16 %v2178, %v2174
  %v2911 = vpack.c.b16 %v2179, %v2175
  %v2912 = vpack.c.b16 %v2184, %v2180
  %v2913 = vpack.c.b16 %v2185, %v2181
  %v2914 = vpack.c.b16 %v2186, %v2182
  %v2915 = vpack.c.b16 %v2187, %v2183
  %v2916 = vpack.c.b16 %v2192, %v2188
  %v2917 = vpack.c.b16 %v2193, %v2189
  %v2918 = vpack.c.b16 %v2194, %v2190
  %v2919 = vpack.c.b16 %v2195, %v2191
  %v2920 = vpack.c.b16 %v2200, %v2196
  %v2921 = vpack.c.b16 %v2201, %v2197
  %v2922 = vpack.c.b16 %v2202, %v2198
  %v2923 = vpack.c.b16 %v2203, %v2199
  %v2924 = vpack.c.b16 %v2208, %v2204
  %v2925 = vpack.c.b16 %v2209, %v2205
  %v2926 = vpack.c.b16 %v2210, %v2206
  %v2927 = vpack.c.b16 %v2211, %v2207
  %v2928 = vpack.c.b16 %v2216, %v2212
  %v2929 = vpack.c.b16 %v2217, %v2213
  %v2930 = vpack.c.b16 %v2218, %v2214
  %v2931 = vpack.c.b16 %v2219, %v2215
  %v2932 = vpack.c.b16 %v2224, %v2220
  %v2933 = vpack.c.b16 %v2225, %v2221
  %v2934 = vpack.c.b16 %v2226, %v2222
  %v2935 = vpack.c.b16 %v2227, %v2223
  %v2936 = vpack.c.b16 %v2232, %v2228
  %v2937 = vpack.c.b16 %v2233, %v2229
  %v2938 = vpack.c.b16 %v2234, %v2230
  %v2939 = vpack.c.b16 %v2235, %v2231
  %v2940 = vpack.c.b16 %v2240, %v2236
  %v2941 = vpack.c.b16 %v2241, %v2237
  %v2942 = vpack.c.b16 %v2242, %v2238
  %v2943 = vpack.c.b16 %v2243, %v2239
  %v2944 = vpack.c.b16 %v2248, %v2244
  %v2945 = vpack.c.b16 %v2249, %v2245
  %v2946 = vpack.c.b16 %v2250, %v2246
  %v2947 = vpack.c.b16 %v2251, %v2247
  %v2948 = vpack.c.b16 %v2256, %v2252
  %v2949 = vpack.c.b16 %v2257, %v2253
  %v2950 = vpack.c.b16 %v2258, %v2254
  %v2951 = vpack.c.b16 %v2259, %v2255
  %v2952 = vpack.c.b16 %v2264, %v2260
  %v2953 = vpack.c.b16 %v2265, %v2261
  %v2954 = vpack.c.b16 %v2266, %v2262
  %v2955 = vpack.c.b16 %v2267, %v2263
  %v2956 = vpack.c.b16 %v2272, %v2268
  %v2957 = vpack.c.b16 %v2273, %v2269
  %v2958 = vpack.c.b16 %v2274, %v2270
  %v2959 = vpack.c.b16 %v2275, %v2271
  %v2960 = vpack.c.b16 %v2280, %v2276
  %v2961 = vpack.c.b16 %v2281, %v2277
  %v2962 = vpack.c.b16 %v2282, %v2278
  %v2963 = vpack.c.b16 %v2283, %v2279
  %v2964 = vpack.c.b16 %v2288, %v2284
  %v2965 = vpack.c.b16 %v2289, %v2285
  %v2966 = vpack.c.b16 %v2290, %v2286
  %v2967 = vpack.c.b16 %v2291, %v2287
  %v2968 = vpack.c.b16 %v2296, %v2292
  %v2969 = vpack.c.b16 %v2297, %v2293
  %v2970 = vpack.c.b16 %v2298, %v2294
  %v2971 = vpack.c.b16 %v2299, %v2295
  %v2972 = vpack.c.b16 %v2304, %v2300
  %v2973 = vpack.c.b16 %v2305, %v2301
  %v2974 = vpack.c.b16 %v2306, %v2302
  %v2975 = vpack.c.b16 %v2307, %v2303
  %v2976 = vpack.c.b16 %v2312, %v2308
  %v2977 = vpack.c.b16 %v2313, %v2309
  %v2978 = vpack.c.b16 %v2314, %v2310
  %v2979 = vpack.c.b16 %v2315, %v2311
  %v2980 = vpack.c.b16 %v2320, %v2316
  %v2981 = vpack.c.b16 %v2321, %v2317
  %v2982 = vpack.c.b16 %v2322, %v2318
  %v2983 = vpack.c.b16 %v2323, %v2319
  %v2984 = vpack.c.b16 %v2328, %v2324
  %v2985 = vpack.c.b16 %v2329, %v2325
  %v2986 = vpack.c.b16 %v2330, %v2326
  %v2987 = vpack.c.b16 %v2331, %v2327
  %v2988 = vpack.c.b16 %v2336, %v2332
  %v2989 = vpack.c.b16 %v2337, %v2333
  %v2990 = vpack.c.b16 %v2338, %v2334
  %v2991 = vpack.c.b16 %v2339, %v2335
  %v2992 = vpack.c.b16 %v2344, %v2340
  %v2993 = vpack.c.b16 %v2345, %v2341
  %v2994 = vpack.c.b16 %v2346, %v2342
  %v2995 = vpack.c.b16 %v2347, %v2343
  %v2996 = vpack.c.b16 %v2352, %v2348
  %v2997 = vpack.c.b16 %v2353, %v2349
  %v2998 = vpack.c.b16 %v2354, %v2350
  %v2999 = vpack.c.b16 %v2355, %v2351
  %v3000 = vpack.c.b16 %v2360, %v2356
  %v3001 = vpack.c.b16 %v2361, %v2357
  %v3002 = vpack.c.b16 %v2362, %v2358
  %v3003 = vpack.c.b16 %v2363, %v2359
  %v3004 = vpack.c.b16 %v2368, %v2364
  %v3005 = vpack.c.b16 %v2369, %v2365
  %v3006 = vpack.c.b16 %v2370, %v2366
  %v3007 = vpack.c.b16 %v2371, %v2367
  %v3008 = vpack.c.b16 %v2376, %v2372
  %v3009 = vpack.c.b16 %v2377, %v2373
  %v3010 = vpack.c.b16 %v2378, %v2374
  %v3011 = vpack.c.b16 %v2379, %v2375
  %v3012 = vpack.c.b16 %v2384, %v2380
  %v3013 = vpack.c.b16 %v2385, %v2381
  %v3014 = vpack.c.b16 %v2386, %v2382
  %v3015 = vpack.c.b16 %v2387, %v2383
  %v3016 = vpack.c.b16 %v2392, %v2388
  %v3017 = vpack.c.b16 %v2393, %v2389
  %v3018 = vpack.c.b16 %v2394, %v2390
  %v3019 = vpack.c.b16 %v2395, %v2391
  %v3020 = vpack.c.b16 %v2400, %v2396
  %v3021 = vpack.c.b16 %v2401, %v2397
  %v3022 = vpack.c.b16 %v2402, %v2398
  %v3023 = vpack.c.b16 %v2403, %v2399
  %v3024 = vpack.c.b16 %v2408, %v2404
  %v3025 = vpack.c.b16 %v2409, %v2405
  %v3026 = vpack.c.b16 %v2410, %v2406
  %v3027 = vpack.c.b16 %v2411, %v2407
  %v3028 = vpack.c.b16 %v2416, %v2412
  %v3029 = vpack.c.b16 %v2417, %v2413
  %v3030 = vpack.c.b16 %v2418, %v2414
  %v3031 = vpack.c.b16 %v2419, %v2415
  %v3032 = vpack.c.b16 %v2424, %v2420
  %v3033 = vpack.c.b16 %v2425, %v2421
  %v3034 = vpack.c.b16 %v2426, %v2422
  %v3035 = vpack.c.b16 %v2427, %v2423
  %v3036 = vpack.c.b16 %v2432, %v2428
  %v3037 = vpack.c.b16 %v2433, %v2429
  %v3038 = vpack.c.b16 %v2434, %v2430
  %v3039 = vpack.c.b16 %v2435, %v2431
  %v3040 = vpack.c.b16 %v2440, %v2436
  %v3041 = vpack.c.b16 %v2441, %v2437
  %v3042 = vpack.c.b16 %v2442, %v2438
  %v3043 = vpack.c.b16 %v2443, %v2439
  %v3044 = vpack.c.b16 %v2448, %v2444
  %v3045 = vpack.c.b16 %v2449, %v2445
  %v3046 = vpack.c.b16 %v2450, %v2446
  %v3047 = vpack.c.b16 %v2451, %v2447
  %v3048 = vpack.c.b16 %v2456, %v2452
  %v3049 = vpack.c.b16 %v2457, %v2453
  %v3050 = vpack.c.b16 %v2458, %v2454
  %v3051 = vpack.c.b16 %v2459, %v2455
  %v3052 = vpack.c.b16 %v2464, %v2460
  %v3053 = vpack.c.b16 %v2465, %v2461
  %v3054 = vpack.c.b16 %v2466, %v2462
  %v3055 = vpack.c.b16 %v2467, %v2463
  %v3056 = vpack.c.b16 %v2472, %v2468
  %v3057 = vpack.c.b16 %v2473, %v2469
  %v3058 = vpack.c.b16 %v2474, %v2470
  %v3059 = vpack.c.b16 %v2475, %v2471
  %v3060 = vpack.c.b16 %v2480, %v2476
  %v3061 = vpack.c.b16 %v2481, %v2477
  %v3062 = vpack.c.b16 %v2482, %v2478
  %v3063 = vpack.c.b16 %v2483, %v2479
  %v3064 = vpack.c.b16 %v2488, %v2484
  %v3065 = vpack.c.b16 %v2489, %v2485
  %v3066 = vpack.c.b16 %v2490, %v2486
  %v3067 = vpack.c.b16 %v2491, %v2487
  %3644 = vmatprep.subr.bf16.mxu0 %v2521
  %3645 = vmatpush1.bf16.msra.mxu0 %v2520
  %3646 = vmatprep.subr.bf16.mxu0 %v2517
  %3647 = vmatpush1.bf16.msra.mxu0 %v2516
  %3648 = vmatprep.subr.bf16.mxu0 %v2513
  %3649 = vmatpush1.bf16.msra.mxu0 %v2512
  %3650 = vmatprep.subr.bf16.mxu0 %v2509
  %3651 = vmatpush1.bf16.msra.mxu0 %v2508
  %3652 = vmatprep.subr.bf16.mxu0 %v2505
  %3653 = vmatpush1.bf16.msra.mxu0 %v2504
  %3654 = vmatprep.subr.bf16.mxu0 %v2501
  %3655 = vmatpush1.bf16.msra.mxu0 %v2500
  %3656 = vmatprep.subr.bf16.mxu0 %v2497
  %3657 = vmatpush1.bf16.msra.mxu0 %v2496
  %3658 = vmatprep.subr.bf16.mxu0 %v2493
  %3659 = vmatpush1.bf16.msra.mxu0 %v2492
  %3660 = vmatprep.subr.bf16.mxu0 %v2553
  %3661 = vmatpush2.bf16.msra.mxu0 %v2552
  %3662 = vmatprep.subr.bf16.mxu0 %v2549
  %3663 = vmatpush2.bf16.msra.mxu0 %v2548
  %3664 = vmatprep.subr.bf16.mxu0 %v2545
  %3665 = vmatpush2.bf16.msra.mxu0 %v2544
  %3666 = vmatprep.subr.bf16.mxu0 %v2541
  %3667 = vmatpush2.bf16.msra.mxu0 %v2540
  %3668 = vmatprep.subr.bf16.mxu0 %v2537
  %3669 = vmatpush2.bf16.msra.mxu0 %v2536
  %3670 = vmatprep.subr.bf16.mxu0 %v2533
  %3671 = vmatpush2.bf16.msra.mxu0 %v2532
  %3672 = vmatprep.subr.bf16.mxu0 %v2529
  %3673 = vmatpush2.bf16.msra.mxu0 %v2528
  %3674 = vmatprep.subr.bf16.mxu0 %v2525
  %3675 = vmatpush2.bf16.msra.mxu0 %v2524
  %3676 = vmatprep.mubr.bf16.mxu0 %v663
  %3677 = vmatmul.mubr.bf16.gmra.mxu0 %v649
  %v3678 = vpop.f32.mrf.mxu0
  %v3679 = vadd.f32 0.0, %v3678
  %v3680 = vpop.f32.mrf.mxu0
  %v3681 = vadd.f32 0.0, %v3680
  %v3682 = vpop.f32.mrf.mxu0
  %v3683 = vpop.f32.mrf.mxu0
  %3684 = vdwg.mxu0
  %3685 = vmatprep.subr.bf16.mxu0 %v2585
  %3686 = vmatpush1.bf16.msra.mxu0 %v2584
  %3687 = vmatprep.subr.bf16.mxu0 %v2581
  %3688 = vmatpush1.bf16.msra.mxu0 %v2580
  %3689 = vmatprep.subr.bf16.mxu0 %v2577
  %3690 = vmatpush1.bf16.msra.mxu0 %v2576
  %3691 = vmatprep.subr.bf16.mxu0 %v2573
  %3692 = vmatpush1.bf16.msra.mxu0 %v2572
  %3693 = vmatprep.subr.bf16.mxu0 %v2569
  %3694 = vmatpush1.bf16.msra.mxu0 %v2568
  %3695 = vmatprep.subr.bf16.mxu0 %v2565
  %3696 = vmatpush1.bf16.msra.mxu0 %v2564
  %3697 = vmatprep.subr.bf16.mxu0 %v2561
  %3698 = vmatpush1.bf16.msra.mxu0 %v2560
  %3699 = vmatprep.subr.bf16.mxu0 %v2557
  %3700 = vmatpush1.bf16.msra.mxu0 %v2556
  %3701 = vmatprep.subr.bf16.mxu0 %v2617
  %3702 = vmatpush2.bf16.msra.mxu0 %v2616
  %3703 = vmatprep.subr.bf16.mxu0 %v2613
  %3704 = vmatpush2.bf16.msra.mxu0 %v2612
  %3705 = vmatprep.subr.bf16.mxu0 %v2609
  %3706 = vmatpush2.bf16.msra.mxu0 %v2608
  %3707 = vmatprep.subr.bf16.mxu0 %v2605
  %3708 = vmatpush2.bf16.msra.mxu0 %v2604
  %3709 = vmatprep.subr.bf16.mxu0 %v2601
  %3710 = vmatpush2.bf16.msra.mxu0 %v2600
  %3711 = vmatprep.subr.bf16.mxu0 %v2597
  %3712 = vmatpush2.bf16.msra.mxu0 %v2596
  %3713 = vmatprep.subr.bf16.mxu0 %v2593
  %3714 = vmatpush2.bf16.msra.mxu0 %v2592
  %3715 = vmatprep.subr.bf16.mxu0 %v2589
  %3716 = vmatpush2.bf16.msra.mxu0 %v2588
  %3717 = vmatprep.mubr.bf16.mxu0 %v673
  %3718 = vmatmul.mubr.bf16.gmra.mxu0 %v671
  %v3719 = vpop.f32.mrf.mxu0
  %v3720 = vadd.f32 %v3679, %v3719
  %v3721 = vpop.f32.mrf.mxu0
  %v3722 = vadd.f32 %v3681, %v3721
  %v3723 = vpop.f32.mrf.mxu0
  %v3724 = vpop.f32.mrf.mxu0
  %3725 = vdwg.mxu0
  %3726 = vmatprep.subr.bf16.mxu0 %v2649
  %3727 = vmatpush1.bf16.msra.mxu0 %v2648
  %3728 = vmatprep.subr.bf16.mxu0 %v2645
  %3729 = vmatpush1.bf16.msra.mxu0 %v2644
  %3730 = vmatprep.subr.bf16.mxu0 %v2641
  %3731 = vmatpush1.bf16.msra.mxu0 %v2640
  %3732 = vmatprep.subr.bf16.mxu0 %v2637
  %3733 = vmatpush1.bf16.msra.mxu0 %v2636
  %3734 = vmatprep.subr.bf16.mxu0 %v2633
  %3735 = vmatpush1.bf16.msra.mxu0 %v2632
  %3736 = vmatprep.subr.bf16.mxu0 %v2629
  %3737 = vmatpush1.bf16.msra.mxu0 %v2628
  %3738 = vmatprep.subr.bf16.mxu0 %v2625
  %3739 = vmatpush1.bf16.msra.mxu0 %v2624
  %3740 = vmatprep.subr.bf16.mxu0 %v2621
  %3741 = vmatpush1.bf16.msra.mxu0 %v2620
  %3742 = vmatprep.subr.bf16.mxu0 %v2681
  %3743 = vmatpush2.bf16.msra.mxu0 %v2680
  %3744 = vmatprep.subr.bf16.mxu0 %v2677
  %3745 = vmatpush2.bf16.msra.mxu0 %v2676
  %3746 = vmatprep.subr.bf16.mxu0 %v2673
  %3747 = vmatpush2.bf16.msra.mxu0 %v2672
  %3748 = vmatprep.subr.bf16.mxu0 %v2669
  %3749 = vmatpush2.bf16.msra.mxu0 %v2668
  %3750 = vmatprep.subr.bf16.mxu0 %v2665
  %3751 = vmatpush2.bf16.msra.mxu0 %v2664
  %3752 = vmatprep.subr.bf16.mxu0 %v2661
  %3753 = vmatpush2.bf16.msra.mxu0 %v2660
  %3754 = vmatprep.subr.bf16.mxu0 %v2657
  %3755 = vmatpush2.bf16.msra.mxu0 %v2656
  %3756 = vmatprep.subr.bf16.mxu0 %v2653
  %3757 = vmatpush2.bf16.msra.mxu0 %v2652
  %3758 = vmatprep.mubr.bf16.mxu0 %v670
  %3759 = vmatmul.mubr.bf16.gmra.mxu0 %v656
  %v3760 = vpop.f32.mrf.mxu0
  %v3761 = vadd.f32 %v3720, %v3760
  %v3762 = vpop.f32.mrf.mxu0
  %v3763 = vadd.f32 %v3722, %v3762
  %v3764 = vpop.f32.mrf.mxu0
  %v3765 = vpop.f32.mrf.mxu0
  %3766 = vdwg.mxu0
  %3767 = vmatprep.subr.bf16.mxu0 %v2713
  %3768 = vmatpush1.bf16.msra.mxu0 %v2712
  %3769 = vmatprep.subr.bf16.mxu0 %v2709
  %3770 = vmatpush1.bf16.msra.mxu0 %v2708
  %3771 = vmatprep.subr.bf16.mxu0 %v2705
  %3772 = vmatpush1.bf16.msra.mxu0 %v2704
  %3773 = vmatprep.subr.bf16.mxu0 %v2701
  %3774 = vmatpush1.bf16.msra.mxu0 %v2700
  %3775 = vmatprep.subr.bf16.mxu0 %v2697
  %3776 = vmatpush1.bf16.msra.mxu0 %v2696
  %3777 = vmatprep.subr.bf16.mxu0 %v2693
  %3778 = vmatpush1.bf16.msra.mxu0 %v2692
  %3779 = vmatprep.subr.bf16.mxu0 %v2689
  %3780 = vmatpush1.bf16.msra.mxu0 %v2688
  %3781 = vmatprep.subr.bf16.mxu0 %v2685
  %3782 = vmatpush1.bf16.msra.mxu0 %v2684
  %3783 = vmatprep.subr.bf16.mxu0 %v2745
  %3784 = vmatpush2.bf16.msra.mxu0 %v2744
  %3785 = vmatprep.subr.bf16.mxu0 %v2741
  %3786 = vmatpush2.bf16.msra.mxu0 %v2740
  %3787 = vmatprep.subr.bf16.mxu0 %v2737
  %3788 = vmatpush2.bf16.msra.mxu0 %v2736
  %3789 = vmatprep.subr.bf16.mxu0 %v2733
  %3790 = vmatpush2.bf16.msra.mxu0 %v2732
  %3791 = vmatprep.subr.bf16.mxu0 %v2729
  %3792 = vmatpush2.bf16.msra.mxu0 %v2728
  %3793 = vmatprep.subr.bf16.mxu0 %v2725
  %3794 = vmatpush2.bf16.msra.mxu0 %v2724
  %3795 = vmatprep.subr.bf16.mxu0 %v2721
  %3796 = vmatpush2.bf16.msra.mxu0 %v2720
  %3797 = vmatprep.subr.bf16.mxu0 %v2717
  %3798 = vmatpush2.bf16.msra.mxu0 %v2716
  %3799 = vmatprep.mubr.bf16.mxu0 %v674
  %3800 = vmatmul.mubr.bf16.gmra.mxu0 %v672
  %v3801 = vpop.f32.mrf.mxu0
  %v3802 = vadd.f32 %v3761, %v3801
  %v3803 = vpop.f32.mrf.mxu0
  %v3804 = vadd.f32 %v3763, %v3803
  %v3805 = vpop.f32.mrf.mxu0
  %v3806 = vpop.f32.mrf.mxu0
  %3807 = vdwg.mxu0
  %3808 = vmatprep.subr.bf16.mxu0 %v2777
  %3809 = vmatpush1.bf16.msra.mxu0 %v2776
  %3810 = vmatprep.subr.bf16.mxu0 %v2773
  %3811 = vmatpush1.bf16.msra.mxu0 %v2772
  %3812 = vmatprep.subr.bf16.mxu0 %v2769
  %3813 = vmatpush1.bf16.msra.mxu0 %v2768
  %3814 = vmatprep.subr.bf16.mxu0 %v2765
  %3815 = vmatpush1.bf16.msra.mxu0 %v2764
  %3816 = vmatprep.subr.bf16.mxu0 %v2761
  %3817 = vmatpush1.bf16.msra.mxu0 %v2760
  %3818 = vmatprep.subr.bf16.mxu0 %v2757
  %3819 = vmatpush1.bf16.msra.mxu0 %v2756
  %3820 = vmatprep.subr.bf16.mxu0 %v2753
  %3821 = vmatpush1.bf16.msra.mxu0 %v2752
  %3822 = vmatprep.subr.bf16.mxu0 %v2749
  %3823 = vmatpush1.bf16.msra.mxu0 %v2748
  %3824 = vmatprep.subr.bf16.mxu0 %v2809
  %3825 = vmatpush2.bf16.msra.mxu0 %v2808
  %3826 = vmatprep.subr.bf16.mxu0 %v2805
  %3827 = vmatpush2.bf16.msra.mxu0 %v2804
  %3828 = vmatprep.subr.bf16.mxu0 %v2801
  %3829 = vmatpush2.bf16.msra.mxu0 %v2800
  %3830 = vmatprep.subr.bf16.mxu0 %v2797
  %3831 = vmatpush2.bf16.msra.mxu0 %v2796
  %3832 = vmatprep.subr.bf16.mxu0 %v2793
  %3833 = vmatpush2.bf16.msra.mxu0 %v2792
  %3834 = vmatprep.subr.bf16.mxu0 %v2789
  %3835 = vmatpush2.bf16.msra.mxu0 %v2788
  %3836 = vmatprep.subr.bf16.mxu0 %v2785
  %3837 = vmatpush2.bf16.msra.mxu0 %v2784
  %3838 = vmatprep.subr.bf16.mxu0 %v2781
  %3839 = vmatpush2.bf16.msra.mxu0 %v2780
  %3840 = vmatprep.mubr.bf16.mxu0 %v712
  %3841 = vmatmul.mubr.bf16.gmra.mxu0 %v698
  %v3842 = vpop.f32.mrf.mxu0
  %v3843 = vadd.f32 %v3802, %v3842
  %v3844 = vpop.f32.mrf.mxu0
  %v3845 = vadd.f32 %v3804, %v3844
  %v3846 = vpop.f32.mrf.mxu0
  %v3847 = vpop.f32.mrf.mxu0
  %3848 = vdwg.mxu0
  %3849 = vmatprep.subr.bf16.mxu0 %v2841
  %3850 = vmatpush1.bf16.msra.mxu0 %v2840
  %3851 = vmatprep.subr.bf16.mxu0 %v2837
  %3852 = vmatpush1.bf16.msra.mxu0 %v2836
  %3853 = vmatprep.subr.bf16.mxu0 %v2833
  %3854 = vmatpush1.bf16.msra.mxu0 %v2832
  %3855 = vmatprep.subr.bf16.mxu0 %v2829
  %3856 = vmatpush1.bf16.msra.mxu0 %v2828
  %3857 = vmatprep.subr.bf16.mxu0 %v2825
  %3858 = vmatpush1.bf16.msra.mxu0 %v2824
  %3859 = vmatprep.subr.bf16.mxu0 %v2821
  %3860 = vmatpush1.bf16.msra.mxu0 %v2820
  %3861 = vmatprep.subr.bf16.mxu0 %v2817
  %3862 = vmatpush1.bf16.msra.mxu0 %v2816
  %3863 = vmatprep.subr.bf16.mxu0 %v2813
  %3864 = vmatpush1.bf16.msra.mxu0 %v2812
  %3865 = vmatprep.subr.bf16.mxu0 %v2873
  %3866 = vmatpush2.bf16.msra.mxu0 %v2872
  %3867 = vmatprep.subr.bf16.mxu0 %v2869
  %3868 = vmatpush2.bf16.msra.mxu0 %v2868
  %3869 = vmatprep.subr.bf16.mxu0 %v2865
  %3870 = vmatpush2.bf16.msra.mxu0 %v2864
  %3871 = vmatprep.subr.bf16.mxu0 %v2861
  %3872 = vmatpush2.bf16.msra.mxu0 %v2860
  %3873 = vmatprep.subr.bf16.mxu0 %v2857
  %3874 = vmatpush2.bf16.msra.mxu0 %v2856
  %3875 = vmatprep.subr.bf16.mxu0 %v2853
  %3876 = vmatpush2.bf16.msra.mxu0 %v2852
  %3877 = vmatprep.subr.bf16.mxu0 %v2849
  %3878 = vmatpush2.bf16.msra.mxu0 %v2848
  %3879 = vmatprep.subr.bf16.mxu0 %v2845
  %3880 = vmatpush2.bf16.msra.mxu0 %v2844
  %3881 = vmatprep.mubr.bf16.mxu0 %v722
  %3882 = vmatmul.mubr.bf16.gmra.mxu0 %v720
  %v3883 = vpop.f32.mrf.mxu0
  %v3884 = vadd.f32 %v3843, %v3883
  %v3885 = vpop.f32.mrf.mxu0
  %v3886 = vadd.f32 %v3845, %v3885
  %v3887 = vpop.f32.mrf.mxu0
  %v3888 = vpop.f32.mrf.mxu0
  %3889 = vdwg.mxu0
  %3890 = vmatprep.subr.bf16.mxu0 %v2905
  %3891 = vmatpush1.bf16.msra.mxu0 %v2904
  %3892 = vmatprep.subr.bf16.mxu0 %v2901
  %3893 = vmatpush1.bf16.msra.mxu0 %v2900
  %3894 = vmatprep.subr.bf16.mxu0 %v2897
  %3895 = vmatpush1.bf16.msra.mxu0 %v2896
  %3896 = vmatprep.subr.bf16.mxu0 %v2893
  %3897 = vmatpush1.bf16.msra.mxu0 %v2892
  %3898 = vmatprep.subr.bf16.mxu0 %v2889
  %3899 = vmatpush1.bf16.msra.mxu0 %v2888
  %3900 = vmatprep.subr.bf16.mxu0 %v2885
  %3901 = vmatpush1.bf16.msra.mxu0 %v2884
  %3902 = vmatprep.subr.bf16.mxu0 %v2881
  %3903 = vmatpush1.bf16.msra.mxu0 %v2880
  %3904 = vmatprep.subr.bf16.mxu0 %v2877
  %3905 = vmatpush1.bf16.msra.mxu0 %v2876
  %3906 = vmatprep.subr.bf16.mxu0 %v2937
  %3907 = vmatpush2.bf16.msra.mxu0 %v2936
  %3908 = vmatprep.subr.bf16.mxu0 %v2933
  %3909 = vmatpush2.bf16.msra.mxu0 %v2932
  %3910 = vmatprep.subr.bf16.mxu0 %v2929
  %3911 = vmatpush2.bf16.msra.mxu0 %v2928
  %3912 = vmatprep.subr.bf16.mxu0 %v2925
  %3913 = vmatpush2.bf16.msra.mxu0 %v2924
  %3914 = vmatprep.subr.bf16.mxu0 %v2921
  %3915 = vmatpush2.bf16.msra.mxu0 %v2920
  %3916 = vmatprep.subr.bf16.mxu0 %v2917
  %3917 = vmatpush2.bf16.msra.mxu0 %v2916
  %3918 = vmatprep.subr.bf16.mxu0 %v2913
  %3919 = vmatpush2.bf16.msra.mxu0 %v2912
  %3920 = vmatprep.subr.bf16.mxu0 %v2909
  %3921 = vmatpush2.bf16.msra.mxu0 %v2908
  %3922 = vmatprep.mubr.bf16.mxu0 %v719
  %3923 = vmatmul.mubr.bf16.gmra.mxu0 %v705
  %v3924 = vpop.f32.mrf.mxu0
  %v3925 = vadd.f32 %v3884, %v3924
  %v3926 = vpop.f32.mrf.mxu0
  %v3927 = vadd.f32 %v3886, %v3926
  %v3928 = vpop.f32.mrf.mxu0
  %v3929 = vpop.f32.mrf.mxu0
  %3930 = vdwg.mxu0
  %3931 = vmatprep.subr.bf16.mxu0 %v2969
  %3932 = vmatpush1.bf16.msra.mxu0 %v2968
  %3933 = vmatprep.subr.bf16.mxu0 %v2965
  %3934 = vmatpush1.bf16.msra.mxu0 %v2964
  %3935 = vmatprep.subr.bf16.mxu0 %v2961
  %3936 = vmatpush1.bf16.msra.mxu0 %v2960
  %3937 = vmatprep.subr.bf16.mxu0 %v2957
  %3938 = vmatpush1.bf16.msra.mxu0 %v2956
  %3939 = vmatprep.subr.bf16.mxu0 %v2953
  %3940 = vmatpush1.bf16.msra.mxu0 %v2952
  %3941 = vmatprep.subr.bf16.mxu0 %v2949
  %3942 = vmatpush1.bf16.msra.mxu0 %v2948
  %3943 = vmatprep.subr.bf16.mxu0 %v2945
  %3944 = vmatpush1.bf16.msra.mxu0 %v2944
  %3945 = vmatprep.subr.bf16.mxu0 %v2941
  %3946 = vmatpush1.bf16.msra.mxu0 %v2940
  %3947 = vmatprep.subr.bf16.mxu0 %v3001
  %3948 = vmatpush2.bf16.msra.mxu0 %v3000
  %3949 = vmatprep.subr.bf16.mxu0 %v2997
  %3950 = vmatpush2.bf16.msra.mxu0 %v2996
  %3951 = vmatprep.subr.bf16.mxu0 %v2993
  %3952 = vmatpush2.bf16.msra.mxu0 %v2992
  %3953 = vmatprep.subr.bf16.mxu0 %v2989
  %3954 = vmatpush2.bf16.msra.mxu0 %v2988
  %3955 = vmatprep.subr.bf16.mxu0 %v2985
  %3956 = vmatpush2.bf16.msra.mxu0 %v2984
  %3957 = vmatprep.subr.bf16.mxu0 %v2981
  %3958 = vmatpush2.bf16.msra.mxu0 %v2980
  %3959 = vmatprep.subr.bf16.mxu0 %v2977
  %3960 = vmatpush2.bf16.msra.mxu0 %v2976
  %3961 = vmatprep.subr.bf16.mxu0 %v2973
  %3962 = vmatpush2.bf16.msra.mxu0 %v2972
  %3963 = vmatprep.mubr.bf16.mxu0 %v723
  %3964 = vmatmul.mubr.bf16.gmra.mxu0 %v721
  %v3965 = vpop.f32.mrf.mxu0
  %v3966 = vadd.f32 %v3925, %v3965
  %v3967 = vpop.f32.mrf.mxu0
  %v3968 = vadd.f32 %v3927, %v3967
  %v3969 = vpop.f32.mrf.mxu0
  %v3970 = vpop.f32.mrf.mxu0
  %3971 = vdwg.mxu0
  %3972 = vmatprep.subr.bf16.mxu0 %v3033
  %3973 = vmatpush1.bf16.msra.mxu0 %v3032
  %3974 = vmatprep.subr.bf16.mxu0 %v3029
  %3975 = vmatpush1.bf16.msra.mxu0 %v3028
  %3976 = vmatprep.subr.bf16.mxu0 %v3025
  %3977 = vmatpush1.bf16.msra.mxu0 %v3024
  %3978 = vmatprep.subr.bf16.mxu0 %v3021
  %3979 = vmatpush1.bf16.msra.mxu0 %v3020
  %3980 = vmatprep.subr.bf16.mxu0 %v3017
  %3981 = vmatpush1.bf16.msra.mxu0 %v3016
  %3982 = vmatprep.subr.bf16.mxu0 %v3013
  %3983 = vmatpush1.bf16.msra.mxu0 %v3012
  %3984 = vmatprep.subr.bf16.mxu0 %v3009
  %3985 = vmatpush1.bf16.msra.mxu0 %v3008
  %3986 = vmatprep.subr.bf16.mxu0 %v3005
  %3987 = vmatpush1.bf16.msra.mxu0 %v3004
  %3988 = vmatprep.subr.bf16.mxu0 %v3065
  %3989 = vmatpush2.bf16.msra.mxu0 %v3064
  %3990 = vmatprep.subr.bf16.mxu0 %v3061
  %3991 = vmatpush2.bf16.msra.mxu0 %v3060
  %3992 = vmatprep.subr.bf16.mxu0 %v3057
  %3993 = vmatpush2.bf16.msra.mxu0 %v3056
  %3994 = vmatprep.subr.bf16.mxu0 %v3053
  %3995 = vmatpush2.bf16.msra.mxu0 %v3052
  %3996 = vmatprep.subr.bf16.mxu0 %v3049
  %3997 = vmatpush2.bf16.msra.mxu0 %v3048
  %3998 = vmatprep.subr.bf16.mxu0 %v3045
  %3999 = vmatpush2.bf16.msra.mxu0 %v3044
  %4000 = vmatprep.subr.bf16.mxu0 %v3041
  %4001 = vmatpush2.bf16.msra.mxu0 %v3040
  %4002 = vmatprep.subr.bf16.mxu0 %v3037
  %4003 = vmatpush2.bf16.msra.mxu0 %v3036
  %4004 = vmatprep.mubr.bf16.mxu0 %v745
  %4005 = vmatmul.mubr.bf16.gmra.mxu0 %v738
  %v4006 = vpop.f32.mrf.mxu0
  %v4007 = vadd.f32 %v3966, %v4006
  %v4008 = vpop.f32.mrf.mxu0
  %v4009 = vadd.f32 %v3968, %v4008
  %v4010 = vpop.f32.mrf.mxu0
  %v4011 = vpop.f32.mrf.mxu0
  %4012 = vdwg.mxu0
  %4013 = vmatprep.subr.bf16.mxu0 %v2523
  %4014 = vmatpush1.bf16.msra.mxu0 %v2522
  %4015 = vmatprep.subr.bf16.mxu0 %v2519
  %4016 = vmatpush1.bf16.msra.mxu0 %v2518
  %4017 = vmatprep.subr.bf16.mxu0 %v2515
  %4018 = vmatpush1.bf16.msra.mxu0 %v2514
  %4019 = vmatprep.subr.bf16.mxu0 %v2511
  %4020 = vmatpush1.bf16.msra.mxu0 %v2510
  %4021 = vmatprep.subr.bf16.mxu0 %v2507
  %4022 = vmatpush1.bf16.msra.mxu0 %v2506
  %4023 = vmatprep.subr.bf16.mxu0 %v2503
  %4024 = vmatpush1.bf16.msra.mxu0 %v2502
  %4025 = vmatprep.subr.bf16.mxu0 %v2499
  %4026 = vmatpush1.bf16.msra.mxu0 %v2498
  %4027 = vmatprep.subr.bf16.mxu0 %v2495
  %4028 = vmatpush1.bf16.msra.mxu0 %v2494
  %4029 = vmatprep.subr.bf16.mxu0 %v2555
  %4030 = vmatpush2.bf16.msra.mxu0 %v2554
  %4031 = vmatprep.subr.bf16.mxu0 %v2551
  %4032 = vmatpush2.bf16.msra.mxu0 %v2550
  %4033 = vmatprep.subr.bf16.mxu0 %v2547
  %4034 = vmatpush2.bf16.msra.mxu0 %v2546
  %4035 = vmatprep.subr.bf16.mxu0 %v2543
  %4036 = vmatpush2.bf16.msra.mxu0 %v2542
  %4037 = vmatprep.subr.bf16.mxu0 %v2539
  %4038 = vmatpush2.bf16.msra.mxu0 %v2538
  %4039 = vmatprep.subr.bf16.mxu0 %v2535
  %4040 = vmatpush2.bf16.msra.mxu0 %v2534
  %4041 = vmatprep.subr.bf16.mxu0 %v2531
  %4042 = vmatpush2.bf16.msra.mxu0 %v2530
  %4043 = vmatprep.subr.bf16.mxu0 %v2527
  %4044 = vmatpush2.bf16.msra.mxu0 %v2526
  %4045 = vmatprep.mubr.bf16.mxu0 %v663
  %4046 = vmatmul.mubr.bf16.gmra.mxu0 %v649
  %v4047 = vpop.f32.mrf.mxu0
  %v4048 = vadd.f32 0.0, %v4047
  %v4049 = vpop.f32.mrf.mxu0
  %v4050 = vadd.f32 0.0, %v4049
  %v4051 = vpop.f32.mrf.mxu0
  %v4052 = vpop.f32.mrf.mxu0
  %4053 = vdwg.mxu0
  %4054 = vmatprep.subr.bf16.mxu0 %v2587
  %4055 = vmatpush1.bf16.msra.mxu0 %v2586
  %4056 = vmatprep.subr.bf16.mxu0 %v2583
  %4057 = vmatpush1.bf16.msra.mxu0 %v2582
  %4058 = vmatprep.subr.bf16.mxu0 %v2579
  %4059 = vmatpush1.bf16.msra.mxu0 %v2578
  %4060 = vmatprep.subr.bf16.mxu0 %v2575
  %4061 = vmatpush1.bf16.msra.mxu0 %v2574
  %4062 = vmatprep.subr.bf16.mxu0 %v2571
  %4063 = vmatpush1.bf16.msra.mxu0 %v2570
  %4064 = vmatprep.subr.bf16.mxu0 %v2567
  %4065 = vmatpush1.bf16.msra.mxu0 %v2566
  %4066 = vmatprep.subr.bf16.mxu0 %v2563
  %4067 = vmatpush1.bf16.msra.mxu0 %v2562
  %4068 = vmatprep.subr.bf16.mxu0 %v2559
  %4069 = vmatpush1.bf16.msra.mxu0 %v2558
  %4070 = vmatprep.subr.bf16.mxu0 %v2619
  %4071 = vmatpush2.bf16.msra.mxu0 %v2618
  %4072 = vmatprep.subr.bf16.mxu0 %v2615
  %4073 = vmatpush2.bf16.msra.mxu0 %v2614
  %4074 = vmatprep.subr.bf16.mxu0 %v2611
  %4075 = vmatpush2.bf16.msra.mxu0 %v2610
  %4076 = vmatprep.subr.bf16.mxu0 %v2607
  %4077 = vmatpush2.bf16.msra.mxu0 %v2606
  %4078 = vmatprep.subr.bf16.mxu0 %v2603
  %4079 = vmatpush2.bf16.msra.mxu0 %v2602
  %4080 = vmatprep.subr.bf16.mxu0 %v2599
  %4081 = vmatpush2.bf16.msra.mxu0 %v2598
  %4082 = vmatprep.subr.bf16.mxu0 %v2595
  %4083 = vmatpush2.bf16.msra.mxu0 %v2594
  %4084 = vmatprep.subr.bf16.mxu0 %v2591
  %4085 = vmatpush2.bf16.msra.mxu0 %v2590
  %4086 = vmatprep.mubr.bf16.mxu0 %v673
  %4087 = vmatmul.mubr.bf16.gmra.mxu0 %v671
  %v4088 = vpop.f32.mrf.mxu0
  %v4089 = vadd.f32 %v4048, %v4088
  %v4090 = vpop.f32.mrf.mxu0
  %v4091 = vadd.f32 %v4050, %v4090
  %v4092 = vpop.f32.mrf.mxu0
  %v4093 = vpop.f32.mrf.mxu0
  %4094 = vdwg.mxu0
  %4095 = vmatprep.subr.bf16.mxu0 %v2651
  %4096 = vmatpush1.bf16.msra.mxu0 %v2650
  %4097 = vmatprep.subr.bf16.mxu0 %v2647
  %4098 = vmatpush1.bf16.msra.mxu0 %v2646
  %4099 = vmatprep.subr.bf16.mxu0 %v2643
  %4100 = vmatpush1.bf16.msra.mxu0 %v2642
  %4101 = vmatprep.subr.bf16.mxu0 %v2639
  %4102 = vmatpush1.bf16.msra.mxu0 %v2638
  %4103 = vmatprep.subr.bf16.mxu0 %v2635
  %4104 = vmatpush1.bf16.msra.mxu0 %v2634
  %4105 = vmatprep.subr.bf16.mxu0 %v2631
  %4106 = vmatpush1.bf16.msra.mxu0 %v2630
  %4107 = vmatprep.subr.bf16.mxu0 %v2627
  %4108 = vmatpush1.bf16.msra.mxu0 %v2626
  %4109 = vmatprep.subr.bf16.mxu0 %v2623
  %4110 = vmatpush1.bf16.msra.mxu0 %v2622
  %4111 = vmatprep.subr.bf16.mxu0 %v2683
  %4112 = vmatpush2.bf16.msra.mxu0 %v2682
  %4113 = vmatprep.subr.bf16.mxu0 %v2679
  %4114 = vmatpush2.bf16.msra.mxu0 %v2678
  %4115 = vmatprep.subr.bf16.mxu0 %v2675
  %4116 = vmatpush2.bf16.msra.mxu0 %v2674
  %4117 = vmatprep.subr.bf16.mxu0 %v2671
  %4118 = vmatpush2.bf16.msra.mxu0 %v2670
  %4119 = vmatprep.subr.bf16.mxu0 %v2667
  %4120 = vmatpush2.bf16.msra.mxu0 %v2666
  %4121 = vmatprep.subr.bf16.mxu0 %v2663
  %4122 = vmatpush2.bf16.msra.mxu0 %v2662
  %4123 = vmatprep.subr.bf16.mxu0 %v2659
  %4124 = vmatpush2.bf16.msra.mxu0 %v2658
  %4125 = vmatprep.subr.bf16.mxu0 %v2655
  %4126 = vmatpush2.bf16.msra.mxu0 %v2654
  %4127 = vmatprep.mubr.bf16.mxu0 %v670
  %4128 = vmatmul.mubr.bf16.gmra.mxu0 %v656
  %v4129 = vpop.f32.mrf.mxu0
  %v4130 = vadd.f32 %v4089, %v4129
  %v4131 = vpop.f32.mrf.mxu0
  %v4132 = vadd.f32 %v4091, %v4131
  %v4133 = vpop.f32.mrf.mxu0
  %v4134 = vpop.f32.mrf.mxu0
  %4135 = vdwg.mxu0
  %4136 = vmatprep.subr.bf16.mxu0 %v2715
  %4137 = vmatpush1.bf16.msra.mxu0 %v2714
  %4138 = vmatprep.subr.bf16.mxu0 %v2711
  %4139 = vmatpush1.bf16.msra.mxu0 %v2710
  %4140 = vmatprep.subr.bf16.mxu0 %v2707
  %4141 = vmatpush1.bf16.msra.mxu0 %v2706
  %4142 = vmatprep.subr.bf16.mxu0 %v2703
  %4143 = vmatpush1.bf16.msra.mxu0 %v2702
  %4144 = vmatprep.subr.bf16.mxu0 %v2699
  %4145 = vmatpush1.bf16.msra.mxu0 %v2698
  %4146 = vmatprep.subr.bf16.mxu0 %v2695
  %4147 = vmatpush1.bf16.msra.mxu0 %v2694
  %4148 = vmatprep.subr.bf16.mxu0 %v2691
  %4149 = vmatpush1.bf16.msra.mxu0 %v2690
  %4150 = vmatprep.subr.bf16.mxu0 %v2687
  %4151 = vmatpush1.bf16.msra.mxu0 %v2686
  %4152 = vmatprep.subr.bf16.mxu0 %v2747
  %4153 = vmatpush2.bf16.msra.mxu0 %v2746
  %4154 = vmatprep.subr.bf16.mxu0 %v2743
  %4155 = vmatpush2.bf16.msra.mxu0 %v2742
  %4156 = vmatprep.subr.bf16.mxu0 %v2739
  %4157 = vmatpush2.bf16.msra.mxu0 %v2738
  %4158 = vmatprep.subr.bf16.mxu0 %v2735
  %4159 = vmatpush2.bf16.msra.mxu0 %v2734
  %4160 = vmatprep.subr.bf16.mxu0 %v2731
  %4161 = vmatpush2.bf16.msra.mxu0 %v2730
  %4162 = vmatprep.subr.bf16.mxu0 %v2727
  %4163 = vmatpush2.bf16.msra.mxu0 %v2726
  %4164 = vmatprep.subr.bf16.mxu0 %v2723
  %4165 = vmatpush2.bf16.msra.mxu0 %v2722
  %4166 = vmatprep.subr.bf16.mxu0 %v2719
  %4167 = vmatpush2.bf16.msra.mxu0 %v2718
  %4168 = vmatprep.mubr.bf16.mxu0 %v674
  %4169 = vmatmul.mubr.bf16.gmra.mxu0 %v672
  %v4170 = vpop.f32.mrf.mxu0
  %v4171 = vadd.f32 %v4130, %v4170
  %v4172 = vpop.f32.mrf.mxu0
  %v4173 = vadd.f32 %v4132, %v4172
  %v4174 = vpop.f32.mrf.mxu0
  %v4175 = vpop.f32.mrf.mxu0
  %4176 = vdwg.mxu0
  %4177 = vmatprep.subr.bf16.mxu0 %v2779
  %4178 = vmatpush1.bf16.msra.mxu0 %v2778
  %4179 = vmatprep.subr.bf16.mxu0 %v2775
  %4180 = vmatpush1.bf16.msra.mxu0 %v2774
  %4181 = vmatprep.subr.bf16.mxu0 %v2771
  %4182 = vmatpush1.bf16.msra.mxu0 %v2770
  %4183 = vmatprep.subr.bf16.mxu0 %v2767
  %4184 = vmatpush1.bf16.msra.mxu0 %v2766
  %4185 = vmatprep.subr.bf16.mxu0 %v2763
  %4186 = vmatpush1.bf16.msra.mxu0 %v2762
  %4187 = vmatprep.subr.bf16.mxu0 %v2759
  %4188 = vmatpush1.bf16.msra.mxu0 %v2758
  %4189 = vmatprep.subr.bf16.mxu0 %v2755
  %4190 = vmatpush1.bf16.msra.mxu0 %v2754
  %4191 = vmatprep.subr.bf16.mxu0 %v2751
  %4192 = vmatpush1.bf16.msra.mxu0 %v2750
  %4193 = vmatprep.subr.bf16.mxu0 %v2811
  %4194 = vmatpush2.bf16.msra.mxu0 %v2810
  %4195 = vmatprep.subr.bf16.mxu0 %v2807
  %4196 = vmatpush2.bf16.msra.mxu0 %v2806
  %4197 = vmatprep.subr.bf16.mxu0 %v2803
  %4198 = vmatpush2.bf16.msra.mxu0 %v2802
  %4199 = vmatprep.subr.bf16.mxu0 %v2799
  %4200 = vmatpush2.bf16.msra.mxu0 %v2798
  %4201 = vmatprep.subr.bf16.mxu0 %v2795
  %4202 = vmatpush2.bf16.msra.mxu0 %v2794
  %4203 = vmatprep.subr.bf16.mxu0 %v2791
  %4204 = vmatpush2.bf16.msra.mxu0 %v2790
  %4205 = vmatprep.subr.bf16.mxu0 %v2787
  %4206 = vmatpush2.bf16.msra.mxu0 %v2786
  %4207 = vmatprep.subr.bf16.mxu0 %v2783
  %4208 = vmatpush2.bf16.msra.mxu0 %v2782
  %4209 = vmatprep.mubr.bf16.mxu0 %v712
  %4210 = vmatmul.mubr.bf16.gmra.mxu0 %v698
  %v4211 = vpop.f32.mrf.mxu0
  %v4212 = vadd.f32 %v4171, %v4211
  %v4213 = vpop.f32.mrf.mxu0
  %v4214 = vadd.f32 %v4173, %v4213
  %v4215 = vpop.f32.mrf.mxu0
  %v4216 = vpop.f32.mrf.mxu0
  %4217 = vdwg.mxu0
  %4218 = vmatprep.subr.bf16.mxu0 %v2843
  %4219 = vmatpush1.bf16.msra.mxu0 %v2842
  %4220 = vmatprep.subr.bf16.mxu0 %v2839
  %4221 = vmatpush1.bf16.msra.mxu0 %v2838
  %4222 = vmatprep.subr.bf16.mxu0 %v2835
  %4223 = vmatpush1.bf16.msra.mxu0 %v2834
  %4224 = vmatprep.subr.bf16.mxu0 %v2831
  %4225 = vmatpush1.bf16.msra.mxu0 %v2830
  %4226 = vmatprep.subr.bf16.mxu0 %v2827
  %4227 = vmatpush1.bf16.msra.mxu0 %v2826
  %4228 = vmatprep.subr.bf16.mxu0 %v2823
  %4229 = vmatpush1.bf16.msra.mxu0 %v2822
  %4230 = vmatprep.subr.bf16.mxu0 %v2819
  %4231 = vmatpush1.bf16.msra.mxu0 %v2818
  %4232 = vmatprep.subr.bf16.mxu0 %v2815
  %4233 = vmatpush1.bf16.msra.mxu0 %v2814
  %4234 = vmatprep.subr.bf16.mxu0 %v2875
  %4235 = vmatpush2.bf16.msra.mxu0 %v2874
  %4236 = vmatprep.subr.bf16.mxu0 %v2871
  %4237 = vmatpush2.bf16.msra.mxu0 %v2870
  %4238 = vmatprep.subr.bf16.mxu0 %v2867
  %4239 = vmatpush2.bf16.msra.mxu0 %v2866
  %4240 = vmatprep.subr.bf16.mxu0 %v2863
  %4241 = vmatpush2.bf16.msra.mxu0 %v2862
  %4242 = vmatprep.subr.bf16.mxu0 %v2859
  %4243 = vmatpush2.bf16.msra.mxu0 %v2858
  %4244 = vmatprep.subr.bf16.mxu0 %v2855
  %4245 = vmatpush2.bf16.msra.mxu0 %v2854
  %4246 = vmatprep.subr.bf16.mxu0 %v2851
  %4247 = vmatpush2.bf16.msra.mxu0 %v2850
  %4248 = vmatprep.subr.bf16.mxu0 %v2847
  %4249 = vmatpush2.bf16.msra.mxu0 %v2846
  %4250 = vmatprep.mubr.bf16.mxu0 %v722
  %4251 = vmatmul.mubr.bf16.gmra.mxu0 %v720
  %v4252 = vpop.f32.mrf.mxu0
  %v4253 = vadd.f32 %v4212, %v4252
  %v4254 = vpop.f32.mrf.mxu0
  %v4255 = vadd.f32 %v4214, %v4254
  %v4256 = vpop.f32.mrf.mxu0
  %v4257 = vpop.f32.mrf.mxu0
  %4258 = vdwg.mxu0
  %4259 = vmatprep.subr.bf16.mxu0 %v2907
  %4260 = vmatpush1.bf16.msra.mxu0 %v2906
  %4261 = vmatprep.subr.bf16.mxu0 %v2903
  %4262 = vmatpush1.bf16.msra.mxu0 %v2902
  %4263 = vmatprep.subr.bf16.mxu0 %v2899
  %4264 = vmatpush1.bf16.msra.mxu0 %v2898
  %4265 = vmatprep.subr.bf16.mxu0 %v2895
  %4266 = vmatpush1.bf16.msra.mxu0 %v2894
  %4267 = vmatprep.subr.bf16.mxu0 %v2891
  %4268 = vmatpush1.bf16.msra.mxu0 %v2890
  %4269 = vmatprep.subr.bf16.mxu0 %v2887
  %4270 = vmatpush1.bf16.msra.mxu0 %v2886
  %4271 = vmatprep.subr.bf16.mxu0 %v2883
  %4272 = vmatpush1.bf16.msra.mxu0 %v2882
  %4273 = vmatprep.subr.bf16.mxu0 %v2879
  %4274 = vmatpush1.bf16.msra.mxu0 %v2878
  %4275 = vmatprep.subr.bf16.mxu0 %v2939
  %4276 = vmatpush2.bf16.msra.mxu0 %v2938
  %4277 = vmatprep.subr.bf16.mxu0 %v2935
  %4278 = vmatpush2.bf16.msra.mxu0 %v2934
  %4279 = vmatprep.subr.bf16.mxu0 %v2931
  %4280 = vmatpush2.bf16.msra.mxu0 %v2930
  %4281 = vmatprep.subr.bf16.mxu0 %v2927
  %4282 = vmatpush2.bf16.msra.mxu0 %v2926
  %4283 = vmatprep.subr.bf16.mxu0 %v2923
  %4284 = vmatpush2.bf16.msra.mxu0 %v2922
  %4285 = vmatprep.subr.bf16.mxu0 %v2919
  %4286 = vmatpush2.bf16.msra.mxu0 %v2918
  %4287 = vmatprep.subr.bf16.mxu0 %v2915
  %4288 = vmatpush2.bf16.msra.mxu0 %v2914
  %4289 = vmatprep.subr.bf16.mxu0 %v2911
  %4290 = vmatpush2.bf16.msra.mxu0 %v2910
  %4291 = vmatprep.mubr.bf16.mxu0 %v719
  %4292 = vmatmul.mubr.bf16.gmra.mxu0 %v705
  %v4293 = vpop.f32.mrf.mxu0
  %v4294 = vadd.f32 %v4253, %v4293
  %v4295 = vpop.f32.mrf.mxu0
  %v4296 = vadd.f32 %v4255, %v4295
  %v4297 = vpop.f32.mrf.mxu0
  %v4298 = vpop.f32.mrf.mxu0
  %4299 = vdwg.mxu0
  %4300 = vmatprep.subr.bf16.mxu0 %v2971
  %4301 = vmatpush1.bf16.msra.mxu0 %v2970
  %4302 = vmatprep.subr.bf16.mxu0 %v2967
  %4303 = vmatpush1.bf16.msra.mxu0 %v2966
  %4304 = vmatprep.subr.bf16.mxu0 %v2963
  %4305 = vmatpush1.bf16.msra.mxu0 %v2962
  %4306 = vmatprep.subr.bf16.mxu0 %v2959
  %4307 = vmatpush1.bf16.msra.mxu0 %v2958
  %4308 = vmatprep.subr.bf16.mxu0 %v2955
  %4309 = vmatpush1.bf16.msra.mxu0 %v2954
  %4310 = vmatprep.subr.bf16.mxu0 %v2951
  %4311 = vmatpush1.bf16.msra.mxu0 %v2950
  %4312 = vmatprep.subr.bf16.mxu0 %v2947
  %4313 = vmatpush1.bf16.msra.mxu0 %v2946
  %4314 = vmatprep.subr.bf16.mxu0 %v2943
  %4315 = vmatpush1.bf16.msra.mxu0 %v2942
  %4316 = vmatprep.subr.bf16.mxu0 %v3003
  %4317 = vmatpush2.bf16.msra.mxu0 %v3002
  %4318 = vmatprep.subr.bf16.mxu0 %v2999
  %4319 = vmatpush2.bf16.msra.mxu0 %v2998
  %4320 = vmatprep.subr.bf16.mxu0 %v2995
  %4321 = vmatpush2.bf16.msra.mxu0 %v2994
  %4322 = vmatprep.subr.bf16.mxu0 %v2991
  %4323 = vmatpush2.bf16.msra.mxu0 %v2990
  %4324 = vmatprep.subr.bf16.mxu0 %v2987
  %4325 = vmatpush2.bf16.msra.mxu0 %v2986
  %4326 = vmatprep.subr.bf16.mxu0 %v2983
  %4327 = vmatpush2.bf16.msra.mxu0 %v2982
  %4328 = vmatprep.subr.bf16.mxu0 %v2979
  %4329 = vmatpush2.bf16.msra.mxu0 %v2978
  %4330 = vmatprep.subr.bf16.mxu0 %v2975
  %4331 = vmatpush2.bf16.msra.mxu0 %v2974
  %4332 = vmatprep.mubr.bf16.mxu0 %v723
  %4333 = vmatmul.mubr.bf16.gmra.mxu0 %v721
  %v4334 = vpop.f32.mrf.mxu0
  %v4335 = vadd.f32 %v4294, %v4334
  %v4336 = vpop.f32.mrf.mxu0
  %v4337 = vadd.f32 %v4296, %v4336
  %v4338 = vpop.f32.mrf.mxu0
  %v4339 = vpop.f32.mrf.mxu0
  %4340 = vdwg.mxu0
  %4341 = vmatprep.subr.bf16.mxu0 %v3035
  %4342 = vmatpush1.bf16.msra.mxu0 %v3034
  %4343 = vmatprep.subr.bf16.mxu0 %v3031
  %4344 = vmatpush1.bf16.msra.mxu0 %v3030
  %4345 = vmatprep.subr.bf16.mxu0 %v3027
  %4346 = vmatpush1.bf16.msra.mxu0 %v3026
  %4347 = vmatprep.subr.bf16.mxu0 %v3023
  %4348 = vmatpush1.bf16.msra.mxu0 %v3022
  %4349 = vmatprep.subr.bf16.mxu0 %v3019
  %4350 = vmatpush1.bf16.msra.mxu0 %v3018
  %4351 = vmatprep.subr.bf16.mxu0 %v3015
  %4352 = vmatpush1.bf16.msra.mxu0 %v3014
  %4353 = vmatprep.subr.bf16.mxu0 %v3011
  %4354 = vmatpush1.bf16.msra.mxu0 %v3010
  %4355 = vmatprep.subr.bf16.mxu0 %v3007
  %4356 = vmatpush1.bf16.msra.mxu0 %v3006
  %4357 = vmatprep.subr.bf16.mxu0 %v3067
  %4358 = vmatpush2.bf16.msra.mxu0 %v3066
  %4359 = vmatprep.subr.bf16.mxu0 %v3063
  %4360 = vmatpush2.bf16.msra.mxu0 %v3062
  %4361 = vmatprep.subr.bf16.mxu0 %v3059
  %4362 = vmatpush2.bf16.msra.mxu0 %v3058
  %4363 = vmatprep.subr.bf16.mxu0 %v3055
  %4364 = vmatpush2.bf16.msra.mxu0 %v3054
  %4365 = vmatprep.subr.bf16.mxu0 %v3051
  %4366 = vmatpush2.bf16.msra.mxu0 %v3050
  %4367 = vmatprep.subr.bf16.mxu0 %v3047
  %4368 = vmatpush2.bf16.msra.mxu0 %v3046
  %4369 = vmatprep.subr.bf16.mxu0 %v3043
  %4370 = vmatpush2.bf16.msra.mxu0 %v3042
  %4371 = vmatprep.subr.bf16.mxu0 %v3039
  %4372 = vmatpush2.bf16.msra.mxu0 %v3038
  %4373 = vmatprep.mubr.bf16.mxu0 %v745
  %4374 = vmatmul.mubr.bf16.gmra.mxu0 %v738
  %v4375 = vpop.f32.mrf.mxu0
  %v4376 = vadd.f32 %v4335, %v4375
  %v4377 = vpop.f32.mrf.mxu0
  %v4378 = vadd.f32 %v4337, %v4377
  %v4379 = vpop.f32.mrf.mxu0
  %v4380 = vpop.f32.mrf.mxu0
  %4381 = vdwg.mxu0
  %s4382 = scalar_lea.vmem %s0, 18
  %v4383 = vld [vmem:[%s4382] sm:$0xff]
  %v4384 = vld [vmem:[%s4382 + $0x8] sm:$0xff]
  %v4385 = vld [vmem:[%s4382 + $0x10] sm:$0x3]
  %v4389 = vcombine.high %v4383, %v4383
  %v4391 = vunpack.c.l.s4 1966171168
  %v4392 = vunpack.c.0.s8 %v4391
  %v4393 = vlaneseq
  %v4394 = vshrl.u32 %v4393, 7
  %v4395 = vsub.s32 %v4392, %v4394
  %v4396 = vrot.slane %v4383, %v4395
  %v4398 = vunpack.c.l.s4 1966171168
  %v4399 = vunpack.c.0.s8 %v4398
  %v4400 = vlaneseq
  %v4401 = vshrl.u32 %v4400, 7
  %v4402 = vsub.s32 %v4399, %v4401
  %v4403 = vrot.slane %v4389, %v4402
  %v4404 = vcombine.high %v4396, %v4396
  %v4405 = vcombine.high %v4403, %v4403
  %v4407 = vunpack.c.l.s4 1966171168
  %v4408 = vunpack.c.0.s8 %v4407
  %v4409 = vlaneseq
  %v4410 = vshrl.u32 %v4409, 7
  %v4411 = vsub.s32 %v4408, %v4410
  %v4412 = vrot.slane %v4396, %v4411
  %v4414 = vunpack.c.l.s4 1966171168
  %v4415 = vunpack.c.0.s8 %v4414
  %v4416 = vlaneseq
  %v4417 = vshrl.u32 %v4416, 7
  %v4418 = vsub.s32 %v4415, %v4417
  %v4419 = vrot.slane %v4403, %v4418
  %v4421 = vunpack.c.l.s4 1966171168
  %v4422 = vunpack.c.0.s8 %v4421
  %v4423 = vlaneseq
  %v4424 = vshrl.u32 %v4423, 7
  %v4425 = vsub.s32 %v4422, %v4424
  %v4426 = vrot.slane %v4404, %v4425
  %v4428 = vunpack.c.l.s4 1966171168
  %v4429 = vunpack.c.0.s8 %v4428
  %v4430 = vlaneseq
  %v4431 = vshrl.u32 %v4430, 7
  %v4432 = vsub.s32 %v4429, %v4431
  %v4433 = vrot.slane %v4405, %v4432
  %v4434 = vcombine.high %v4412, %v4412
  %v4435 = vcombine.high %v4419, %v4419
  %v4436 = vcombine.high %v4426, %v4426
  %v4437 = vcombine.high %v4433, %v4433
  %v4438 = vcombine.high %v4384, %v4384
  %v4440 = vunpack.c.l.s4 1966171168
  %v4441 = vunpack.c.0.s8 %v4440
  %v4442 = vlaneseq
  %v4443 = vshrl.u32 %v4442, 7
  %v4444 = vsub.s32 %v4441, %v4443
  %v4445 = vrot.slane %v4384, %v4444
  %v4447 = vunpack.c.l.s4 1966171168
  %v4448 = vunpack.c.0.s8 %v4447
  %v4449 = vlaneseq
  %v4450 = vshrl.u32 %v4449, 7
  %v4451 = vsub.s32 %v4448, %v4450
  %v4452 = vrot.slane %v4438, %v4451
  %v4453 = vcombine.high %v4445, %v4445
  %v4454 = vcombine.high %v4452, %v4452
  %v4456 = vunpack.c.l.s4 1966171168
  %v4457 = vunpack.c.0.s8 %v4456
  %v4458 = vlaneseq
  %v4459 = vshrl.u32 %v4458, 7
  %v4460 = vsub.s32 %v4457, %v4459
  %v4461 = vrot.slane %v4445, %v4460
  %v4463 = vunpack.c.l.s4 1966171168
  %v4464 = vunpack.c.0.s8 %v4463
  %v4465 = vlaneseq
  %v4466 = vshrl.u32 %v4465, 7
  %v4467 = vsub.s32 %v4464, %v4466
  %v4468 = vrot.slane %v4452, %v4467
  %v4470 = vunpack.c.l.s4 1966171168
  %v4471 = vunpack.c.0.s8 %v4470
  %v4472 = vlaneseq
  %v4473 = vshrl.u32 %v4472, 7
  %v4474 = vsub.s32 %v4471, %v4473
  %v4475 = vrot.slane %v4453, %v4474
  %v4477 = vunpack.c.l.s4 1966171168
  %v4478 = vunpack.c.0.s8 %v4477
  %v4479 = vlaneseq
  %v4480 = vshrl.u32 %v4479, 7
  %v4481 = vsub.s32 %v4478, %v4480
  %v4482 = vrot.slane %v4454, %v4481
  %v4483 = vcombine.high %v4461, %v4461
  %v4484 = vcombine.high %v4468, %v4468
  %v4485 = vcombine.high %v4475, %v4475
  %v4486 = vcombine.high %v4482, %v4482
  %v4488 = vunpack.c.l.s4 1966171168
  %v4489 = vunpack.c.0.s8 %v4488
  %v4490 = vlaneseq
  %v4491 = vshrl.u32 %v4490, 7
  %v4492 = vsub.s32 %v4489, %v4491
  %v4493 = vrot.slane %v4385, %v4492
  %v4494 = vcombine.high %v4493, %v4493
  %v4496 = vunpack.c.l.s4 1966171168
  %v4497 = vunpack.c.0.s8 %v4496
  %v4498 = vlaneseq
  %v4499 = vshrl.u32 %v4498, 7
  %v4500 = vsub.s32 %v4497, %v4499
  %v4501 = vrot.slane %v4493, %v4500
  %v4503 = vunpack.c.l.s4 1966171168
  %v4504 = vunpack.c.0.s8 %v4503
  %v4505 = vlaneseq
  %v4506 = vshrl.u32 %v4505, 7
  %v4507 = vsub.s32 %v4504, %v4506
  %v4508 = vrot.slane %v4494, %v4507
  %4527 = vmatprep.subr.bf16.mxu0 %v2521
  %4528 = vmatpush1.bf16.msra.mxu0 %v2520
  %4529 = vmatprep.subr.bf16.mxu0 %v2517
  %4530 = vmatpush1.bf16.msra.mxu0 %v2516
  %4531 = vmatprep.subr.bf16.mxu0 %v2513
  %4532 = vmatpush1.bf16.msra.mxu0 %v2512
  %4533 = vmatprep.subr.bf16.mxu0 %v2509
  %4534 = vmatpush1.bf16.msra.mxu0 %v2508
  %4535 = vmatprep.subr.bf16.mxu0 %v2505
  %4536 = vmatpush1.bf16.msra.mxu0 %v2504
  %4537 = vmatprep.subr.bf16.mxu0 %v2501
  %4538 = vmatpush1.bf16.msra.mxu0 %v2500
  %4539 = vmatprep.subr.bf16.mxu0 %v2497
  %4540 = vmatpush1.bf16.msra.mxu0 %v2496
  %4541 = vmatprep.subr.bf16.mxu0 %v2493
  %4542 = vmatpush1.bf16.msra.mxu0 %v2492
  %4543 = vmatprep.subr.bf16.mxu0 %v2553
  %4544 = vmatpush2.bf16.msra.mxu0 %v2552
  %4545 = vmatprep.subr.bf16.mxu0 %v2549
  %4546 = vmatpush2.bf16.msra.mxu0 %v2548
  %4547 = vmatprep.subr.bf16.mxu0 %v2545
  %4548 = vmatpush2.bf16.msra.mxu0 %v2544
  %4549 = vmatprep.subr.bf16.mxu0 %v2541
  %4550 = vmatpush2.bf16.msra.mxu0 %v2540
  %4551 = vmatprep.subr.bf16.mxu0 %v2537
  %4552 = vmatpush2.bf16.msra.mxu0 %v2536
  %4553 = vmatprep.subr.bf16.mxu0 %v2533
  %4554 = vmatpush2.bf16.msra.mxu0 %v2532
  %4555 = vmatprep.subr.bf16.mxu0 %v2529
  %4556 = vmatpush2.bf16.msra.mxu0 %v2528
  %4557 = vmatprep.subr.bf16.mxu0 %v2525
  %4558 = vmatpush2.bf16.msra.mxu0 %v2524
  %4559 = vmatprep.mubr.bf16.mxu0 %v4426
  %4560 = vmatmul.mubr.bf16.gmra.mxu0 %v4412
  %v4561 = vpop.f32.mrf.mxu0
  %v4562 = vadd.f32 0.0, %v4561
  %v4563 = vpop.f32.mrf.mxu0
  %v4564 = vadd.f32 0.0, %v4563
  %v4565 = vpop.f32.mrf.mxu0
  %v4566 = vpop.f32.mrf.mxu0
  %4567 = vdwg.mxu0
  %4568 = vmatprep.subr.bf16.mxu0 %v2585
  %4569 = vmatpush1.bf16.msra.mxu0 %v2584
  %4570 = vmatprep.subr.bf16.mxu0 %v2581
  %4571 = vmatpush1.bf16.msra.mxu0 %v2580
  %4572 = vmatprep.subr.bf16.mxu0 %v2577
  %4573 = vmatpush1.bf16.msra.mxu0 %v2576
  %4574 = vmatprep.subr.bf16.mxu0 %v2573
  %4575 = vmatpush1.bf16.msra.mxu0 %v2572
  %4576 = vmatprep.subr.bf16.mxu0 %v2569
  %4577 = vmatpush1.bf16.msra.mxu0 %v2568
  %4578 = vmatprep.subr.bf16.mxu0 %v2565
  %4579 = vmatpush1.bf16.msra.mxu0 %v2564
  %4580 = vmatprep.subr.bf16.mxu0 %v2561
  %4581 = vmatpush1.bf16.msra.mxu0 %v2560
  %4582 = vmatprep.subr.bf16.mxu0 %v2557
  %4583 = vmatpush1.bf16.msra.mxu0 %v2556
  %4584 = vmatprep.subr.bf16.mxu0 %v2617
  %4585 = vmatpush2.bf16.msra.mxu0 %v2616
  %4586 = vmatprep.subr.bf16.mxu0 %v2613
  %4587 = vmatpush2.bf16.msra.mxu0 %v2612
  %4588 = vmatprep.subr.bf16.mxu0 %v2609
  %4589 = vmatpush2.bf16.msra.mxu0 %v2608
  %4590 = vmatprep.subr.bf16.mxu0 %v2605
  %4591 = vmatpush2.bf16.msra.mxu0 %v2604
  %4592 = vmatprep.subr.bf16.mxu0 %v2601
  %4593 = vmatpush2.bf16.msra.mxu0 %v2600
  %4594 = vmatprep.subr.bf16.mxu0 %v2597
  %4595 = vmatpush2.bf16.msra.mxu0 %v2596
  %4596 = vmatprep.subr.bf16.mxu0 %v2593
  %4597 = vmatpush2.bf16.msra.mxu0 %v2592
  %4598 = vmatprep.subr.bf16.mxu0 %v2589
  %4599 = vmatpush2.bf16.msra.mxu0 %v2588
  %4600 = vmatprep.mubr.bf16.mxu0 %v4436
  %4601 = vmatmul.mubr.bf16.gmra.mxu0 %v4434
  %v4602 = vpop.f32.mrf.mxu0
  %v4603 = vadd.f32 %v4562, %v4602
  %v4604 = vpop.f32.mrf.mxu0
  %v4605 = vadd.f32 %v4564, %v4604
  %v4606 = vpop.f32.mrf.mxu0
  %v4607 = vpop.f32.mrf.mxu0
  %4608 = vdwg.mxu0
  %4609 = vmatprep.subr.bf16.mxu0 %v2649
  %4610 = vmatpush1.bf16.msra.mxu0 %v2648
  %4611 = vmatprep.subr.bf16.mxu0 %v2645
  %4612 = vmatpush1.bf16.msra.mxu0 %v2644
  %4613 = vmatprep.subr.bf16.mxu0 %v2641
  %4614 = vmatpush1.bf16.msra.mxu0 %v2640
  %4615 = vmatprep.subr.bf16.mxu0 %v2637
  %4616 = vmatpush1.bf16.msra.mxu0 %v2636
  %4617 = vmatprep.subr.bf16.mxu0 %v2633
  %4618 = vmatpush1.bf16.msra.mxu0 %v2632
  %4619 = vmatprep.subr.bf16.mxu0 %v2629
  %4620 = vmatpush1.bf16.msra.mxu0 %v2628
  %4621 = vmatprep.subr.bf16.mxu0 %v2625
  %4622 = vmatpush1.bf16.msra.mxu0 %v2624
  %4623 = vmatprep.subr.bf16.mxu0 %v2621
  %4624 = vmatpush1.bf16.msra.mxu0 %v2620
  %4625 = vmatprep.subr.bf16.mxu0 %v2681
  %4626 = vmatpush2.bf16.msra.mxu0 %v2680
  %4627 = vmatprep.subr.bf16.mxu0 %v2677
  %4628 = vmatpush2.bf16.msra.mxu0 %v2676
  %4629 = vmatprep.subr.bf16.mxu0 %v2673
  %4630 = vmatpush2.bf16.msra.mxu0 %v2672
  %4631 = vmatprep.subr.bf16.mxu0 %v2669
  %4632 = vmatpush2.bf16.msra.mxu0 %v2668
  %4633 = vmatprep.subr.bf16.mxu0 %v2665
  %4634 = vmatpush2.bf16.msra.mxu0 %v2664
  %4635 = vmatprep.subr.bf16.mxu0 %v2661
  %4636 = vmatpush2.bf16.msra.mxu0 %v2660
  %4637 = vmatprep.subr.bf16.mxu0 %v2657
  %4638 = vmatpush2.bf16.msra.mxu0 %v2656
  %4639 = vmatprep.subr.bf16.mxu0 %v2653
  %4640 = vmatpush2.bf16.msra.mxu0 %v2652
  %4641 = vmatprep.mubr.bf16.mxu0 %v4433
  %4642 = vmatmul.mubr.bf16.gmra.mxu0 %v4419
  %v4643 = vpop.f32.mrf.mxu0
  %v4644 = vadd.f32 %v4603, %v4643
  %v4645 = vpop.f32.mrf.mxu0
  %v4646 = vadd.f32 %v4605, %v4645
  %v4647 = vpop.f32.mrf.mxu0
  %v4648 = vpop.f32.mrf.mxu0
  %4649 = vdwg.mxu0
  %4650 = vmatprep.subr.bf16.mxu0 %v2713
  %4651 = vmatpush1.bf16.msra.mxu0 %v2712
  %4652 = vmatprep.subr.bf16.mxu0 %v2709
  %4653 = vmatpush1.bf16.msra.mxu0 %v2708
  %4654 = vmatprep.subr.bf16.mxu0 %v2705
  %4655 = vmatpush1.bf16.msra.mxu0 %v2704
  %4656 = vmatprep.subr.bf16.mxu0 %v2701
  %4657 = vmatpush1.bf16.msra.mxu0 %v2700
  %4658 = vmatprep.subr.bf16.mxu0 %v2697
  %4659 = vmatpush1.bf16.msra.mxu0 %v2696
  %4660 = vmatprep.subr.bf16.mxu0 %v2693
  %4661 = vmatpush1.bf16.msra.mxu0 %v2692
  %4662 = vmatprep.subr.bf16.mxu0 %v2689
  %4663 = vmatpush1.bf16.msra.mxu0 %v2688
  %4664 = vmatprep.subr.bf16.mxu0 %v2685
  %4665 = vmatpush1.bf16.msra.mxu0 %v2684
  %4666 = vmatprep.subr.bf16.mxu0 %v2745
  %4667 = vmatpush2.bf16.msra.mxu0 %v2744
  %4668 = vmatprep.subr.bf16.mxu0 %v2741
  %4669 = vmatpush2.bf16.msra.mxu0 %v2740
  %4670 = vmatprep.subr.bf16.mxu0 %v2737
  %4671 = vmatpush2.bf16.msra.mxu0 %v2736
  %4672 = vmatprep.subr.bf16.mxu0 %v2733
  %4673 = vmatpush2.bf16.msra.mxu0 %v2732
  %4674 = vmatprep.subr.bf16.mxu0 %v2729
  %4675 = vmatpush2.bf16.msra.mxu0 %v2728
  %4676 = vmatprep.subr.bf16.mxu0 %v2725
  %4677 = vmatpush2.bf16.msra.mxu0 %v2724
  %4678 = vmatprep.subr.bf16.mxu0 %v2721
  %4679 = vmatpush2.bf16.msra.mxu0 %v2720
  %4680 = vmatprep.subr.bf16.mxu0 %v2717
  %4681 = vmatpush2.bf16.msra.mxu0 %v2716
  %4682 = vmatprep.mubr.bf16.mxu0 %v4437
  %4683 = vmatmul.mubr.bf16.gmra.mxu0 %v4435
  %v4684 = vpop.f32.mrf.mxu0
  %v4685 = vadd.f32 %v4644, %v4684
  %v4686 = vpop.f32.mrf.mxu0
  %v4687 = vadd.f32 %v4646, %v4686
  %v4688 = vpop.f32.mrf.mxu0
  %v4689 = vpop.f32.mrf.mxu0
  %4690 = vdwg.mxu0
  %4691 = vmatprep.subr.bf16.mxu0 %v2777
  %4692 = vmatpush1.bf16.msra.mxu0 %v2776
  %4693 = vmatprep.subr.bf16.mxu0 %v2773
  %4694 = vmatpush1.bf16.msra.mxu0 %v2772
  %4695 = vmatprep.subr.bf16.mxu0 %v2769
  %4696 = vmatpush1.bf16.msra.mxu0 %v2768
  %4697 = vmatprep.subr.bf16.mxu0 %v2765
  %4698 = vmatpush1.bf16.msra.mxu0 %v2764
  %4699 = vmatprep.subr.bf16.mxu0 %v2761
  %4700 = vmatpush1.bf16.msra.mxu0 %v2760
  %4701 = vmatprep.subr.bf16.mxu0 %v2757
  %4702 = vmatpush1.bf16.msra.mxu0 %v2756
  %4703 = vmatprep.subr.bf16.mxu0 %v2753
  %4704 = vmatpush1.bf16.msra.mxu0 %v2752
  %4705 = vmatprep.subr.bf16.mxu0 %v2749
  %4706 = vmatpush1.bf16.msra.mxu0 %v2748
  %4707 = vmatprep.subr.bf16.mxu0 %v2809
  %4708 = vmatpush2.bf16.msra.mxu0 %v2808
  %4709 = vmatprep.subr.bf16.mxu0 %v2805
  %4710 = vmatpush2.bf16.msra.mxu0 %v2804
  %4711 = vmatprep.subr.bf16.mxu0 %v2801
  %4712 = vmatpush2.bf16.msra.mxu0 %v2800
  %4713 = vmatprep.subr.bf16.mxu0 %v2797
  %4714 = vmatpush2.bf16.msra.mxu0 %v2796
  %4715 = vmatprep.subr.bf16.mxu0 %v2793
  %4716 = vmatpush2.bf16.msra.mxu0 %v2792
  %4717 = vmatprep.subr.bf16.mxu0 %v2789
  %4718 = vmatpush2.bf16.msra.mxu0 %v2788
  %4719 = vmatprep.subr.bf16.mxu0 %v2785
  %4720 = vmatpush2.bf16.msra.mxu0 %v2784
  %4721 = vmatprep.subr.bf16.mxu0 %v2781
  %4722 = vmatpush2.bf16.msra.mxu0 %v2780
  %4723 = vmatprep.mubr.bf16.mxu0 %v4475
  %4724 = vmatmul.mubr.bf16.gmra.mxu0 %v4461
  %v4725 = vpop.f32.mrf.mxu0
  %v4726 = vadd.f32 %v4685, %v4725
  %v4727 = vpop.f32.mrf.mxu0
  %v4728 = vadd.f32 %v4687, %v4727
  %v4729 = vpop.f32.mrf.mxu0
  %v4730 = vpop.f32.mrf.mxu0
  %4731 = vdwg.mxu0
  %4732 = vmatprep.subr.bf16.mxu0 %v2841
  %4733 = vmatpush1.bf16.msra.mxu0 %v2840
  %4734 = vmatprep.subr.bf16.mxu0 %v2837
  %4735 = vmatpush1.bf16.msra.mxu0 %v2836
  %4736 = vmatprep.subr.bf16.mxu0 %v2833
  %4737 = vmatpush1.bf16.msra.mxu0 %v2832
  %4738 = vmatprep.subr.bf16.mxu0 %v2829
  %4739 = vmatpush1.bf16.msra.mxu0 %v2828
  %4740 = vmatprep.subr.bf16.mxu0 %v2825
  %4741 = vmatpush1.bf16.msra.mxu0 %v2824
  %4742 = vmatprep.subr.bf16.mxu0 %v2821
  %4743 = vmatpush1.bf16.msra.mxu0 %v2820
  %4744 = vmatprep.subr.bf16.mxu0 %v2817
  %4745 = vmatpush1.bf16.msra.mxu0 %v2816
  %4746 = vmatprep.subr.bf16.mxu0 %v2813
  %4747 = vmatpush1.bf16.msra.mxu0 %v2812
  %4748 = vmatprep.subr.bf16.mxu0 %v2873
  %4749 = vmatpush2.bf16.msra.mxu0 %v2872
  %4750 = vmatprep.subr.bf16.mxu0 %v2869
  %4751 = vmatpush2.bf16.msra.mxu0 %v2868
  %4752 = vmatprep.subr.bf16.mxu0 %v2865
  %4753 = vmatpush2.bf16.msra.mxu0 %v2864
  %4754 = vmatprep.subr.bf16.mxu0 %v2861
  %4755 = vmatpush2.bf16.msra.mxu0 %v2860
  %4756 = vmatprep.subr.bf16.mxu0 %v2857
  %4757 = vmatpush2.bf16.msra.mxu0 %v2856
  %4758 = vmatprep.subr.bf16.mxu0 %v2853
  %4759 = vmatpush2.bf16.msra.mxu0 %v2852
  %4760 = vmatprep.subr.bf16.mxu0 %v2849
  %4761 = vmatpush2.bf16.msra.mxu0 %v2848
  %4762 = vmatprep.subr.bf16.mxu0 %v2845
  %4763 = vmatpush2.bf16.msra.mxu0 %v2844
  %4764 = vmatprep.mubr.bf16.mxu0 %v4485
  %4765 = vmatmul.mubr.bf16.gmra.mxu0 %v4483
  %v4766 = vpop.f32.mrf.mxu0
  %v4767 = vadd.f32 %v4726, %v4766
  %v4768 = vpop.f32.mrf.mxu0
  %v4769 = vadd.f32 %v4728, %v4768
  %v4770 = vpop.f32.mrf.mxu0
  %v4771 = vpop.f32.mrf.mxu0
  %4772 = vdwg.mxu0
  %4773 = vmatprep.subr.bf16.mxu0 %v2905
  %4774 = vmatpush1.bf16.msra.mxu0 %v2904
  %4775 = vmatprep.subr.bf16.mxu0 %v2901
  %4776 = vmatpush1.bf16.msra.mxu0 %v2900
  %4777 = vmatprep.subr.bf16.mxu0 %v2897
  %4778 = vmatpush1.bf16.msra.mxu0 %v2896
  %4779 = vmatprep.subr.bf16.mxu0 %v2893
  %4780 = vmatpush1.bf16.msra.mxu0 %v2892
  %4781 = vmatprep.subr.bf16.mxu0 %v2889
  %4782 = vmatpush1.bf16.msra.mxu0 %v2888
  %4783 = vmatprep.subr.bf16.mxu0 %v2885
  %4784 = vmatpush1.bf16.msra.mxu0 %v2884
  %4785 = vmatprep.subr.bf16.mxu0 %v2881
  %4786 = vmatpush1.bf16.msra.mxu0 %v2880
  %4787 = vmatprep.subr.bf16.mxu0 %v2877
  %4788 = vmatpush1.bf16.msra.mxu0 %v2876
  %4789 = vmatprep.subr.bf16.mxu0 %v2937
  %4790 = vmatpush2.bf16.msra.mxu0 %v2936
  %4791 = vmatprep.subr.bf16.mxu0 %v2933
  %4792 = vmatpush2.bf16.msra.mxu0 %v2932
  %4793 = vmatprep.subr.bf16.mxu0 %v2929
  %4794 = vmatpush2.bf16.msra.mxu0 %v2928
  %4795 = vmatprep.subr.bf16.mxu0 %v2925
  %4796 = vmatpush2.bf16.msra.mxu0 %v2924
  %4797 = vmatprep.subr.bf16.mxu0 %v2921
  %4798 = vmatpush2.bf16.msra.mxu0 %v2920
  %4799 = vmatprep.subr.bf16.mxu0 %v2917
  %4800 = vmatpush2.bf16.msra.mxu0 %v2916
  %4801 = vmatprep.subr.bf16.mxu0 %v2913
  %4802 = vmatpush2.bf16.msra.mxu0 %v2912
  %4803 = vmatprep.subr.bf16.mxu0 %v2909
  %4804 = vmatpush2.bf16.msra.mxu0 %v2908
  %4805 = vmatprep.mubr.bf16.mxu0 %v4482
  %4806 = vmatmul.mubr.bf16.gmra.mxu0 %v4468
  %v4807 = vpop.f32.mrf.mxu0
  %v4808 = vadd.f32 %v4767, %v4807
  %v4809 = vpop.f32.mrf.mxu0
  %v4810 = vadd.f32 %v4769, %v4809
  %v4811 = vpop.f32.mrf.mxu0
  %v4812 = vpop.f32.mrf.mxu0
  %4813 = vdwg.mxu0
  %4814 = vmatprep.subr.bf16.mxu0 %v2969
  %4815 = vmatpush1.bf16.msra.mxu0 %v2968
  %4816 = vmatprep.subr.bf16.mxu0 %v2965
  %4817 = vmatpush1.bf16.msra.mxu0 %v2964
  %4818 = vmatprep.subr.bf16.mxu0 %v2961
  %4819 = vmatpush1.bf16.msra.mxu0 %v2960
  %4820 = vmatprep.subr.bf16.mxu0 %v2957
  %4821 = vmatpush1.bf16.msra.mxu0 %v2956
  %4822 = vmatprep.subr.bf16.mxu0 %v2953
  %4823 = vmatpush1.bf16.msra.mxu0 %v2952
  %4824 = vmatprep.subr.bf16.mxu0 %v2949
  %4825 = vmatpush1.bf16.msra.mxu0 %v2948
  %4826 = vmatprep.subr.bf16.mxu0 %v2945
  %4827 = vmatpush1.bf16.msra.mxu0 %v2944
  %4828 = vmatprep.subr.bf16.mxu0 %v2941
  %4829 = vmatpush1.bf16.msra.mxu0 %v2940
  %4830 = vmatprep.subr.bf16.mxu0 %v3001
  %4831 = vmatpush2.bf16.msra.mxu0 %v3000
  %4832 = vmatprep.subr.bf16.mxu0 %v2997
  %4833 = vmatpush2.bf16.msra.mxu0 %v2996
  %4834 = vmatprep.subr.bf16.mxu0 %v2993
  %4835 = vmatpush2.bf16.msra.mxu0 %v2992
  %4836 = vmatprep.subr.bf16.mxu0 %v2989
  %4837 = vmatpush2.bf16.msra.mxu0 %v2988
  %4838 = vmatprep.subr.bf16.mxu0 %v2985
  %4839 = vmatpush2.bf16.msra.mxu0 %v2984
  %4840 = vmatprep.subr.bf16.mxu0 %v2981
  %4841 = vmatpush2.bf16.msra.mxu0 %v2980
  %4842 = vmatprep.subr.bf16.mxu0 %v2977
  %4843 = vmatpush2.bf16.msra.mxu0 %v2976
  %4844 = vmatprep.subr.bf16.mxu0 %v2973
  %4845 = vmatpush2.bf16.msra.mxu0 %v2972
  %4846 = vmatprep.mubr.bf16.mxu0 %v4486
  %4847 = vmatmul.mubr.bf16.gmra.mxu0 %v4484
  %v4848 = vpop.f32.mrf.mxu0
  %v4849 = vadd.f32 %v4808, %v4848
  %v4850 = vpop.f32.mrf.mxu0
  %v4851 = vadd.f32 %v4810, %v4850
  %v4852 = vpop.f32.mrf.mxu0
  %v4853 = vpop.f32.mrf.mxu0
  %4854 = vdwg.mxu0
  %4855 = vmatprep.subr.bf16.mxu0 %v3033
  %4856 = vmatpush1.bf16.msra.mxu0 %v3032
  %4857 = vmatprep.subr.bf16.mxu0 %v3029
  %4858 = vmatpush1.bf16.msra.mxu0 %v3028
  %4859 = vmatprep.subr.bf16.mxu0 %v3025
  %4860 = vmatpush1.bf16.msra.mxu0 %v3024
  %4861 = vmatprep.subr.bf16.mxu0 %v3021
  %4862 = vmatpush1.bf16.msra.mxu0 %v3020
  %4863 = vmatprep.subr.bf16.mxu0 %v3017
  %4864 = vmatpush1.bf16.msra.mxu0 %v3016
  %4865 = vmatprep.subr.bf16.mxu0 %v3013
  %4866 = vmatpush1.bf16.msra.mxu0 %v3012
  %4867 = vmatprep.subr.bf16.mxu0 %v3009
  %4868 = vmatpush1.bf16.msra.mxu0 %v3008
  %4869 = vmatprep.subr.bf16.mxu0 %v3005
  %4870 = vmatpush1.bf16.msra.mxu0 %v3004
  %4871 = vmatprep.subr.bf16.mxu0 %v3065
  %4872 = vmatpush2.bf16.msra.mxu0 %v3064
  %4873 = vmatprep.subr.bf16.mxu0 %v3061
  %4874 = vmatpush2.bf16.msra.mxu0 %v3060
  %4875 = vmatprep.subr.bf16.mxu0 %v3057
  %4876 = vmatpush2.bf16.msra.mxu0 %v3056
  %4877 = vmatprep.subr.bf16.mxu0 %v3053
  %4878 = vmatpush2.bf16.msra.mxu0 %v3052
  %4879 = vmatprep.subr.bf16.mxu0 %v3049
  %4880 = vmatpush2.bf16.msra.mxu0 %v3048
  %4881 = vmatprep.subr.bf16.mxu0 %v3045
  %4882 = vmatpush2.bf16.msra.mxu0 %v3044
  %4883 = vmatprep.subr.bf16.mxu0 %v3041
  %4884 = vmatpush2.bf16.msra.mxu0 %v3040
  %4885 = vmatprep.subr.bf16.mxu0 %v3037
  %4886 = vmatpush2.bf16.msra.mxu0 %v3036
  %4887 = vmatprep.mubr.bf16.mxu0 %v4508
  %4888 = vmatmul.mubr.bf16.gmra.mxu0 %v4501
  %v4889 = vpop.f32.mrf.mxu0
  %v4890 = vadd.f32 %v4849, %v4889
  %v4891 = vpop.f32.mrf.mxu0
  %v4892 = vadd.f32 %v4851, %v4891
  %v4893 = vpop.f32.mrf.mxu0
  %v4894 = vpop.f32.mrf.mxu0
  %4895 = vdwg.mxu0
  %4896 = vmatprep.subr.bf16.mxu0 %v2523
  %4897 = vmatpush1.bf16.msra.mxu0 %v2522
  %4898 = vmatprep.subr.bf16.mxu0 %v2519
  %4899 = vmatpush1.bf16.msra.mxu0 %v2518
  %4900 = vmatprep.subr.bf16.mxu0 %v2515
  %4901 = vmatpush1.bf16.msra.mxu0 %v2514
  %4902 = vmatprep.subr.bf16.mxu0 %v2511
  %4903 = vmatpush1.bf16.msra.mxu0 %v2510
  %4904 = vmatprep.subr.bf16.mxu0 %v2507
  %4905 = vmatpush1.bf16.msra.mxu0 %v2506
  %4906 = vmatprep.subr.bf16.mxu0 %v2503
  %4907 = vmatpush1.bf16.msra.mxu0 %v2502
  %4908 = vmatprep.subr.bf16.mxu0 %v2499
  %4909 = vmatpush1.bf16.msra.mxu0 %v2498
  %4910 = vmatprep.subr.bf16.mxu0 %v2495
  %4911 = vmatpush1.bf16.msra.mxu0 %v2494
  %4912 = vmatprep.subr.bf16.mxu0 %v2555
  %4913 = vmatpush2.bf16.msra.mxu0 %v2554
  %4914 = vmatprep.subr.bf16.mxu0 %v2551
  %4915 = vmatpush2.bf16.msra.mxu0 %v2550
  %4916 = vmatprep.subr.bf16.mxu0 %v2547
  %4917 = vmatpush2.bf16.msra.mxu0 %v2546
  %4918 = vmatprep.subr.bf16.mxu0 %v2543
  %4919 = vmatpush2.bf16.msra.mxu0 %v2542
  %4920 = vmatprep.subr.bf16.mxu0 %v2539
  %4921 = vmatpush2.bf16.msra.mxu0 %v2538
  %4922 = vmatprep.subr.bf16.mxu0 %v2535
  %4923 = vmatpush2.bf16.msra.mxu0 %v2534
  %4924 = vmatprep.subr.bf16.mxu0 %v2531
  %4925 = vmatpush2.bf16.msra.mxu0 %v2530
  %4926 = vmatprep.subr.bf16.mxu0 %v2527
  %4927 = vmatpush2.bf16.msra.mxu0 %v2526
  %4928 = vmatprep.mubr.bf16.mxu0 %v4426
  %4929 = vmatmul.mubr.bf16.gmra.mxu0 %v4412
  %v4930 = vpop.f32.mrf.mxu0
  %v4931 = vadd.f32 0.0, %v4930
  %v4932 = vpop.f32.mrf.mxu0
  %v4933 = vadd.f32 0.0, %v4932
  %v4934 = vpop.f32.mrf.mxu0
  %v4935 = vpop.f32.mrf.mxu0
  %4936 = vdwg.mxu0
  %4937 = vmatprep.subr.bf16.mxu0 %v2587
  %4938 = vmatpush1.bf16.msra.mxu0 %v2586
  %4939 = vmatprep.subr.bf16.mxu0 %v2583
  %4940 = vmatpush1.bf16.msra.mxu0 %v2582
  %4941 = vmatprep.subr.bf16.mxu0 %v2579
  %4942 = vmatpush1.bf16.msra.mxu0 %v2578
  %4943 = vmatprep.subr.bf16.mxu0 %v2575
  %4944 = vmatpush1.bf16.msra.mxu0 %v2574
  %4945 = vmatprep.subr.bf16.mxu0 %v2571
  %4946 = vmatpush1.bf16.msra.mxu0 %v2570
  %4947 = vmatprep.subr.bf16.mxu0 %v2567
  %4948 = vmatpush1.bf16.msra.mxu0 %v2566
  %4949 = vmatprep.subr.bf16.mxu0 %v2563
  %4950 = vmatpush1.bf16.msra.mxu0 %v2562
  %4951 = vmatprep.subr.bf16.mxu0 %v2559
  %4952 = vmatpush1.bf16.msra.mxu0 %v2558
  %4953 = vmatprep.subr.bf16.mxu0 %v2619
  %4954 = vmatpush2.bf16.msra.mxu0 %v2618
  %4955 = vmatprep.subr.bf16.mxu0 %v2615
  %4956 = vmatpush2.bf16.msra.mxu0 %v2614
  %4957 = vmatprep.subr.bf16.mxu0 %v2611
  %4958 = vmatpush2.bf16.msra.mxu0 %v2610
  %4959 = vmatprep.subr.bf16.mxu0 %v2607
  %4960 = vmatpush2.bf16.msra.mxu0 %v2606
  %4961 = vmatprep.subr.bf16.mxu0 %v2603
  %4962 = vmatpush2.bf16.msra.mxu0 %v2602
  %4963 = vmatprep.subr.bf16.mxu0 %v2599
  %4964 = vmatpush2.bf16.msra.mxu0 %v2598
  %4965 = vmatprep.subr.bf16.mxu0 %v2595
  %4966 = vmatpush2.bf16.msra.mxu0 %v2594
  %4967 = vmatprep.subr.bf16.mxu0 %v2591
  %4968 = vmatpush2.bf16.msra.mxu0 %v2590
  %4969 = vmatprep.mubr.bf16.mxu0 %v4436
  %4970 = vmatmul.mubr.bf16.gmra.mxu0 %v4434
  %v4971 = vpop.f32.mrf.mxu0
  %v4972 = vadd.f32 %v4931, %v4971
  %v4973 = vpop.f32.mrf.mxu0
  %v4974 = vadd.f32 %v4933, %v4973
  %v4975 = vpop.f32.mrf.mxu0
  %v4976 = vpop.f32.mrf.mxu0
  %4977 = vdwg.mxu0
  %4978 = vmatprep.subr.bf16.mxu0 %v2651
  %4979 = vmatpush1.bf16.msra.mxu0 %v2650
  %4980 = vmatprep.subr.bf16.mxu0 %v2647
  %4981 = vmatpush1.bf16.msra.mxu0 %v2646
  %4982 = vmatprep.subr.bf16.mxu0 %v2643
  %4983 = vmatpush1.bf16.msra.mxu0 %v2642
  %4984 = vmatprep.subr.bf16.mxu0 %v2639
  %4985 = vmatpush1.bf16.msra.mxu0 %v2638
  %4986 = vmatprep.subr.bf16.mxu0 %v2635
  %4987 = vmatpush1.bf16.msra.mxu0 %v2634
  %4988 = vmatprep.subr.bf16.mxu0 %v2631
  %4989 = vmatpush1.bf16.msra.mxu0 %v2630
  %4990 = vmatprep.subr.bf16.mxu0 %v2627
  %4991 = vmatpush1.bf16.msra.mxu0 %v2626
  %4992 = vmatprep.subr.bf16.mxu0 %v2623
  %4993 = vmatpush1.bf16.msra.mxu0 %v2622
  %4994 = vmatprep.subr.bf16.mxu0 %v2683
  %4995 = vmatpush2.bf16.msra.mxu0 %v2682
  %4996 = vmatprep.subr.bf16.mxu0 %v2679
  %4997 = vmatpush2.bf16.msra.mxu0 %v2678
  %4998 = vmatprep.subr.bf16.mxu0 %v2675
  %4999 = vmatpush2.bf16.msra.mxu0 %v2674
  %5000 = vmatprep.subr.bf16.mxu0 %v2671
  %5001 = vmatpush2.bf16.msra.mxu0 %v2670
  %5002 = vmatprep.subr.bf16.mxu0 %v2667
  %5003 = vmatpush2.bf16.msra.mxu0 %v2666
  %5004 = vmatprep.subr.bf16.mxu0 %v2663
  %5005 = vmatpush2.bf16.msra.mxu0 %v2662
  %5006 = vmatprep.subr.bf16.mxu0 %v2659
  %5007 = vmatpush2.bf16.msra.mxu0 %v2658
  %5008 = vmatprep.subr.bf16.mxu0 %v2655
  %5009 = vmatpush2.bf16.msra.mxu0 %v2654
  %5010 = vmatprep.mubr.bf16.mxu0 %v4433
  %5011 = vmatmul.mubr.bf16.gmra.mxu0 %v4419
  %v5012 = vpop.f32.mrf.mxu0
  %v5013 = vadd.f32 %v4972, %v5012
  %v5014 = vpop.f32.mrf.mxu0
  %v5015 = vadd.f32 %v4974, %v5014
  %v5016 = vpop.f32.mrf.mxu0
  %v5017 = vpop.f32.mrf.mxu0
  %5018 = vdwg.mxu0
  %5019 = vmatprep.subr.bf16.mxu0 %v2715
  %5020 = vmatpush1.bf16.msra.mxu0 %v2714
  %5021 = vmatprep.subr.bf16.mxu0 %v2711
  %5022 = vmatpush1.bf16.msra.mxu0 %v2710
  %5023 = vmatprep.subr.bf16.mxu0 %v2707
  %5024 = vmatpush1.bf16.msra.mxu0 %v2706
  %5025 = vmatprep.subr.bf16.mxu0 %v2703
  %5026 = vmatpush1.bf16.msra.mxu0 %v2702
  %5027 = vmatprep.subr.bf16.mxu0 %v2699
  %5028 = vmatpush1.bf16.msra.mxu0 %v2698
  %5029 = vmatprep.subr.bf16.mxu0 %v2695
  %5030 = vmatpush1.bf16.msra.mxu0 %v2694
  %5031 = vmatprep.subr.bf16.mxu0 %v2691
  %5032 = vmatpush1.bf16.msra.mxu0 %v2690
  %5033 = vmatprep.subr.bf16.mxu0 %v2687
  %5034 = vmatpush1.bf16.msra.mxu0 %v2686
  %5035 = vmatprep.subr.bf16.mxu0 %v2747
  %5036 = vmatpush2.bf16.msra.mxu0 %v2746
  %5037 = vmatprep.subr.bf16.mxu0 %v2743
  %5038 = vmatpush2.bf16.msra.mxu0 %v2742
  %5039 = vmatprep.subr.bf16.mxu0 %v2739
  %5040 = vmatpush2.bf16.msra.mxu0 %v2738
  %5041 = vmatprep.subr.bf16.mxu0 %v2735
  %5042 = vmatpush2.bf16.msra.mxu0 %v2734
  %5043 = vmatprep.subr.bf16.mxu0 %v2731
  %5044 = vmatpush2.bf16.msra.mxu0 %v2730
  %5045 = vmatprep.subr.bf16.mxu0 %v2727
  %5046 = vmatpush2.bf16.msra.mxu0 %v2726
  %5047 = vmatprep.subr.bf16.mxu0 %v2723
  %5048 = vmatpush2.bf16.msra.mxu0 %v2722
  %5049 = vmatprep.subr.bf16.mxu0 %v2719
  %5050 = vmatpush2.bf16.msra.mxu0 %v2718
  %5051 = vmatprep.mubr.bf16.mxu0 %v4437
  %5052 = vmatmul.mubr.bf16.gmra.mxu0 %v4435
  %v5053 = vpop.f32.mrf.mxu0
  %v5054 = vadd.f32 %v5013, %v5053
  %v5055 = vpop.f32.mrf.mxu0
  %v5056 = vadd.f32 %v5015, %v5055
  %v5057 = vpop.f32.mrf.mxu0
  %v5058 = vpop.f32.mrf.mxu0
  %5059 = vdwg.mxu0
  %5060 = vmatprep.subr.bf16.mxu0 %v2779
  %5061 = vmatpush1.bf16.msra.mxu0 %v2778
  %5062 = vmatprep.subr.bf16.mxu0 %v2775
  %5063 = vmatpush1.bf16.msra.mxu0 %v2774
  %5064 = vmatprep.subr.bf16.mxu0 %v2771
  %5065 = vmatpush1.bf16.msra.mxu0 %v2770
  %5066 = vmatprep.subr.bf16.mxu0 %v2767
  %5067 = vmatpush1.bf16.msra.mxu0 %v2766
  %5068 = vmatprep.subr.bf16.mxu0 %v2763
  %5069 = vmatpush1.bf16.msra.mxu0 %v2762
  %5070 = vmatprep.subr.bf16.mxu0 %v2759
  %5071 = vmatpush1.bf16.msra.mxu0 %v2758
  %5072 = vmatprep.subr.bf16.mxu0 %v2755
  %5073 = vmatpush1.bf16.msra.mxu0 %v2754
  %5074 = vmatprep.subr.bf16.mxu0 %v2751
  %5075 = vmatpush1.bf16.msra.mxu0 %v2750
  %5076 = vmatprep.subr.bf16.mxu0 %v2811
  %5077 = vmatpush2.bf16.msra.mxu0 %v2810
  %5078 = vmatprep.subr.bf16.mxu0 %v2807
  %5079 = vmatpush2.bf16.msra.mxu0 %v2806
  %5080 = vmatprep.subr.bf16.mxu0 %v2803
  %5081 = vmatpush2.bf16.msra.mxu0 %v2802
  %5082 = vmatprep.subr.bf16.mxu0 %v2799
  %5083 = vmatpush2.bf16.msra.mxu0 %v2798
  %5084 = vmatprep.subr.bf16.mxu0 %v2795
  %5085 = vmatpush2.bf16.msra.mxu0 %v2794
  %5086 = vmatprep.subr.bf16.mxu0 %v2791
  %5087 = vmatpush2.bf16.msra.mxu0 %v2790
  %5088 = vmatprep.subr.bf16.mxu0 %v2787
  %5089 = vmatpush2.bf16.msra.mxu0 %v2786
  %5090 = vmatprep.subr.bf16.mxu0 %v2783
  %5091 = vmatpush2.bf16.msra.mxu0 %v2782
  %5092 = vmatprep.mubr.bf16.mxu0 %v4475
  %5093 = vmatmul.mubr.bf16.gmra.mxu0 %v4461
  %v5094 = vpop.f32.mrf.mxu0
  %v5095 = vadd.f32 %v5054, %v5094
  %v5096 = vpop.f32.mrf.mxu0
  %v5097 = vadd.f32 %v5056, %v5096
  %v5098 = vpop.f32.mrf.mxu0
  %v5099 = vpop.f32.mrf.mxu0
  %5100 = vdwg.mxu0
  %5101 = vmatprep.subr.bf16.mxu0 %v2843
  %5102 = vmatpush1.bf16.msra.mxu0 %v2842
  %5103 = vmatprep.subr.bf16.mxu0 %v2839
  %5104 = vmatpush1.bf16.msra.mxu0 %v2838
  %5105 = vmatprep.subr.bf16.mxu0 %v2835
  %5106 = vmatpush1.bf16.msra.mxu0 %v2834
  %5107 = vmatprep.subr.bf16.mxu0 %v2831
  %5108 = vmatpush1.bf16.msra.mxu0 %v2830
  %5109 = vmatprep.subr.bf16.mxu0 %v2827
  %5110 = vmatpush1.bf16.msra.mxu0 %v2826
  %5111 = vmatprep.subr.bf16.mxu0 %v2823
  %5112 = vmatpush1.bf16.msra.mxu0 %v2822
  %5113 = vmatprep.subr.bf16.mxu0 %v2819
  %5114 = vmatpush1.bf16.msra.mxu0 %v2818
  %5115 = vmatprep.subr.bf16.mxu0 %v2815
  %5116 = vmatpush1.bf16.msra.mxu0 %v2814
  %5117 = vmatprep.subr.bf16.mxu0 %v2875
  %5118 = vmatpush2.bf16.msra.mxu0 %v2874
  %5119 = vmatprep.subr.bf16.mxu0 %v2871
  %5120 = vmatpush2.bf16.msra.mxu0 %v2870
  %5121 = vmatprep.subr.bf16.mxu0 %v2867
  %5122 = vmatpush2.bf16.msra.mxu0 %v2866
  %5123 = vmatprep.subr.bf16.mxu0 %v2863
  %5124 = vmatpush2.bf16.msra.mxu0 %v2862
  %5125 = vmatprep.subr.bf16.mxu0 %v2859
  %5126 = vmatpush2.bf16.msra.mxu0 %v2858
  %5127 = vmatprep.subr.bf16.mxu0 %v2855
  %5128 = vmatpush2.bf16.msra.mxu0 %v2854
  %5129 = vmatprep.subr.bf16.mxu0 %v2851
  %5130 = vmatpush2.bf16.msra.mxu0 %v2850
  %5131 = vmatprep.subr.bf16.mxu0 %v2847
  %5132 = vmatpush2.bf16.msra.mxu0 %v2846
  %5133 = vmatprep.mubr.bf16.mxu0 %v4485
  %5134 = vmatmul.mubr.bf16.gmra.mxu0 %v4483
  %v5135 = vpop.f32.mrf.mxu0
  %v5136 = vadd.f32 %v5095, %v5135
  %v5137 = vpop.f32.mrf.mxu0
  %v5138 = vadd.f32 %v5097, %v5137
  %v5139 = vpop.f32.mrf.mxu0
  %v5140 = vpop.f32.mrf.mxu0
  %5141 = vdwg.mxu0
  %5142 = vmatprep.subr.bf16.mxu0 %v2907
  %5143 = vmatpush1.bf16.msra.mxu0 %v2906
  %5144 = vmatprep.subr.bf16.mxu0 %v2903
  %5145 = vmatpush1.bf16.msra.mxu0 %v2902
  %5146 = vmatprep.subr.bf16.mxu0 %v2899
  %5147 = vmatpush1.bf16.msra.mxu0 %v2898
  %5148 = vmatprep.subr.bf16.mxu0 %v2895
  %5149 = vmatpush1.bf16.msra.mxu0 %v2894
  %5150 = vmatprep.subr.bf16.mxu0 %v2891
  %5151 = vmatpush1.bf16.msra.mxu0 %v2890
  %5152 = vmatprep.subr.bf16.mxu0 %v2887
  %5153 = vmatpush1.bf16.msra.mxu0 %v2886
  %5154 = vmatprep.subr.bf16.mxu0 %v2883
  %5155 = vmatpush1.bf16.msra.mxu0 %v2882
  %5156 = vmatprep.subr.bf16.mxu0 %v2879
  %5157 = vmatpush1.bf16.msra.mxu0 %v2878
  %5158 = vmatprep.subr.bf16.mxu0 %v2939
  %5159 = vmatpush2.bf16.msra.mxu0 %v2938
  %5160 = vmatprep.subr.bf16.mxu0 %v2935
  %5161 = vmatpush2.bf16.msra.mxu0 %v2934
  %5162 = vmatprep.subr.bf16.mxu0 %v2931
  %5163 = vmatpush2.bf16.msra.mxu0 %v2930
  %5164 = vmatprep.subr.bf16.mxu0 %v2927
  %5165 = vmatpush2.bf16.msra.mxu0 %v2926
  %5166 = vmatprep.subr.bf16.mxu0 %v2923
  %5167 = vmatpush2.bf16.msra.mxu0 %v2922
  %5168 = vmatprep.subr.bf16.mxu0 %v2919
  %5169 = vmatpush2.bf16.msra.mxu0 %v2918
  %5170 = vmatprep.subr.bf16.mxu0 %v2915
  %5171 = vmatpush2.bf16.msra.mxu0 %v2914
  %5172 = vmatprep.subr.bf16.mxu0 %v2911
  %5173 = vmatpush2.bf16.msra.mxu0 %v2910
  %5174 = vmatprep.mubr.bf16.mxu0 %v4482
  %5175 = vmatmul.mubr.bf16.gmra.mxu0 %v4468
  %v5176 = vpop.f32.mrf.mxu0
  %v5177 = vadd.f32 %v5136, %v5176
  %v5178 = vpop.f32.mrf.mxu0
  %v5179 = vadd.f32 %v5138, %v5178
  %v5180 = vpop.f32.mrf.mxu0
  %v5181 = vpop.f32.mrf.mxu0
  %5182 = vdwg.mxu0
  %5183 = vmatprep.subr.bf16.mxu0 %v2971
  %5184 = vmatpush1.bf16.msra.mxu0 %v2970
  %5185 = vmatprep.subr.bf16.mxu0 %v2967
  %5186 = vmatpush1.bf16.msra.mxu0 %v2966
  %5187 = vmatprep.subr.bf16.mxu0 %v2963
  %5188 = vmatpush1.bf16.msra.mxu0 %v2962
  %5189 = vmatprep.subr.bf16.mxu0 %v2959
  %5190 = vmatpush1.bf16.msra.mxu0 %v2958
  %5191 = vmatprep.subr.bf16.mxu0 %v2955
  %5192 = vmatpush1.bf16.msra.mxu0 %v2954
  %5193 = vmatprep.subr.bf16.mxu0 %v2951
  %5194 = vmatpush1.bf16.msra.mxu0 %v2950
  %5195 = vmatprep.subr.bf16.mxu0 %v2947
  %5196 = vmatpush1.bf16.msra.mxu0 %v2946
  %5197 = vmatprep.subr.bf16.mxu0 %v2943
  %5198 = vmatpush1.bf16.msra.mxu0 %v2942
  %5199 = vmatprep.subr.bf16.mxu0 %v3003
  %5200 = vmatpush2.bf16.msra.mxu0 %v3002
  %5201 = vmatprep.subr.bf16.mxu0 %v2999
  %5202 = vmatpush2.bf16.msra.mxu0 %v2998
  %5203 = vmatprep.subr.bf16.mxu0 %v2995
  %5204 = vmatpush2.bf16.msra.mxu0 %v2994
  %5205 = vmatprep.subr.bf16.mxu0 %v2991
  %5206 = vmatpush2.bf16.msra.mxu0 %v2990
  %5207 = vmatprep.subr.bf16.mxu0 %v2987
  %5208 = vmatpush2.bf16.msra.mxu0 %v2986
  %5209 = vmatprep.subr.bf16.mxu0 %v2983
  %5210 = vmatpush2.bf16.msra.mxu0 %v2982
  %5211 = vmatprep.subr.bf16.mxu0 %v2979
  %5212 = vmatpush2.bf16.msra.mxu0 %v2978
  %5213 = vmatprep.subr.bf16.mxu0 %v2975
  %5214 = vmatpush2.bf16.msra.mxu0 %v2974
  %5215 = vmatprep.mubr.bf16.mxu0 %v4486
  %5216 = vmatmul.mubr.bf16.gmra.mxu0 %v4484
  %v5217 = vpop.f32.mrf.mxu0
  %v5218 = vadd.f32 %v5177, %v5217
  %v5219 = vpop.f32.mrf.mxu0
  %v5220 = vadd.f32 %v5179, %v5219
  %v5221 = vpop.f32.mrf.mxu0
  %v5222 = vpop.f32.mrf.mxu0
  %5223 = vdwg.mxu0
  %5224 = vmatprep.subr.bf16.mxu0 %v3035
  %5225 = vmatpush1.bf16.msra.mxu0 %v3034
  %5226 = vmatprep.subr.bf16.mxu0 %v3031
  %5227 = vmatpush1.bf16.msra.mxu0 %v3030
  %5228 = vmatprep.subr.bf16.mxu0 %v3027
  %5229 = vmatpush1.bf16.msra.mxu0 %v3026
  %5230 = vmatprep.subr.bf16.mxu0 %v3023
  %5231 = vmatpush1.bf16.msra.mxu0 %v3022
  %5232 = vmatprep.subr.bf16.mxu0 %v3019
  %5233 = vmatpush1.bf16.msra.mxu0 %v3018
  %5234 = vmatprep.subr.bf16.mxu0 %v3015
  %5235 = vmatpush1.bf16.msra.mxu0 %v3014
  %5236 = vmatprep.subr.bf16.mxu0 %v3011
  %5237 = vmatpush1.bf16.msra.mxu0 %v3010
  %5238 = vmatprep.subr.bf16.mxu0 %v3007
  %5239 = vmatpush1.bf16.msra.mxu0 %v3006
  %5240 = vmatprep.subr.bf16.mxu0 %v3067
  %5241 = vmatpush2.bf16.msra.mxu0 %v3066
  %5242 = vmatprep.subr.bf16.mxu0 %v3063
  %5243 = vmatpush2.bf16.msra.mxu0 %v3062
  %5244 = vmatprep.subr.bf16.mxu0 %v3059
  %5245 = vmatpush2.bf16.msra.mxu0 %v3058
  %5246 = vmatprep.subr.bf16.mxu0 %v3055
  %5247 = vmatpush2.bf16.msra.mxu0 %v3054
  %5248 = vmatprep.subr.bf16.mxu0 %v3051
  %5249 = vmatpush2.bf16.msra.mxu0 %v3050
  %5250 = vmatprep.subr.bf16.mxu0 %v3047
  %5251 = vmatpush2.bf16.msra.mxu0 %v3046
  %5252 = vmatprep.subr.bf16.mxu0 %v3043
  %5253 = vmatpush2.bf16.msra.mxu0 %v3042
  %5254 = vmatprep.subr.bf16.mxu0 %v3039
  %5255 = vmatpush2.bf16.msra.mxu0 %v3038
  %5256 = vmatprep.mubr.bf16.mxu0 %v4508
  %5257 = vmatmul.mubr.bf16.gmra.mxu0 %v4501
  %v5258 = vpop.f32.mrf.mxu0
  %v5259 = vadd.f32 %v5218, %v5258
  %v5260 = vpop.f32.mrf.mxu0
  %v5261 = vadd.f32 %v5220, %v5260
  %v5262 = vpop.f32.mrf.mxu0
  %v5263 = vpop.f32.mrf.mxu0
  %5264 = vdwg.mxu0
  %s5265 = scalar_lea.vmem %s0, 36
  %v5266 = vld [vmem:[%s5265] sm:$0xff]
  %v5267 = vld [vmem:[%s5265 + $0x8] sm:$0xff]
  %v5268 = vld [vmem:[%s5265 + $0x10] sm:$0x3]
  %v5272 = vcombine.high %v5266, %v5266
  %v5274 = vunpack.c.l.s4 1966171168
  %v5275 = vunpack.c.0.s8 %v5274
  %v5276 = vlaneseq
  %v5277 = vshrl.u32 %v5276, 7
  %v5278 = vsub.s32 %v5275, %v5277
  %v5279 = vrot.slane %v5266, %v5278
  %v5281 = vunpack.c.l.s4 1966171168
  %v5282 = vunpack.c.0.s8 %v5281
  %v5283 = vlaneseq
  %v5284 = vshrl.u32 %v5283, 7
  %v5285 = vsub.s32 %v5282, %v5284
  %v5286 = vrot.slane %v5272, %v5285
  %v5287 = vcombine.high %v5279, %v5279
  %v5288 = vcombine.high %v5286, %v5286
  %v5290 = vunpack.c.l.s4 1966171168
  %v5291 = vunpack.c.0.s8 %v5290
  %v5292 = vlaneseq
  %v5293 = vshrl.u32 %v5292, 7
  %v5294 = vsub.s32 %v5291, %v5293
  %v5295 = vrot.slane %v5279, %v5294
  %v5297 = vunpack.c.l.s4 1966171168
  %v5298 = vunpack.c.0.s8 %v5297
  %v5299 = vlaneseq
  %v5300 = vshrl.u32 %v5299, 7
  %v5301 = vsub.s32 %v5298, %v5300
  %v5302 = vrot.slane %v5286, %v5301
  %v5304 = vunpack.c.l.s4 1966171168
  %v5305 = vunpack.c.0.s8 %v5304
  %v5306 = vlaneseq
  %v5307 = vshrl.u32 %v5306, 7
  %v5308 = vsub.s32 %v5305, %v5307
  %v5309 = vrot.slane %v5287, %v5308
  %v5311 = vunpack.c.l.s4 1966171168
  %v5312 = vunpack.c.0.s8 %v5311
  %v5313 = vlaneseq
  %v5314 = vshrl.u32 %v5313, 7
  %v5315 = vsub.s32 %v5312, %v5314
  %v5316 = vrot.slane %v5288, %v5315
  %v5317 = vcombine.high %v5295, %v5295
  %v5318 = vcombine.high %v5302, %v5302
  %v5319 = vcombine.high %v5309, %v5309
  %v5320 = vcombine.high %v5316, %v5316
  %v5321 = vcombine.high %v5267, %v5267
  %v5323 = vunpack.c.l.s4 1966171168
  %v5324 = vunpack.c.0.s8 %v5323
  %v5325 = vlaneseq
  %v5326 = vshrl.u32 %v5325, 7
  %v5327 = vsub.s32 %v5324, %v5326
  %v5328 = vrot.slane %v5267, %v5327
  %v5330 = vunpack.c.l.s4 1966171168
  %v5331 = vunpack.c.0.s8 %v5330
  %v5332 = vlaneseq
  %v5333 = vshrl.u32 %v5332, 7
  %v5334 = vsub.s32 %v5331, %v5333
  %v5335 = vrot.slane %v5321, %v5334
  %v5336 = vcombine.high %v5328, %v5328
  %v5337 = vcombine.high %v5335, %v5335
  %v5339 = vunpack.c.l.s4 1966171168
  %v5340 = vunpack.c.0.s8 %v5339
  %v5341 = vlaneseq
  %v5342 = vshrl.u32 %v5341, 7
  %v5343 = vsub.s32 %v5340, %v5342
  %v5344 = vrot.slane %v5328, %v5343
  %v5346 = vunpack.c.l.s4 1966171168
  %v5347 = vunpack.c.0.s8 %v5346
  %v5348 = vlaneseq
  %v5349 = vshrl.u32 %v5348, 7
  %v5350 = vsub.s32 %v5347, %v5349
  %v5351 = vrot.slane %v5335, %v5350
  %v5353 = vunpack.c.l.s4 1966171168
  %v5354 = vunpack.c.0.s8 %v5353
  %v5355 = vlaneseq
  %v5356 = vshrl.u32 %v5355, 7
  %v5357 = vsub.s32 %v5354, %v5356
  %v5358 = vrot.slane %v5336, %v5357
  %v5360 = vunpack.c.l.s4 1966171168
  %v5361 = vunpack.c.0.s8 %v5360
  %v5362 = vlaneseq
  %v5363 = vshrl.u32 %v5362, 7
  %v5364 = vsub.s32 %v5361, %v5363
  %v5365 = vrot.slane %v5337, %v5364
  %v5366 = vcombine.high %v5344, %v5344
  %v5367 = vcombine.high %v5351, %v5351
  %v5368 = vcombine.high %v5358, %v5358
  %v5369 = vcombine.high %v5365, %v5365
  %v5371 = vunpack.c.l.s4 1966171168
  %v5372 = vunpack.c.0.s8 %v5371
  %v5373 = vlaneseq
  %v5374 = vshrl.u32 %v5373, 7
  %v5375 = vsub.s32 %v5372, %v5374
  %v5376 = vrot.slane %v5268, %v5375
  %v5377 = vcombine.high %v5376, %v5376
  %v5379 = vunpack.c.l.s4 1966171168
  %v5380 = vunpack.c.0.s8 %v5379
  %v5381 = vlaneseq
  %v5382 = vshrl.u32 %v5381, 7
  %v5383 = vsub.s32 %v5380, %v5382
  %v5384 = vrot.slane %v5376, %v5383
  %v5386 = vunpack.c.l.s4 1966171168
  %v5387 = vunpack.c.0.s8 %v5386
  %v5388 = vlaneseq
  %v5389 = vshrl.u32 %v5388, 7
  %v5390 = vsub.s32 %v5387, %v5389
  %v5391 = vrot.slane %v5377, %v5390
  %5410 = vmatprep.subr.bf16.mxu0 %v2521
  %5411 = vmatpush1.bf16.msra.mxu0 %v2520
  %5412 = vmatprep.subr.bf16.mxu0 %v2517
  %5413 = vmatpush1.bf16.msra.mxu0 %v2516
  %5414 = vmatprep.subr.bf16.mxu0 %v2513
  %5415 = vmatpush1.bf16.msra.mxu0 %v2512
  %5416 = vmatprep.subr.bf16.mxu0 %v2509
  %5417 = vmatpush1.bf16.msra.mxu0 %v2508
  %5418 = vmatprep.subr.bf16.mxu0 %v2505
  %5419 = vmatpush1.bf16.msra.mxu0 %v2504
  %5420 = vmatprep.subr.bf16.mxu0 %v2501
  %5421 = vmatpush1.bf16.msra.mxu0 %v2500
  %5422 = vmatprep.subr.bf16.mxu0 %v2497
  %5423 = vmatpush1.bf16.msra.mxu0 %v2496
  %5424 = vmatprep.subr.bf16.mxu0 %v2493
  %5425 = vmatpush1.bf16.msra.mxu0 %v2492
  %5426 = vmatprep.subr.bf16.mxu0 %v2553
  %5427 = vmatpush2.bf16.msra.mxu0 %v2552
  %5428 = vmatprep.subr.bf16.mxu0 %v2549
  %5429 = vmatpush2.bf16.msra.mxu0 %v2548
  %5430 = vmatprep.subr.bf16.mxu0 %v2545
  %5431 = vmatpush2.bf16.msra.mxu0 %v2544
  %5432 = vmatprep.subr.bf16.mxu0 %v2541
  %5433 = vmatpush2.bf16.msra.mxu0 %v2540
  %5434 = vmatprep.subr.bf16.mxu0 %v2537
  %5435 = vmatpush2.bf16.msra.mxu0 %v2536
  %5436 = vmatprep.subr.bf16.mxu0 %v2533
  %5437 = vmatpush2.bf16.msra.mxu0 %v2532
  %5438 = vmatprep.subr.bf16.mxu0 %v2529
  %5439 = vmatpush2.bf16.msra.mxu0 %v2528
  %5440 = vmatprep.subr.bf16.mxu0 %v2525
  %5441 = vmatpush2.bf16.msra.mxu0 %v2524
  %5442 = vmatprep.mubr.bf16.mxu0 %v5309
  %5443 = vmatmul.mubr.bf16.gmra.mxu0 %v5295
  %v5444 = vpop.f32.mrf.mxu0
  %v5445 = vadd.f32 0.0, %v5444
  %v5446 = vpop.f32.mrf.mxu0
  %v5447 = vadd.f32 0.0, %v5446
  %v5448 = vpop.f32.mrf.mxu0
  %v5449 = vpop.f32.mrf.mxu0
  %5450 = vdwg.mxu0
  %5451 = vmatprep.subr.bf16.mxu0 %v2585
  %5452 = vmatpush1.bf16.msra.mxu0 %v2584
  %5453 = vmatprep.subr.bf16.mxu0 %v2581
  %5454 = vmatpush1.bf16.msra.mxu0 %v2580
  %5455 = vmatprep.subr.bf16.mxu0 %v2577
  %5456 = vmatpush1.bf16.msra.mxu0 %v2576
  %5457 = vmatprep.subr.bf16.mxu0 %v2573
  %5458 = vmatpush1.bf16.msra.mxu0 %v2572
  %5459 = vmatprep.subr.bf16.mxu0 %v2569
  %5460 = vmatpush1.bf16.msra.mxu0 %v2568
  %5461 = vmatprep.subr.bf16.mxu0 %v2565
  %5462 = vmatpush1.bf16.msra.mxu0 %v2564
  %5463 = vmatprep.subr.bf16.mxu0 %v2561
  %5464 = vmatpush1.bf16.msra.mxu0 %v2560
  %5465 = vmatprep.subr.bf16.mxu0 %v2557
  %5466 = vmatpush1.bf16.msra.mxu0 %v2556
  %5467 = vmatprep.subr.bf16.mxu0 %v2617
  %5468 = vmatpush2.bf16.msra.mxu0 %v2616
  %5469 = vmatprep.subr.bf16.mxu0 %v2613
  %5470 = vmatpush2.bf16.msra.mxu0 %v2612
  %5471 = vmatprep.subr.bf16.mxu0 %v2609
  %5472 = vmatpush2.bf16.msra.mxu0 %v2608
  %5473 = vmatprep.subr.bf16.mxu0 %v2605
  %5474 = vmatpush2.bf16.msra.mxu0 %v2604
  %5475 = vmatprep.subr.bf16.mxu0 %v2601
  %5476 = vmatpush2.bf16.msra.mxu0 %v2600
  %5477 = vmatprep.subr.bf16.mxu0 %v2597
  %5478 = vmatpush2.bf16.msra.mxu0 %v2596
  %5479 = vmatprep.subr.bf16.mxu0 %v2593
  %5480 = vmatpush2.bf16.msra.mxu0 %v2592
  %5481 = vmatprep.subr.bf16.mxu0 %v2589
  %5482 = vmatpush2.bf16.msra.mxu0 %v2588
  %5483 = vmatprep.mubr.bf16.mxu0 %v5319
  %5484 = vmatmul.mubr.bf16.gmra.mxu0 %v5317
  %v5485 = vpop.f32.mrf.mxu0
  %v5486 = vadd.f32 %v5445, %v5485
  %v5487 = vpop.f32.mrf.mxu0
  %v5488 = vadd.f32 %v5447, %v5487
  %v5489 = vpop.f32.mrf.mxu0
  %v5490 = vpop.f32.mrf.mxu0
  %5491 = vdwg.mxu0
  %5492 = vmatprep.subr.bf16.mxu0 %v2649
  %5493 = vmatpush1.bf16.msra.mxu0 %v2648
  %5494 = vmatprep.subr.bf16.mxu0 %v2645
  %5495 = vmatpush1.bf16.msra.mxu0 %v2644
  %5496 = vmatprep.subr.bf16.mxu0 %v2641
  %5497 = vmatpush1.bf16.msra.mxu0 %v2640
  %5498 = vmatprep.subr.bf16.mxu0 %v2637
  %5499 = vmatpush1.bf16.msra.mxu0 %v2636
  %5500 = vmatprep.subr.bf16.mxu0 %v2633
  %5501 = vmatpush1.bf16.msra.mxu0 %v2632
  %5502 = vmatprep.subr.bf16.mxu0 %v2629
  %5503 = vmatpush1.bf16.msra.mxu0 %v2628
  %5504 = vmatprep.subr.bf16.mxu0 %v2625
  %5505 = vmatpush1.bf16.msra.mxu0 %v2624
  %5506 = vmatprep.subr.bf16.mxu0 %v2621
  %5507 = vmatpush1.bf16.msra.mxu0 %v2620
  %5508 = vmatprep.subr.bf16.mxu0 %v2681
  %5509 = vmatpush2.bf16.msra.mxu0 %v2680
  %5510 = vmatprep.subr.bf16.mxu0 %v2677
  %5511 = vmatpush2.bf16.msra.mxu0 %v2676
  %5512 = vmatprep.subr.bf16.mxu0 %v2673
  %5513 = vmatpush2.bf16.msra.mxu0 %v2672
  %5514 = vmatprep.subr.bf16.mxu0 %v2669
  %5515 = vmatpush2.bf16.msra.mxu0 %v2668
  %5516 = vmatprep.subr.bf16.mxu0 %v2665
  %5517 = vmatpush2.bf16.msra.mxu0 %v2664
  %5518 = vmatprep.subr.bf16.mxu0 %v2661
  %5519 = vmatpush2.bf16.msra.mxu0 %v2660
  %5520 = vmatprep.subr.bf16.mxu0 %v2657
  %5521 = vmatpush2.bf16.msra.mxu0 %v2656
  %5522 = vmatprep.subr.bf16.mxu0 %v2653
  %5523 = vmatpush2.bf16.msra.mxu0 %v2652
  %5524 = vmatprep.mubr.bf16.mxu0 %v5316
  %5525 = vmatmul.mubr.bf16.gmra.mxu0 %v5302
  %v5526 = vpop.f32.mrf.mxu0
  %v5527 = vadd.f32 %v5486, %v5526
  %v5528 = vpop.f32.mrf.mxu0
  %v5529 = vadd.f32 %v5488, %v5528
  %v5530 = vpop.f32.mrf.mxu0
  %v5531 = vpop.f32.mrf.mxu0
  %5532 = vdwg.mxu0
  %5533 = vmatprep.subr.bf16.mxu0 %v2713
  %5534 = vmatpush1.bf16.msra.mxu0 %v2712
  %5535 = vmatprep.subr.bf16.mxu0 %v2709
  %5536 = vmatpush1.bf16.msra.mxu0 %v2708
  %5537 = vmatprep.subr.bf16.mxu0 %v2705
  %5538 = vmatpush1.bf16.msra.mxu0 %v2704
  %5539 = vmatprep.subr.bf16.mxu0 %v2701
  %5540 = vmatpush1.bf16.msra.mxu0 %v2700
  %5541 = vmatprep.subr.bf16.mxu0 %v2697
  %5542 = vmatpush1.bf16.msra.mxu0 %v2696
  %5543 = vmatprep.subr.bf16.mxu0 %v2693
  %5544 = vmatpush1.bf16.msra.mxu0 %v2692
  %5545 = vmatprep.subr.bf16.mxu0 %v2689
  %5546 = vmatpush1.bf16.msra.mxu0 %v2688
  %5547 = vmatprep.subr.bf16.mxu0 %v2685
  %5548 = vmatpush1.bf16.msra.mxu0 %v2684
  %5549 = vmatprep.subr.bf16.mxu0 %v2745
  %5550 = vmatpush2.bf16.msra.mxu0 %v2744
  %5551 = vmatprep.subr.bf16.mxu0 %v2741
  %5552 = vmatpush2.bf16.msra.mxu0 %v2740
  %5553 = vmatprep.subr.bf16.mxu0 %v2737
  %5554 = vmatpush2.bf16.msra.mxu0 %v2736
  %5555 = vmatprep.subr.bf16.mxu0 %v2733
  %5556 = vmatpush2.bf16.msra.mxu0 %v2732
  %5557 = vmatprep.subr.bf16.mxu0 %v2729
  %5558 = vmatpush2.bf16.msra.mxu0 %v2728
  %5559 = vmatprep.subr.bf16.mxu0 %v2725
  %5560 = vmatpush2.bf16.msra.mxu0 %v2724
  %5561 = vmatprep.subr.bf16.mxu0 %v2721
  %5562 = vmatpush2.bf16.msra.mxu0 %v2720
  %5563 = vmatprep.subr.bf16.mxu0 %v2717
  %5564 = vmatpush2.bf16.msra.mxu0 %v2716
  %5565 = vmatprep.mubr.bf16.mxu0 %v5320
  %5566 = vmatmul.mubr.bf16.gmra.mxu0 %v5318
  %v5567 = vpop.f32.mrf.mxu0
  %v5568 = vadd.f32 %v5527, %v5567
  %v5569 = vpop.f32.mrf.mxu0
  %v5570 = vadd.f32 %v5529, %v5569
  %v5571 = vpop.f32.mrf.mxu0
  %v5572 = vpop.f32.mrf.mxu0
  %5573 = vdwg.mxu0
  %5574 = vmatprep.subr.bf16.mxu0 %v2777
  %5575 = vmatpush1.bf16.msra.mxu0 %v2776
  %5576 = vmatprep.subr.bf16.mxu0 %v2773
  %5577 = vmatpush1.bf16.msra.mxu0 %v2772
  %5578 = vmatprep.subr.bf16.mxu0 %v2769
  %5579 = vmatpush1.bf16.msra.mxu0 %v2768
  %5580 = vmatprep.subr.bf16.mxu0 %v2765
  %5581 = vmatpush1.bf16.msra.mxu0 %v2764
  %5582 = vmatprep.subr.bf16.mxu0 %v2761
  %5583 = vmatpush1.bf16.msra.mxu0 %v2760
  %5584 = vmatprep.subr.bf16.mxu0 %v2757
  %5585 = vmatpush1.bf16.msra.mxu0 %v2756
  %5586 = vmatprep.subr.bf16.mxu0 %v2753
  %5587 = vmatpush1.bf16.msra.mxu0 %v2752
  %5588 = vmatprep.subr.bf16.mxu0 %v2749
  %5589 = vmatpush1.bf16.msra.mxu0 %v2748
  %5590 = vmatprep.subr.bf16.mxu0 %v2809
  %5591 = vmatpush2.bf16.msra.mxu0 %v2808
  %5592 = vmatprep.subr.bf16.mxu0 %v2805
  %5593 = vmatpush2.bf16.msra.mxu0 %v2804
  %5594 = vmatprep.subr.bf16.mxu0 %v2801
  %5595 = vmatpush2.bf16.msra.mxu0 %v2800
  %5596 = vmatprep.subr.bf16.mxu0 %v2797
  %5597 = vmatpush2.bf16.msra.mxu0 %v2796
  %5598 = vmatprep.subr.bf16.mxu0 %v2793
  %5599 = vmatpush2.bf16.msra.mxu0 %v2792
  %5600 = vmatprep.subr.bf16.mxu0 %v2789
  %5601 = vmatpush2.bf16.msra.mxu0 %v2788
  %5602 = vmatprep.subr.bf16.mxu0 %v2785
  %5603 = vmatpush2.bf16.msra.mxu0 %v2784
  %5604 = vmatprep.subr.bf16.mxu0 %v2781
  %5605 = vmatpush2.bf16.msra.mxu0 %v2780
  %5606 = vmatprep.mubr.bf16.mxu0 %v5358
  %5607 = vmatmul.mubr.bf16.gmra.mxu0 %v5344
  %v5608 = vpop.f32.mrf.mxu0
  %v5609 = vadd.f32 %v5568, %v5608
  %v5610 = vpop.f32.mrf.mxu0
  %v5611 = vadd.f32 %v5570, %v5610
  %v5612 = vpop.f32.mrf.mxu0
  %v5613 = vpop.f32.mrf.mxu0
  %5614 = vdwg.mxu0
  %5615 = vmatprep.subr.bf16.mxu0 %v2841
  %5616 = vmatpush1.bf16.msra.mxu0 %v2840
  %5617 = vmatprep.subr.bf16.mxu0 %v2837
  %5618 = vmatpush1.bf16.msra.mxu0 %v2836
  %5619 = vmatprep.subr.bf16.mxu0 %v2833
  %5620 = vmatpush1.bf16.msra.mxu0 %v2832
  %5621 = vmatprep.subr.bf16.mxu0 %v2829
  %5622 = vmatpush1.bf16.msra.mxu0 %v2828
  %5623 = vmatprep.subr.bf16.mxu0 %v2825
  %5624 = vmatpush1.bf16.msra.mxu0 %v2824
  %5625 = vmatprep.subr.bf16.mxu0 %v2821
  %5626 = vmatpush1.bf16.msra.mxu0 %v2820
  %5627 = vmatprep.subr.bf16.mxu0 %v2817
  %5628 = vmatpush1.bf16.msra.mxu0 %v2816
  %5629 = vmatprep.subr.bf16.mxu0 %v2813
  %5630 = vmatpush1.bf16.msra.mxu0 %v2812
  %5631 = vmatprep.subr.bf16.mxu0 %v2873
  %5632 = vmatpush2.bf16.msra.mxu0 %v2872
  %5633 = vmatprep.subr.bf16.mxu0 %v2869
  %5634 = vmatpush2.bf16.msra.mxu0 %v2868
  %5635 = vmatprep.subr.bf16.mxu0 %v2865
  %5636 = vmatpush2.bf16.msra.mxu0 %v2864
  %5637 = vmatprep.subr.bf16.mxu0 %v2861
  %5638 = vmatpush2.bf16.msra.mxu0 %v2860
  %5639 = vmatprep.subr.bf16.mxu0 %v2857
  %5640 = vmatpush2.bf16.msra.mxu0 %v2856
  %5641 = vmatprep.subr.bf16.mxu0 %v2853
  %5642 = vmatpush2.bf16.msra.mxu0 %v2852
  %5643 = vmatprep.subr.bf16.mxu0 %v2849
  %5644 = vmatpush2.bf16.msra.mxu0 %v2848
  %5645 = vmatprep.subr.bf16.mxu0 %v2845
  %5646 = vmatpush2.bf16.msra.mxu0 %v2844
  %5647 = vmatprep.mubr.bf16.mxu0 %v5368
  %5648 = vmatmul.mubr.bf16.gmra.mxu0 %v5366
  %v5649 = vpop.f32.mrf.mxu0
  %v5650 = vadd.f32 %v5609, %v5649
  %v5651 = vpop.f32.mrf.mxu0
  %v5652 = vadd.f32 %v5611, %v5651
  %v5653 = vpop.f32.mrf.mxu0
  %v5654 = vpop.f32.mrf.mxu0
  %5655 = vdwg.mxu0
  %5656 = vmatprep.subr.bf16.mxu0 %v2905
  %5657 = vmatpush1.bf16.msra.mxu0 %v2904
  %5658 = vmatprep.subr.bf16.mxu0 %v2901
  %5659 = vmatpush1.bf16.msra.mxu0 %v2900
  %5660 = vmatprep.subr.bf16.mxu0 %v2897
  %5661 = vmatpush1.bf16.msra.mxu0 %v2896
  %5662 = vmatprep.subr.bf16.mxu0 %v2893
  %5663 = vmatpush1.bf16.msra.mxu0 %v2892
  %5664 = vmatprep.subr.bf16.mxu0 %v2889
  %5665 = vmatpush1.bf16.msra.mxu0 %v2888
  %5666 = vmatprep.subr.bf16.mxu0 %v2885
  %5667 = vmatpush1.bf16.msra.mxu0 %v2884
  %5668 = vmatprep.subr.bf16.mxu0 %v2881
  %5669 = vmatpush1.bf16.msra.mxu0 %v2880
  %5670 = vmatprep.subr.bf16.mxu0 %v2877
  %5671 = vmatpush1.bf16.msra.mxu0 %v2876
  %5672 = vmatprep.subr.bf16.mxu0 %v2937
  %5673 = vmatpush2.bf16.msra.mxu0 %v2936
  %5674 = vmatprep.subr.bf16.mxu0 %v2933
  %5675 = vmatpush2.bf16.msra.mxu0 %v2932
  %5676 = vmatprep.subr.bf16.mxu0 %v2929
  %5677 = vmatpush2.bf16.msra.mxu0 %v2928
  %5678 = vmatprep.subr.bf16.mxu0 %v2925
  %5679 = vmatpush2.bf16.msra.mxu0 %v2924
  %5680 = vmatprep.subr.bf16.mxu0 %v2921
  %5681 = vmatpush2.bf16.msra.mxu0 %v2920
  %5682 = vmatprep.subr.bf16.mxu0 %v2917
  %5683 = vmatpush2.bf16.msra.mxu0 %v2916
  %5684 = vmatprep.subr.bf16.mxu0 %v2913
  %5685 = vmatpush2.bf16.msra.mxu0 %v2912
  %5686 = vmatprep.subr.bf16.mxu0 %v2909
  %5687 = vmatpush2.bf16.msra.mxu0 %v2908
  %5688 = vmatprep.mubr.bf16.mxu0 %v5365
  %5689 = vmatmul.mubr.bf16.gmra.mxu0 %v5351
  %v5690 = vpop.f32.mrf.mxu0
  %v5691 = vadd.f32 %v5650, %v5690
  %v5692 = vpop.f32.mrf.mxu0
  %v5693 = vadd.f32 %v5652, %v5692
  %v5694 = vpop.f32.mrf.mxu0
  %v5695 = vpop.f32.mrf.mxu0
  %5696 = vdwg.mxu0
  %5697 = vmatprep.subr.bf16.mxu0 %v2969
  %5698 = vmatpush1.bf16.msra.mxu0 %v2968
  %5699 = vmatprep.subr.bf16.mxu0 %v2965
  %5700 = vmatpush1.bf16.msra.mxu0 %v2964
  %5701 = vmatprep.subr.bf16.mxu0 %v2961
  %5702 = vmatpush1.bf16.msra.mxu0 %v2960
  %5703 = vmatprep.subr.bf16.mxu0 %v2957
  %5704 = vmatpush1.bf16.msra.mxu0 %v2956
  %5705 = vmatprep.subr.bf16.mxu0 %v2953
  %5706 = vmatpush1.bf16.msra.mxu0 %v2952
  %5707 = vmatprep.subr.bf16.mxu0 %v2949
  %5708 = vmatpush1.bf16.msra.mxu0 %v2948
  %5709 = vmatprep.subr.bf16.mxu0 %v2945
  %5710 = vmatpush1.bf16.msra.mxu0 %v2944
  %5711 = vmatprep.subr.bf16.mxu0 %v2941
  %5712 = vmatpush1.bf16.msra.mxu0 %v2940
  %5713 = vmatprep.subr.bf16.mxu0 %v3001
  %5714 = vmatpush2.bf16.msra.mxu0 %v3000
  %5715 = vmatprep.subr.bf16.mxu0 %v2997
  %5716 = vmatpush2.bf16.msra.mxu0 %v2996
  %5717 = vmatprep.subr.bf16.mxu0 %v2993
  %5718 = vmatpush2.bf16.msra.mxu0 %v2992
  %5719 = vmatprep.subr.bf16.mxu0 %v2989
  %5720 = vmatpush2.bf16.msra.mxu0 %v2988
  %5721 = vmatprep.subr.bf16.mxu0 %v2985
  %5722 = vmatpush2.bf16.msra.mxu0 %v2984
  %5723 = vmatprep.subr.bf16.mxu0 %v2981
  %5724 = vmatpush2.bf16.msra.mxu0 %v2980
  %5725 = vmatprep.subr.bf16.mxu0 %v2977
  %5726 = vmatpush2.bf16.msra.mxu0 %v2976
  %5727 = vmatprep.subr.bf16.mxu0 %v2973
  %5728 = vmatpush2.bf16.msra.mxu0 %v2972
  %5729 = vmatprep.mubr.bf16.mxu0 %v5369
  %5730 = vmatmul.mubr.bf16.gmra.mxu0 %v5367
  %v5731 = vpop.f32.mrf.mxu0
  %v5732 = vadd.f32 %v5691, %v5731
  %v5733 = vpop.f32.mrf.mxu0
  %v5734 = vadd.f32 %v5693, %v5733
  %v5735 = vpop.f32.mrf.mxu0
  %v5736 = vpop.f32.mrf.mxu0
  %5737 = vdwg.mxu0
  %5738 = vmatprep.subr.bf16.mxu0 %v3033
  %5739 = vmatpush1.bf16.msra.mxu0 %v3032
  %5740 = vmatprep.subr.bf16.mxu0 %v3029
  %5741 = vmatpush1.bf16.msra.mxu0 %v3028
  %5742 = vmatprep.subr.bf16.mxu0 %v3025
  %5743 = vmatpush1.bf16.msra.mxu0 %v3024
  %5744 = vmatprep.subr.bf16.mxu0 %v3021
  %5745 = vmatpush1.bf16.msra.mxu0 %v3020
  %5746 = vmatprep.subr.bf16.mxu0 %v3017
  %5747 = vmatpush1.bf16.msra.mxu0 %v3016
  %5748 = vmatprep.subr.bf16.mxu0 %v3013
  %5749 = vmatpush1.bf16.msra.mxu0 %v3012
  %5750 = vmatprep.subr.bf16.mxu0 %v3009
  %5751 = vmatpush1.bf16.msra.mxu0 %v3008
  %5752 = vmatprep.subr.bf16.mxu0 %v3005
  %5753 = vmatpush1.bf16.msra.mxu0 %v3004
  %5754 = vmatprep.subr.bf16.mxu0 %v3065
  %5755 = vmatpush2.bf16.msra.mxu0 %v3064
  %5756 = vmatprep.subr.bf16.mxu0 %v3061
  %5757 = vmatpush2.bf16.msra.mxu0 %v3060
  %5758 = vmatprep.subr.bf16.mxu0 %v3057
  %5759 = vmatpush2.bf16.msra.mxu0 %v3056
  %5760 = vmatprep.subr.bf16.mxu0 %v3053
  %5761 = vmatpush2.bf16.msra.mxu0 %v3052
  %5762 = vmatprep.subr.bf16.mxu0 %v3049
  %5763 = vmatpush2.bf16.msra.mxu0 %v3048
  %5764 = vmatprep.subr.bf16.mxu0 %v3045
  %5765 = vmatpush2.bf16.msra.mxu0 %v3044
  %5766 = vmatprep.subr.bf16.mxu0 %v3041
  %5767 = vmatpush2.bf16.msra.mxu0 %v3040
  %5768 = vmatprep.subr.bf16.mxu0 %v3037
  %5769 = vmatpush2.bf16.msra.mxu0 %v3036
  %5770 = vmatprep.mubr.bf16.mxu0 %v5391
  %5771 = vmatmul.mubr.bf16.gmra.mxu0 %v5384
  %v5772 = vpop.f32.mrf.mxu0
  %v5773 = vadd.f32 %v5732, %v5772
  %v5774 = vpop.f32.mrf.mxu0
  %v5775 = vadd.f32 %v5734, %v5774
  %v5776 = vpop.f32.mrf.mxu0
  %v5777 = vpop.f32.mrf.mxu0
  %5778 = vdwg.mxu0
  %5779 = vmatprep.subr.bf16.mxu0 %v2523
  %5780 = vmatpush1.bf16.msra.mxu0 %v2522
  %5781 = vmatprep.subr.bf16.mxu0 %v2519
  %5782 = vmatpush1.bf16.msra.mxu0 %v2518
  %5783 = vmatprep.subr.bf16.mxu0 %v2515
  %5784 = vmatpush1.bf16.msra.mxu0 %v2514
  %5785 = vmatprep.subr.bf16.mxu0 %v2511
  %5786 = vmatpush1.bf16.msra.mxu0 %v2510
  %5787 = vmatprep.subr.bf16.mxu0 %v2507
  %5788 = vmatpush1.bf16.msra.mxu0 %v2506
  %5789 = vmatprep.subr.bf16.mxu0 %v2503
  %5790 = vmatpush1.bf16.msra.mxu0 %v2502
  %5791 = vmatprep.subr.bf16.mxu0 %v2499
  %5792 = vmatpush1.bf16.msra.mxu0 %v2498
  %5793 = vmatprep.subr.bf16.mxu0 %v2495
  %5794 = vmatpush1.bf16.msra.mxu0 %v2494
  %5795 = vmatprep.subr.bf16.mxu0 %v2555
  %5796 = vmatpush2.bf16.msra.mxu0 %v2554
  %5797 = vmatprep.subr.bf16.mxu0 %v2551
  %5798 = vmatpush2.bf16.msra.mxu0 %v2550
  %5799 = vmatprep.subr.bf16.mxu0 %v2547
  %5800 = vmatpush2.bf16.msra.mxu0 %v2546
  %5801 = vmatprep.subr.bf16.mxu0 %v2543
  %5802 = vmatpush2.bf16.msra.mxu0 %v2542
  %5803 = vmatprep.subr.bf16.mxu0 %v2539
  %5804 = vmatpush2.bf16.msra.mxu0 %v2538
  %5805 = vmatprep.subr.bf16.mxu0 %v2535
  %5806 = vmatpush2.bf16.msra.mxu0 %v2534
  %5807 = vmatprep.subr.bf16.mxu0 %v2531
  %5808 = vmatpush2.bf16.msra.mxu0 %v2530
  %5809 = vmatprep.subr.bf16.mxu0 %v2527
  %5810 = vmatpush2.bf16.msra.mxu0 %v2526
  %5811 = vmatprep.mubr.bf16.mxu0 %v5309
  %5812 = vmatmul.mubr.bf16.gmra.mxu0 %v5295
  %v5813 = vpop.f32.mrf.mxu0
  %v5814 = vadd.f32 0.0, %v5813
  %v5815 = vpop.f32.mrf.mxu0
  %v5816 = vadd.f32 0.0, %v5815
  %v5817 = vpop.f32.mrf.mxu0
  %v5818 = vpop.f32.mrf.mxu0
  %5819 = vdwg.mxu0
  %5820 = vmatprep.subr.bf16.mxu0 %v2587
  %5821 = vmatpush1.bf16.msra.mxu0 %v2586
  %5822 = vmatprep.subr.bf16.mxu0 %v2583
  %5823 = vmatpush1.bf16.msra.mxu0 %v2582
  %5824 = vmatprep.subr.bf16.mxu0 %v2579
  %5825 = vmatpush1.bf16.msra.mxu0 %v2578
  %5826 = vmatprep.subr.bf16.mxu0 %v2575
  %5827 = vmatpush1.bf16.msra.mxu0 %v2574
  %5828 = vmatprep.subr.bf16.mxu0 %v2571
  %5829 = vmatpush1.bf16.msra.mxu0 %v2570
  %5830 = vmatprep.subr.bf16.mxu0 %v2567
  %5831 = vmatpush1.bf16.msra.mxu0 %v2566
  %5832 = vmatprep.subr.bf16.mxu0 %v2563
  %5833 = vmatpush1.bf16.msra.mxu0 %v2562
  %5834 = vmatprep.subr.bf16.mxu0 %v2559
  %5835 = vmatpush1.bf16.msra.mxu0 %v2558
  %5836 = vmatprep.subr.bf16.mxu0 %v2619
  %5837 = vmatpush2.bf16.msra.mxu0 %v2618
  %5838 = vmatprep.subr.bf16.mxu0 %v2615
  %5839 = vmatpush2.bf16.msra.mxu0 %v2614
  %5840 = vmatprep.subr.bf16.mxu0 %v2611
  %5841 = vmatpush2.bf16.msra.mxu0 %v2610
  %5842 = vmatprep.subr.bf16.mxu0 %v2607
  %5843 = vmatpush2.bf16.msra.mxu0 %v2606
  %5844 = vmatprep.subr.bf16.mxu0 %v2603
  %5845 = vmatpush2.bf16.msra.mxu0 %v2602
  %5846 = vmatprep.subr.bf16.mxu0 %v2599
  %5847 = vmatpush2.bf16.msra.mxu0 %v2598
  %5848 = vmatprep.subr.bf16.mxu0 %v2595
  %5849 = vmatpush2.bf16.msra.mxu0 %v2594
  %5850 = vmatprep.subr.bf16.mxu0 %v2591
  %5851 = vmatpush2.bf16.msra.mxu0 %v2590
  %5852 = vmatprep.mubr.bf16.mxu0 %v5319
  %5853 = vmatmul.mubr.bf16.gmra.mxu0 %v5317
  %v5854 = vpop.f32.mrf.mxu0
  %v5855 = vadd.f32 %v5814, %v5854
  %v5856 = vpop.f32.mrf.mxu0
  %v5857 = vadd.f32 %v5816, %v5856
  %v5858 = vpop.f32.mrf.mxu0
  %v5859 = vpop.f32.mrf.mxu0
  %5860 = vdwg.mxu0
  %5861 = vmatprep.subr.bf16.mxu0 %v2651
  %5862 = vmatpush1.bf16.msra.mxu0 %v2650
  %5863 = vmatprep.subr.bf16.mxu0 %v2647
  %5864 = vmatpush1.bf16.msra.mxu0 %v2646
  %5865 = vmatprep.subr.bf16.mxu0 %v2643
  %5866 = vmatpush1.bf16.msra.mxu0 %v2642
  %5867 = vmatprep.subr.bf16.mxu0 %v2639
  %5868 = vmatpush1.bf16.msra.mxu0 %v2638
  %5869 = vmatprep.subr.bf16.mxu0 %v2635
  %5870 = vmatpush1.bf16.msra.mxu0 %v2634
  %5871 = vmatprep.subr.bf16.mxu0 %v2631
  %5872 = vmatpush1.bf16.msra.mxu0 %v2630
  %5873 = vmatprep.subr.bf16.mxu0 %v2627
  %5874 = vmatpush1.bf16.msra.mxu0 %v2626
  %5875 = vmatprep.subr.bf16.mxu0 %v2623
  %5876 = vmatpush1.bf16.msra.mxu0 %v2622
  %5877 = vmatprep.subr.bf16.mxu0 %v2683
  %5878 = vmatpush2.bf16.msra.mxu0 %v2682
  %5879 = vmatprep.subr.bf16.mxu0 %v2679
  %5880 = vmatpush2.bf16.msra.mxu0 %v2678
  %5881 = vmatprep.subr.bf16.mxu0 %v2675
  %5882 = vmatpush2.bf16.msra.mxu0 %v2674
  %5883 = vmatprep.subr.bf16.mxu0 %v2671
  %5884 = vmatpush2.bf16.msra.mxu0 %v2670
  %5885 = vmatprep.subr.bf16.mxu0 %v2667
  %5886 = vmatpush2.bf16.msra.mxu0 %v2666
  %5887 = vmatprep.subr.bf16.mxu0 %v2663
  %5888 = vmatpush2.bf16.msra.mxu0 %v2662
  %5889 = vmatprep.subr.bf16.mxu0 %v2659
  %5890 = vmatpush2.bf16.msra.mxu0 %v2658
  %5891 = vmatprep.subr.bf16.mxu0 %v2655
  %5892 = vmatpush2.bf16.msra.mxu0 %v2654
  %5893 = vmatprep.mubr.bf16.mxu0 %v5316
  %5894 = vmatmul.mubr.bf16.gmra.mxu0 %v5302
  %v5895 = vpop.f32.mrf.mxu0
  %v5896 = vadd.f32 %v5855, %v5895
  %v5897 = vpop.f32.mrf.mxu0
  %v5898 = vadd.f32 %v5857, %v5897
  %v5899 = vpop.f32.mrf.mxu0
  %v5900 = vpop.f32.mrf.mxu0
  %5901 = vdwg.mxu0
  %5902 = vmatprep.subr.bf16.mxu0 %v2715
  %5903 = vmatpush1.bf16.msra.mxu0 %v2714
  %5904 = vmatprep.subr.bf16.mxu0 %v2711
  %5905 = vmatpush1.bf16.msra.mxu0 %v2710
  %5906 = vmatprep.subr.bf16.mxu0 %v2707
  %5907 = vmatpush1.bf16.msra.mxu0 %v2706
  %5908 = vmatprep.subr.bf16.mxu0 %v2703
  %5909 = vmatpush1.bf16.msra.mxu0 %v2702
  %5910 = vmatprep.subr.bf16.mxu0 %v2699
  %5911 = vmatpush1.bf16.msra.mxu0 %v2698
  %5912 = vmatprep.subr.bf16.mxu0 %v2695
  %5913 = vmatpush1.bf16.msra.mxu0 %v2694
  %5914 = vmatprep.subr.bf16.mxu0 %v2691
  %5915 = vmatpush1.bf16.msra.mxu0 %v2690
  %5916 = vmatprep.subr.bf16.mxu0 %v2687
  %5917 = vmatpush1.bf16.msra.mxu0 %v2686
  %5918 = vmatprep.subr.bf16.mxu0 %v2747
  %5919 = vmatpush2.bf16.msra.mxu0 %v2746
  %5920 = vmatprep.subr.bf16.mxu0 %v2743
  %5921 = vmatpush2.bf16.msra.mxu0 %v2742
  %5922 = vmatprep.subr.bf16.mxu0 %v2739
  %5923 = vmatpush2.bf16.msra.mxu0 %v2738
  %5924 = vmatprep.subr.bf16.mxu0 %v2735
  %5925 = vmatpush2.bf16.msra.mxu0 %v2734
  %5926 = vmatprep.subr.bf16.mxu0 %v2731
  %5927 = vmatpush2.bf16.msra.mxu0 %v2730
  %5928 = vmatprep.subr.bf16.mxu0 %v2727
  %5929 = vmatpush2.bf16.msra.mxu0 %v2726
  %5930 = vmatprep.subr.bf16.mxu0 %v2723
  %5931 = vmatpush2.bf16.msra.mxu0 %v2722
  %5932 = vmatprep.subr.bf16.mxu0 %v2719
  %5933 = vmatpush2.bf16.msra.mxu0 %v2718
  %5934 = vmatprep.mubr.bf16.mxu0 %v5320
  %5935 = vmatmul.mubr.bf16.gmra.mxu0 %v5318
  %v5936 = vpop.f32.mrf.mxu0
  %v5937 = vadd.f32 %v5896, %v5936
  %v5938 = vpop.f32.mrf.mxu0
  %v5939 = vadd.f32 %v5898, %v5938
  %v5940 = vpop.f32.mrf.mxu0
  %v5941 = vpop.f32.mrf.mxu0
  %5942 = vdwg.mxu0
  %5943 = vmatprep.subr.bf16.mxu0 %v2779
  %5944 = vmatpush1.bf16.msra.mxu0 %v2778
  %5945 = vmatprep.subr.bf16.mxu0 %v2775
  %5946 = vmatpush1.bf16.msra.mxu0 %v2774
  %5947 = vmatprep.subr.bf16.mxu0 %v2771
  %5948 = vmatpush1.bf16.msra.mxu0 %v2770
  %5949 = vmatprep.subr.bf16.mxu0 %v2767
  %5950 = vmatpush1.bf16.msra.mxu0 %v2766
  %5951 = vmatprep.subr.bf16.mxu0 %v2763
  %5952 = vmatpush1.bf16.msra.mxu0 %v2762
  %5953 = vmatprep.subr.bf16.mxu0 %v2759
  %5954 = vmatpush1.bf16.msra.mxu0 %v2758
  %5955 = vmatprep.subr.bf16.mxu0 %v2755
  %5956 = vmatpush1.bf16.msra.mxu0 %v2754
  %5957 = vmatprep.subr.bf16.mxu0 %v2751
  %5958 = vmatpush1.bf16.msra.mxu0 %v2750
  %5959 = vmatprep.subr.bf16.mxu0 %v2811
  %5960 = vmatpush2.bf16.msra.mxu0 %v2810
  %5961 = vmatprep.subr.bf16.mxu0 %v2807
  %5962 = vmatpush2.bf16.msra.mxu0 %v2806
  %5963 = vmatprep.subr.bf16.mxu0 %v2803
  %5964 = vmatpush2.bf16.msra.mxu0 %v2802
  %5965 = vmatprep.subr.bf16.mxu0 %v2799
  %5966 = vmatpush2.bf16.msra.mxu0 %v2798
  %5967 = vmatprep.subr.bf16.mxu0 %v2795
  %5968 = vmatpush2.bf16.msra.mxu0 %v2794
  %5969 = vmatprep.subr.bf16.mxu0 %v2791
  %5970 = vmatpush2.bf16.msra.mxu0 %v2790
  %5971 = vmatprep.subr.bf16.mxu0 %v2787
  %5972 = vmatpush2.bf16.msra.mxu0 %v2786
  %5973 = vmatprep.subr.bf16.mxu0 %v2783
  %5974 = vmatpush2.bf16.msra.mxu0 %v2782
  %5975 = vmatprep.mubr.bf16.mxu0 %v5358
  %5976 = vmatmul.mubr.bf16.gmra.mxu0 %v5344
  %v5977 = vpop.f32.mrf.mxu0
  %v5978 = vadd.f32 %v5937, %v5977
  %v5979 = vpop.f32.mrf.mxu0
  %v5980 = vadd.f32 %v5939, %v5979
  %v5981 = vpop.f32.mrf.mxu0
  %v5982 = vpop.f32.mrf.mxu0
  %5983 = vdwg.mxu0
  %5984 = vmatprep.subr.bf16.mxu0 %v2843
  %5985 = vmatpush1.bf16.msra.mxu0 %v2842
  %5986 = vmatprep.subr.bf16.mxu0 %v2839
  %5987 = vmatpush1.bf16.msra.mxu0 %v2838
  %5988 = vmatprep.subr.bf16.mxu0 %v2835
  %5989 = vmatpush1.bf16.msra.mxu0 %v2834
  %5990 = vmatprep.subr.bf16.mxu0 %v2831
  %5991 = vmatpush1.bf16.msra.mxu0 %v2830
  %5992 = vmatprep.subr.bf16.mxu0 %v2827
  %5993 = vmatpush1.bf16.msra.mxu0 %v2826
  %5994 = vmatprep.subr.bf16.mxu0 %v2823
  %5995 = vmatpush1.bf16.msra.mxu0 %v2822
  %5996 = vmatprep.subr.bf16.mxu0 %v2819
  %5997 = vmatpush1.bf16.msra.mxu0 %v2818
  %5998 = vmatprep.subr.bf16.mxu0 %v2815
  %5999 = vmatpush1.bf16.msra.mxu0 %v2814
  %6000 = vmatprep.subr.bf16.mxu0 %v2875
  %6001 = vmatpush2.bf16.msra.mxu0 %v2874
  %6002 = vmatprep.subr.bf16.mxu0 %v2871
  %6003 = vmatpush2.bf16.msra.mxu0 %v2870
  %6004 = vmatprep.subr.bf16.mxu0 %v2867
  %6005 = vmatpush2.bf16.msra.mxu0 %v2866
  %6006 = vmatprep.subr.bf16.mxu0 %v2863
  %6007 = vmatpush2.bf16.msra.mxu0 %v2862
  %6008 = vmatprep.subr.bf16.mxu0 %v2859
  %6009 = vmatpush2.bf16.msra.mxu0 %v2858
  %6010 = vmatprep.subr.bf16.mxu0 %v2855
  %6011 = vmatpush2.bf16.msra.mxu0 %v2854
  %6012 = vmatprep.subr.bf16.mxu0 %v2851
  %6013 = vmatpush2.bf16.msra.mxu0 %v2850
  %6014 = vmatprep.subr.bf16.mxu0 %v2847
  %6015 = vmatpush2.bf16.msra.mxu0 %v2846
  %6016 = vmatprep.mubr.bf16.mxu0 %v5368
  %6017 = vmatmul.mubr.bf16.gmra.mxu0 %v5366
  %v6018 = vpop.f32.mrf.mxu0
  %v6019 = vadd.f32 %v5978, %v6018
  %v6020 = vpop.f32.mrf.mxu0
  %v6021 = vadd.f32 %v5980, %v6020
  %v6022 = vpop.f32.mrf.mxu0
  %v6023 = vpop.f32.mrf.mxu0
  %6024 = vdwg.mxu0
  %6025 = vmatprep.subr.bf16.mxu0 %v2907
  %6026 = vmatpush1.bf16.msra.mxu0 %v2906
  %6027 = vmatprep.subr.bf16.mxu0 %v2903
  %6028 = vmatpush1.bf16.msra.mxu0 %v2902
  %6029 = vmatprep.subr.bf16.mxu0 %v2899
  %6030 = vmatpush1.bf16.msra.mxu0 %v2898
  %6031 = vmatprep.subr.bf16.mxu0 %v2895
  %6032 = vmatpush1.bf16.msra.mxu0 %v2894
  %6033 = vmatprep.subr.bf16.mxu0 %v2891
  %6034 = vmatpush1.bf16.msra.mxu0 %v2890
  %6035 = vmatprep.subr.bf16.mxu0 %v2887
  %6036 = vmatpush1.bf16.msra.mxu0 %v2886
  %6037 = vmatprep.subr.bf16.mxu0 %v2883
  %6038 = vmatpush1.bf16.msra.mxu0 %v2882
  %6039 = vmatprep.subr.bf16.mxu0 %v2879
  %6040 = vmatpush1.bf16.msra.mxu0 %v2878
  %6041 = vmatprep.subr.bf16.mxu0 %v2939
  %6042 = vmatpush2.bf16.msra.mxu0 %v2938
  %6043 = vmatprep.subr.bf16.mxu0 %v2935
  %6044 = vmatpush2.bf16.msra.mxu0 %v2934
  %6045 = vmatprep.subr.bf16.mxu0 %v2931
  %6046 = vmatpush2.bf16.msra.mxu0 %v2930
  %6047 = vmatprep.subr.bf16.mxu0 %v2927
  %6048 = vmatpush2.bf16.msra.mxu0 %v2926
  %6049 = vmatprep.subr.bf16.mxu0 %v2923
  %6050 = vmatpush2.bf16.msra.mxu0 %v2922
  %6051 = vmatprep.subr.bf16.mxu0 %v2919
  %6052 = vmatpush2.bf16.msra.mxu0 %v2918
  %6053 = vmatprep.subr.bf16.mxu0 %v2915
  %6054 = vmatpush2.bf16.msra.mxu0 %v2914
  %6055 = vmatprep.subr.bf16.mxu0 %v2911
  %6056 = vmatpush2.bf16.msra.mxu0 %v2910
  %6057 = vmatprep.mubr.bf16.mxu0 %v5365
  %6058 = vmatmul.mubr.bf16.gmra.mxu0 %v5351
  %v6059 = vpop.f32.mrf.mxu0
  %v6060 = vadd.f32 %v6019, %v6059
  %v6061 = vpop.f32.mrf.mxu0
  %v6062 = vadd.f32 %v6021, %v6061
  %v6063 = vpop.f32.mrf.mxu0
  %v6064 = vpop.f32.mrf.mxu0
  %6065 = vdwg.mxu0
  %6066 = vmatprep.subr.bf16.mxu0 %v2971
  %6067 = vmatpush1.bf16.msra.mxu0 %v2970
  %6068 = vmatprep.subr.bf16.mxu0 %v2967
  %6069 = vmatpush1.bf16.msra.mxu0 %v2966
  %6070 = vmatprep.subr.bf16.mxu0 %v2963
  %6071 = vmatpush1.bf16.msra.mxu0 %v2962
  %6072 = vmatprep.subr.bf16.mxu0 %v2959
  %6073 = vmatpush1.bf16.msra.mxu0 %v2958
  %6074 = vmatprep.subr.bf16.mxu0 %v2955
  %6075 = vmatpush1.bf16.msra.mxu0 %v2954
  %6076 = vmatprep.subr.bf16.mxu0 %v2951
  %6077 = vmatpush1.bf16.msra.mxu0 %v2950
  %6078 = vmatprep.subr.bf16.mxu0 %v2947
  %6079 = vmatpush1.bf16.msra.mxu0 %v2946
  %6080 = vmatprep.subr.bf16.mxu0 %v2943
  %6081 = vmatpush1.bf16.msra.mxu0 %v2942
  %6082 = vmatprep.subr.bf16.mxu0 %v3003
  %6083 = vmatpush2.bf16.msra.mxu0 %v3002
  %6084 = vmatprep.subr.bf16.mxu0 %v2999
  %6085 = vmatpush2.bf16.msra.mxu0 %v2998
  %6086 = vmatprep.subr.bf16.mxu0 %v2995
  %6087 = vmatpush2.bf16.msra.mxu0 %v2994
  %6088 = vmatprep.subr.bf16.mxu0 %v2991
  %6089 = vmatpush2.bf16.msra.mxu0 %v2990
  %6090 = vmatprep.subr.bf16.mxu0 %v2987
  %6091 = vmatpush2.bf16.msra.mxu0 %v2986
  %6092 = vmatprep.subr.bf16.mxu0 %v2983
  %6093 = vmatpush2.bf16.msra.mxu0 %v2982
  %6094 = vmatprep.subr.bf16.mxu0 %v2979
  %6095 = vmatpush2.bf16.msra.mxu0 %v2978
  %6096 = vmatprep.subr.bf16.mxu0 %v2975
  %6097 = vmatpush2.bf16.msra.mxu0 %v2974
  %6098 = vmatprep.mubr.bf16.mxu0 %v5369
  %6099 = vmatmul.mubr.bf16.gmra.mxu0 %v5367
  %v6100 = vpop.f32.mrf.mxu0
  %v6101 = vadd.f32 %v6060, %v6100
  %v6102 = vpop.f32.mrf.mxu0
  %v6103 = vadd.f32 %v6062, %v6102
  %v6104 = vpop.f32.mrf.mxu0
  %v6105 = vpop.f32.mrf.mxu0
  %6106 = vdwg.mxu0
  %6107 = vmatprep.subr.bf16.mxu0 %v3035
  %6108 = vmatpush1.bf16.msra.mxu0 %v3034
  %6109 = vmatprep.subr.bf16.mxu0 %v3031
  %6110 = vmatpush1.bf16.msra.mxu0 %v3030
  %6111 = vmatprep.subr.bf16.mxu0 %v3027
  %6112 = vmatpush1.bf16.msra.mxu0 %v3026
  %6113 = vmatprep.subr.bf16.mxu0 %v3023
  %6114 = vmatpush1.bf16.msra.mxu0 %v3022
  %6115 = vmatprep.subr.bf16.mxu0 %v3019
  %6116 = vmatpush1.bf16.msra.mxu0 %v3018
  %6117 = vmatprep.subr.bf16.mxu0 %v3015
  %6118 = vmatpush1.bf16.msra.mxu0 %v3014
  %6119 = vmatprep.subr.bf16.mxu0 %v3011
  %6120 = vmatpush1.bf16.msra.mxu0 %v3010
  %6121 = vmatprep.subr.bf16.mxu0 %v3007
  %6122 = vmatpush1.bf16.msra.mxu0 %v3006
  %6123 = vmatprep.subr.bf16.mxu0 %v3067
  %6124 = vmatpush2.bf16.msra.mxu0 %v3066
  %6125 = vmatprep.subr.bf16.mxu0 %v3063
  %6126 = vmatpush2.bf16.msra.mxu0 %v3062
  %6127 = vmatprep.subr.bf16.mxu0 %v3059
  %6128 = vmatpush2.bf16.msra.mxu0 %v3058
  %6129 = vmatprep.subr.bf16.mxu0 %v3055
  %6130 = vmatpush2.bf16.msra.mxu0 %v3054
  %6131 = vmatprep.subr.bf16.mxu0 %v3051
  %6132 = vmatpush2.bf16.msra.mxu0 %v3050
  %6133 = vmatprep.subr.bf16.mxu0 %v3047
  %6134 = vmatpush2.bf16.msra.mxu0 %v3046
  %6135 = vmatprep.subr.bf16.mxu0 %v3043
  %6136 = vmatpush2.bf16.msra.mxu0 %v3042
  %6137 = vmatprep.subr.bf16.mxu0 %v3039
  %6138 = vmatpush2.bf16.msra.mxu0 %v3038
  %6139 = vmatprep.mubr.bf16.mxu0 %v5391
  %6140 = vmatmul.mubr.bf16.gmra.mxu0 %v5384
  %v6141 = vpop.f32.mrf.mxu0
  %v6142 = vadd.f32 %v6101, %v6141
  %v6143 = vpop.f32.mrf.mxu0
  %v6144 = vadd.f32 %v6103, %v6143
  %v6145 = vpop.f32.mrf.mxu0
  %v6146 = vpop.f32.mrf.mxu0
  %6147 = vdwg.mxu0
  %s6148 = scalar_lea.vmem %s0, 54
  %v6149 = vld [vmem:[%s6148] sm:$0xff]
  %v6150 = vld [vmem:[%s6148 + $0x8] sm:$0xff]
  %v6151 = vld [vmem:[%s6148 + $0x10] sm:$0x3]
  %v6155 = vcombine.high %v6149, %v6149
  %v6157 = vunpack.c.l.s4 1966171168
  %v6158 = vunpack.c.0.s8 %v6157
  %v6159 = vlaneseq
  %v6160 = vshrl.u32 %v6159, 7
  %v6161 = vsub.s32 %v6158, %v6160
  %v6162 = vrot.slane %v6149, %v6161
  %v6164 = vunpack.c.l.s4 1966171168
  %v6165 = vunpack.c.0.s8 %v6164
  %v6166 = vlaneseq
  %v6167 = vshrl.u32 %v6166, 7
  %v6168 = vsub.s32 %v6165, %v6167
  %v6169 = vrot.slane %v6155, %v6168
  %v6170 = vcombine.high %v6162, %v6162
  %v6171 = vcombine.high %v6169, %v6169
  %v6173 = vunpack.c.l.s4 1966171168
  %v6174 = vunpack.c.0.s8 %v6173
  %v6175 = vlaneseq
  %v6176 = vshrl.u32 %v6175, 7
  %v6177 = vsub.s32 %v6174, %v6176
  %v6178 = vrot.slane %v6162, %v6177
  %v6180 = vunpack.c.l.s4 1966171168
  %v6181 = vunpack.c.0.s8 %v6180
  %v6182 = vlaneseq
  %v6183 = vshrl.u32 %v6182, 7
  %v6184 = vsub.s32 %v6181, %v6183
  %v6185 = vrot.slane %v6169, %v6184
  %v6187 = vunpack.c.l.s4 1966171168
  %v6188 = vunpack.c.0.s8 %v6187
  %v6189 = vlaneseq
  %v6190 = vshrl.u32 %v6189, 7
  %v6191 = vsub.s32 %v6188, %v6190
  %v6192 = vrot.slane %v6170, %v6191
  %v6194 = vunpack.c.l.s4 1966171168
  %v6195 = vunpack.c.0.s8 %v6194
  %v6196 = vlaneseq
  %v6197 = vshrl.u32 %v6196, 7
  %v6198 = vsub.s32 %v6195, %v6197
  %v6199 = vrot.slane %v6171, %v6198
  %v6200 = vcombine.high %v6178, %v6178
  %v6201 = vcombine.high %v6185, %v6185
  %v6202 = vcombine.high %v6192, %v6192
  %v6203 = vcombine.high %v6199, %v6199
  %v6204 = vcombine.high %v6150, %v6150
  %v6206 = vunpack.c.l.s4 1966171168
  %v6207 = vunpack.c.0.s8 %v6206
  %v6208 = vlaneseq
  %v6209 = vshrl.u32 %v6208, 7
  %v6210 = vsub.s32 %v6207, %v6209
  %v6211 = vrot.slane %v6150, %v6210
  %v6213 = vunpack.c.l.s4 1966171168
  %v6214 = vunpack.c.0.s8 %v6213
  %v6215 = vlaneseq
  %v6216 = vshrl.u32 %v6215, 7
  %v6217 = vsub.s32 %v6214, %v6216
  %v6218 = vrot.slane %v6204, %v6217
  %v6219 = vcombine.high %v6211, %v6211
  %v6220 = vcombine.high %v6218, %v6218
  %v6222 = vunpack.c.l.s4 1966171168
  %v6223 = vunpack.c.0.s8 %v6222
  %v6224 = vlaneseq
  %v6225 = vshrl.u32 %v6224, 7
  %v6226 = vsub.s32 %v6223, %v6225
  %v6227 = vrot.slane %v6211, %v6226
  %v6229 = vunpack.c.l.s4 1966171168
  %v6230 = vunpack.c.0.s8 %v6229
  %v6231 = vlaneseq
  %v6232 = vshrl.u32 %v6231, 7
  %v6233 = vsub.s32 %v6230, %v6232
  %v6234 = vrot.slane %v6218, %v6233
  %v6236 = vunpack.c.l.s4 1966171168
  %v6237 = vunpack.c.0.s8 %v6236
  %v6238 = vlaneseq
  %v6239 = vshrl.u32 %v6238, 7
  %v6240 = vsub.s32 %v6237, %v6239
  %v6241 = vrot.slane %v6219, %v6240
  %v6243 = vunpack.c.l.s4 1966171168
  %v6244 = vunpack.c.0.s8 %v6243
  %v6245 = vlaneseq
  %v6246 = vshrl.u32 %v6245, 7
  %v6247 = vsub.s32 %v6244, %v6246
  %v6248 = vrot.slane %v6220, %v6247
  %v6249 = vcombine.high %v6227, %v6227
  %v6250 = vcombine.high %v6234, %v6234
  %v6251 = vcombine.high %v6241, %v6241
  %v6252 = vcombine.high %v6248, %v6248
  %v6254 = vunpack.c.l.s4 1966171168
  %v6255 = vunpack.c.0.s8 %v6254
  %v6256 = vlaneseq
  %v6257 = vshrl.u32 %v6256, 7
  %v6258 = vsub.s32 %v6255, %v6257
  %v6259 = vrot.slane %v6151, %v6258
  %v6260 = vcombine.high %v6259, %v6259
  %v6262 = vunpack.c.l.s4 1966171168
  %v6263 = vunpack.c.0.s8 %v6262
  %v6264 = vlaneseq
  %v6265 = vshrl.u32 %v6264, 7
  %v6266 = vsub.s32 %v6263, %v6265
  %v6267 = vrot.slane %v6259, %v6266
  %v6269 = vunpack.c.l.s4 1966171168
  %v6270 = vunpack.c.0.s8 %v6269
  %v6271 = vlaneseq
  %v6272 = vshrl.u32 %v6271, 7
  %v6273 = vsub.s32 %v6270, %v6272
  %v6274 = vrot.slane %v6260, %v6273
  %6293 = vmatprep.subr.bf16.mxu0 %v2521
  %6294 = vmatpush1.bf16.msra.mxu0 %v2520
  %6295 = vmatprep.subr.bf16.mxu0 %v2517
  %6296 = vmatpush1.bf16.msra.mxu0 %v2516
  %6297 = vmatprep.subr.bf16.mxu0 %v2513
  %6298 = vmatpush1.bf16.msra.mxu0 %v2512
  %6299 = vmatprep.subr.bf16.mxu0 %v2509
  %6300 = vmatpush1.bf16.msra.mxu0 %v2508
  %6301 = vmatprep.subr.bf16.mxu0 %v2505
  %6302 = vmatpush1.bf16.msra.mxu0 %v2504
  %6303 = vmatprep.subr.bf16.mxu0 %v2501
  %6304 = vmatpush1.bf16.msra.mxu0 %v2500
  %6305 = vmatprep.subr.bf16.mxu0 %v2497
  %6306 = vmatpush1.bf16.msra.mxu0 %v2496
  %6307 = vmatprep.subr.bf16.mxu0 %v2493
  %6308 = vmatpush1.bf16.msra.mxu0 %v2492
  %6309 = vmatprep.subr.bf16.mxu0 %v2553
  %6310 = vmatpush2.bf16.msra.mxu0 %v2552
  %6311 = vmatprep.subr.bf16.mxu0 %v2549
  %6312 = vmatpush2.bf16.msra.mxu0 %v2548
  %6313 = vmatprep.subr.bf16.mxu0 %v2545
  %6314 = vmatpush2.bf16.msra.mxu0 %v2544
  %6315 = vmatprep.subr.bf16.mxu0 %v2541
  %6316 = vmatpush2.bf16.msra.mxu0 %v2540
  %6317 = vmatprep.subr.bf16.mxu0 %v2537
  %6318 = vmatpush2.bf16.msra.mxu0 %v2536
  %6319 = vmatprep.subr.bf16.mxu0 %v2533
  %6320 = vmatpush2.bf16.msra.mxu0 %v2532
  %6321 = vmatprep.subr.bf16.mxu0 %v2529
  %6322 = vmatpush2.bf16.msra.mxu0 %v2528
  %6323 = vmatprep.subr.bf16.mxu0 %v2525
  %6324 = vmatpush2.bf16.msra.mxu0 %v2524
  %6325 = vmatprep.mubr.bf16.mxu0 %v6192
  %6326 = vmatmul.mubr.bf16.gmra.mxu0 %v6178
  %v6327 = vpop.f32.mrf.mxu0
  %v6328 = vadd.f32 0.0, %v6327
  %v6329 = vpop.f32.mrf.mxu0
  %v6330 = vadd.f32 0.0, %v6329
  %v6331 = vpop.f32.mrf.mxu0
  %v6332 = vpop.f32.mrf.mxu0
  %6333 = vdwg.mxu0
  %6334 = vmatprep.subr.bf16.mxu0 %v2585
  %6335 = vmatpush1.bf16.msra.mxu0 %v2584
  %6336 = vmatprep.subr.bf16.mxu0 %v2581
  %6337 = vmatpush1.bf16.msra.mxu0 %v2580
  %6338 = vmatprep.subr.bf16.mxu0 %v2577
  %6339 = vmatpush1.bf16.msra.mxu0 %v2576
  %6340 = vmatprep.subr.bf16.mxu0 %v2573
  %6341 = vmatpush1.bf16.msra.mxu0 %v2572
  %6342 = vmatprep.subr.bf16.mxu0 %v2569
  %6343 = vmatpush1.bf16.msra.mxu0 %v2568
  %6344 = vmatprep.subr.bf16.mxu0 %v2565
  %6345 = vmatpush1.bf16.msra.mxu0 %v2564
  %6346 = vmatprep.subr.bf16.mxu0 %v2561
  %6347 = vmatpush1.bf16.msra.mxu0 %v2560
  %6348 = vmatprep.subr.bf16.mxu0 %v2557
  %6349 = vmatpush1.bf16.msra.mxu0 %v2556
  %6350 = vmatprep.subr.bf16.mxu0 %v2617
  %6351 = vmatpush2.bf16.msra.mxu0 %v2616
  %6352 = vmatprep.subr.bf16.mxu0 %v2613
  %6353 = vmatpush2.bf16.msra.mxu0 %v2612
  %6354 = vmatprep.subr.bf16.mxu0 %v2609
  %6355 = vmatpush2.bf16.msra.mxu0 %v2608
  %6356 = vmatprep.subr.bf16.mxu0 %v2605
  %6357 = vmatpush2.bf16.msra.mxu0 %v2604
  %6358 = vmatprep.subr.bf16.mxu0 %v2601
  %6359 = vmatpush2.bf16.msra.mxu0 %v2600
  %6360 = vmatprep.subr.bf16.mxu0 %v2597
  %6361 = vmatpush2.bf16.msra.mxu0 %v2596
  %6362 = vmatprep.subr.bf16.mxu0 %v2593
  %6363 = vmatpush2.bf16.msra.mxu0 %v2592
  %6364 = vmatprep.subr.bf16.mxu0 %v2589
  %6365 = vmatpush2.bf16.msra.mxu0 %v2588
  %6366 = vmatprep.mubr.bf16.mxu0 %v6202
  %6367 = vmatmul.mubr.bf16.gmra.mxu0 %v6200
  %v6368 = vpop.f32.mrf.mxu0
  %v6369 = vadd.f32 %v6328, %v6368
  %v6370 = vpop.f32.mrf.mxu0
  %v6371 = vadd.f32 %v6330, %v6370
  %v6372 = vpop.f32.mrf.mxu0
  %v6373 = vpop.f32.mrf.mxu0
  %6374 = vdwg.mxu0
  %6375 = vmatprep.subr.bf16.mxu0 %v2649
  %6376 = vmatpush1.bf16.msra.mxu0 %v2648
  %6377 = vmatprep.subr.bf16.mxu0 %v2645
  %6378 = vmatpush1.bf16.msra.mxu0 %v2644
  %6379 = vmatprep.subr.bf16.mxu0 %v2641
  %6380 = vmatpush1.bf16.msra.mxu0 %v2640
  %6381 = vmatprep.subr.bf16.mxu0 %v2637
  %6382 = vmatpush1.bf16.msra.mxu0 %v2636
  %6383 = vmatprep.subr.bf16.mxu0 %v2633
  %6384 = vmatpush1.bf16.msra.mxu0 %v2632
  %6385 = vmatprep.subr.bf16.mxu0 %v2629
  %6386 = vmatpush1.bf16.msra.mxu0 %v2628
  %6387 = vmatprep.subr.bf16.mxu0 %v2625
  %6388 = vmatpush1.bf16.msra.mxu0 %v2624
  %6389 = vmatprep.subr.bf16.mxu0 %v2621
  %6390 = vmatpush1.bf16.msra.mxu0 %v2620
  %6391 = vmatprep.subr.bf16.mxu0 %v2681
  %6392 = vmatpush2.bf16.msra.mxu0 %v2680
  %6393 = vmatprep.subr.bf16.mxu0 %v2677
  %6394 = vmatpush2.bf16.msra.mxu0 %v2676
  %6395 = vmatprep.subr.bf16.mxu0 %v2673
  %6396 = vmatpush2.bf16.msra.mxu0 %v2672
  %6397 = vmatprep.subr.bf16.mxu0 %v2669
  %6398 = vmatpush2.bf16.msra.mxu0 %v2668
  %6399 = vmatprep.subr.bf16.mxu0 %v2665
  %6400 = vmatpush2.bf16.msra.mxu0 %v2664
  %6401 = vmatprep.subr.bf16.mxu0 %v2661
  %6402 = vmatpush2.bf16.msra.mxu0 %v2660
  %6403 = vmatprep.subr.bf16.mxu0 %v2657
  %6404 = vmatpush2.bf16.msra.mxu0 %v2656
  %6405 = vmatprep.subr.bf16.mxu0 %v2653
  %6406 = vmatpush2.bf16.msra.mxu0 %v2652
  %6407 = vmatprep.mubr.bf16.mxu0 %v6199
  %6408 = vmatmul.mubr.bf16.gmra.mxu0 %v6185
  %v6409 = vpop.f32.mrf.mxu0
  %v6410 = vadd.f32 %v6369, %v6409
  %v6411 = vpop.f32.mrf.mxu0
  %v6412 = vadd.f32 %v6371, %v6411
  %v6413 = vpop.f32.mrf.mxu0
  %v6414 = vpop.f32.mrf.mxu0
  %6415 = vdwg.mxu0
  %6416 = vmatprep.subr.bf16.mxu0 %v2713
  %6417 = vmatpush1.bf16.msra.mxu0 %v2712
  %6418 = vmatprep.subr.bf16.mxu0 %v2709
  %6419 = vmatpush1.bf16.msra.mxu0 %v2708
  %6420 = vmatprep.subr.bf16.mxu0 %v2705
  %6421 = vmatpush1.bf16.msra.mxu0 %v2704
  %6422 = vmatprep.subr.bf16.mxu0 %v2701
  %6423 = vmatpush1.bf16.msra.mxu0 %v2700
  %6424 = vmatprep.subr.bf16.mxu0 %v2697
  %6425 = vmatpush1.bf16.msra.mxu0 %v2696
  %6426 = vmatprep.subr.bf16.mxu0 %v2693
  %6427 = vmatpush1.bf16.msra.mxu0 %v2692
  %6428 = vmatprep.subr.bf16.mxu0 %v2689
  %6429 = vmatpush1.bf16.msra.mxu0 %v2688
  %6430 = vmatprep.subr.bf16.mxu0 %v2685
  %6431 = vmatpush1.bf16.msra.mxu0 %v2684
  %6432 = vmatprep.subr.bf16.mxu0 %v2745
  %6433 = vmatpush2.bf16.msra.mxu0 %v2744
  %6434 = vmatprep.subr.bf16.mxu0 %v2741
  %6435 = vmatpush2.bf16.msra.mxu0 %v2740
  %6436 = vmatprep.subr.bf16.mxu0 %v2737
  %6437 = vmatpush2.bf16.msra.mxu0 %v2736
  %6438 = vmatprep.subr.bf16.mxu0 %v2733
  %6439 = vmatpush2.bf16.msra.mxu0 %v2732
  %6440 = vmatprep.subr.bf16.mxu0 %v2729
  %6441 = vmatpush2.bf16.msra.mxu0 %v2728
  %6442 = vmatprep.subr.bf16.mxu0 %v2725
  %6443 = vmatpush2.bf16.msra.mxu0 %v2724
  %6444 = vmatprep.subr.bf16.mxu0 %v2721
  %6445 = vmatpush2.bf16.msra.mxu0 %v2720
  %6446 = vmatprep.subr.bf16.mxu0 %v2717
  %6447 = vmatpush2.bf16.msra.mxu0 %v2716
  %6448 = vmatprep.mubr.bf16.mxu0 %v6203
  %6449 = vmatmul.mubr.bf16.gmra.mxu0 %v6201
  %v6450 = vpop.f32.mrf.mxu0
  %v6451 = vadd.f32 %v6410, %v6450
  %v6452 = vpop.f32.mrf.mxu0
  %v6453 = vadd.f32 %v6412, %v6452
  %v6454 = vpop.f32.mrf.mxu0
  %v6455 = vpop.f32.mrf.mxu0
  %6456 = vdwg.mxu0
  %6457 = vmatprep.subr.bf16.mxu0 %v2777
  %6458 = vmatpush1.bf16.msra.mxu0 %v2776
  %6459 = vmatprep.subr.bf16.mxu0 %v2773
  %6460 = vmatpush1.bf16.msra.mxu0 %v2772
  %6461 = vmatprep.subr.bf16.mxu0 %v2769
  %6462 = vmatpush1.bf16.msra.mxu0 %v2768
  %6463 = vmatprep.subr.bf16.mxu0 %v2765
  %6464 = vmatpush1.bf16.msra.mxu0 %v2764
  %6465 = vmatprep.subr.bf16.mxu0 %v2761
  %6466 = vmatpush1.bf16.msra.mxu0 %v2760
  %6467 = vmatprep.subr.bf16.mxu0 %v2757
  %6468 = vmatpush1.bf16.msra.mxu0 %v2756
  %6469 = vmatprep.subr.bf16.mxu0 %v2753
  %6470 = vmatpush1.bf16.msra.mxu0 %v2752
  %6471 = vmatprep.subr.bf16.mxu0 %v2749
  %6472 = vmatpush1.bf16.msra.mxu0 %v2748
  %6473 = vmatprep.subr.bf16.mxu0 %v2809
  %6474 = vmatpush2.bf16.msra.mxu0 %v2808
  %6475 = vmatprep.subr.bf16.mxu0 %v2805
  %6476 = vmatpush2.bf16.msra.mxu0 %v2804
  %6477 = vmatprep.subr.bf16.mxu0 %v2801
  %6478 = vmatpush2.bf16.msra.mxu0 %v2800
  %6479 = vmatprep.subr.bf16.mxu0 %v2797
  %6480 = vmatpush2.bf16.msra.mxu0 %v2796
  %6481 = vmatprep.subr.bf16.mxu0 %v2793
  %6482 = vmatpush2.bf16.msra.mxu0 %v2792
  %6483 = vmatprep.subr.bf16.mxu0 %v2789
  %6484 = vmatpush2.bf16.msra.mxu0 %v2788
  %6485 = vmatprep.subr.bf16.mxu0 %v2785
  %6486 = vmatpush2.bf16.msra.mxu0 %v2784
  %6487 = vmatprep.subr.bf16.mxu0 %v2781
  %6488 = vmatpush2.bf16.msra.mxu0 %v2780
  %6489 = vmatprep.mubr.bf16.mxu0 %v6241
  %6490 = vmatmul.mubr.bf16.gmra.mxu0 %v6227
  %v6491 = vpop.f32.mrf.mxu0
  %v6492 = vadd.f32 %v6451, %v6491
  %v6493 = vpop.f32.mrf.mxu0
  %v6494 = vadd.f32 %v6453, %v6493
  %v6495 = vpop.f32.mrf.mxu0
  %v6496 = vpop.f32.mrf.mxu0
  %6497 = vdwg.mxu0
  %6498 = vmatprep.subr.bf16.mxu0 %v2841
  %6499 = vmatpush1.bf16.msra.mxu0 %v2840
  %6500 = vmatprep.subr.bf16.mxu0 %v2837
  %6501 = vmatpush1.bf16.msra.mxu0 %v2836
  %6502 = vmatprep.subr.bf16.mxu0 %v2833
  %6503 = vmatpush1.bf16.msra.mxu0 %v2832
  %6504 = vmatprep.subr.bf16.mxu0 %v2829
  %6505 = vmatpush1.bf16.msra.mxu0 %v2828
  %6506 = vmatprep.subr.bf16.mxu0 %v2825
  %6507 = vmatpush1.bf16.msra.mxu0 %v2824
  %6508 = vmatprep.subr.bf16.mxu0 %v2821
  %6509 = vmatpush1.bf16.msra.mxu0 %v2820
  %6510 = vmatprep.subr.bf16.mxu0 %v2817
  %6511 = vmatpush1.bf16.msra.mxu0 %v2816
  %6512 = vmatprep.subr.bf16.mxu0 %v2813
  %6513 = vmatpush1.bf16.msra.mxu0 %v2812
  %6514 = vmatprep.subr.bf16.mxu0 %v2873
  %6515 = vmatpush2.bf16.msra.mxu0 %v2872
  %6516 = vmatprep.subr.bf16.mxu0 %v2869
  %6517 = vmatpush2.bf16.msra.mxu0 %v2868
  %6518 = vmatprep.subr.bf16.mxu0 %v2865
  %6519 = vmatpush2.bf16.msra.mxu0 %v2864
  %6520 = vmatprep.subr.bf16.mxu0 %v2861
  %6521 = vmatpush2.bf16.msra.mxu0 %v2860
  %6522 = vmatprep.subr.bf16.mxu0 %v2857
  %6523 = vmatpush2.bf16.msra.mxu0 %v2856
  %6524 = vmatprep.subr.bf16.mxu0 %v2853
  %6525 = vmatpush2.bf16.msra.mxu0 %v2852
  %6526 = vmatprep.subr.bf16.mxu0 %v2849
  %6527 = vmatpush2.bf16.msra.mxu0 %v2848
  %6528 = vmatprep.subr.bf16.mxu0 %v2845
  %6529 = vmatpush2.bf16.msra.mxu0 %v2844
  %6530 = vmatprep.mubr.bf16.mxu0 %v6251
  %6531 = vmatmul.mubr.bf16.gmra.mxu0 %v6249
  %v6532 = vpop.f32.mrf.mxu0
  %v6533 = vadd.f32 %v6492, %v6532
  %v6534 = vpop.f32.mrf.mxu0
  %v6535 = vadd.f32 %v6494, %v6534
  %v6536 = vpop.f32.mrf.mxu0
  %v6537 = vpop.f32.mrf.mxu0
  %6538 = vdwg.mxu0
  %6539 = vmatprep.subr.bf16.mxu0 %v2905
  %6540 = vmatpush1.bf16.msra.mxu0 %v2904
  %6541 = vmatprep.subr.bf16.mxu0 %v2901
  %6542 = vmatpush1.bf16.msra.mxu0 %v2900
  %6543 = vmatprep.subr.bf16.mxu0 %v2897
  %6544 = vmatpush1.bf16.msra.mxu0 %v2896
  %6545 = vmatprep.subr.bf16.mxu0 %v2893
  %6546 = vmatpush1.bf16.msra.mxu0 %v2892
  %6547 = vmatprep.subr.bf16.mxu0 %v2889
  %6548 = vmatpush1.bf16.msra.mxu0 %v2888
  %6549 = vmatprep.subr.bf16.mxu0 %v2885
  %6550 = vmatpush1.bf16.msra.mxu0 %v2884
  %6551 = vmatprep.subr.bf16.mxu0 %v2881
  %6552 = vmatpush1.bf16.msra.mxu0 %v2880
  %6553 = vmatprep.subr.bf16.mxu0 %v2877
  %6554 = vmatpush1.bf16.msra.mxu0 %v2876
  %6555 = vmatprep.subr.bf16.mxu0 %v2937
  %6556 = vmatpush2.bf16.msra.mxu0 %v2936
  %6557 = vmatprep.subr.bf16.mxu0 %v2933
  %6558 = vmatpush2.bf16.msra.mxu0 %v2932
  %6559 = vmatprep.subr.bf16.mxu0 %v2929
  %6560 = vmatpush2.bf16.msra.mxu0 %v2928
  %6561 = vmatprep.subr.bf16.mxu0 %v2925
  %6562 = vmatpush2.bf16.msra.mxu0 %v2924
  %6563 = vmatprep.subr.bf16.mxu0 %v2921
  %6564 = vmatpush2.bf16.msra.mxu0 %v2920
  %6565 = vmatprep.subr.bf16.mxu0 %v2917
  %6566 = vmatpush2.bf16.msra.mxu0 %v2916
  %6567 = vmatprep.subr.bf16.mxu0 %v2913
  %6568 = vmatpush2.bf16.msra.mxu0 %v2912
  %6569 = vmatprep.subr.bf16.mxu0 %v2909
  %6570 = vmatpush2.bf16.msra.mxu0 %v2908
  %6571 = vmatprep.mubr.bf16.mxu0 %v6248
  %6572 = vmatmul.mubr.bf16.gmra.mxu0 %v6234
  %v6573 = vpop.f32.mrf.mxu0
  %v6574 = vadd.f32 %v6533, %v6573
  %v6575 = vpop.f32.mrf.mxu0
  %v6576 = vadd.f32 %v6535, %v6575
  %v6577 = vpop.f32.mrf.mxu0
  %v6578 = vpop.f32.mrf.mxu0
  %6579 = vdwg.mxu0
  %6580 = vmatprep.subr.bf16.mxu0 %v2969
  %6581 = vmatpush1.bf16.msra.mxu0 %v2968
  %6582 = vmatprep.subr.bf16.mxu0 %v2965
  %6583 = vmatpush1.bf16.msra.mxu0 %v2964
  %6584 = vmatprep.subr.bf16.mxu0 %v2961
  %6585 = vmatpush1.bf16.msra.mxu0 %v2960
  %6586 = vmatprep.subr.bf16.mxu0 %v2957
  %6587 = vmatpush1.bf16.msra.mxu0 %v2956
  %6588 = vmatprep.subr.bf16.mxu0 %v2953
  %6589 = vmatpush1.bf16.msra.mxu0 %v2952
  %6590 = vmatprep.subr.bf16.mxu0 %v2949
  %6591 = vmatpush1.bf16.msra.mxu0 %v2948
  %6592 = vmatprep.subr.bf16.mxu0 %v2945
  %6593 = vmatpush1.bf16.msra.mxu0 %v2944
  %6594 = vmatprep.subr.bf16.mxu0 %v2941
  %6595 = vmatpush1.bf16.msra.mxu0 %v2940
  %6596 = vmatprep.subr.bf16.mxu0 %v3001
  %6597 = vmatpush2.bf16.msra.mxu0 %v3000
  %6598 = vmatprep.subr.bf16.mxu0 %v2997
  %6599 = vmatpush2.bf16.msra.mxu0 %v2996
  %6600 = vmatprep.subr.bf16.mxu0 %v2993
  %6601 = vmatpush2.bf16.msra.mxu0 %v2992
  %6602 = vmatprep.subr.bf16.mxu0 %v2989
  %6603 = vmatpush2.bf16.msra.mxu0 %v2988
  %6604 = vmatprep.subr.bf16.mxu0 %v2985
  %6605 = vmatpush2.bf16.msra.mxu0 %v2984
  %6606 = vmatprep.subr.bf16.mxu0 %v2981
  %6607 = vmatpush2.bf16.msra.mxu0 %v2980
  %6608 = vmatprep.subr.bf16.mxu0 %v2977
  %6609 = vmatpush2.bf16.msra.mxu0 %v2976
  %6610 = vmatprep.subr.bf16.mxu0 %v2973
  %6611 = vmatpush2.bf16.msra.mxu0 %v2972
  %6612 = vmatprep.mubr.bf16.mxu0 %v6252
  %6613 = vmatmul.mubr.bf16.gmra.mxu0 %v6250
  %v6614 = vpop.f32.mrf.mxu0
  %v6615 = vadd.f32 %v6574, %v6614
  %v6616 = vpop.f32.mrf.mxu0
  %v6617 = vadd.f32 %v6576, %v6616
  %v6618 = vpop.f32.mrf.mxu0
  %v6619 = vpop.f32.mrf.mxu0
  %6620 = vdwg.mxu0
  %6621 = vmatprep.subr.bf16.mxu0 %v3033
  %6622 = vmatpush1.bf16.msra.mxu0 %v3032
  %6623 = vmatprep.subr.bf16.mxu0 %v3029
  %6624 = vmatpush1.bf16.msra.mxu0 %v3028
  %6625 = vmatprep.subr.bf16.mxu0 %v3025
  %6626 = vmatpush1.bf16.msra.mxu0 %v3024
  %6627 = vmatprep.subr.bf16.mxu0 %v3021
  %6628 = vmatpush1.bf16.msra.mxu0 %v3020
  %6629 = vmatprep.subr.bf16.mxu0 %v3017
  %6630 = vmatpush1.bf16.msra.mxu0 %v3016
  %6631 = vmatprep.subr.bf16.mxu0 %v3013
  %6632 = vmatpush1.bf16.msra.mxu0 %v3012
  %6633 = vmatprep.subr.bf16.mxu0 %v3009
  %6634 = vmatpush1.bf16.msra.mxu0 %v3008
  %6635 = vmatprep.subr.bf16.mxu0 %v3005
  %6636 = vmatpush1.bf16.msra.mxu0 %v3004
  %6637 = vmatprep.subr.bf16.mxu0 %v3065
  %6638 = vmatpush2.bf16.msra.mxu0 %v3064
  %6639 = vmatprep.subr.bf16.mxu0 %v3061
  %6640 = vmatpush2.bf16.msra.mxu0 %v3060
  %6641 = vmatprep.subr.bf16.mxu0 %v3057
  %6642 = vmatpush2.bf16.msra.mxu0 %v3056
  %6643 = vmatprep.subr.bf16.mxu0 %v3053
  %6644 = vmatpush2.bf16.msra.mxu0 %v3052
  %6645 = vmatprep.subr.bf16.mxu0 %v3049
  %6646 = vmatpush2.bf16.msra.mxu0 %v3048
  %6647 = vmatprep.subr.bf16.mxu0 %v3045
  %6648 = vmatpush2.bf16.msra.mxu0 %v3044
  %6649 = vmatprep.subr.bf16.mxu0 %v3041
  %6650 = vmatpush2.bf16.msra.mxu0 %v3040
  %6651 = vmatprep.subr.bf16.mxu0 %v3037
  %6652 = vmatpush2.bf16.msra.mxu0 %v3036
  %6653 = vmatprep.mubr.bf16.mxu0 %v6274
  %6654 = vmatmul.mubr.bf16.gmra.mxu0 %v6267
  %v6655 = vpop.f32.mrf.mxu0
  %v6656 = vadd.f32 %v6615, %v6655
  %v6657 = vpop.f32.mrf.mxu0
  %v6658 = vadd.f32 %v6617, %v6657
  %v6659 = vpop.f32.mrf.mxu0
  %v6660 = vpop.f32.mrf.mxu0
  %6661 = vdwg.mxu0
  %6662 = vmatprep.subr.bf16.mxu0 %v2523
  %6663 = vmatpush1.bf16.msra.mxu0 %v2522
  %6664 = vmatprep.subr.bf16.mxu0 %v2519
  %6665 = vmatpush1.bf16.msra.mxu0 %v2518
  %6666 = vmatprep.subr.bf16.mxu0 %v2515
  %6667 = vmatpush1.bf16.msra.mxu0 %v2514
  %6668 = vmatprep.subr.bf16.mxu0 %v2511
  %6669 = vmatpush1.bf16.msra.mxu0 %v2510
  %6670 = vmatprep.subr.bf16.mxu0 %v2507
  %6671 = vmatpush1.bf16.msra.mxu0 %v2506
  %6672 = vmatprep.subr.bf16.mxu0 %v2503
  %6673 = vmatpush1.bf16.msra.mxu0 %v2502
  %6674 = vmatprep.subr.bf16.mxu0 %v2499
  %6675 = vmatpush1.bf16.msra.mxu0 %v2498
  %6676 = vmatprep.subr.bf16.mxu0 %v2495
  %6677 = vmatpush1.bf16.msra.mxu0 %v2494
  %6678 = vmatprep.subr.bf16.mxu0 %v2555
  %6679 = vmatpush2.bf16.msra.mxu0 %v2554
  %6680 = vmatprep.subr.bf16.mxu0 %v2551
  %6681 = vmatpush2.bf16.msra.mxu0 %v2550
  %6682 = vmatprep.subr.bf16.mxu0 %v2547
  %6683 = vmatpush2.bf16.msra.mxu0 %v2546
  %6684 = vmatprep.subr.bf16.mxu0 %v2543
  %6685 = vmatpush2.bf16.msra.mxu0 %v2542
  %6686 = vmatprep.subr.bf16.mxu0 %v2539
  %6687 = vmatpush2.bf16.msra.mxu0 %v2538
  %6688 = vmatprep.subr.bf16.mxu0 %v2535
  %6689 = vmatpush2.bf16.msra.mxu0 %v2534
  %6690 = vmatprep.subr.bf16.mxu0 %v2531
  %6691 = vmatpush2.bf16.msra.mxu0 %v2530
  %6692 = vmatprep.subr.bf16.mxu0 %v2527
  %6693 = vmatpush2.bf16.msra.mxu0 %v2526
  %6694 = vmatprep.mubr.bf16.mxu0 %v6192
  %6695 = vmatmul.mubr.bf16.gmra.mxu0 %v6178
  %v6696 = vpop.f32.mrf.mxu0
  %v6697 = vadd.f32 0.0, %v6696
  %v6698 = vpop.f32.mrf.mxu0
  %v6699 = vadd.f32 0.0, %v6698
  %v6700 = vpop.f32.mrf.mxu0
  %v6701 = vpop.f32.mrf.mxu0
  %6702 = vdwg.mxu0
  %6703 = vmatprep.subr.bf16.mxu0 %v2587
  %6704 = vmatpush1.bf16.msra.mxu0 %v2586
  %6705 = vmatprep.subr.bf16.mxu0 %v2583
  %6706 = vmatpush1.bf16.msra.mxu0 %v2582
  %6707 = vmatprep.subr.bf16.mxu0 %v2579
  %6708 = vmatpush1.bf16.msra.mxu0 %v2578
  %6709 = vmatprep.subr.bf16.mxu0 %v2575
  %6710 = vmatpush1.bf16.msra.mxu0 %v2574
  %6711 = vmatprep.subr.bf16.mxu0 %v2571
  %6712 = vmatpush1.bf16.msra.mxu0 %v2570
  %6713 = vmatprep.subr.bf16.mxu0 %v2567
  %6714 = vmatpush1.bf16.msra.mxu0 %v2566
  %6715 = vmatprep.subr.bf16.mxu0 %v2563
  %6716 = vmatpush1.bf16.msra.mxu0 %v2562
  %6717 = vmatprep.subr.bf16.mxu0 %v2559
  %6718 = vmatpush1.bf16.msra.mxu0 %v2558
  %6719 = vmatprep.subr.bf16.mxu0 %v2619
  %6720 = vmatpush2.bf16.msra.mxu0 %v2618
  %6721 = vmatprep.subr.bf16.mxu0 %v2615
  %6722 = vmatpush2.bf16.msra.mxu0 %v2614
  %6723 = vmatprep.subr.bf16.mxu0 %v2611
  %6724 = vmatpush2.bf16.msra.mxu0 %v2610
  %6725 = vmatprep.subr.bf16.mxu0 %v2607
  %6726 = vmatpush2.bf16.msra.mxu0 %v2606
  %6727 = vmatprep.subr.bf16.mxu0 %v2603
  %6728 = vmatpush2.bf16.msra.mxu0 %v2602
  %6729 = vmatprep.subr.bf16.mxu0 %v2599
  %6730 = vmatpush2.bf16.msra.mxu0 %v2598
  %6731 = vmatprep.subr.bf16.mxu0 %v2595
  %6732 = vmatpush2.bf16.msra.mxu0 %v2594
  %6733 = vmatprep.subr.bf16.mxu0 %v2591
  %6734 = vmatpush2.bf16.msra.mxu0 %v2590
  %6735 = vmatprep.mubr.bf16.mxu0 %v6202
  %6736 = vmatmul.mubr.bf16.gmra.mxu0 %v6200
  %v6737 = vpop.f32.mrf.mxu0
  %v6738 = vadd.f32 %v6697, %v6737
  %v6739 = vpop.f32.mrf.mxu0
  %v6740 = vadd.f32 %v6699, %v6739
  %v6741 = vpop.f32.mrf.mxu0
  %v6742 = vpop.f32.mrf.mxu0
  %6743 = vdwg.mxu0
  %6744 = vmatprep.subr.bf16.mxu0 %v2651
  %6745 = vmatpush1.bf16.msra.mxu0 %v2650
  %6746 = vmatprep.subr.bf16.mxu0 %v2647
  %6747 = vmatpush1.bf16.msra.mxu0 %v2646
  %6748 = vmatprep.subr.bf16.mxu0 %v2643
  %6749 = vmatpush1.bf16.msra.mxu0 %v2642
  %6750 = vmatprep.subr.bf16.mxu0 %v2639
  %6751 = vmatpush1.bf16.msra.mxu0 %v2638
  %6752 = vmatprep.subr.bf16.mxu0 %v2635
  %6753 = vmatpush1.bf16.msra.mxu0 %v2634
  %6754 = vmatprep.subr.bf16.mxu0 %v2631
  %6755 = vmatpush1.bf16.msra.mxu0 %v2630
  %6756 = vmatprep.subr.bf16.mxu0 %v2627
  %6757 = vmatpush1.bf16.msra.mxu0 %v2626
  %6758 = vmatprep.subr.bf16.mxu0 %v2623
  %6759 = vmatpush1.bf16.msra.mxu0 %v2622
  %6760 = vmatprep.subr.bf16.mxu0 %v2683
  %6761 = vmatpush2.bf16.msra.mxu0 %v2682
  %6762 = vmatprep.subr.bf16.mxu0 %v2679
  %6763 = vmatpush2.bf16.msra.mxu0 %v2678
  %6764 = vmatprep.subr.bf16.mxu0 %v2675
  %6765 = vmatpush2.bf16.msra.mxu0 %v2674
  %6766 = vmatprep.subr.bf16.mxu0 %v2671
  %6767 = vmatpush2.bf16.msra.mxu0 %v2670
  %6768 = vmatprep.subr.bf16.mxu0 %v2667
  %6769 = vmatpush2.bf16.msra.mxu0 %v2666
  %6770 = vmatprep.subr.bf16.mxu0 %v2663
  %6771 = vmatpush2.bf16.msra.mxu0 %v2662
  %6772 = vmatprep.subr.bf16.mxu0 %v2659
  %6773 = vmatpush2.bf16.msra.mxu0 %v2658
  %6774 = vmatprep.subr.bf16.mxu0 %v2655
  %6775 = vmatpush2.bf16.msra.mxu0 %v2654
  %6776 = vmatprep.mubr.bf16.mxu0 %v6199
  %6777 = vmatmul.mubr.bf16.gmra.mxu0 %v6185
  %v6778 = vpop.f32.mrf.mxu0
  %v6779 = vadd.f32 %v6738, %v6778
  %v6780 = vpop.f32.mrf.mxu0
  %v6781 = vadd.f32 %v6740, %v6780
  %v6782 = vpop.f32.mrf.mxu0
  %v6783 = vpop.f32.mrf.mxu0
  %6784 = vdwg.mxu0
  %6785 = vmatprep.subr.bf16.mxu0 %v2715
  %6786 = vmatpush1.bf16.msra.mxu0 %v2714
  %6787 = vmatprep.subr.bf16.mxu0 %v2711
  %6788 = vmatpush1.bf16.msra.mxu0 %v2710
  %6789 = vmatprep.subr.bf16.mxu0 %v2707
  %6790 = vmatpush1.bf16.msra.mxu0 %v2706
  %6791 = vmatprep.subr.bf16.mxu0 %v2703
  %6792 = vmatpush1.bf16.msra.mxu0 %v2702
  %6793 = vmatprep.subr.bf16.mxu0 %v2699
  %6794 = vmatpush1.bf16.msra.mxu0 %v2698
  %6795 = vmatprep.subr.bf16.mxu0 %v2695
  %6796 = vmatpush1.bf16.msra.mxu0 %v2694
  %6797 = vmatprep.subr.bf16.mxu0 %v2691
  %6798 = vmatpush1.bf16.msra.mxu0 %v2690
  %6799 = vmatprep.subr.bf16.mxu0 %v2687
  %6800 = vmatpush1.bf16.msra.mxu0 %v2686
  %6801 = vmatprep.subr.bf16.mxu0 %v2747
  %6802 = vmatpush2.bf16.msra.mxu0 %v2746
  %6803 = vmatprep.subr.bf16.mxu0 %v2743
  %6804 = vmatpush2.bf16.msra.mxu0 %v2742
  %6805 = vmatprep.subr.bf16.mxu0 %v2739
  %6806 = vmatpush2.bf16.msra.mxu0 %v2738
  %6807 = vmatprep.subr.bf16.mxu0 %v2735
  %6808 = vmatpush2.bf16.msra.mxu0 %v2734
  %6809 = vmatprep.subr.bf16.mxu0 %v2731
  %6810 = vmatpush2.bf16.msra.mxu0 %v2730
  %6811 = vmatprep.subr.bf16.mxu0 %v2727
  %6812 = vmatpush2.bf16.msra.mxu0 %v2726
  %6813 = vmatprep.subr.bf16.mxu0 %v2723
  %6814 = vmatpush2.bf16.msra.mxu0 %v2722
  %6815 = vmatprep.subr.bf16.mxu0 %v2719
  %6816 = vmatpush2.bf16.msra.mxu0 %v2718
  %6817 = vmatprep.mubr.bf16.mxu0 %v6203
  %6818 = vmatmul.mubr.bf16.gmra.mxu0 %v6201
  %v6819 = vpop.f32.mrf.mxu0
  %v6820 = vadd.f32 %v6779, %v6819
  %v6821 = vpop.f32.mrf.mxu0
  %v6822 = vadd.f32 %v6781, %v6821
  %v6823 = vpop.f32.mrf.mxu0
  %v6824 = vpop.f32.mrf.mxu0
  %6825 = vdwg.mxu0
  %6826 = vmatprep.subr.bf16.mxu0 %v2779
  %6827 = vmatpush1.bf16.msra.mxu0 %v2778
  %6828 = vmatprep.subr.bf16.mxu0 %v2775
  %6829 = vmatpush1.bf16.msra.mxu0 %v2774
  %6830 = vmatprep.subr.bf16.mxu0 %v2771
  %6831 = vmatpush1.bf16.msra.mxu0 %v2770
  %6832 = vmatprep.subr.bf16.mxu0 %v2767
  %6833 = vmatpush1.bf16.msra.mxu0 %v2766
  %6834 = vmatprep.subr.bf16.mxu0 %v2763
  %6835 = vmatpush1.bf16.msra.mxu0 %v2762
  %6836 = vmatprep.subr.bf16.mxu0 %v2759
  %6837 = vmatpush1.bf16.msra.mxu0 %v2758
  %6838 = vmatprep.subr.bf16.mxu0 %v2755
  %6839 = vmatpush1.bf16.msra.mxu0 %v2754
  %6840 = vmatprep.subr.bf16.mxu0 %v2751
  %6841 = vmatpush1.bf16.msra.mxu0 %v2750
  %6842 = vmatprep.subr.bf16.mxu0 %v2811
  %6843 = vmatpush2.bf16.msra.mxu0 %v2810
  %6844 = vmatprep.subr.bf16.mxu0 %v2807
  %6845 = vmatpush2.bf16.msra.mxu0 %v2806
  %6846 = vmatprep.subr.bf16.mxu0 %v2803
  %6847 = vmatpush2.bf16.msra.mxu0 %v2802
  %6848 = vmatprep.subr.bf16.mxu0 %v2799
  %6849 = vmatpush2.bf16.msra.mxu0 %v2798
  %6850 = vmatprep.subr.bf16.mxu0 %v2795
  %6851 = vmatpush2.bf16.msra.mxu0 %v2794
  %6852 = vmatprep.subr.bf16.mxu0 %v2791
  %6853 = vmatpush2.bf16.msra.mxu0 %v2790
  %6854 = vmatprep.subr.bf16.mxu0 %v2787
  %6855 = vmatpush2.bf16.msra.mxu0 %v2786
  %6856 = vmatprep.subr.bf16.mxu0 %v2783
  %6857 = vmatpush2.bf16.msra.mxu0 %v2782
  %6858 = vmatprep.mubr.bf16.mxu0 %v6241
  %6859 = vmatmul.mubr.bf16.gmra.mxu0 %v6227
  %v6860 = vpop.f32.mrf.mxu0
  %v6861 = vadd.f32 %v6820, %v6860
  %v6862 = vpop.f32.mrf.mxu0
  %v6863 = vadd.f32 %v6822, %v6862
  %v6864 = vpop.f32.mrf.mxu0
  %v6865 = vpop.f32.mrf.mxu0
  %6866 = vdwg.mxu0
  %6867 = vmatprep.subr.bf16.mxu0 %v2843
  %6868 = vmatpush1.bf16.msra.mxu0 %v2842
  %6869 = vmatprep.subr.bf16.mxu0 %v2839
  %6870 = vmatpush1.bf16.msra.mxu0 %v2838
  %6871 = vmatprep.subr.bf16.mxu0 %v2835
  %6872 = vmatpush1.bf16.msra.mxu0 %v2834
  %6873 = vmatprep.subr.bf16.mxu0 %v2831
  %6874 = vmatpush1.bf16.msra.mxu0 %v2830
  %6875 = vmatprep.subr.bf16.mxu0 %v2827
  %6876 = vmatpush1.bf16.msra.mxu0 %v2826
  %6877 = vmatprep.subr.bf16.mxu0 %v2823
  %6878 = vmatpush1.bf16.msra.mxu0 %v2822
  %6879 = vmatprep.subr.bf16.mxu0 %v2819
  %6880 = vmatpush1.bf16.msra.mxu0 %v2818
  %6881 = vmatprep.subr.bf16.mxu0 %v2815
  %6882 = vmatpush1.bf16.msra.mxu0 %v2814
  %6883 = vmatprep.subr.bf16.mxu0 %v2875
  %6884 = vmatpush2.bf16.msra.mxu0 %v2874
  %6885 = vmatprep.subr.bf16.mxu0 %v2871
  %6886 = vmatpush2.bf16.msra.mxu0 %v2870
  %6887 = vmatprep.subr.bf16.mxu0 %v2867
  %6888 = vmatpush2.bf16.msra.mxu0 %v2866
  %6889 = vmatprep.subr.bf16.mxu0 %v2863
  %6890 = vmatpush2.bf16.msra.mxu0 %v2862
  %6891 = vmatprep.subr.bf16.mxu0 %v2859
  %6892 = vmatpush2.bf16.msra.mxu0 %v2858
  %6893 = vmatprep.subr.bf16.mxu0 %v2855
  %6894 = vmatpush2.bf16.msra.mxu0 %v2854
  %6895 = vmatprep.subr.bf16.mxu0 %v2851
  %6896 = vmatpush2.bf16.msra.mxu0 %v2850
  %6897 = vmatprep.subr.bf16.mxu0 %v2847
  %6898 = vmatpush2.bf16.msra.mxu0 %v2846
  %6899 = vmatprep.mubr.bf16.mxu0 %v6251
  %6900 = vmatmul.mubr.bf16.gmra.mxu0 %v6249
  %v6901 = vpop.f32.mrf.mxu0
  %v6902 = vadd.f32 %v6861, %v6901
  %v6903 = vpop.f32.mrf.mxu0
  %v6904 = vadd.f32 %v6863, %v6903
  %v6905 = vpop.f32.mrf.mxu0
  %v6906 = vpop.f32.mrf.mxu0
  %6907 = vdwg.mxu0
  %6908 = vmatprep.subr.bf16.mxu0 %v2907
  %6909 = vmatpush1.bf16.msra.mxu0 %v2906
  %6910 = vmatprep.subr.bf16.mxu0 %v2903
  %6911 = vmatpush1.bf16.msra.mxu0 %v2902
  %6912 = vmatprep.subr.bf16.mxu0 %v2899
  %6913 = vmatpush1.bf16.msra.mxu0 %v2898
  %6914 = vmatprep.subr.bf16.mxu0 %v2895
  %6915 = vmatpush1.bf16.msra.mxu0 %v2894
  %6916 = vmatprep.subr.bf16.mxu0 %v2891
  %6917 = vmatpush1.bf16.msra.mxu0 %v2890
  %6918 = vmatprep.subr.bf16.mxu0 %v2887
  %6919 = vmatpush1.bf16.msra.mxu0 %v2886
  %6920 = vmatprep.subr.bf16.mxu0 %v2883
  %6921 = vmatpush1.bf16.msra.mxu0 %v2882
  %6922 = vmatprep.subr.bf16.mxu0 %v2879
  %6923 = vmatpush1.bf16.msra.mxu0 %v2878
  %6924 = vmatprep.subr.bf16.mxu0 %v2939
  %6925 = vmatpush2.bf16.msra.mxu0 %v2938
  %6926 = vmatprep.subr.bf16.mxu0 %v2935
  %6927 = vmatpush2.bf16.msra.mxu0 %v2934
  %6928 = vmatprep.subr.bf16.mxu0 %v2931
  %6929 = vmatpush2.bf16.msra.mxu0 %v2930
  %6930 = vmatprep.subr.bf16.mxu0 %v2927
  %6931 = vmatpush2.bf16.msra.mxu0 %v2926
  %6932 = vmatprep.subr.bf16.mxu0 %v2923
  %6933 = vmatpush2.bf16.msra.mxu0 %v2922
  %6934 = vmatprep.subr.bf16.mxu0 %v2919
  %6935 = vmatpush2.bf16.msra.mxu0 %v2918
  %6936 = vmatprep.subr.bf16.mxu0 %v2915
  %6937 = vmatpush2.bf16.msra.mxu0 %v2914
  %6938 = vmatprep.subr.bf16.mxu0 %v2911
  %6939 = vmatpush2.bf16.msra.mxu0 %v2910
  %6940 = vmatprep.mubr.bf16.mxu0 %v6248
  %6941 = vmatmul.mubr.bf16.gmra.mxu0 %v6234
  %v6942 = vpop.f32.mrf.mxu0
  %v6943 = vadd.f32 %v6902, %v6942
  %v6944 = vpop.f32.mrf.mxu0
  %v6945 = vadd.f32 %v6904, %v6944
  %v6946 = vpop.f32.mrf.mxu0
  %v6947 = vpop.f32.mrf.mxu0
  %6948 = vdwg.mxu0
  %6949 = vmatprep.subr.bf16.mxu0 %v2971
  %6950 = vmatpush1.bf16.msra.mxu0 %v2970
  %6951 = vmatprep.subr.bf16.mxu0 %v2967
  %6952 = vmatpush1.bf16.msra.mxu0 %v2966
  %6953 = vmatprep.subr.bf16.mxu0 %v2963
  %6954 = vmatpush1.bf16.msra.mxu0 %v2962
  %6955 = vmatprep.subr.bf16.mxu0 %v2959
  %6956 = vmatpush1.bf16.msra.mxu0 %v2958
  %6957 = vmatprep.subr.bf16.mxu0 %v2955
  %6958 = vmatpush1.bf16.msra.mxu0 %v2954
  %6959 = vmatprep.subr.bf16.mxu0 %v2951
  %6960 = vmatpush1.bf16.msra.mxu0 %v2950
  %6961 = vmatprep.subr.bf16.mxu0 %v2947
  %6962 = vmatpush1.bf16.msra.mxu0 %v2946
  %6963 = vmatprep.subr.bf16.mxu0 %v2943
  %6964 = vmatpush1.bf16.msra.mxu0 %v2942
  %6965 = vmatprep.subr.bf16.mxu0 %v3003
  %6966 = vmatpush2.bf16.msra.mxu0 %v3002
  %6967 = vmatprep.subr.bf16.mxu0 %v2999
  %6968 = vmatpush2.bf16.msra.mxu0 %v2998
  %6969 = vmatprep.subr.bf16.mxu0 %v2995
  %6970 = vmatpush2.bf16.msra.mxu0 %v2994
  %6971 = vmatprep.subr.bf16.mxu0 %v2991
  %6972 = vmatpush2.bf16.msra.mxu0 %v2990
  %6973 = vmatprep.subr.bf16.mxu0 %v2987
  %6974 = vmatpush2.bf16.msra.mxu0 %v2986
  %6975 = vmatprep.subr.bf16.mxu0 %v2983
  %6976 = vmatpush2.bf16.msra.mxu0 %v2982
  %6977 = vmatprep.subr.bf16.mxu0 %v2979
  %6978 = vmatpush2.bf16.msra.mxu0 %v2978
  %6979 = vmatprep.subr.bf16.mxu0 %v2975
  %6980 = vmatpush2.bf16.msra.mxu0 %v2974
  %6981 = vmatprep.mubr.bf16.mxu0 %v6252
  %6982 = vmatmul.mubr.bf16.gmra.mxu0 %v6250
  %v6983 = vpop.f32.mrf.mxu0
  %v6984 = vadd.f32 %v6943, %v6983
  %v6985 = vpop.f32.mrf.mxu0
  %v6986 = vadd.f32 %v6945, %v6985
  %v6987 = vpop.f32.mrf.mxu0
  %v6988 = vpop.f32.mrf.mxu0
  %6989 = vdwg.mxu0
  %6990 = vmatprep.subr.bf16.mxu0 %v3035
  %6991 = vmatpush1.bf16.msra.mxu0 %v3034
  %6992 = vmatprep.subr.bf16.mxu0 %v3031
  %6993 = vmatpush1.bf16.msra.mxu0 %v3030
  %6994 = vmatprep.subr.bf16.mxu0 %v3027
  %6995 = vmatpush1.bf16.msra.mxu0 %v3026
  %6996 = vmatprep.subr.bf16.mxu0 %v3023
  %6997 = vmatpush1.bf16.msra.mxu0 %v3022
  %6998 = vmatprep.subr.bf16.mxu0 %v3019
  %6999 = vmatpush1.bf16.msra.mxu0 %v3018
  %7000 = vmatprep.subr.bf16.mxu0 %v3015
  %7001 = vmatpush1.bf16.msra.mxu0 %v3014
  %7002 = vmatprep.subr.bf16.mxu0 %v3011
  %7003 = vmatpush1.bf16.msra.mxu0 %v3010
  %7004 = vmatprep.subr.bf16.mxu0 %v3007
  %7005 = vmatpush1.bf16.msra.mxu0 %v3006
  %7006 = vmatprep.subr.bf16.mxu0 %v3067
  %7007 = vmatpush2.bf16.msra.mxu0 %v3066
  %7008 = vmatprep.subr.bf16.mxu0 %v3063
  %7009 = vmatpush2.bf16.msra.mxu0 %v3062
  %7010 = vmatprep.subr.bf16.mxu0 %v3059
  %7011 = vmatpush2.bf16.msra.mxu0 %v3058
  %7012 = vmatprep.subr.bf16.mxu0 %v3055
  %7013 = vmatpush2.bf16.msra.mxu0 %v3054
  %7014 = vmatprep.subr.bf16.mxu0 %v3051
  %7015 = vmatpush2.bf16.msra.mxu0 %v3050
  %7016 = vmatprep.subr.bf16.mxu0 %v3047
  %7017 = vmatpush2.bf16.msra.mxu0 %v3046
  %7018 = vmatprep.subr.bf16.mxu0 %v3043
  %7019 = vmatpush2.bf16.msra.mxu0 %v3042
  %7020 = vmatprep.subr.bf16.mxu0 %v3039
  %7021 = vmatpush2.bf16.msra.mxu0 %v3038
  %7022 = vmatprep.mubr.bf16.mxu0 %v6274
  %7023 = vmatmul.mubr.bf16.gmra.mxu0 %v6267
  %v7024 = vpop.f32.mrf.mxu0
  %v7025 = vadd.f32 %v6984, %v7024
  %v7026 = vpop.f32.mrf.mxu0
  %v7027 = vadd.f32 %v6986, %v7026
  %v7028 = vpop.f32.mrf.mxu0
  %v7029 = vpop.f32.mrf.mxu0
  %7030 = vdwg.mxu0
  %v7031 = vadd.f32 %v4007, %v4890
  %v7032 = vadd.f32 %v4009, %v4892
  %v7033 = vadd.f32 %v4376, %v5259
  %v7034 = vadd.f32 %v4378, %v5261
  %v7035 = vadd.f32 %v7031, %v5773
  %v7036 = vadd.f32 %v7032, %v5775
  %v7037 = vadd.f32 %v7033, %v6142
  %v7038 = vadd.f32 %v7034, %v6144
  %v7039 = vadd.f32 %v7035, %v6656
  %v7040 = vadd.f32 %v7036, %v6658
  %v7041 = vadd.f32 %v7037, %v7025
  %v7042 = vadd.f32 %v7038, %v7027
  %vm7043 = vcmask 1041408
  %v7044 = vsel %vm7043, %v7039, 0.0
  %v7045 = vrot.slane %v7044, 4
  %v7046 = vadd.f32 %v7044, %v7045
  %v7047 = vrot.slane %v7046, 2
  %v7048 = vadd.f32 %v7046, %v7047
  %v7049 = vrot.slane %v7048, 1
  %v7050 = vadd.f32 %v7048, %v7049
  %v7051 = vsel %vm7043, %v7040, 0.0
  %v7052 = vrot.slane %v7051, 4
  %v7053 = vadd.f32 %v7051, %v7052
  %v7054 = vrot.slane %v7053, 2
  %v7055 = vadd.f32 %v7053, %v7054
  %v7056 = vrot.slane %v7055, 1
  %v7057 = vadd.f32 %v7055, %v7056
  %v7058 = vsel %vm7043, %v7041, 0.0
  %v7059 = vrot.slane %v7058, 4
  %v7060 = vadd.f32 %v7058, %v7059
  %v7061 = vrot.slane %v7060, 2
  %v7062 = vadd.f32 %v7060, %v7061
  %v7063 = vrot.slane %v7062, 1
  %v7064 = vadd.f32 %v7062, %v7063
  %v7065 = vsel %vm7043, %v7042, 0.0
  %v7066 = vrot.slane %v7065, 4
  %v7067 = vadd.f32 %v7065, %v7066
  %v7068 = vrot.slane %v7067, 2
  %v7069 = vadd.f32 %v7067, %v7068
  %v7070 = vrot.slane %v7069, 1
  %v7071 = vadd.f32 %v7069, %v7070
  %v7072 = vmul.f32 %v7050, 0.125
  %v7073 = vmul.f32 %v7057, 0.125
  %v7074 = vmul.f32 %v7064, 0.125
  %v7075 = vmul.f32 %v7071, 0.125
  %v7076 = vsub.f32 %v4007, %v7072
  %v7077 = vsub.f32 %v4009, %v7073
  %v7078 = vsub.f32 %v4376, %v7074
  %v7079 = vsub.f32 %v4378, %v7075
  %v7080 = vsub.f32 %v4890, %v7072
  %v7081 = vsub.f32 %v4892, %v7073
  %v7082 = vsub.f32 %v5259, %v7074
  %v7083 = vsub.f32 %v5261, %v7075
  %v7084 = vsub.f32 %v5773, %v7072
  %v7085 = vsub.f32 %v5775, %v7073
  %v7086 = vsub.f32 %v6142, %v7074
  %v7087 = vsub.f32 %v6144, %v7075
  %v7088 = vsub.f32 %v6656, %v7072
  %v7089 = vsub.f32 %v6658, %v7073
  %v7090 = vsub.f32 %v7025, %v7074
  %v7091 = vsub.f32 %v7027, %v7075
  %v7092 = vmul.f32 %v7076, %v7076
  %v7093 = vmul.f32 %v7077, %v7077
  %v7094 = vmul.f32 %v7078, %v7078
  %v7095 = vmul.f32 %v7079, %v7079
  %v7096 = vmul.f32 %v7080, %v7080
  %v7097 = vmul.f32 %v7081, %v7081
  %v7098 = vmul.f32 %v7082, %v7082
  %v7099 = vmul.f32 %v7083, %v7083
  %v7100 = vadd.f32 %v7092, %v7096
  %v7101 = vadd.f32 %v7093, %v7097
  %v7102 = vadd.f32 %v7094, %v7098
  %v7103 = vadd.f32 %v7095, %v7099
  %v7104 = vmul.f32 %v7084, %v7084
  %v7105 = vmul.f32 %v7085, %v7085
  %v7106 = vmul.f32 %v7086, %v7086
  %v7107 = vmul.f32 %v7087, %v7087
  %v7108 = vadd.f32 %v7100, %v7104
  %v7109 = vadd.f32 %v7101, %v7105
  %v7110 = vadd.f32 %v7102, %v7106
  %v7111 = vadd.f32 %v7103, %v7107
  %v7112 = vmul.f32 %v7088, %v7088
  %v7113 = vmul.f32 %v7089, %v7089
  %v7114 = vmul.f32 %v7090, %v7090
  %v7115 = vmul.f32 %v7091, %v7091
  %v7116 = vadd.f32 %v7108, %v7112
  %v7117 = vadd.f32 %v7109, %v7113
  %v7118 = vadd.f32 %v7110, %v7114
  %v7119 = vadd.f32 %v7111, %v7115
  %v7120 = vsel %vm7043, %v7116, 0.0
  %v7121 = vrot.slane %v7120, 4
  %v7122 = vadd.f32 %v7120, %v7121
  %v7123 = vrot.slane %v7122, 2
  %v7124 = vadd.f32 %v7122, %v7123
  %v7125 = vrot.slane %v7124, 1
  %v7126 = vadd.f32 %v7124, %v7125
  %v7127 = vsel %vm7043, %v7117, 0.0
  %v7128 = vrot.slane %v7127, 4
  %v7129 = vadd.f32 %v7127, %v7128
  %v7130 = vrot.slane %v7129, 2
  %v7131 = vadd.f32 %v7129, %v7130
  %v7132 = vrot.slane %v7131, 1
  %v7133 = vadd.f32 %v7131, %v7132
  %v7134 = vsel %vm7043, %v7118, 0.0
  %v7135 = vrot.slane %v7134, 4
  %v7136 = vadd.f32 %v7134, %v7135
  %v7137 = vrot.slane %v7136, 2
  %v7138 = vadd.f32 %v7136, %v7137
  %v7139 = vrot.slane %v7138, 1
  %v7140 = vadd.f32 %v7138, %v7139
  %v7141 = vsel %vm7043, %v7119, 0.0
  %v7142 = vrot.slane %v7141, 4
  %v7143 = vadd.f32 %v7141, %v7142
  %v7144 = vrot.slane %v7143, 2
  %v7145 = vadd.f32 %v7143, %v7144
  %v7146 = vrot.slane %v7145, 1
  %v7147 = vadd.f32 %v7145, %v7146
  %v7148 = vmul.f32 %v7126, 0.125
  %v7149 = vmul.f32 %v7133, 0.125
  %v7150 = vmul.f32 %v7140, 0.125
  %v7151 = vmul.f32 %v7147, 0.125
  %v7152 = vadd.f32 %v7148, 1e-05
  %v7153 = vadd.f32 %v7149, 1e-05
  %v7154 = vadd.f32 %v7150, 1e-05
  %v7155 = vadd.f32 %v7151, 1e-05
  %v7156 = vrsqrt.pop %v7152
  %v7157 = vrsqrt.pop %v7153
  %v7158 = vrsqrt.pop %v7154
  %v7159 = vrsqrt.pop %v7155
  %v7160 = vld [vmem:[%s2] sm:$0xf]
  %v7162 = vlaneseq
  %v7163 = vshrl.u32 %v7162, 7
  %v7164 = vsub.s32 0, %v7163
  %v7165 = vrot.slane %v7160, %v7164
  %v7166 = vlaneseq
  %v7167 = vshrl.u32 %v7166, 7
  %v7168 = vsub.s32 1, %v7167
  %v7169 = vrot.slane %v7160, %v7168
  %v7170 = vlaneseq
  %v7171 = vshrl.u32 %v7170, 7
  %v7172 = vsub.s32 2, %v7171
  %v7173 = vrot.slane %v7160, %v7172
  %v7174 = vlaneseq
  %v7175 = vshrl.u32 %v7174, 7
  %v7176 = vsub.s32 3, %v7175
  %v7177 = vrot.slane %v7160, %v7176
  %v7182 = vmul.f32 %v7156, %v7165
  %v7183 = vmul.f32 %v7157, %v7169
  %v7184 = vmul.f32 %v7158, %v7173
  %v7185 = vmul.f32 %v7159, %v7177
  %v7186 = vlaneseq
  %v7187 = vshrl.u32 %v7186, 7
  %v7188 = vsub.s32 0, %v7187
  %v7189 = vrot.slane %v7182, %v7188
  %v7190 = vlaneseq
  %v7191 = vshrl.u32 %v7190, 7
  %v7192 = vsub.s32 0, %v7191
  %v7193 = vrot.slane %v7183, %v7192
  %v7194 = vlaneseq
  %v7195 = vshrl.u32 %v7194, 7
  %v7196 = vsub.s32 0, %v7195
  %v7197 = vrot.slane %v7184, %v7196
  %v7198 = vlaneseq
  %v7199 = vshrl.u32 %v7198, 7
  %v7200 = vsub.s32 0, %v7199
  %v7201 = vrot.slane %v7185, %v7200
  %v7202 = vmul.f32 %v7076, %v7189
  %v7203 = vmul.f32 %v7077, %v7193
  %v7204 = vmul.f32 %v7078, %v7197
  %v7205 = vmul.f32 %v7079, %v7201
  %v7206 = vld [vmem:[%s3] sm:$0xf]
  %v7208 = vlaneseq
  %v7209 = vshrl.u32 %v7208, 7
  %v7210 = vsub.s32 0, %v7209
  %v7211 = vrot.slane %v7206, %v7210
  %v7212 = vlaneseq
  %v7213 = vshrl.u32 %v7212, 7
  %v7214 = vsub.s32 1, %v7213
  %v7215 = vrot.slane %v7206, %v7214
  %v7216 = vlaneseq
  %v7217 = vshrl.u32 %v7216, 7
  %v7218 = vsub.s32 2, %v7217
  %v7219 = vrot.slane %v7206, %v7218
  %v7220 = vlaneseq
  %v7221 = vshrl.u32 %v7220, 7
  %v7222 = vsub.s32 3, %v7221
  %v7223 = vrot.slane %v7206, %v7222
  %v7228 = vadd.f32 %v7202, %v7211
  %v7229 = vadd.f32 %v7203, %v7215
  %v7230 = vadd.f32 %v7204, %v7219
  %v7231 = vadd.f32 %v7205, %v7223
  %vm7232 = vcmp.gt.f32.partialorder %v7228, 0.0
  %vm7233 = vcmp.gt.f32.partialorder %v7229, 0.0
  %vm7234 = vcmp.gt.f32.partialorder %v7230, 0.0
  %vm7235 = vcmp.gt.f32.partialorder %v7231, 0.0
  %v7236 = vmul.f32 %v7228, 0.01
  %v7237 = vmul.f32 %v7229, 0.01
  %v7238 = vmul.f32 %v7230, 0.01
  %v7239 = vmul.f32 %v7231, 0.01
  %v7240 = vsel %vm7232, %v7228, %v7236
  %v7241 = vsel %vm7233, %v7229, %v7237
  %v7242 = vsel %vm7234, %v7230, %v7238
  %v7243 = vsel %vm7235, %v7231, %v7239
  %v7244 = vpack.c.bf16 %v7240, %v7240
  %v7245 = vpack.c.bf16 %v7241, %v7241
  %v7246 = vpack.c.bf16 %v7242, %v7242
  %v7247 = vpack.c.bf16 %v7243, %v7243
  %v7248 = vld [vmem:[%s4] sm:$0xff]
  %v7249 = vld [vmem:[%s4 + $0x8] sm:$0xff]
  %v7250 = vld [vmem:[%s4 + $0x10] sm:$0xff]
  %v7251 = vld [vmem:[%s4 + $0x18] sm:$0xff]
  %v7252 = vld [vmem:[%s4 + $0x20] sm:$0xff]
  %v7253 = vld [vmem:[%s4 + $0x28] sm:$0xff]
  %v7254 = vld [vmem:[%s4 + $0x30] sm:$0xff]
  %v7255 = vld [vmem:[%s4 + $0x38] sm:$0xff]
  %v7256 = vld [vmem:[%s4 + $0x40] sm:$0xff]
  %v7257 = vld [vmem:[%s4 + $0x48] sm:$0xff]
  %v7258 = vld [vmem:[%s4 + $0x50] sm:$0xff]
  %v7259 = vld [vmem:[%s4 + $0x58] sm:$0xff]
  %v7260 = vld [vmem:[%s4 + $0x60] sm:$0xff]
  %v7261 = vld [vmem:[%s4 + $0x68] sm:$0xff]
  %v7262 = vld [vmem:[%s4 + $0x70] sm:$0xff]
  %v7263 = vld [vmem:[%s4 + $0x78] sm:$0xff]
  %v7264 = vld [vmem:[%s4 + $0x80] sm:$0xff]
  %v7265 = vld [vmem:[%s4 + $0x88] sm:$0xff]
  %v7266 = vld [vmem:[%s4 + $0x90] sm:$0xff]
  %v7267 = vld [vmem:[%s4 + $0x98] sm:$0xff]
  %v7268 = vld [vmem:[%s4 + $0xa0] sm:$0xff]
  %v7269 = vld [vmem:[%s4 + $0xa8] sm:$0xff]
  %v7270 = vld [vmem:[%s4 + $0xb0] sm:$0xff]
  %v7271 = vld [vmem:[%s4 + $0xb8] sm:$0xff]
  %v7272 = vld [vmem:[%s4 + $0xc0] sm:$0xff]
  %v7273 = vld [vmem:[%s4 + $0xc8] sm:$0xff]
  %v7274 = vld [vmem:[%s4 + $0xd0] sm:$0xff]
  %v7275 = vld [vmem:[%s4 + $0xd8] sm:$0xff]
  %v7276 = vld [vmem:[%s4 + $0xe0] sm:$0xff]
  %v7277 = vld [vmem:[%s4 + $0xe8] sm:$0xff]
  %v7278 = vld [vmem:[%s4 + $0xf0] sm:$0xff]
  %v7279 = vld [vmem:[%s4 + $0xf8] sm:$0xff]
  %v7280 = vld [vmem:[%s4 + $0x100] sm:$0xff]
  %v7281 = vld [vmem:[%s4 + $0x108] sm:$0xff]
  %v7282 = vld [vmem:[%s4 + $0x110] sm:$0xff]
  %v7283 = vld [vmem:[%s4 + $0x118] sm:$0xff]
  %v7284 = vld [vmem:[%s4 + $0x120] sm:$0xff]
  %v7285 = vld [vmem:[%s4 + $0x128] sm:$0xff]
  %v7286 = vld [vmem:[%s4 + $0x130] sm:$0xff]
  %v7287 = vld [vmem:[%s4 + $0x138] sm:$0xff]
  %v7288 = vld [vmem:[%s4 + $0x140] sm:$0xff]
  %v7289 = vld [vmem:[%s4 + $0x148] sm:$0xff]
  %v7290 = vld [vmem:[%s4 + $0x150] sm:$0xff]
  %v7291 = vld [vmem:[%s4 + $0x158] sm:$0xff]
  %v7292 = vld [vmem:[%s4 + $0x160] sm:$0xff]
  %v7293 = vld [vmem:[%s4 + $0x168] sm:$0xff]
  %v7294 = vld [vmem:[%s4 + $0x170] sm:$0xff]
  %v7295 = vld [vmem:[%s4 + $0x178] sm:$0xff]
  %v7296 = vld [vmem:[%s4 + $0x180] sm:$0xff]
  %v7297 = vld [vmem:[%s4 + $0x188] sm:$0xff]
  %v7298 = vld [vmem:[%s4 + $0x190] sm:$0xff]
  %v7299 = vld [vmem:[%s4 + $0x198] sm:$0xff]
  %v7300 = vld [vmem:[%s4 + $0x1a0] sm:$0xff]
  %v7301 = vld [vmem:[%s4 + $0x1a8] sm:$0xff]
  %v7302 = vld [vmem:[%s4 + $0x1b0] sm:$0xff]
  %v7303 = vld [vmem:[%s4 + $0x1b8] sm:$0xff]
  %v7304 = vld [vmem:[%s4 + $0x1c0] sm:$0xff]
  %v7305 = vld [vmem:[%s4 + $0x1c8] sm:$0xff]
  %v7306 = vld [vmem:[%s4 + $0x1d0] sm:$0xff]
  %v7307 = vld [vmem:[%s4 + $0x1d8] sm:$0xff]
  %v7308 = vld [vmem:[%s4 + $0x1e0] sm:$0xff]
  %v7309 = vld [vmem:[%s4 + $0x1e8] sm:$0xff]
  %v7310 = vld [vmem:[%s4 + $0x1f0] sm:$0xff]
  %v7311 = vld [vmem:[%s4 + $0x1f8] sm:$0xff]
  %v7312 = vmul.f32 %v7080, %v7189
  %v7313 = vmul.f32 %v7081, %v7193
  %v7314 = vmul.f32 %v7082, %v7197
  %v7315 = vmul.f32 %v7083, %v7201
  %v7316 = vadd.f32 %v7312, %v7211
  %v7317 = vadd.f32 %v7313, %v7215
  %v7318 = vadd.f32 %v7314, %v7219
  %v7319 = vadd.f32 %v7315, %v7223
  %vm7320 = vcmp.gt.f32.partialorder %v7316, 0.0
  %vm7321 = vcmp.gt.f32.partialorder %v7317, 0.0
  %vm7322 = vcmp.gt.f32.partialorder %v7318, 0.0
  %vm7323 = vcmp.gt.f32.partialorder %v7319, 0.0
  %v7324 = vmul.f32 %v7316, 0.01
  %v7325 = vmul.f32 %v7317, 0.01
  %v7326 = vmul.f32 %v7318, 0.01
  %v7327 = vmul.f32 %v7319, 0.01
  %v7328 = vsel %vm7320, %v7316, %v7324
  %v7329 = vsel %vm7321, %v7317, %v7325
  %v7330 = vsel %vm7322, %v7318, %v7326
  %v7331 = vsel %vm7323, %v7319, %v7327
  %v7332 = vpack.c.bf16 %v7328, %v7328
  %v7333 = vpack.c.bf16 %v7329, %v7329
  %v7334 = vpack.c.bf16 %v7330, %v7330
  %v7335 = vpack.c.bf16 %v7331, %v7331
  %s7336 = scalar_lea.vmem %s4, 512
  %v7337 = vld [vmem:[%s7336] sm:$0xff]
  %v7338 = vld [vmem:[%s7336 + $0x8] sm:$0xff]
  %v7339 = vld [vmem:[%s7336 + $0x10] sm:$0xff]
  %v7340 = vld [vmem:[%s7336 + $0x18] sm:$0xff]
  %v7341 = vld [vmem:[%s7336 + $0x20] sm:$0xff]
  %v7342 = vld [vmem:[%s7336 + $0x28] sm:$0xff]
  %v7343 = vld [vmem:[%s7336 + $0x30] sm:$0xff]
  %v7344 = vld [vmem:[%s7336 + $0x38] sm:$0xff]
  %v7345 = vld [vmem:[%s7336 + $0x40] sm:$0xff]
  %v7346 = vld [vmem:[%s7336 + $0x48] sm:$0xff]
  %v7347 = vld [vmem:[%s7336 + $0x50] sm:$0xff]
  %v7348 = vld [vmem:[%s7336 + $0x58] sm:$0xff]
  %v7349 = vld [vmem:[%s7336 + $0x60] sm:$0xff]
  %v7350 = vld [vmem:[%s7336 + $0x68] sm:$0xff]
  %v7351 = vld [vmem:[%s7336 + $0x70] sm:$0xff]
  %v7352 = vld [vmem:[%s7336 + $0x78] sm:$0xff]
  %v7353 = vld [vmem:[%s7336 + $0x80] sm:$0xff]
  %v7354 = vld [vmem:[%s7336 + $0x88] sm:$0xff]
  %v7355 = vld [vmem:[%s7336 + $0x90] sm:$0xff]
  %v7356 = vld [vmem:[%s7336 + $0x98] sm:$0xff]
  %v7357 = vld [vmem:[%s7336 + $0xa0] sm:$0xff]
  %v7358 = vld [vmem:[%s7336 + $0xa8] sm:$0xff]
  %v7359 = vld [vmem:[%s7336 + $0xb0] sm:$0xff]
  %v7360 = vld [vmem:[%s7336 + $0xb8] sm:$0xff]
  %v7361 = vld [vmem:[%s7336 + $0xc0] sm:$0xff]
  %v7362 = vld [vmem:[%s7336 + $0xc8] sm:$0xff]
  %v7363 = vld [vmem:[%s7336 + $0xd0] sm:$0xff]
  %v7364 = vld [vmem:[%s7336 + $0xd8] sm:$0xff]
  %v7365 = vld [vmem:[%s7336 + $0xe0] sm:$0xff]
  %v7366 = vld [vmem:[%s7336 + $0xe8] sm:$0xff]
  %v7367 = vld [vmem:[%s7336 + $0xf0] sm:$0xff]
  %v7368 = vld [vmem:[%s7336 + $0xf8] sm:$0xff]
  %v7369 = vld [vmem:[%s7336 + $0x100] sm:$0xff]
  %v7370 = vld [vmem:[%s7336 + $0x108] sm:$0xff]
  %v7371 = vld [vmem:[%s7336 + $0x110] sm:$0xff]
  %v7372 = vld [vmem:[%s7336 + $0x118] sm:$0xff]
  %v7373 = vld [vmem:[%s7336 + $0x120] sm:$0xff]
  %v7374 = vld [vmem:[%s7336 + $0x128] sm:$0xff]
  %v7375 = vld [vmem:[%s7336 + $0x130] sm:$0xff]
  %v7376 = vld [vmem:[%s7336 + $0x138] sm:$0xff]
  %v7377 = vld [vmem:[%s7336 + $0x140] sm:$0xff]
  %v7378 = vld [vmem:[%s7336 + $0x148] sm:$0xff]
  %v7379 = vld [vmem:[%s7336 + $0x150] sm:$0xff]
  %v7380 = vld [vmem:[%s7336 + $0x158] sm:$0xff]
  %v7381 = vld [vmem:[%s7336 + $0x160] sm:$0xff]
  %v7382 = vld [vmem:[%s7336 + $0x168] sm:$0xff]
  %v7383 = vld [vmem:[%s7336 + $0x170] sm:$0xff]
  %v7384 = vld [vmem:[%s7336 + $0x178] sm:$0xff]
  %v7385 = vld [vmem:[%s7336 + $0x180] sm:$0xff]
  %v7386 = vld [vmem:[%s7336 + $0x188] sm:$0xff]
  %v7387 = vld [vmem:[%s7336 + $0x190] sm:$0xff]
  %v7388 = vld [vmem:[%s7336 + $0x198] sm:$0xff]
  %v7389 = vld [vmem:[%s7336 + $0x1a0] sm:$0xff]
  %v7390 = vld [vmem:[%s7336 + $0x1a8] sm:$0xff]
  %v7391 = vld [vmem:[%s7336 + $0x1b0] sm:$0xff]
  %v7392 = vld [vmem:[%s7336 + $0x1b8] sm:$0xff]
  %v7393 = vld [vmem:[%s7336 + $0x1c0] sm:$0xff]
  %v7394 = vld [vmem:[%s7336 + $0x1c8] sm:$0xff]
  %v7395 = vld [vmem:[%s7336 + $0x1d0] sm:$0xff]
  %v7396 = vld [vmem:[%s7336 + $0x1d8] sm:$0xff]
  %v7397 = vld [vmem:[%s7336 + $0x1e0] sm:$0xff]
  %v7398 = vld [vmem:[%s7336 + $0x1e8] sm:$0xff]
  %v7399 = vld [vmem:[%s7336 + $0x1f0] sm:$0xff]
  %v7400 = vld [vmem:[%s7336 + $0x1f8] sm:$0xff]
  %v7465 = vunpack.c.l.b16 %v7337
  %v7466 = vunpack.c.h.b16 %v7337
  %v7467 = vunpack.c.l.b16 %v7338
  %v7468 = vunpack.c.h.b16 %v7338
  %v7469 = vunpack.c.l.b16 %v7339
  %v7470 = vunpack.c.h.b16 %v7339
  %v7471 = vunpack.c.l.b16 %v7340
  %v7472 = vunpack.c.h.b16 %v7340
  %v7473 = vunpack.c.l.b16 %v7341
  %v7474 = vunpack.c.h.b16 %v7341
  %v7475 = vunpack.c.l.b16 %v7342
  %v7476 = vunpack.c.h.b16 %v7342
  %v7477 = vunpack.c.l.b16 %v7343
  %v7478 = vunpack.c.h.b16 %v7343
  %v7479 = vunpack.c.l.b16 %v7344
  %v7480 = vunpack.c.h.b16 %v7344
  %v7481 = vunpack.c.l.b16 %v7345
  %v7482 = vunpack.c.h.b16 %v7345
  %v7483 = vunpack.c.l.b16 %v7346
  %v7484 = vunpack.c.h.b16 %v7346
  %v7485 = vunpack.c.l.b16 %v7347
  %v7486 = vunpack.c.h.b16 %v7347
  %v7487 = vunpack.c.l.b16 %v7348
  %v7488 = vunpack.c.h.b16 %v7348
  %v7489 = vunpack.c.l.b16 %v7349
  %v7490 = vunpack.c.h.b16 %v7349
  %v7491 = vunpack.c.l.b16 %v7350
  %v7492 = vunpack.c.h.b16 %v7350
  %v7493 = vunpack.c.l.b16 %v7351
  %v7494 = vunpack.c.h.b16 %v7351
  %v7495 = vunpack.c.l.b16 %v7352
  %v7496 = vunpack.c.h.b16 %v7352
  %v7497 = vunpack.c.l.b16 %v7353
  %v7498 = vunpack.c.h.b16 %v7353
  %v7499 = vunpack.c.l.b16 %v7354
  %v7500 = vunpack.c.h.b16 %v7354
  %v7501 = vunpack.c.l.b16 %v7355
  %v7502 = vunpack.c.h.b16 %v7355
  %v7503 = vunpack.c.l.b16 %v7356
  %v7504 = vunpack.c.h.b16 %v7356
  %v7505 = vunpack.c.l.b16 %v7357
  %v7506 = vunpack.c.h.b16 %v7357
  %v7507 = vunpack.c.l.b16 %v7358
  %v7508 = vunpack.c.h.b16 %v7358
  %v7509 = vunpack.c.l.b16 %v7359
  %v7510 = vunpack.c.h.b16 %v7359
  %v7511 = vunpack.c.l.b16 %v7360
  %v7512 = vunpack.c.h.b16 %v7360
  %v7513 = vunpack.c.l.b16 %v7361
  %v7514 = vunpack.c.h.b16 %v7361
  %v7515 = vunpack.c.l.b16 %v7362
  %v7516 = vunpack.c.h.b16 %v7362
  %v7517 = vunpack.c.l.b16 %v7363
  %v7518 = vunpack.c.h.b16 %v7363
  %v7519 = vunpack.c.l.b16 %v7364
  %v7520 = vunpack.c.h.b16 %v7364
  %v7521 = vunpack.c.l.b16 %v7365
  %v7522 = vunpack.c.h.b16 %v7365
  %v7523 = vunpack.c.l.b16 %v7366
  %v7524 = vunpack.c.h.b16 %v7366
  %v7525 = vunpack.c.l.b16 %v7367
  %v7526 = vunpack.c.h.b16 %v7367
  %v7527 = vunpack.c.l.b16 %v7368
  %v7528 = vunpack.c.h.b16 %v7368
  %v7529 = vunpack.c.l.b16 %v7369
  %v7530 = vunpack.c.h.b16 %v7369
  %v7531 = vunpack.c.l.b16 %v7370
  %v7532 = vunpack.c.h.b16 %v7370
  %v7533 = vunpack.c.l.b16 %v7371
  %v7534 = vunpack.c.h.b16 %v7371
  %v7535 = vunpack.c.l.b16 %v7372
  %v7536 = vunpack.c.h.b16 %v7372
  %v7537 = vunpack.c.l.b16 %v7373
  %v7538 = vunpack.c.h.b16 %v7373
  %v7539 = vunpack.c.l.b16 %v7374
  %v7540 = vunpack.c.h.b16 %v7374
  %v7541 = vunpack.c.l.b16 %v7375
  %v7542 = vunpack.c.h.b16 %v7375
  %v7543 = vunpack.c.l.b16 %v7376
  %v7544 = vunpack.c.h.b16 %v7376
  %v7545 = vunpack.c.l.b16 %v7377
  %v7546 = vunpack.c.h.b16 %v7377
  %v7547 = vunpack.c.l.b16 %v7378
  %v7548 = vunpack.c.h.b16 %v7378
  %v7549 = vunpack.c.l.b16 %v7379
  %v7550 = vunpack.c.h.b16 %v7379
  %v7551 = vunpack.c.l.b16 %v7380
  %v7552 = vunpack.c.h.b16 %v7380
  %v7553 = vunpack.c.l.b16 %v7381
  %v7554 = vunpack.c.h.b16 %v7381
  %v7555 = vunpack.c.l.b16 %v7382
  %v7556 = vunpack.c.h.b16 %v7382
  %v7557 = vunpack.c.l.b16 %v7383
  %v7558 = vunpack.c.h.b16 %v7383
  %v7559 = vunpack.c.l.b16 %v7384
  %v7560 = vunpack.c.h.b16 %v7384
  %v7561 = vunpack.c.l.b16 %v7385
  %v7562 = vunpack.c.h.b16 %v7385
  %v7563 = vunpack.c.l.b16 %v7386
  %v7564 = vunpack.c.h.b16 %v7386
  %v7565 = vunpack.c.l.b16 %v7387
  %v7566 = vunpack.c.h.b16 %v7387
  %v7567 = vunpack.c.l.b16 %v7388
  %v7568 = vunpack.c.h.b16 %v7388
  %v7569 = vunpack.c.l.b16 %v7389
  %v7570 = vunpack.c.h.b16 %v7389
  %v7571 = vunpack.c.l.b16 %v7390
  %v7572 = vunpack.c.h.b16 %v7390
  %v7573 = vunpack.c.l.b16 %v7391
  %v7574 = vunpack.c.h.b16 %v7391
  %v7575 = vunpack.c.l.b16 %v7392
  %v7576 = vunpack.c.h.b16 %v7392
  %v7577 = vunpack.c.l.b16 %v7393
  %v7578 = vunpack.c.h.b16 %v7393
  %v7579 = vunpack.c.l.b16 %v7394
  %v7580 = vunpack.c.h.b16 %v7394
  %v7581 = vunpack.c.l.b16 %v7395
  %v7582 = vunpack.c.h.b16 %v7395
  %v7583 = vunpack.c.l.b16 %v7396
  %v7584 = vunpack.c.h.b16 %v7396
  %v7585 = vunpack.c.l.b16 %v7397
  %v7586 = vunpack.c.h.b16 %v7397
  %v7587 = vunpack.c.l.b16 %v7398
  %v7588 = vunpack.c.h.b16 %v7398
  %v7589 = vunpack.c.l.b16 %v7399
  %v7590 = vunpack.c.h.b16 %v7399
  %v7591 = vunpack.c.l.b16 %v7400
  %v7592 = vunpack.c.h.b16 %v7400
  %v7593 = vpack.c.b16 %v7467, %v7465
  %v7594 = vpack.c.b16 %v7468, %v7466
  %v7595 = vpack.c.b16 %v7471, %v7469
  %v7596 = vpack.c.b16 %v7472, %v7470
  %v7597 = vpack.c.b16 %v7475, %v7473
  %v7598 = vpack.c.b16 %v7476, %v7474
  %v7599 = vpack.c.b16 %v7479, %v7477
  %v7600 = vpack.c.b16 %v7480, %v7478
  %v7601 = vpack.c.b16 %v7483, %v7481
  %v7602 = vpack.c.b16 %v7484, %v7482
  %v7603 = vpack.c.b16 %v7487, %v7485
  %v7604 = vpack.c.b16 %v7488, %v7486
  %v7605 = vpack.c.b16 %v7491, %v7489
  %v7606 = vpack.c.b16 %v7492, %v7490
  %v7607 = vpack.c.b16 %v7495, %v7493
  %v7608 = vpack.c.b16 %v7496, %v7494
  %v7609 = vpack.c.b16 %v7499, %v7497
  %v7610 = vpack.c.b16 %v7500, %v7498
  %v7611 = vpack.c.b16 %v7503, %v7501
  %v7612 = vpack.c.b16 %v7504, %v7502
  %v7613 = vpack.c.b16 %v7507, %v7505
  %v7614 = vpack.c.b16 %v7508, %v7506
  %v7615 = vpack.c.b16 %v7511, %v7509
  %v7616 = vpack.c.b16 %v7512, %v7510
  %v7617 = vpack.c.b16 %v7515, %v7513
  %v7618 = vpack.c.b16 %v7516, %v7514
  %v7619 = vpack.c.b16 %v7519, %v7517
  %v7620 = vpack.c.b16 %v7520, %v7518
  %v7621 = vpack.c.b16 %v7523, %v7521
  %v7622 = vpack.c.b16 %v7524, %v7522
  %v7623 = vpack.c.b16 %v7527, %v7525
  %v7624 = vpack.c.b16 %v7528, %v7526
  %v7625 = vpack.c.b16 %v7531, %v7529
  %v7626 = vpack.c.b16 %v7532, %v7530
  %v7627 = vpack.c.b16 %v7535, %v7533
  %v7628 = vpack.c.b16 %v7536, %v7534
  %v7629 = vpack.c.b16 %v7539, %v7537
  %v7630 = vpack.c.b16 %v7540, %v7538
  %v7631 = vpack.c.b16 %v7543, %v7541
  %v7632 = vpack.c.b16 %v7544, %v7542
  %v7633 = vpack.c.b16 %v7547, %v7545
  %v7634 = vpack.c.b16 %v7548, %v7546
  %v7635 = vpack.c.b16 %v7551, %v7549
  %v7636 = vpack.c.b16 %v7552, %v7550
  %v7637 = vpack.c.b16 %v7555, %v7553
  %v7638 = vpack.c.b16 %v7556, %v7554
  %v7639 = vpack.c.b16 %v7559, %v7557
  %v7640 = vpack.c.b16 %v7560, %v7558
  %v7641 = vpack.c.b16 %v7563, %v7561
  %v7642 = vpack.c.b16 %v7564, %v7562
  %v7643 = vpack.c.b16 %v7567, %v7565
  %v7644 = vpack.c.b16 %v7568, %v7566
  %v7645 = vpack.c.b16 %v7571, %v7569
  %v7646 = vpack.c.b16 %v7572, %v7570
  %v7647 = vpack.c.b16 %v7575, %v7573
  %v7648 = vpack.c.b16 %v7576, %v7574
  %v7649 = vpack.c.b16 %v7579, %v7577
  %v7650 = vpack.c.b16 %v7580, %v7578
  %v7651 = vpack.c.b16 %v7583, %v7581
  %v7652 = vpack.c.b16 %v7584, %v7582
  %v7653 = vpack.c.b16 %v7587, %v7585
  %v7654 = vpack.c.b16 %v7588, %v7586
  %v7655 = vpack.c.b16 %v7591, %v7589
  %v7656 = vpack.c.b16 %v7592, %v7590
  %7721 = vmatprep.subr.bf16.mxu0 %v7608
  %7722 = vmatpush1.bf16.msra.mxu0 %v7607
  %7723 = vmatprep.subr.bf16.mxu0 %v7606
  %7724 = vmatpush1.bf16.msra.mxu0 %v7605
  %7725 = vmatprep.subr.bf16.mxu0 %v7604
  %7726 = vmatpush1.bf16.msra.mxu0 %v7603
  %7727 = vmatprep.subr.bf16.mxu0 %v7602
  %7728 = vmatpush1.bf16.msra.mxu0 %v7601
  %7729 = vmatprep.subr.bf16.mxu0 %v7600
  %7730 = vmatpush1.bf16.msra.mxu0 %v7599
  %7731 = vmatprep.subr.bf16.mxu0 %v7598
  %7732 = vmatpush1.bf16.msra.mxu0 %v7597
  %7733 = vmatprep.subr.bf16.mxu0 %v7596
  %7734 = vmatpush1.bf16.msra.mxu0 %v7595
  %7735 = vmatprep.subr.bf16.mxu0 %v7594
  %7736 = vmatpush1.bf16.msra.mxu0 %v7593
  %7737 = vmatprep.subr.bf16.mxu0 %v7624
  %7738 = vmatpush2.bf16.msra.mxu0 %v7623
  %7739 = vmatprep.subr.bf16.mxu0 %v7622
  %7740 = vmatpush2.bf16.msra.mxu0 %v7621
  %7741 = vmatprep.subr.bf16.mxu0 %v7620
  %7742 = vmatpush2.bf16.msra.mxu0 %v7619
  %7743 = vmatprep.subr.bf16.mxu0 %v7618
  %7744 = vmatpush2.bf16.msra.mxu0 %v7617
  %7745 = vmatprep.subr.bf16.mxu0 %v7616
  %7746 = vmatpush2.bf16.msra.mxu0 %v7615
  %7747 = vmatprep.subr.bf16.mxu0 %v7614
  %7748 = vmatpush2.bf16.msra.mxu0 %v7613
  %7749 = vmatprep.subr.bf16.mxu0 %v7612
  %7750 = vmatpush2.bf16.msra.mxu0 %v7611
  %7751 = vmatprep.subr.bf16.mxu0 %v7610
  %7752 = vmatpush2.bf16.msra.mxu0 %v7609
  %7753 = vmatprep.mubr.bf16.mxu0 %v7333
  %7754 = vmatmul.mubr.bf16.gmra.mxu0 %v7332
  %v7755 = vpop.f32.mrf.mxu0
  %v7756 = vadd.f32 0.0, %v7755
  %v7757 = vpop.f32.mrf.mxu0
  %v7758 = vadd.f32 0.0, %v7757
  %v7759 = vpop.f32.mrf.mxu0
  %v7760 = vpop.f32.mrf.mxu0
  %7761 = vdwg.mxu0
  %7762 = vmatprep.subr.bf16.mxu0 %v7640
  %7763 = vmatpush1.bf16.msra.mxu0 %v7639
  %7764 = vmatprep.subr.bf16.mxu0 %v7638
  %7765 = vmatpush1.bf16.msra.mxu0 %v7637
  %7766 = vmatprep.subr.bf16.mxu0 %v7636
  %7767 = vmatpush1.bf16.msra.mxu0 %v7635
  %7768 = vmatprep.subr.bf16.mxu0 %v7634
  %7769 = vmatpush1.bf16.msra.mxu0 %v7633
  %7770 = vmatprep.subr.bf16.mxu0 %v7632
  %7771 = vmatpush1.bf16.msra.mxu0 %v7631
  %7772 = vmatprep.subr.bf16.mxu0 %v7630
  %7773 = vmatpush1.bf16.msra.mxu0 %v7629
  %7774 = vmatprep.subr.bf16.mxu0 %v7628
  %7775 = vmatpush1.bf16.msra.mxu0 %v7627
  %7776 = vmatprep.subr.bf16.mxu0 %v7626
  %7777 = vmatpush1.bf16.msra.mxu0 %v7625
  %7778 = vmatprep.subr.bf16.mxu0 %v7656
  %7779 = vmatpush2.bf16.msra.mxu0 %v7655
  %7780 = vmatprep.subr.bf16.mxu0 %v7654
  %7781 = vmatpush2.bf16.msra.mxu0 %v7653
  %7782 = vmatprep.subr.bf16.mxu0 %v7652
  %7783 = vmatpush2.bf16.msra.mxu0 %v7651
  %7784 = vmatprep.subr.bf16.mxu0 %v7650
  %7785 = vmatpush2.bf16.msra.mxu0 %v7649
  %7786 = vmatprep.subr.bf16.mxu0 %v7648
  %7787 = vmatpush2.bf16.msra.mxu0 %v7647
  %7788 = vmatprep.subr.bf16.mxu0 %v7646
  %7789 = vmatpush2.bf16.msra.mxu0 %v7645
  %7790 = vmatprep.subr.bf16.mxu0 %v7644
  %7791 = vmatpush2.bf16.msra.mxu0 %v7643
  %7792 = vmatprep.subr.bf16.mxu0 %v7642
  %7793 = vmatpush2.bf16.msra.mxu0 %v7641
  %7794 = vmatprep.mubr.bf16.mxu0 %v7335
  %7795 = vmatmul.mubr.bf16.gmra.mxu0 %v7334
  %v7796 = vpop.f32.mrf.mxu0
  %v7797 = vadd.f32 %v7756, %v7796
  %v7798 = vpop.f32.mrf.mxu0
  %v7799 = vadd.f32 %v7758, %v7798
  %v7800 = vpop.f32.mrf.mxu0
  %v7801 = vpop.f32.mrf.mxu0
  %7802 = vdwg.mxu0
  %v7867 = vunpack.c.l.b16 %v7248
  %v7868 = vunpack.c.h.b16 %v7248
  %v7869 = vunpack.c.l.b16 %v7249
  %v7870 = vunpack.c.h.b16 %v7249
  %v7871 = vunpack.c.l.b16 %v7250
  %v7872 = vunpack.c.h.b16 %v7250
  %v7873 = vunpack.c.l.b16 %v7251
  %v7874 = vunpack.c.h.b16 %v7251
  %v7875 = vunpack.c.l.b16 %v7252
  %v7876 = vunpack.c.h.b16 %v7252
  %v7877 = vunpack.c.l.b16 %v7253
  %v7878 = vunpack.c.h.b16 %v7253
  %v7879 = vunpack.c.l.b16 %v7254
  %v7880 = vunpack.c.h.b16 %v7254
  %v7881 = vunpack.c.l.b16 %v7255
  %v7882 = vunpack.c.h.b16 %v7255
  %v7883 = vunpack.c.l.b16 %v7256
  %v7884 = vunpack.c.h.b16 %v7256
  %v7885 = vunpack.c.l.b16 %v7257
  %v7886 = vunpack.c.h.b16 %v7257
  %v7887 = vunpack.c.l.b16 %v7258
  %v7888 = vunpack.c.h.b16 %v7258
  %v7889 = vunpack.c.l.b16 %v7259
  %v7890 = vunpack.c.h.b16 %v7259
  %v7891 = vunpack.c.l.b16 %v7260
  %v7892 = vunpack.c.h.b16 %v7260
  %v7893 = vunpack.c.l.b16 %v7261
  %v7894 = vunpack.c.h.b16 %v7261
  %v7895 = vunpack.c.l.b16 %v7262
  %v7896 = vunpack.c.h.b16 %v7262
  %v7897 = vunpack.c.l.b16 %v7263
  %v7898 = vunpack.c.h.b16 %v7263
  %v7899 = vunpack.c.l.b16 %v7264
  %v7900 = vunpack.c.h.b16 %v7264
  %v7901 = vunpack.c.l.b16 %v7265
  %v7902 = vunpack.c.h.b16 %v7265
  %v7903 = vunpack.c.l.b16 %v7266
  %v7904 = vunpack.c.h.b16 %v7266
  %v7905 = vunpack.c.l.b16 %v7267
  %v7906 = vunpack.c.h.b16 %v7267
  %v7907 = vunpack.c.l.b16 %v7268
  %v7908 = vunpack.c.h.b16 %v7268
  %v7909 = vunpack.c.l.b16 %v7269
  %v7910 = vunpack.c.h.b16 %v7269
  %v7911 = vunpack.c.l.b16 %v7270
  %v7912 = vunpack.c.h.b16 %v7270
  %v7913 = vunpack.c.l.b16 %v7271
  %v7914 = vunpack.c.h.b16 %v7271
  %v7915 = vunpack.c.l.b16 %v7272
  %v7916 = vunpack.c.h.b16 %v7272
  %v7917 = vunpack.c.l.b16 %v7273
  %v7918 = vunpack.c.h.b16 %v7273
  %v7919 = vunpack.c.l.b16 %v7274
  %v7920 = vunpack.c.h.b16 %v7274
  %v7921 = vunpack.c.l.b16 %v7275
  %v7922 = vunpack.c.h.b16 %v7275
  %v7923 = vunpack.c.l.b16 %v7276
  %v7924 = vunpack.c.h.b16 %v7276
  %v7925 = vunpack.c.l.b16 %v7277
  %v7926 = vunpack.c.h.b16 %v7277
  %v7927 = vunpack.c.l.b16 %v7278
  %v7928 = vunpack.c.h.b16 %v7278
  %v7929 = vunpack.c.l.b16 %v7279
  %v7930 = vunpack.c.h.b16 %v7279
  %v7931 = vunpack.c.l.b16 %v7280
  %v7932 = vunpack.c.h.b16 %v7280
  %v7933 = vunpack.c.l.b16 %v7281
  %v7934 = vunpack.c.h.b16 %v7281
  %v7935 = vunpack.c.l.b16 %v7282
  %v7936 = vunpack.c.h.b16 %v7282
  %v7937 = vunpack.c.l.b16 %v7283
  %v7938 = vunpack.c.h.b16 %v7283
  %v7939 = vunpack.c.l.b16 %v7284
  %v7940 = vunpack.c.h.b16 %v7284
  %v7941 = vunpack.c.l.b16 %v7285
  %v7942 = vunpack.c.h.b16 %v7285
  %v7943 = vunpack.c.l.b16 %v7286
  %v7944 = vunpack.c.h.b16 %v7286
  %v7945 = vunpack.c.l.b16 %v7287
  %v7946 = vunpack.c.h.b16 %v7287
  %v7947 = vunpack.c.l.b16 %v7288
  %v7948 = vunpack.c.h.b16 %v7288
  %v7949 = vunpack.c.l.b16 %v7289
  %v7950 = vunpack.c.h.b16 %v7289
  %v7951 = vunpack.c.l.b16 %v7290
  %v7952 = vunpack.c.h.b16 %v7290
  %v7953 = vunpack.c.l.b16 %v7291
  %v7954 = vunpack.c.h.b16 %v7291
  %v7955 = vunpack.c.l.b16 %v7292
  %v7956 = vunpack.c.h.b16 %v7292
  %v7957 = vunpack.c.l.b16 %v7293
  %v7958 = vunpack.c.h.b16 %v7293
  %v7959 = vunpack.c.l.b16 %v7294
  %v7960 = vunpack.c.h.b16 %v7294
  %v7961 = vunpack.c.l.b16 %v7295
  %v7962 = vunpack.c.h.b16 %v7295
  %v7963 = vunpack.c.l.b16 %v7296
  %v7964 = vunpack.c.h.b16 %v7296
  %v7965 = vunpack.c.l.b16 %v7297
  %v7966 = vunpack.c.h.b16 %v7297
  %v7967 = vunpack.c.l.b16 %v7298
  %v7968 = vunpack.c.h.b16 %v7298
  %v7969 = vunpack.c.l.b16 %v7299
  %v7970 = vunpack.c.h.b16 %v7299
  %v7971 = vunpack.c.l.b16 %v7300
  %v7972 = vunpack.c.h.b16 %v7300
  %v7973 = vunpack.c.l.b16 %v7301
  %v7974 = vunpack.c.h.b16 %v7301
  %v7975 = vunpack.c.l.b16 %v7302
  %v7976 = vunpack.c.h.b16 %v7302
  %v7977 = vunpack.c.l.b16 %v7303
  %v7978 = vunpack.c.h.b16 %v7303
  %v7979 = vunpack.c.l.b16 %v7304
  %v7980 = vunpack.c.h.b16 %v7304
  %v7981 = vunpack.c.l.b16 %v7305
  %v7982 = vunpack.c.h.b16 %v7305
  %v7983 = vunpack.c.l.b16 %v7306
  %v7984 = vunpack.c.h.b16 %v7306
  %v7985 = vunpack.c.l.b16 %v7307
  %v7986 = vunpack.c.h.b16 %v7307
  %v7987 = vunpack.c.l.b16 %v7308
  %v7988 = vunpack.c.h.b16 %v7308
  %v7989 = vunpack.c.l.b16 %v7309
  %v7990 = vunpack.c.h.b16 %v7309
  %v7991 = vunpack.c.l.b16 %v7310
  %v7992 = vunpack.c.h.b16 %v7310
  %v7993 = vunpack.c.l.b16 %v7311
  %v7994 = vunpack.c.h.b16 %v7311
  %v7995 = vpack.c.b16 %v7869, %v7867
  %v7996 = vpack.c.b16 %v7870, %v7868
  %v7997 = vpack.c.b16 %v7873, %v7871
  %v7998 = vpack.c.b16 %v7874, %v7872
  %v7999 = vpack.c.b16 %v7877, %v7875
  %v8000 = vpack.c.b16 %v7878, %v7876
  %v8001 = vpack.c.b16 %v7881, %v7879
  %v8002 = vpack.c.b16 %v7882, %v7880
  %v8003 = vpack.c.b16 %v7885, %v7883
  %v8004 = vpack.c.b16 %v7886, %v7884
  %v8005 = vpack.c.b16 %v7889, %v7887
  %v8006 = vpack.c.b16 %v7890, %v7888
  %v8007 = vpack.c.b16 %v7893, %v7891
  %v8008 = vpack.c.b16 %v7894, %v7892
  %v8009 = vpack.c.b16 %v7897, %v7895
  %v8010 = vpack.c.b16 %v7898, %v7896
  %v8011 = vpack.c.b16 %v7901, %v7899
  %v8012 = vpack.c.b16 %v7902, %v7900
  %v8013 = vpack.c.b16 %v7905, %v7903
  %v8014 = vpack.c.b16 %v7906, %v7904
  %v8015 = vpack.c.b16 %v7909, %v7907
  %v8016 = vpack.c.b16 %v7910, %v7908
  %v8017 = vpack.c.b16 %v7913, %v7911
  %v8018 = vpack.c.b16 %v7914, %v7912
  %v8019 = vpack.c.b16 %v7917, %v7915
  %v8020 = vpack.c.b16 %v7918, %v7916
  %v8021 = vpack.c.b16 %v7921, %v7919
  %v8022 = vpack.c.b16 %v7922, %v7920
  %v8023 = vpack.c.b16 %v7925, %v7923
  %v8024 = vpack.c.b16 %v7926, %v7924
  %v8025 = vpack.c.b16 %v7929, %v7927
  %v8026 = vpack.c.b16 %v7930, %v7928
  %v8027 = vpack.c.b16 %v7933, %v7931
  %v8028 = vpack.c.b16 %v7934, %v7932
  %v8029 = vpack.c.b16 %v7937, %v7935
  %v8030 = vpack.c.b16 %v7938, %v7936
  %v8031 = vpack.c.b16 %v7941, %v7939
  %v8032 = vpack.c.b16 %v7942, %v7940
  %v8033 = vpack.c.b16 %v7945, %v7943
  %v8034 = vpack.c.b16 %v7946, %v7944
  %v8035 = vpack.c.b16 %v7949, %v7947
  %v8036 = vpack.c.b16 %v7950, %v7948
  %v8037 = vpack.c.b16 %v7953, %v7951
  %v8038 = vpack.c.b16 %v7954, %v7952
  %v8039 = vpack.c.b16 %v7957, %v7955
  %v8040 = vpack.c.b16 %v7958, %v7956
  %v8041 = vpack.c.b16 %v7961, %v7959
  %v8042 = vpack.c.b16 %v7962, %v7960
  %v8043 = vpack.c.b16 %v7965, %v7963
  %v8044 = vpack.c.b16 %v7966, %v7964
  %v8045 = vpack.c.b16 %v7969, %v7967
  %v8046 = vpack.c.b16 %v7970, %v7968
  %v8047 = vpack.c.b16 %v7973, %v7971
  %v8048 = vpack.c.b16 %v7974, %v7972
  %v8049 = vpack.c.b16 %v7977, %v7975
  %v8050 = vpack.c.b16 %v7978, %v7976
  %v8051 = vpack.c.b16 %v7981, %v7979
  %v8052 = vpack.c.b16 %v7982, %v7980
  %v8053 = vpack.c.b16 %v7985, %v7983
  %v8054 = vpack.c.b16 %v7986, %v7984
  %v8055 = vpack.c.b16 %v7989, %v7987
  %v8056 = vpack.c.b16 %v7990, %v7988
  %v8057 = vpack.c.b16 %v7993, %v7991
  %v8058 = vpack.c.b16 %v7994, %v7992
  %8123 = vmatprep.subr.bf16.mxu0 %v8010
  %8124 = vmatpush1.bf16.msra.mxu0 %v8009
  %8125 = vmatprep.subr.bf16.mxu0 %v8008
  %8126 = vmatpush1.bf16.msra.mxu0 %v8007
  %8127 = vmatprep.subr.bf16.mxu0 %v8006
  %8128 = vmatpush1.bf16.msra.mxu0 %v8005
  %8129 = vmatprep.subr.bf16.mxu0 %v8004
  %8130 = vmatpush1.bf16.msra.mxu0 %v8003
  %8131 = vmatprep.subr.bf16.mxu0 %v8002
  %8132 = vmatpush1.bf16.msra.mxu0 %v8001
  %8133 = vmatprep.subr.bf16.mxu0 %v8000
  %8134 = vmatpush1.bf16.msra.mxu0 %v7999
  %8135 = vmatprep.subr.bf16.mxu0 %v7998
  %8136 = vmatpush1.bf16.msra.mxu0 %v7997
  %8137 = vmatprep.subr.bf16.mxu0 %v7996
  %8138 = vmatpush1.bf16.msra.mxu0 %v7995
  %8139 = vmatprep.subr.bf16.mxu0 %v8026
  %8140 = vmatpush2.bf16.msra.mxu0 %v8025
  %8141 = vmatprep.subr.bf16.mxu0 %v8024
  %8142 = vmatpush2.bf16.msra.mxu0 %v8023
  %8143 = vmatprep.subr.bf16.mxu0 %v8022
  %8144 = vmatpush2.bf16.msra.mxu0 %v8021
  %8145 = vmatprep.subr.bf16.mxu0 %v8020
  %8146 = vmatpush2.bf16.msra.mxu0 %v8019
  %8147 = vmatprep.subr.bf16.mxu0 %v8018
  %8148 = vmatpush2.bf16.msra.mxu0 %v8017
  %8149 = vmatprep.subr.bf16.mxu0 %v8016
  %8150 = vmatpush2.bf16.msra.mxu0 %v8015
  %8151 = vmatprep.subr.bf16.mxu0 %v8014
  %8152 = vmatpush2.bf16.msra.mxu0 %v8013
  %8153 = vmatprep.subr.bf16.mxu0 %v8012
  %8154 = vmatpush2.bf16.msra.mxu0 %v8011
  %8155 = vmatprep.mubr.bf16.mxu0 %v7245
  %8156 = vmatmul.mubr.bf16.gmra.mxu0 %v7244
  %v8157 = vpop.f32.mrf.mxu0
  %v8158 = vadd.f32 %v7797, %v8157
  %v8159 = vpop.f32.mrf.mxu0
  %v8160 = vadd.f32 %v7799, %v8159
  %v8161 = vpop.f32.mrf.mxu0
  %v8162 = vpop.f32.mrf.mxu0
  %8163 = vdwg.mxu0
  %8164 = vmatprep.subr.bf16.mxu0 %v8042
  %8165 = vmatpush1.bf16.msra.mxu0 %v8041
  %8166 = vmatprep.subr.bf16.mxu0 %v8040
  %8167 = vmatpush1.bf16.msra.mxu0 %v8039
  %8168 = vmatprep.subr.bf16.mxu0 %v8038
  %8169 = vmatpush1.bf16.msra.mxu0 %v8037
  %8170 = vmatprep.subr.bf16.mxu0 %v8036
  %8171 = vmatpush1.bf16.msra.mxu0 %v8035
  %8172 = vmatprep.subr.bf16.mxu0 %v8034
  %8173 = vmatpush1.bf16.msra.mxu0 %v8033
  %8174 = vmatprep.subr.bf16.mxu0 %v8032
  %8175 = vmatpush1.bf16.msra.mxu0 %v8031
  %8176 = vmatprep.subr.bf16.mxu0 %v8030
  %8177 = vmatpush1.bf16.msra.mxu0 %v8029
  %8178 = vmatprep.subr.bf16.mxu0 %v8028
  %8179 = vmatpush1.bf16.msra.mxu0 %v8027
  %8180 = vmatprep.subr.bf16.mxu0 %v8058
  %8181 = vmatpush2.bf16.msra.mxu0 %v8057
  %8182 = vmatprep.subr.bf16.mxu0 %v8056
  %8183 = vmatpush2.bf16.msra.mxu0 %v8055
  %8184 = vmatprep.subr.bf16.mxu0 %v8054
  %8185 = vmatpush2.bf16.msra.mxu0 %v8053
  %8186 = vmatprep.subr.bf16.mxu0 %v8052
  %8187 = vmatpush2.bf16.msra.mxu0 %v8051
  %8188 = vmatprep.subr.bf16.mxu0 %v8050
  %8189 = vmatpush2.bf16.msra.mxu0 %v8049
  %8190 = vmatprep.subr.bf16.mxu0 %v8048
  %8191 = vmatpush2.bf16.msra.mxu0 %v8047
  %8192 = vmatprep.subr.bf16.mxu0 %v8046
  %8193 = vmatpush2.bf16.msra.mxu0 %v8045
  %8194 = vmatprep.subr.bf16.mxu0 %v8044
  %8195 = vmatpush2.bf16.msra.mxu0 %v8043
  %8196 = vmatprep.mubr.bf16.mxu0 %v7247
  %8197 = vmatmul.mubr.bf16.gmra.mxu0 %v7246
  %v8198 = vpop.f32.mrf.mxu0
  %v8199 = vadd.f32 %v8158, %v8198
  %v8200 = vpop.f32.mrf.mxu0
  %v8201 = vadd.f32 %v8160, %v8200
  %v8202 = vpop.f32.mrf.mxu0
  %v8203 = vpop.f32.mrf.mxu0
  %8204 = vdwg.mxu0
  %v8205 = vmul.f32 %v7084, %v7189
  %v8206 = vmul.f32 %v7085, %v7193
  %v8207 = vmul.f32 %v7086, %v7197
  %v8208 = vmul.f32 %v7087, %v7201
  %v8209 = vadd.f32 %v8205, %v7211
  %v8210 = vadd.f32 %v8206, %v7215
  %v8211 = vadd.f32 %v8207, %v7219
  %v8212 = vadd.f32 %v8208, %v7223
  %vm8213 = vcmp.gt.f32.partialorder %v8209, 0.0
  %vm8214 = vcmp.gt.f32.partialorder %v8210, 0.0
  %vm8215 = vcmp.gt.f32.partialorder %v8211, 0.0
  %vm8216 = vcmp.gt.f32.partialorder %v8212, 0.0
  %v8217 = vmul.f32 %v8209, 0.01
  %v8218 = vmul.f32 %v8210, 0.01
  %v8219 = vmul.f32 %v8211, 0.01
  %v8220 = vmul.f32 %v8212, 0.01
  %v8221 = vsel %vm8213, %v8209, %v8217
  %v8222 = vsel %vm8214, %v8210, %v8218
  %v8223 = vsel %vm8215, %v8211, %v8219
  %v8224 = vsel %vm8216, %v8212, %v8220
  %v8225 = vpack.c.bf16 %v8221, %v8221
  %v8226 = vpack.c.bf16 %v8222, %v8222
  %v8227 = vpack.c.bf16 %v8223, %v8223
  %v8228 = vpack.c.bf16 %v8224, %v8224
  %s8229 = scalar_lea.vmem %s4, 1024
  %v8230 = vld [vmem:[%s8229] sm:$0xff]
  %v8231 = vld [vmem:[%s8229 + $0x8] sm:$0xff]
  %v8232 = vld [vmem:[%s8229 + $0x10] sm:$0xff]
  %v8233 = vld [vmem:[%s8229 + $0x18] sm:$0xff]
  %v8234 = vld [vmem:[%s8229 + $0x20] sm:$0xff]
  %v8235 = vld [vmem:[%s8229 + $0x28] sm:$0xff]
  %v8236 = vld [vmem:[%s8229 + $0x30] sm:$0xff]
  %v8237 = vld [vmem:[%s8229 + $0x38] sm:$0xff]
  %v8238 = vld [vmem:[%s8229 + $0x40] sm:$0xff]
  %v8239 = vld [vmem:[%s8229 + $0x48] sm:$0xff]
  %v8240 = vld [vmem:[%s8229 + $0x50] sm:$0xff]
  %v8241 = vld [vmem:[%s8229 + $0x58] sm:$0xff]
  %v8242 = vld [vmem:[%s8229 + $0x60] sm:$0xff]
  %v8243 = vld [vmem:[%s8229 + $0x68] sm:$0xff]
  %v8244 = vld [vmem:[%s8229 + $0x70] sm:$0xff]
  %v8245 = vld [vmem:[%s8229 + $0x78] sm:$0xff]
  %v8246 = vld [vmem:[%s8229 + $0x80] sm:$0xff]
  %v8247 = vld [vmem:[%s8229 + $0x88] sm:$0xff]
  %v8248 = vld [vmem:[%s8229 + $0x90] sm:$0xff]
  %v8249 = vld [vmem:[%s8229 + $0x98] sm:$0xff]
  %v8250 = vld [vmem:[%s8229 + $0xa0] sm:$0xff]
  %v8251 = vld [vmem:[%s8229 + $0xa8] sm:$0xff]
  %v8252 = vld [vmem:[%s8229 + $0xb0] sm:$0xff]
  %v8253 = vld [vmem:[%s8229 + $0xb8] sm:$0xff]
  %v8254 = vld [vmem:[%s8229 + $0xc0] sm:$0xff]
  %v8255 = vld [vmem:[%s8229 + $0xc8] sm:$0xff]
  %v8256 = vld [vmem:[%s8229 + $0xd0] sm:$0xff]
  %v8257 = vld [vmem:[%s8229 + $0xd8] sm:$0xff]
  %v8258 = vld [vmem:[%s8229 + $0xe0] sm:$0xff]
  %v8259 = vld [vmem:[%s8229 + $0xe8] sm:$0xff]
  %v8260 = vld [vmem:[%s8229 + $0xf0] sm:$0xff]
  %v8261 = vld [vmem:[%s8229 + $0xf8] sm:$0xff]
  %v8262 = vld [vmem:[%s8229 + $0x100] sm:$0xff]
  %v8263 = vld [vmem:[%s8229 + $0x108] sm:$0xff]
  %v8264 = vld [vmem:[%s8229 + $0x110] sm:$0xff]
  %v8265 = vld [vmem:[%s8229 + $0x118] sm:$0xff]
  %v8266 = vld [vmem:[%s8229 + $0x120] sm:$0xff]
  %v8267 = vld [vmem:[%s8229 + $0x128] sm:$0xff]
  %v8268 = vld [vmem:[%s8229 + $0x130] sm:$0xff]
  %v8269 = vld [vmem:[%s8229 + $0x138] sm:$0xff]
  %v8270 = vld [vmem:[%s8229 + $0x140] sm:$0xff]
  %v8271 = vld [vmem:[%s8229 + $0x148] sm:$0xff]
  %v8272 = vld [vmem:[%s8229 + $0x150] sm:$0xff]
  %v8273 = vld [vmem:[%s8229 + $0x158] sm:$0xff]
  %v8274 = vld [vmem:[%s8229 + $0x160] sm:$0xff]
  %v8275 = vld [vmem:[%s8229 + $0x168] sm:$0xff]
  %v8276 = vld [vmem:[%s8229 + $0x170] sm:$0xff]
  %v8277 = vld [vmem:[%s8229 + $0x178] sm:$0xff]
  %v8278 = vld [vmem:[%s8229 + $0x180] sm:$0xff]
  %v8279 = vld [vmem:[%s8229 + $0x188] sm:$0xff]
  %v8280 = vld [vmem:[%s8229 + $0x190] sm:$0xff]
  %v8281 = vld [vmem:[%s8229 + $0x198] sm:$0xff]
  %v8282 = vld [vmem:[%s8229 + $0x1a0] sm:$0xff]
  %v8283 = vld [vmem:[%s8229 + $0x1a8] sm:$0xff]
  %v8284 = vld [vmem:[%s8229 + $0x1b0] sm:$0xff]
  %v8285 = vld [vmem:[%s8229 + $0x1b8] sm:$0xff]
  %v8286 = vld [vmem:[%s8229 + $0x1c0] sm:$0xff]
  %v8287 = vld [vmem:[%s8229 + $0x1c8] sm:$0xff]
  %v8288 = vld [vmem:[%s8229 + $0x1d0] sm:$0xff]
  %v8289 = vld [vmem:[%s8229 + $0x1d8] sm:$0xff]
  %v8290 = vld [vmem:[%s8229 + $0x1e0] sm:$0xff]
  %v8291 = vld [vmem:[%s8229 + $0x1e8] sm:$0xff]
  %v8292 = vld [vmem:[%s8229 + $0x1f0] sm:$0xff]
  %v8293 = vld [vmem:[%s8229 + $0x1f8] sm:$0xff]
  %v8358 = vunpack.c.l.b16 %v8230
  %v8359 = vunpack.c.h.b16 %v8230
  %v8360 = vunpack.c.l.b16 %v8231
  %v8361 = vunpack.c.h.b16 %v8231
  %v8362 = vunpack.c.l.b16 %v8232
  %v8363 = vunpack.c.h.b16 %v8232
  %v8364 = vunpack.c.l.b16 %v8233
  %v8365 = vunpack.c.h.b16 %v8233
  %v8366 = vunpack.c.l.b16 %v8234
  %v8367 = vunpack.c.h.b16 %v8234
  %v8368 = vunpack.c.l.b16 %v8235
  %v8369 = vunpack.c.h.b16 %v8235
  %v8370 = vunpack.c.l.b16 %v8236
  %v8371 = vunpack.c.h.b16 %v8236
  %v8372 = vunpack.c.l.b16 %v8237
  %v8373 = vunpack.c.h.b16 %v8237
  %v8374 = vunpack.c.l.b16 %v8238
  %v8375 = vunpack.c.h.b16 %v8238
  %v8376 = vunpack.c.l.b16 %v8239
  %v8377 = vunpack.c.h.b16 %v8239
  %v8378 = vunpack.c.l.b16 %v8240
  %v8379 = vunpack.c.h.b16 %v8240
  %v8380 = vunpack.c.l.b16 %v8241
  %v8381 = vunpack.c.h.b16 %v8241
  %v8382 = vunpack.c.l.b16 %v8242
  %v8383 = vunpack.c.h.b16 %v8242
  %v8384 = vunpack.c.l.b16 %v8243
  %v8385 = vunpack.c.h.b16 %v8243
  %v8386 = vunpack.c.l.b16 %v8244
  %v8387 = vunpack.c.h.b16 %v8244
  %v8388 = vunpack.c.l.b16 %v8245
  %v8389 = vunpack.c.h.b16 %v8245
  %v8390 = vunpack.c.l.b16 %v8246
  %v8391 = vunpack.c.h.b16 %v8246
  %v8392 = vunpack.c.l.b16 %v8247
  %v8393 = vunpack.c.h.b16 %v8247
  %v8394 = vunpack.c.l.b16 %v8248
  %v8395 = vunpack.c.h.b16 %v8248
  %v8396 = vunpack.c.l.b16 %v8249
  %v8397 = vunpack.c.h.b16 %v8249
  %v8398 = vunpack.c.l.b16 %v8250
  %v8399 = vunpack.c.h.b16 %v8250
  %v8400 = vunpack.c.l.b16 %v8251
  %v8401 = vunpack.c.h.b16 %v8251
  %v8402 = vunpack.c.l.b16 %v8252
  %v8403 = vunpack.c.h.b16 %v8252
  %v8404 = vunpack.c.l.b16 %v8253
  %v8405 = vunpack.c.h.b16 %v8253
  %v8406 = vunpack.c.l.b16 %v8254
  %v8407 = vunpack.c.h.b16 %v8254
  %v8408 = vunpack.c.l.b16 %v8255
  %v8409 = vunpack.c.h.b16 %v8255
  %v8410 = vunpack.c.l.b16 %v8256
  %v8411 = vunpack.c.h.b16 %v8256
  %v8412 = vunpack.c.l.b16 %v8257
  %v8413 = vunpack.c.h.b16 %v8257
  %v8414 = vunpack.c.l.b16 %v8258
  %v8415 = vunpack.c.h.b16 %v8258
  %v8416 = vunpack.c.l.b16 %v8259
  %v8417 = vunpack.c.h.b16 %v8259
  %v8418 = vunpack.c.l.b16 %v8260
  %v8419 = vunpack.c.h.b16 %v8260
  %v8420 = vunpack.c.l.b16 %v8261
  %v8421 = vunpack.c.h.b16 %v8261
  %v8422 = vunpack.c.l.b16 %v8262
  %v8423 = vunpack.c.h.b16 %v8262
  %v8424 = vunpack.c.l.b16 %v8263
  %v8425 = vunpack.c.h.b16 %v8263
  %v8426 = vunpack.c.l.b16 %v8264
  %v8427 = vunpack.c.h.b16 %v8264
  %v8428 = vunpack.c.l.b16 %v8265
  %v8429 = vunpack.c.h.b16 %v8265
  %v8430 = vunpack.c.l.b16 %v8266
  %v8431 = vunpack.c.h.b16 %v8266
  %v8432 = vunpack.c.l.b16 %v8267
  %v8433 = vunpack.c.h.b16 %v8267
  %v8434 = vunpack.c.l.b16 %v8268
  %v8435 = vunpack.c.h.b16 %v8268
  %v8436 = vunpack.c.l.b16 %v8269
  %v8437 = vunpack.c.h.b16 %v8269
  %v8438 = vunpack.c.l.b16 %v8270
  %v8439 = vunpack.c.h.b16 %v8270
  %v8440 = vunpack.c.l.b16 %v8271
  %v8441 = vunpack.c.h.b16 %v8271
  %v8442 = vunpack.c.l.b16 %v8272
  %v8443 = vunpack.c.h.b16 %v8272
  %v8444 = vunpack.c.l.b16 %v8273
  %v8445 = vunpack.c.h.b16 %v8273
  %v8446 = vunpack.c.l.b16 %v8274
  %v8447 = vunpack.c.h.b16 %v8274
  %v8448 = vunpack.c.l.b16 %v8275
  %v8449 = vunpack.c.h.b16 %v8275
  %v8450 = vunpack.c.l.b16 %v8276
  %v8451 = vunpack.c.h.b16 %v8276
  %v8452 = vunpack.c.l.b16 %v8277
  %v8453 = vunpack.c.h.b16 %v8277
  %v8454 = vunpack.c.l.b16 %v8278
  %v8455 = vunpack.c.h.b16 %v8278
  %v8456 = vunpack.c.l.b16 %v8279
  %v8457 = vunpack.c.h.b16 %v8279
  %v8458 = vunpack.c.l.b16 %v8280
  %v8459 = vunpack.c.h.b16 %v8280
  %v8460 = vunpack.c.l.b16 %v8281
  %v8461 = vunpack.c.h.b16 %v8281
  %v8462 = vunpack.c.l.b16 %v8282
  %v8463 = vunpack.c.h.b16 %v8282
  %v8464 = vunpack.c.l.b16 %v8283
  %v8465 = vunpack.c.h.b16 %v8283
  %v8466 = vunpack.c.l.b16 %v8284
  %v8467 = vunpack.c.h.b16 %v8284
  %v8468 = vunpack.c.l.b16 %v8285
  %v8469 = vunpack.c.h.b16 %v8285
  %v8470 = vunpack.c.l.b16 %v8286
  %v8471 = vunpack.c.h.b16 %v8286
  %v8472 = vunpack.c.l.b16 %v8287
  %v8473 = vunpack.c.h.b16 %v8287
  %v8474 = vunpack.c.l.b16 %v8288
  %v8475 = vunpack.c.h.b16 %v8288
  %v8476 = vunpack.c.l.b16 %v8289
  %v8477 = vunpack.c.h.b16 %v8289
  %v8478 = vunpack.c.l.b16 %v8290
  %v8479 = vunpack.c.h.b16 %v8290
  %v8480 = vunpack.c.l.b16 %v8291
  %v8481 = vunpack.c.h.b16 %v8291
  %v8482 = vunpack.c.l.b16 %v8292
  %v8483 = vunpack.c.h.b16 %v8292
  %v8484 = vunpack.c.l.b16 %v8293
  %v8485 = vunpack.c.h.b16 %v8293
  %v8486 = vpack.c.b16 %v8360, %v8358
  %v8487 = vpack.c.b16 %v8361, %v8359
  %v8488 = vpack.c.b16 %v8364, %v8362
  %v8489 = vpack.c.b16 %v8365, %v8363
  %v8490 = vpack.c.b16 %v8368, %v8366
  %v8491 = vpack.c.b16 %v8369, %v8367
  %v8492 = vpack.c.b16 %v8372, %v8370
  %v8493 = vpack.c.b16 %v8373, %v8371
  %v8494 = vpack.c.b16 %v8376, %v8374
  %v8495 = vpack.c.b16 %v8377, %v8375
  %v8496 = vpack.c.b16 %v8380, %v8378
  %v8497 = vpack.c.b16 %v8381, %v8379
  %v8498 = vpack.c.b16 %v8384, %v8382
  %v8499 = vpack.c.b16 %v8385, %v8383
  %v8500 = vpack.c.b16 %v8388, %v8386
  %v8501 = vpack.c.b16 %v8389, %v8387
  %v8502 = vpack.c.b16 %v8392, %v8390
  %v8503 = vpack.c.b16 %v8393, %v8391
  %v8504 = vpack.c.b16 %v8396, %v8394
  %v8505 = vpack.c.b16 %v8397, %v8395
  %v8506 = vpack.c.b16 %v8400, %v8398
  %v8507 = vpack.c.b16 %v8401, %v8399
  %v8508 = vpack.c.b16 %v8404, %v8402
  %v8509 = vpack.c.b16 %v8405, %v8403
  %v8510 = vpack.c.b16 %v8408, %v8406
  %v8511 = vpack.c.b16 %v8409, %v8407
  %v8512 = vpack.c.b16 %v8412, %v8410
  %v8513 = vpack.c.b16 %v8413, %v8411
  %v8514 = vpack.c.b16 %v8416, %v8414
  %v8515 = vpack.c.b16 %v8417, %v8415
  %v8516 = vpack.c.b16 %v8420, %v8418
  %v8517 = vpack.c.b16 %v8421, %v8419
  %v8518 = vpack.c.b16 %v8424, %v8422
  %v8519 = vpack.c.b16 %v8425, %v8423
  %v8520 = vpack.c.b16 %v8428, %v8426
  %v8521 = vpack.c.b16 %v8429, %v8427
  %v8522 = vpack.c.b16 %v8432, %v8430
  %v8523 = vpack.c.b16 %v8433, %v8431
  %v8524 = vpack.c.b16 %v8436, %v8434
  %v8525 = vpack.c.b16 %v8437, %v8435
  %v8526 = vpack.c.b16 %v8440, %v8438
  %v8527 = vpack.c.b16 %v8441, %v8439
  %v8528 = vpack.c.b16 %v8444, %v8442
  %v8529 = vpack.c.b16 %v8445, %v8443
  %v8530 = vpack.c.b16 %v8448, %v8446
  %v8531 = vpack.c.b16 %v8449, %v8447
  %v8532 = vpack.c.b16 %v8452, %v8450
  %v8533 = vpack.c.b16 %v8453, %v8451
  %v8534 = vpack.c.b16 %v8456, %v8454
  %v8535 = vpack.c.b16 %v8457, %v8455
  %v8536 = vpack.c.b16 %v8460, %v8458
  %v8537 = vpack.c.b16 %v8461, %v8459
  %v8538 = vpack.c.b16 %v8464, %v8462
  %v8539 = vpack.c.b16 %v8465, %v8463
  %v8540 = vpack.c.b16 %v8468, %v8466
  %v8541 = vpack.c.b16 %v8469, %v8467
  %v8542 = vpack.c.b16 %v8472, %v8470
  %v8543 = vpack.c.b16 %v8473, %v8471
  %v8544 = vpack.c.b16 %v8476, %v8474
  %v8545 = vpack.c.b16 %v8477, %v8475
  %v8546 = vpack.c.b16 %v8480, %v8478
  %v8547 = vpack.c.b16 %v8481, %v8479
  %v8548 = vpack.c.b16 %v8484, %v8482
  %v8549 = vpack.c.b16 %v8485, %v8483
  %8614 = vmatprep.subr.bf16.mxu0 %v8501
  %8615 = vmatpush1.bf16.msra.mxu0 %v8500
  %8616 = vmatprep.subr.bf16.mxu0 %v8499
  %8617 = vmatpush1.bf16.msra.mxu0 %v8498
  %8618 = vmatprep.subr.bf16.mxu0 %v8497
  %8619 = vmatpush1.bf16.msra.mxu0 %v8496
  %8620 = vmatprep.subr.bf16.mxu0 %v8495
  %8621 = vmatpush1.bf16.msra.mxu0 %v8494
  %8622 = vmatprep.subr.bf16.mxu0 %v8493
  %8623 = vmatpush1.bf16.msra.mxu0 %v8492
  %8624 = vmatprep.subr.bf16.mxu0 %v8491
  %8625 = vmatpush1.bf16.msra.mxu0 %v8490
  %8626 = vmatprep.subr.bf16.mxu0 %v8489
  %8627 = vmatpush1.bf16.msra.mxu0 %v8488
  %8628 = vmatprep.subr.bf16.mxu0 %v8487
  %8629 = vmatpush1.bf16.msra.mxu0 %v8486
  %8630 = vmatprep.subr.bf16.mxu0 %v8517
  %8631 = vmatpush2.bf16.msra.mxu0 %v8516
  %8632 = vmatprep.subr.bf16.mxu0 %v8515
  %8633 = vmatpush2.bf16.msra.mxu0 %v8514
  %8634 = vmatprep.subr.bf16.mxu0 %v8513
  %8635 = vmatpush2.bf16.msra.mxu0 %v8512
  %8636 = vmatprep.subr.bf16.mxu0 %v8511
  %8637 = vmatpush2.bf16.msra.mxu0 %v8510
  %8638 = vmatprep.subr.bf16.mxu0 %v8509
  %8639 = vmatpush2.bf16.msra.mxu0 %v8508
  %8640 = vmatprep.subr.bf16.mxu0 %v8507
  %8641 = vmatpush2.bf16.msra.mxu0 %v8506
  %8642 = vmatprep.subr.bf16.mxu0 %v8505
  %8643 = vmatpush2.bf16.msra.mxu0 %v8504
  %8644 = vmatprep.subr.bf16.mxu0 %v8503
  %8645 = vmatpush2.bf16.msra.mxu0 %v8502
  %8646 = vmatprep.mubr.bf16.mxu0 %v8226
  %8647 = vmatmul.mubr.bf16.gmra.mxu0 %v8225
  %v8648 = vpop.f32.mrf.mxu0
  %v8649 = vadd.f32 0.0, %v8648
  %v8650 = vpop.f32.mrf.mxu0
  %v8651 = vadd.f32 0.0, %v8650
  %v8652 = vpop.f32.mrf.mxu0
  %v8653 = vpop.f32.mrf.mxu0
  %8654 = vdwg.mxu0
  %8655 = vmatprep.subr.bf16.mxu0 %v8533
  %8656 = vmatpush1.bf16.msra.mxu0 %v8532
  %8657 = vmatprep.subr.bf16.mxu0 %v8531
  %8658 = vmatpush1.bf16.msra.mxu0 %v8530
  %8659 = vmatprep.subr.bf16.mxu0 %v8529
  %8660 = vmatpush1.bf16.msra.mxu0 %v8528
  %8661 = vmatprep.subr.bf16.mxu0 %v8527
  %8662 = vmatpush1.bf16.msra.mxu0 %v8526
  %8663 = vmatprep.subr.bf16.mxu0 %v8525
  %8664 = vmatpush1.bf16.msra.mxu0 %v8524
  %8665 = vmatprep.subr.bf16.mxu0 %v8523
  %8666 = vmatpush1.bf16.msra.mxu0 %v8522
  %8667 = vmatprep.subr.bf16.mxu0 %v8521
  %8668 = vmatpush1.bf16.msra.mxu0 %v8520
  %8669 = vmatprep.subr.bf16.mxu0 %v8519
  %8670 = vmatpush1.bf16.msra.mxu0 %v8518
  %8671 = vmatprep.subr.bf16.mxu0 %v8549
  %8672 = vmatpush2.bf16.msra.mxu0 %v8548
  %8673 = vmatprep.subr.bf16.mxu0 %v8547
  %8674 = vmatpush2.bf16.msra.mxu0 %v8546
  %8675 = vmatprep.subr.bf16.mxu0 %v8545
  %8676 = vmatpush2.bf16.msra.mxu0 %v8544
  %8677 = vmatprep.subr.bf16.mxu0 %v8543
  %8678 = vmatpush2.bf16.msra.mxu0 %v8542
  %8679 = vmatprep.subr.bf16.mxu0 %v8541
  %8680 = vmatpush2.bf16.msra.mxu0 %v8540
  %8681 = vmatprep.subr.bf16.mxu0 %v8539
  %8682 = vmatpush2.bf16.msra.mxu0 %v8538
  %8683 = vmatprep.subr.bf16.mxu0 %v8537
  %8684 = vmatpush2.bf16.msra.mxu0 %v8536
  %8685 = vmatprep.subr.bf16.mxu0 %v8535
  %8686 = vmatpush2.bf16.msra.mxu0 %v8534
  %8687 = vmatprep.mubr.bf16.mxu0 %v8228
  %8688 = vmatmul.mubr.bf16.gmra.mxu0 %v8227
  %v8689 = vpop.f32.mrf.mxu0
  %v8690 = vadd.f32 %v8649, %v8689
  %v8691 = vpop.f32.mrf.mxu0
  %v8692 = vadd.f32 %v8651, %v8691
  %v8693 = vpop.f32.mrf.mxu0
  %v8694 = vpop.f32.mrf.mxu0
  %8695 = vdwg.mxu0
  %v8696 = vadd.f32 %v8199, %v8690
  %v8697 = vadd.f32 %v8201, %v8692
  %v8698 = vmul.f32 %v7088, %v7189
  %v8699 = vmul.f32 %v7089, %v7193
  %v8700 = vmul.f32 %v7090, %v7197
  %v8701 = vmul.f32 %v7091, %v7201
  %v8702 = vadd.f32 %v8698, %v7211
  %v8703 = vadd.f32 %v8699, %v7215
  %v8704 = vadd.f32 %v8700, %v7219
  %v8705 = vadd.f32 %v8701, %v7223
  %vm8706 = vcmp.gt.f32.partialorder %v8702, 0.0
  %vm8707 = vcmp.gt.f32.partialorder %v8703, 0.0
  %vm8708 = vcmp.gt.f32.partialorder %v8704, 0.0
  %vm8709 = vcmp.gt.f32.partialorder %v8705, 0.0
  %v8710 = vmul.f32 %v8702, 0.01
  %v8711 = vmul.f32 %v8703, 0.01
  %v8712 = vmul.f32 %v8704, 0.01
  %v8713 = vmul.f32 %v8705, 0.01
  %v8714 = vsel %vm8706, %v8702, %v8710
  %v8715 = vsel %vm8707, %v8703, %v8711
  %v8716 = vsel %vm8708, %v8704, %v8712
  %v8717 = vsel %vm8709, %v8705, %v8713
  %v8718 = vpack.c.bf16 %v8714, %v8714
  %v8719 = vpack.c.bf16 %v8715, %v8715
  %v8720 = vpack.c.bf16 %v8716, %v8716
  %v8721 = vpack.c.bf16 %v8717, %v8717
  %s8722 = scalar_lea.vmem %s4, 1536
  %v8723 = vld [vmem:[%s8722] sm:$0xff]
  %v8724 = vld [vmem:[%s8722 + $0x8] sm:$0xff]
  %v8725 = vld [vmem:[%s8722 + $0x10] sm:$0xff]
  %v8726 = vld [vmem:[%s8722 + $0x18] sm:$0xff]
  %v8727 = vld [vmem:[%s8722 + $0x20] sm:$0xff]
  %v8728 = vld [vmem:[%s8722 + $0x28] sm:$0xff]
  %v8729 = vld [vmem:[%s8722 + $0x30] sm:$0xff]
  %v8730 = vld [vmem:[%s8722 + $0x38] sm:$0xff]
  %v8731 = vld [vmem:[%s8722 + $0x40] sm:$0xff]
  %v8732 = vld [vmem:[%s8722 + $0x48] sm:$0xff]
  %v8733 = vld [vmem:[%s8722 + $0x50] sm:$0xff]
  %v8734 = vld [vmem:[%s8722 + $0x58] sm:$0xff]
  %v8735 = vld [vmem:[%s8722 + $0x60] sm:$0xff]
  %v8736 = vld [vmem:[%s8722 + $0x68] sm:$0xff]
  %v8737 = vld [vmem:[%s8722 + $0x70] sm:$0xff]
  %v8738 = vld [vmem:[%s8722 + $0x78] sm:$0xff]
  %v8739 = vld [vmem:[%s8722 + $0x80] sm:$0xff]
  %v8740 = vld [vmem:[%s8722 + $0x88] sm:$0xff]
  %v8741 = vld [vmem:[%s8722 + $0x90] sm:$0xff]
  %v8742 = vld [vmem:[%s8722 + $0x98] sm:$0xff]
  %v8743 = vld [vmem:[%s8722 + $0xa0] sm:$0xff]
  %v8744 = vld [vmem:[%s8722 + $0xa8] sm:$0xff]
  %v8745 = vld [vmem:[%s8722 + $0xb0] sm:$0xff]
  %v8746 = vld [vmem:[%s8722 + $0xb8] sm:$0xff]
  %v8747 = vld [vmem:[%s8722 + $0xc0] sm:$0xff]
  %v8748 = vld [vmem:[%s8722 + $0xc8] sm:$0xff]
  %v8749 = vld [vmem:[%s8722 + $0xd0] sm:$0xff]
  %v8750 = vld [vmem:[%s8722 + $0xd8] sm:$0xff]
  %v8751 = vld [vmem:[%s8722 + $0xe0] sm:$0xff]
  %v8752 = vld [vmem:[%s8722 + $0xe8] sm:$0xff]
  %v8753 = vld [vmem:[%s8722 + $0xf0] sm:$0xff]
  %v8754 = vld [vmem:[%s8722 + $0xf8] sm:$0xff]
  %v8755 = vld [vmem:[%s8722 + $0x100] sm:$0xff]
  %v8756 = vld [vmem:[%s8722 + $0x108] sm:$0xff]
  %v8757 = vld [vmem:[%s8722 + $0x110] sm:$0xff]
  %v8758 = vld [vmem:[%s8722 + $0x118] sm:$0xff]
  %v8759 = vld [vmem:[%s8722 + $0x120] sm:$0xff]
  %v8760 = vld [vmem:[%s8722 + $0x128] sm:$0xff]
  %v8761 = vld [vmem:[%s8722 + $0x130] sm:$0xff]
  %v8762 = vld [vmem:[%s8722 + $0x138] sm:$0xff]
  %v8763 = vld [vmem:[%s8722 + $0x140] sm:$0xff]
  %v8764 = vld [vmem:[%s8722 + $0x148] sm:$0xff]
  %v8765 = vld [vmem:[%s8722 + $0x150] sm:$0xff]
  %v8766 = vld [vmem:[%s8722 + $0x158] sm:$0xff]
  %v8767 = vld [vmem:[%s8722 + $0x160] sm:$0xff]
  %v8768 = vld [vmem:[%s8722 + $0x168] sm:$0xff]
  %v8769 = vld [vmem:[%s8722 + $0x170] sm:$0xff]
  %v8770 = vld [vmem:[%s8722 + $0x178] sm:$0xff]
  %v8771 = vld [vmem:[%s8722 + $0x180] sm:$0xff]
  %v8772 = vld [vmem:[%s8722 + $0x188] sm:$0xff]
  %v8773 = vld [vmem:[%s8722 + $0x190] sm:$0xff]
  %v8774 = vld [vmem:[%s8722 + $0x198] sm:$0xff]
  %v8775 = vld [vmem:[%s8722 + $0x1a0] sm:$0xff]
  %v8776 = vld [vmem:[%s8722 + $0x1a8] sm:$0xff]
  %v8777 = vld [vmem:[%s8722 + $0x1b0] sm:$0xff]
  %v8778 = vld [vmem:[%s8722 + $0x1b8] sm:$0xff]
  %v8779 = vld [vmem:[%s8722 + $0x1c0] sm:$0xff]
  %v8780 = vld [vmem:[%s8722 + $0x1c8] sm:$0xff]
  %v8781 = vld [vmem:[%s8722 + $0x1d0] sm:$0xff]
  %v8782 = vld [vmem:[%s8722 + $0x1d8] sm:$0xff]
  %v8783 = vld [vmem:[%s8722 + $0x1e0] sm:$0xff]
  %v8784 = vld [vmem:[%s8722 + $0x1e8] sm:$0xff]
  %v8785 = vld [vmem:[%s8722 + $0x1f0] sm:$0xff]
  %v8786 = vld [vmem:[%s8722 + $0x1f8] sm:$0xff]
  %v8851 = vunpack.c.l.b16 %v8723
  %v8852 = vunpack.c.h.b16 %v8723
  %v8853 = vunpack.c.l.b16 %v8724
  %v8854 = vunpack.c.h.b16 %v8724
  %v8855 = vunpack.c.l.b16 %v8725
  %v8856 = vunpack.c.h.b16 %v8725
  %v8857 = vunpack.c.l.b16 %v8726
  %v8858 = vunpack.c.h.b16 %v8726
  %v8859 = vunpack.c.l.b16 %v8727
  %v8860 = vunpack.c.h.b16 %v8727
  %v8861 = vunpack.c.l.b16 %v8728
  %v8862 = vunpack.c.h.b16 %v8728
  %v8863 = vunpack.c.l.b16 %v8729
  %v8864 = vunpack.c.h.b16 %v8729
  %v8865 = vunpack.c.l.b16 %v8730
  %v8866 = vunpack.c.h.b16 %v8730
  %v8867 = vunpack.c.l.b16 %v8731
  %v8868 = vunpack.c.h.b16 %v8731
  %v8869 = vunpack.c.l.b16 %v8732
  %v8870 = vunpack.c.h.b16 %v8732
  %v8871 = vunpack.c.l.b16 %v8733
  %v8872 = vunpack.c.h.b16 %v8733
  %v8873 = vunpack.c.l.b16 %v8734
  %v8874 = vunpack.c.h.b16 %v8734
  %v8875 = vunpack.c.l.b16 %v8735
  %v8876 = vunpack.c.h.b16 %v8735
  %v8877 = vunpack.c.l.b16 %v8736
  %v8878 = vunpack.c.h.b16 %v8736
  %v8879 = vunpack.c.l.b16 %v8737
  %v8880 = vunpack.c.h.b16 %v8737
  %v8881 = vunpack.c.l.b16 %v8738
  %v8882 = vunpack.c.h.b16 %v8738
  %v8883 = vunpack.c.l.b16 %v8739
  %v8884 = vunpack.c.h.b16 %v8739
  %v8885 = vunpack.c.l.b16 %v8740
  %v8886 = vunpack.c.h.b16 %v8740
  %v8887 = vunpack.c.l.b16 %v8741
  %v8888 = vunpack.c.h.b16 %v8741
  %v8889 = vunpack.c.l.b16 %v8742
  %v8890 = vunpack.c.h.b16 %v8742
  %v8891 = vunpack.c.l.b16 %v8743
  %v8892 = vunpack.c.h.b16 %v8743
  %v8893 = vunpack.c.l.b16 %v8744
  %v8894 = vunpack.c.h.b16 %v8744
  %v8895 = vunpack.c.l.b16 %v8745
  %v8896 = vunpack.c.h.b16 %v8745
  %v8897 = vunpack.c.l.b16 %v8746
  %v8898 = vunpack.c.h.b16 %v8746
  %v8899 = vunpack.c.l.b16 %v8747
  %v8900 = vunpack.c.h.b16 %v8747
  %v8901 = vunpack.c.l.b16 %v8748
  %v8902 = vunpack.c.h.b16 %v8748
  %v8903 = vunpack.c.l.b16 %v8749
  %v8904 = vunpack.c.h.b16 %v8749
  %v8905 = vunpack.c.l.b16 %v8750
  %v8906 = vunpack.c.h.b16 %v8750
  %v8907 = vunpack.c.l.b16 %v8751
  %v8908 = vunpack.c.h.b16 %v8751
  %v8909 = vunpack.c.l.b16 %v8752
  %v8910 = vunpack.c.h.b16 %v8752
  %v8911 = vunpack.c.l.b16 %v8753
  %v8912 = vunpack.c.h.b16 %v8753
  %v8913 = vunpack.c.l.b16 %v8754
  %v8914 = vunpack.c.h.b16 %v8754
  %v8915 = vunpack.c.l.b16 %v8755
  %v8916 = vunpack.c.h.b16 %v8755
  %v8917 = vunpack.c.l.b16 %v8756
  %v8918 = vunpack.c.h.b16 %v8756
  %v8919 = vunpack.c.l.b16 %v8757
  %v8920 = vunpack.c.h.b16 %v8757
  %v8921 = vunpack.c.l.b16 %v8758
  %v8922 = vunpack.c.h.b16 %v8758
  %v8923 = vunpack.c.l.b16 %v8759
  %v8924 = vunpack.c.h.b16 %v8759
  %v8925 = vunpack.c.l.b16 %v8760
  %v8926 = vunpack.c.h.b16 %v8760
  %v8927 = vunpack.c.l.b16 %v8761
  %v8928 = vunpack.c.h.b16 %v8761
  %v8929 = vunpack.c.l.b16 %v8762
  %v8930 = vunpack.c.h.b16 %v8762
  %v8931 = vunpack.c.l.b16 %v8763
  %v8932 = vunpack.c.h.b16 %v8763
  %v8933 = vunpack.c.l.b16 %v8764
  %v8934 = vunpack.c.h.b16 %v8764
  %v8935 = vunpack.c.l.b16 %v8765
  %v8936 = vunpack.c.h.b16 %v8765
  %v8937 = vunpack.c.l.b16 %v8766
  %v8938 = vunpack.c.h.b16 %v8766
  %v8939 = vunpack.c.l.b16 %v8767
  %v8940 = vunpack.c.h.b16 %v8767
  %v8941 = vunpack.c.l.b16 %v8768
  %v8942 = vunpack.c.h.b16 %v8768
  %v8943 = vunpack.c.l.b16 %v8769
  %v8944 = vunpack.c.h.b16 %v8769
  %v8945 = vunpack.c.l.b16 %v8770
  %v8946 = vunpack.c.h.b16 %v8770
  %v8947 = vunpack.c.l.b16 %v8771
  %v8948 = vunpack.c.h.b16 %v8771
  %v8949 = vunpack.c.l.b16 %v8772
  %v8950 = vunpack.c.h.b16 %v8772
  %v8951 = vunpack.c.l.b16 %v8773
  %v8952 = vunpack.c.h.b16 %v8773
  %v8953 = vunpack.c.l.b16 %v8774
  %v8954 = vunpack.c.h.b16 %v8774
  %v8955 = vunpack.c.l.b16 %v8775
  %v8956 = vunpack.c.h.b16 %v8775
  %v8957 = vunpack.c.l.b16 %v8776
  %v8958 = vunpack.c.h.b16 %v8776
  %v8959 = vunpack.c.l.b16 %v8777
  %v8960 = vunpack.c.h.b16 %v8777
  %v8961 = vunpack.c.l.b16 %v8778
  %v8962 = vunpack.c.h.b16 %v8778
  %v8963 = vunpack.c.l.b16 %v8779
  %v8964 = vunpack.c.h.b16 %v8779
  %v8965 = vunpack.c.l.b16 %v8780
  %v8966 = vunpack.c.h.b16 %v8780
  %v8967 = vunpack.c.l.b16 %v8781
  %v8968 = vunpack.c.h.b16 %v8781
  %v8969 = vunpack.c.l.b16 %v8782
  %v8970 = vunpack.c.h.b16 %v8782
  %v8971 = vunpack.c.l.b16 %v8783
  %v8972 = vunpack.c.h.b16 %v8783
  %v8973 = vunpack.c.l.b16 %v8784
  %v8974 = vunpack.c.h.b16 %v8784
  %v8975 = vunpack.c.l.b16 %v8785
  %v8976 = vunpack.c.h.b16 %v8785
  %v8977 = vunpack.c.l.b16 %v8786
  %v8978 = vunpack.c.h.b16 %v8786
  %v8979 = vpack.c.b16 %v8853, %v8851
  %v8980 = vpack.c.b16 %v8854, %v8852
  %v8981 = vpack.c.b16 %v8857, %v8855
  %v8982 = vpack.c.b16 %v8858, %v8856
  %v8983 = vpack.c.b16 %v8861, %v8859
  %v8984 = vpack.c.b16 %v8862, %v8860
  %v8985 = vpack.c.b16 %v8865, %v8863
  %v8986 = vpack.c.b16 %v8866, %v8864
  %v8987 = vpack.c.b16 %v8869, %v8867
  %v8988 = vpack.c.b16 %v8870, %v8868
  %v8989 = vpack.c.b16 %v8873, %v8871
  %v8990 = vpack.c.b16 %v8874, %v8872
  %v8991 = vpack.c.b16 %v8877, %v8875
  %v8992 = vpack.c.b16 %v8878, %v8876
  %v8993 = vpack.c.b16 %v8881, %v8879
  %v8994 = vpack.c.b16 %v8882, %v8880
  %v8995 = vpack.c.b16 %v8885, %v8883
  %v8996 = vpack.c.b16 %v8886, %v8884
  %v8997 = vpack.c.b16 %v8889, %v8887
  %v8998 = vpack.c.b16 %v8890, %v8888
  %v8999 = vpack.c.b16 %v8893, %v8891
  %v9000 = vpack.c.b16 %v8894, %v8892
  %v9001 = vpack.c.b16 %v8897, %v8895
  %v9002 = vpack.c.b16 %v8898, %v8896
  %v9003 = vpack.c.b16 %v8901, %v8899
  %v9004 = vpack.c.b16 %v8902, %v8900
  %v9005 = vpack.c.b16 %v8905, %v8903
  %v9006 = vpack.c.b16 %v8906, %v8904
  %v9007 = vpack.c.b16 %v8909, %v8907
  %v9008 = vpack.c.b16 %v8910, %v8908
  %v9009 = vpack.c.b16 %v8913, %v8911
  %v9010 = vpack.c.b16 %v8914, %v8912
  %v9011 = vpack.c.b16 %v8917, %v8915
  %v9012 = vpack.c.b16 %v8918, %v8916
  %v9013 = vpack.c.b16 %v8921, %v8919
  %v9014 = vpack.c.b16 %v8922, %v8920
  %v9015 = vpack.c.b16 %v8925, %v8923
  %v9016 = vpack.c.b16 %v8926, %v8924
  %v9017 = vpack.c.b16 %v8929, %v8927
  %v9018 = vpack.c.b16 %v8930, %v8928
  %v9019 = vpack.c.b16 %v8933, %v8931
  %v9020 = vpack.c.b16 %v8934, %v8932
  %v9021 = vpack.c.b16 %v8937, %v8935
  %v9022 = vpack.c.b16 %v8938, %v8936
  %v9023 = vpack.c.b16 %v8941, %v8939
  %v9024 = vpack.c.b16 %v8942, %v8940
  %v9025 = vpack.c.b16 %v8945, %v8943
  %v9026 = vpack.c.b16 %v8946, %v8944
  %v9027 = vpack.c.b16 %v8949, %v8947
  %v9028 = vpack.c.b16 %v8950, %v8948
  %v9029 = vpack.c.b16 %v8953, %v8951
  %v9030 = vpack.c.b16 %v8954, %v8952
  %v9031 = vpack.c.b16 %v8957, %v8955
  %v9032 = vpack.c.b16 %v8958, %v8956
  %v9033 = vpack.c.b16 %v8961, %v8959
  %v9034 = vpack.c.b16 %v8962, %v8960
  %v9035 = vpack.c.b16 %v8965, %v8963
  %v9036 = vpack.c.b16 %v8966, %v8964
  %v9037 = vpack.c.b16 %v8969, %v8967
  %v9038 = vpack.c.b16 %v8970, %v8968
  %v9039 = vpack.c.b16 %v8973, %v8971
  %v9040 = vpack.c.b16 %v8974, %v8972
  %v9041 = vpack.c.b16 %v8977, %v8975
  %v9042 = vpack.c.b16 %v8978, %v8976
  %9107 = vmatprep.subr.bf16.mxu0 %v8994
  %9108 = vmatpush1.bf16.msra.mxu0 %v8993
  %9109 = vmatprep.subr.bf16.mxu0 %v8992
  %9110 = vmatpush1.bf16.msra.mxu0 %v8991
  %9111 = vmatprep.subr.bf16.mxu0 %v8990
  %9112 = vmatpush1.bf16.msra.mxu0 %v8989
  %9113 = vmatprep.subr.bf16.mxu0 %v8988
  %9114 = vmatpush1.bf16.msra.mxu0 %v8987
  %9115 = vmatprep.subr.bf16.mxu0 %v8986
  %9116 = vmatpush1.bf16.msra.mxu0 %v8985
  %9117 = vmatprep.subr.bf16.mxu0 %v8984
  %9118 = vmatpush1.bf16.msra.mxu0 %v8983
  %9119 = vmatprep.subr.bf16.mxu0 %v8982
  %9120 = vmatpush1.bf16.msra.mxu0 %v8981
  %9121 = vmatprep.subr.bf16.mxu0 %v8980
  %9122 = vmatpush1.bf16.msra.mxu0 %v8979
  %9123 = vmatprep.subr.bf16.mxu0 %v9010
  %9124 = vmatpush2.bf16.msra.mxu0 %v9009
  %9125 = vmatprep.subr.bf16.mxu0 %v9008
  %9126 = vmatpush2.bf16.msra.mxu0 %v9007
  %9127 = vmatprep.subr.bf16.mxu0 %v9006
  %9128 = vmatpush2.bf16.msra.mxu0 %v9005
  %9129 = vmatprep.subr.bf16.mxu0 %v9004
  %9130 = vmatpush2.bf16.msra.mxu0 %v9003
  %9131 = vmatprep.subr.bf16.mxu0 %v9002
  %9132 = vmatpush2.bf16.msra.mxu0 %v9001
  %9133 = vmatprep.subr.bf16.mxu0 %v9000
  %9134 = vmatpush2.bf16.msra.mxu0 %v8999
  %9135 = vmatprep.subr.bf16.mxu0 %v8998
  %9136 = vmatpush2.bf16.msra.mxu0 %v8997
  %9137 = vmatprep.subr.bf16.mxu0 %v8996
  %9138 = vmatpush2.bf16.msra.mxu0 %v8995
  %9139 = vmatprep.mubr.bf16.mxu0 %v8719
  %9140 = vmatmul.mubr.bf16.gmra.mxu0 %v8718
  %v9141 = vpop.f32.mrf.mxu0
  %v9142 = vadd.f32 0.0, %v9141
  %v9143 = vpop.f32.mrf.mxu0
  %v9144 = vadd.f32 0.0, %v9143
  %v9145 = vpop.f32.mrf.mxu0
  %v9146 = vpop.f32.mrf.mxu0
  %9147 = vdwg.mxu0
  %9148 = vmatprep.subr.bf16.mxu0 %v9026
  %9149 = vmatpush1.bf16.msra.mxu0 %v9025
  %9150 = vmatprep.subr.bf16.mxu0 %v9024
  %9151 = vmatpush1.bf16.msra.mxu0 %v9023
  %9152 = vmatprep.subr.bf16.mxu0 %v9022
  %9153 = vmatpush1.bf16.msra.mxu0 %v9021
  %9154 = vmatprep.subr.bf16.mxu0 %v9020
  %9155 = vmatpush1.bf16.msra.mxu0 %v9019
  %9156 = vmatprep.subr.bf16.mxu0 %v9018
  %9157 = vmatpush1.bf16.msra.mxu0 %v9017
  %9158 = vmatprep.subr.bf16.mxu0 %v9016
  %9159 = vmatpush1.bf16.msra.mxu0 %v9015
  %9160 = vmatprep.subr.bf16.mxu0 %v9014
  %9161 = vmatpush1.bf16.msra.mxu0 %v9013
  %9162 = vmatprep.subr.bf16.mxu0 %v9012
  %9163 = vmatpush1.bf16.msra.mxu0 %v9011
  %9164 = vmatprep.subr.bf16.mxu0 %v9042
  %9165 = vmatpush2.bf16.msra.mxu0 %v9041
  %9166 = vmatprep.subr.bf16.mxu0 %v9040
  %9167 = vmatpush2.bf16.msra.mxu0 %v9039
  %9168 = vmatprep.subr.bf16.mxu0 %v9038
  %9169 = vmatpush2.bf16.msra.mxu0 %v9037
  %9170 = vmatprep.subr.bf16.mxu0 %v9036
  %9171 = vmatpush2.bf16.msra.mxu0 %v9035
  %9172 = vmatprep.subr.bf16.mxu0 %v9034
  %9173 = vmatpush2.bf16.msra.mxu0 %v9033
  %9174 = vmatprep.subr.bf16.mxu0 %v9032
  %9175 = vmatpush2.bf16.msra.mxu0 %v9031
  %9176 = vmatprep.subr.bf16.mxu0 %v9030
  %9177 = vmatpush2.bf16.msra.mxu0 %v9029
  %9178 = vmatprep.subr.bf16.mxu0 %v9028
  %9179 = vmatpush2.bf16.msra.mxu0 %v9027
  %9180 = vmatprep.mubr.bf16.mxu0 %v8721
  %9181 = vmatmul.mubr.bf16.gmra.mxu0 %v8720
  %v9182 = vpop.f32.mrf.mxu0
  %v9183 = vadd.f32 %v9142, %v9182
  %v9184 = vpop.f32.mrf.mxu0
  %v9185 = vadd.f32 %v9144, %v9184
  %v9186 = vpop.f32.mrf.mxu0
  %v9187 = vpop.f32.mrf.mxu0
  %9188 = vdwg.mxu0
  %v9189 = vadd.f32 %v8696, %v9183
  %v9190 = vadd.f32 %v8697, %v9185
  %v9191 = vld [vmem:[%s5] sm:$0x3]
  %v9192 = vld [vmem:[%s6] sm:$0x3]
  %v9193 = vsel %vm7043, %v9189, 0.0
  %v9194 = vrot.slane %v9193, 4
  %v9195 = vadd.f32 %v9193, %v9194
  %v9196 = vrot.slane %v9195, 2
  %v9197 = vadd.f32 %v9195, %v9196
  %v9198 = vrot.slane %v9197, 1
  %v9199 = vadd.f32 %v9197, %v9198
  %v9200 = vsel %vm7043, %v9190, 0.0
  %v9201 = vrot.slane %v9200, 4
  %v9202 = vadd.f32 %v9200, %v9201
  %v9203 = vrot.slane %v9202, 2
  %v9204 = vadd.f32 %v9202, %v9203
  %v9205 = vrot.slane %v9204, 1
  %v9206 = vadd.f32 %v9204, %v9205
  %v9207 = vmul.f32 %v9199, 0.5
  %v9208 = vmul.f32 %v9206, 0.5
  %v9209 = vsub.f32 %v9189, %v9207
  %v9210 = vsub.f32 %v9190, %v9208
  %v9211 = vmul.f32 %v9209, %v9209
  %v9212 = vmul.f32 %v9210, %v9210
  %v9213 = vsel %vm7043, %v9211, 0.0
  %v9214 = vrot.slane %v9213, 4
  %v9215 = vadd.f32 %v9213, %v9214
  %v9216 = vrot.slane %v9215, 2
  %v9217 = vadd.f32 %v9215, %v9216
  %v9218 = vrot.slane %v9217, 1
  %v9219 = vadd.f32 %v9217, %v9218
  %v9220 = vsel %vm7043, %v9212, 0.0
  %v9221 = vrot.slane %v9220, 4
  %v9222 = vadd.f32 %v9220, %v9221
  %v9223 = vrot.slane %v9222, 2
  %v9224 = vadd.f32 %v9222, %v9223
  %v9225 = vrot.slane %v9224, 1
  %v9226 = vadd.f32 %v9224, %v9225
  %v9227 = vmul.f32 %v9219, 0.5
  %v9228 = vmul.f32 %v9226, 0.5
  %v9229 = vadd.f32 %v9227, 1e-05
  %v9230 = vadd.f32 %v9228, 1e-05
  %v9231 = vrsqrt.pop %v9229
  %v9232 = vrsqrt.pop %v9230
  %v9233 = vmul.f32 %v9209, %v9231
  %v9234 = vmul.f32 %v9210, %v9232
  %v9236 = vlaneseq
  %v9237 = vshrl.u32 %v9236, 7
  %v9238 = vsub.s32 0, %v9237
  %v9239 = vrot.slane %v9191, %v9238
  %v9240 = vlaneseq
  %v9241 = vshrl.u32 %v9240, 7
  %v9242 = vsub.s32 1, %v9241
  %v9243 = vrot.slane %v9191, %v9242
  %v9246 = vmul.f32 %v9233, %v9239
  %v9247 = vmul.f32 %v9234, %v9243
  %v9249 = vlaneseq
  %v9250 = vshrl.u32 %v9249, 7
  %v9251 = vsub.s32 0, %v9250
  %v9252 = vrot.slane %v9192, %v9251
  %v9253 = vlaneseq
  %v9254 = vshrl.u32 %v9253, 7
  %v9255 = vsub.s32 1, %v9254
  %v9256 = vrot.slane %v9192, %v9255
  %v9259 = vadd.f32 %v9246, %v9252
  %v9260 = vadd.f32 %v9247, %v9256
  %vm9261 = vcmp.gt.f32.partialorder %v9259, 0.0
  %vm9262 = vcmp.gt.f32.partialorder %v9260, 0.0
  %v9263 = vmul.f32 %v9259, 0.01
  %v9264 = vmul.f32 %v9260, 0.01
  %v9265 = vsel %vm9261, %v9259, %v9263
  %v9266 = vsel %vm9262, %v9260, %v9264
  %v9267 = vpack.c.bf16 %v9265, %v9265
  %v9268 = vpack.c.bf16 %v9266, %v9266
  %v9269 = vld [vmem:[%s7] sm:$0xf]
  %v9270 = vld [vmem:[%s7 + $0x4] sm:$0xf]
  %v9271 = vld [vmem:[%s7 + $0x8] sm:$0xf]
  %v9272 = vld [vmem:[%s7 + $0xc] sm:$0xf]
  %v9273 = vld [vmem:[%s7 + $0x10] sm:$0xf]
  %v9274 = vld [vmem:[%s7 + $0x14] sm:$0xf]
  %v9275 = vld [vmem:[%s7 + $0x18] sm:$0xf]
  %v9276 = vld [vmem:[%s7 + $0x1c] sm:$0xf]
  %v9277 = vld [vmem:[%s7 + $0x20] sm:$0xf]
  %v9278 = vld [vmem:[%s7 + $0x24] sm:$0xf]
  %v9279 = vld [vmem:[%s7 + $0x28] sm:$0xf]
  %v9280 = vld [vmem:[%s7 + $0x2c] sm:$0xf]
  %v9281 = vld [vmem:[%s7 + $0x30] sm:$0xf]
  %v9282 = vld [vmem:[%s7 + $0x34] sm:$0xf]
  %v9283 = vld [vmem:[%s7 + $0x38] sm:$0xf]
  %v9284 = vld [vmem:[%s7 + $0x3c] sm:$0xf]
  %v9285 = vld [vmem:[%s7 + $0x40] sm:$0xf]
  %v9286 = vld [vmem:[%s7 + $0x44] sm:$0xf]
  %v9287 = vld [vmem:[%s7 + $0x48] sm:$0xf]
  %v9288 = vld [vmem:[%s7 + $0x4c] sm:$0xf]
  %v9289 = vld [vmem:[%s7 + $0x50] sm:$0xf]
  %v9290 = vld [vmem:[%s7 + $0x54] sm:$0xf]
  %v9291 = vld [vmem:[%s7 + $0x58] sm:$0xf]
  %v9292 = vld [vmem:[%s7 + $0x5c] sm:$0xf]
  %v9293 = vld [vmem:[%s7 + $0x60] sm:$0xf]
  %v9294 = vld [vmem:[%s7 + $0x64] sm:$0xf]
  %v9295 = vld [vmem:[%s7 + $0x68] sm:$0xf]
  %v9296 = vld [vmem:[%s7 + $0x6c] sm:$0xf]
  %v9297 = vld [vmem:[%s7 + $0x70] sm:$0xf]
  %v9298 = vld [vmem:[%s7 + $0x74] sm:$0xf]
  %v9299 = vld [vmem:[%s7 + $0x78] sm:$0xf]
  %v9300 = vld [vmem:[%s7 + $0x7c] sm:$0xf]
  %v9333 = vunpack.c.l.b16 %v9269
  %v9334 = vunpack.c.l.b16 %v9270
  %v9335 = vunpack.c.l.b16 %v9271
  %v9336 = vunpack.c.l.b16 %v9272
  %v9337 = vunpack.c.l.b16 %v9273
  %v9338 = vunpack.c.l.b16 %v9274
  %v9339 = vunpack.c.l.b16 %v9275
  %v9340 = vunpack.c.l.b16 %v9276
  %v9341 = vunpack.c.l.b16 %v9277
  %v9342 = vunpack.c.l.b16 %v9278
  %v9343 = vunpack.c.l.b16 %v9279
  %v9344 = vunpack.c.l.b16 %v9280
  %v9345 = vunpack.c.l.b16 %v9281
  %v9346 = vunpack.c.l.b16 %v9282
  %v9347 = vunpack.c.l.b16 %v9283
  %v9348 = vunpack.c.l.b16 %v9284
  %v9349 = vunpack.c.l.b16 %v9285
  %v9350 = vunpack.c.l.b16 %v9286
  %v9351 = vunpack.c.l.b16 %v9287
  %v9352 = vunpack.c.l.b16 %v9288
  %v9353 = vunpack.c.l.b16 %v9289
  %v9354 = vunpack.c.l.b16 %v9290
  %v9355 = vunpack.c.l.b16 %v9291
  %v9356 = vunpack.c.l.b16 %v9292
  %v9357 = vunpack.c.l.b16 %v9293
  %v9358 = vunpack.c.l.b16 %v9294
  %v9359 = vunpack.c.l.b16 %v9295
  %v9360 = vunpack.c.l.b16 %v9296
  %v9361 = vunpack.c.l.b16 %v9297
  %v9362 = vunpack.c.l.b16 %v9298
  %v9363 = vunpack.c.l.b16 %v9299
  %v9364 = vunpack.c.l.b16 %v9300
  %v9365 = vpack.c.b16 %v9334, %v9333
  %v9366 = vpack.c.b16 %v9336, %v9335
  %v9367 = vpack.c.b16 %v9338, %v9337
  %v9368 = vpack.c.b16 %v9340, %v9339
  %v9369 = vpack.c.b16 %v9342, %v9341
  %v9370 = vpack.c.b16 %v9344, %v9343
  %v9371 = vpack.c.b16 %v9346, %v9345
  %v9372 = vpack.c.b16 %v9348, %v9347
  %v9373 = vpack.c.b16 %v9350, %v9349
  %v9374 = vpack.c.b16 %v9352, %v9351
  %v9375 = vpack.c.b16 %v9354, %v9353
  %v9376 = vpack.c.b16 %v9356, %v9355
  %v9377 = vpack.c.b16 %v9358, %v9357
  %v9378 = vpack.c.b16 %v9360, %v9359
  %v9379 = vpack.c.b16 %v9362, %v9361
  %v9380 = vpack.c.b16 %v9364, %v9363
  %9397 = vmatprep.subr.bf16.mxu0 0
  %9398 = vmatpush1.bf16.msra.mxu0 %v9372
  %9399 = vmatprep.subr.bf16.mxu0 0
  %9400 = vmatpush1.bf16.msra.mxu0 %v9371
  %9401 = vmatprep.subr.bf16.mxu0 0
  %9402 = vmatpush1.bf16.msra.mxu0 %v9370
  %9403 = vmatprep.subr.bf16.mxu0 0
  %9404 = vmatpush1.bf16.msra.mxu0 %v9369
  %9405 = vmatprep.subr.bf16.mxu0 0
  %9406 = vmatpush1.bf16.msra.mxu0 %v9368
  %9407 = vmatprep.subr.bf16.mxu0 0
  %9408 = vmatpush1.bf16.msra.mxu0 %v9367
  %9409 = vmatprep.subr.bf16.mxu0 0
  %9410 = vmatpush1.bf16.msra.mxu0 %v9366
  %9411 = vmatprep.subr.bf16.mxu0 0
  %9412 = vmatpush1.bf16.msra.mxu0 %v9365
  %9413 = vmatprep.subr.bf16.mxu0 0
  %9414 = vmatpush2.bf16.msra.mxu0 %v9380
  %9415 = vmatprep.subr.bf16.mxu0 0
  %9416 = vmatpush2.bf16.msra.mxu0 %v9379
  %9417 = vmatprep.subr.bf16.mxu0 0
  %9418 = vmatpush2.bf16.msra.mxu0 %v9378
  %9419 = vmatprep.subr.bf16.mxu0 0
  %9420 = vmatpush2.bf16.msra.mxu0 %v9377
  %9421 = vmatprep.subr.bf16.mxu0 0
  %9422 = vmatpush2.bf16.msra.mxu0 %v9376
  %9423 = vmatprep.subr.bf16.mxu0 0
  %9424 = vmatpush2.bf16.msra.mxu0 %v9375
  %9425 = vmatprep.subr.bf16.mxu0 0
  %9426 = vmatpush2.bf16.msra.mxu0 %v9374
  %9427 = vmatprep.subr.bf16.mxu0 0
  %9428 = vmatpush2.bf16.msra.mxu0 %v9373
  %9429 = vmatprep.mubr.bf16.mxu0 %v9268
  %9430 = vmatmul.mubr.bf16.gmra.mxu0 %v9267
  %v9431 = vpop.f32.mrf.mxu0
  %v9432 = vadd.f32 0.0, %v9431
  %v9433 = vpop.f32.mrf.mxu0
  %v9434 = vpop.f32.mrf.mxu0
  %v9435 = vpop.f32.mrf.mxu0
  %9436 = vdwg.mxu0
  %v9437 = vld [vmem:[%s8] sm:$0x1]
  %v9438 = vld [vmem:[%s9] sm:$0x1]
  %v9439 = vsel %vm7043, %v9432, 0.0
  %v9440 = vrot.slane %v9439, 4
  %v9441 = vadd.f32 %v9439, %v9440
  %v9442 = vrot.slane %v9441, 2
  %v9443 = vadd.f32 %v9441, %v9442
  %v9444 = vrot.slane %v9443, 1
  %v9445 = vadd.f32 %v9443, %v9444
  %v9446 = vmul.f32 %v9445, 0.5
  %v9447 = vsub.f32 %v9432, %v9446
  %v9448 = vmul.f32 %v9447, %v9447
  %v9449 = vsel %vm7043, %v9448, 0.0
  %v9450 = vrot.slane %v9449, 4
  %v9451 = vadd.f32 %v9449, %v9450
  %v9452 = vrot.slane %v9451, 2
  %v9453 = vadd.f32 %v9451, %v9452
  %v9454 = vrot.slane %v9453, 1
  %v9455 = vadd.f32 %v9453, %v9454
  %v9456 = vmul.f32 %v9455, 0.5
  %v9457 = vadd.f32 %v9456, 1e-05
  %v9458 = vrsqrt.pop %v9457
  %v9459 = vmul.f32 %v9447, %v9458
  %v9461 = vlaneseq
  %v9462 = vshrl.u32 %v9461, 7
  %v9463 = vsub.s32 0, %v9462
  %v9464 = vrot.slane %v9437, %v9463
  %v9466 = vmul.f32 %v9459, %v9464
  %v9468 = vlaneseq
  %v9469 = vshrl.u32 %v9468, 7
  %v9470 = vsub.s32 0, %v9469
  %v9471 = vrot.slane %v9438, %v9470
  %v9473 = vadd.f32 %v9466, %v9471
  %vm9474 = vcmp.gt.f32.partialorder %v9473, 0.0
  %v9475 = vmul.f32 %v9473, 0.01
  %v9476 = vsel %vm9474, %v9473, %v9475
  %v9477 = vld [vmem:[%s10] sm:$0x1]
  %v9479 = vlaneseq
  %v9480 = vshrl.u32 %v9479, 7
  %v9481 = vsub.s32 0, %v9480
  %v9482 = vrot.slane %v9477, %v9481
  %v9484 = vmul.f32 %v9476, %v9482
  %v9485 = vsel %vm7043, %v9484, 0.0
  %9486 = vadd.xlane.f32.xlu0 %v9485
  %v9487 = vpop.xlane.xlu0 %9486
  %v9488 = vld [vmem:[#allocation2] sm:$0x1]
  %v9490 = vlaneseq
  %v9491 = vshrl.u32 %v9490, 7
  %v9492 = vsub.s32 0, %v9491
  %v9493 = vrot.slane %v9488, %v9492
  %v9495 = vadd.f32 %v9487, %v9493
  %v9496 = vsub.f32 0.0, %v9495
  %v9497 = vmul.f32 %v9496, 1.442695
  %v9498 = vpow.pop %v9497
  %v9499 = vadd.f32 %v9498, 1.0
  %v9500 = vrcp.pop %v9499
  %v9501 = vmul.f32 1.0, %v9500
  %vm9502 = vcmask 1024
  %9503 = vst.msk [vmem:[%s12] sm:$0x3] %vm9502, %v9501
  // Predicated region
  $region50: #{discriminator_forward.7} parent=0 // pred_check
    _
  $region51: #{discriminator_forward.7} parent=0 // pred_check_branch
    %9505 = sbr.rel (0) target = $region53
  $region52: #{discriminator_forward.7} parent=0 // pred_region
    _
  $region53: #{discriminator_forward.7} parent=0 // pred_fallthru
    _
  // Predicated region
  $region54: #{discriminator_forward.7} parent=0 // pred_check
    _
  $region55: #{discriminator_forward.7} parent=0 // pred_check_branch
    %9507 = sbr.rel (0) target = $region57
  $region56: #{discriminator_forward.7} parent=0 // pred_region
    _
  $region57: #{discriminator_forward.7} parent=0 // pred_fallthru
    _

</llo_original>
